<compile_context>
chip_gen: v7x
topology: tpu7x:2x2x1
jax: 0.10.0
libtpu: 0.0.40
codegen_flags: <defaults>
</compile_context>

<pallas_src>
import jax
import jax.numpy as jnp
from jax import lax
from jax.experimental import pallas as pl
from jax.experimental.pallas import tpu as pltpu


# ----------------------------------------------------------------------------
# Pallas kernel: the full Generator forward as six fused VMEM-resident GEMMs
# ----------------------------------------------------------------------------
def _generator_kernel(x_ref,
                      m0, sb0, m1, sb1, m2, sb2, m3, sb3, m4, sb4, m5, sb5,
                      o_ref):
    def dense(h, m_ref, sb_ref, act):
        # int8 weights -> bf16 (exact for |v| <= 127) -> MXU, f32 accumulate.
        w = m_ref[...].astype(jnp.bfloat16)
        acc = jnp.dot(h.astype(jnp.bfloat16), w,
                      preferred_element_type=jnp.float32)
        # Per-output-column dequant scale + bias, f32 epilogue (v5e-safe).
        acc = acc * sb_ref[0:1, :] + sb_ref[1:2, :]
        if act == "relu":
            return jnp.maximum(acc, 0.0)
        return jax.nn.sigmoid(acc)

    h = x_ref[...]                                # (B, latent) f32
    h = dense(h, m0, sb0, "relu")                 # Linear                   -> (B, 4*4*4*dim)
    h = dense(h, m1, sb1, "relu")                 # ConvT(4d,2d,5)           -> (B, 2d*8*8)
    h = dense(h, m2, sb2, "relu")                 # Conv(2d,2d,3,p=1)+crop   -> (B, 2d*7*7)
    h = dense(h, m3, sb3, "relu")                 # ConvT(2d,d,5)            -> (B, d*11*11)
    h = dense(h, m4, sb4, "relu")                 # Conv(d,d,3,p=1)          -> (B, d*11*11)
    o_ref[...] = dense(h, m5, sb5, "sigmoid")     # ConvT(d,1,8,s=2)+sigmoid -> (B, 28*28)


def generator_forward(flat_params, x):
    """x: (B, latent_dim) f32. flat_params: tuple (m0_q, sb0, ..., m5_q, sb5)."""
    B = x.shape[0]
    args = (x,) + tuple(flat_params)
    full = lambda i: (0, 0)                       # all operands 2-D, one block
    in_specs = [pl.BlockSpec(a.shape, full) for a in args]

    # Advisory cost estimate so XLA can overlap the (dominant) weight fetch.
    flops = 0
    bytes_accessed = x.size * x.dtype.itemsize + B * 28 * 28 * 4
    for idx in range(0, len(flat_params), 2):
        m = flat_params[idx]
        sb = flat_params[idx + 1]
        flops += 2 * B * m.shape[0] * m.shape[1]
        bytes_accessed += m.size * m.dtype.itemsize
        bytes_accessed += sb.size * sb.dtype.itemsize

    out = pl.pallas_call(
        _generator_kernel,
        out_shape=jax.ShapeDtypeStruct((B, 28 * 28), jnp.float32),
        grid=(1,),
        in_specs=in_specs,
        out_specs=pl.BlockSpec((B, 28 * 28), full),
        compiler_params=pltpu.CompilerParams(
            dimension_semantics=("arbitrary",)),
        cost_estimate=pl.CostEstimate(
            flops=int(flops),
            transcendentals=int(B * 28 * 28),
            bytes_accessed=int(bytes_accessed)),
    )(*args)
    return out.reshape(B, 1, 28, 28)


# ----------------------------------------------------------------------------
# Init-time weight preprocessing: compose each layer into a dense matrix over
# the NCHW-flattened activation, then int8-quantize with per-column scales.
# Runs ONCE at init, outside the hot path.
# ----------------------------------------------------------------------------
def _conv2d_op(w, padding):
    """PyTorch Conv2d (stride=1) as an NCHW linear op. w: (Cout, Cin, kh, kw)."""
    def op(x):
        return lax.conv_general_dilated(
            x, w, window_strides=(1, 1),
            padding=[(padding, padding), (padding, padding)],
            dimension_numbers=("NCHW", "OIHW", "NCHW"))
    return op


def _conv_transpose2d_op(w, stride):
    """PyTorch ConvTranspose2d (padding=0) as an NCHW linear op.
    w: (Cin, Cout, kh, kw). Equals a full conv of the spatially-flipped,
    in/out-swapped kernel over the stride-dilated input."""
    kh, kw = w.shape[2], w.shape[3]
    w_conv = jnp.flip(w, axis=(2, 3)).transpose(1, 0, 2, 3)   # (Cout, Cin, kh, kw)

    def op(x):
        return lax.conv_general_dilated(
            x, w_conv, window_strides=(1, 1),
            padding=[(kh - 1, kh - 1), (kw - 1, kw - 1)],
            lhs_dilation=(stride, stride),
            dimension_numbers=("NCHW", "OIHW", "NCHW"))
    return op


def _layer_matrix(op, in_shape):
    """Dense (Din, Dout) matrix of a linear NCHW op via the identity basis."""
    c, h, w = in_shape
    din = c * h * w
    basis = jnp.eye(din, dtype=jnp.float32).reshape(din, c, h, w)
    out = op(basis)                               # (Din, Cout, Hout, Wout)
    return out.reshape(din, -1), out.shape[1:]


def _quantize_layer(m, b):
    """int8 weights + packed (2, Dout) f32 [scale; bias]."""
    scale = jnp.maximum(jnp.max(jnp.abs(m), axis=0), 1e-8) / 127.0
    m_q = jnp.clip(jnp.round(m / scale), -127, 127).astype(jnp.int8)
    sb = jnp.stack([scale, b]).astype(jnp.float32)            # (2, Dout)
    return m_q, sb


def preprocess_params(params, dim):
    layers = []

    # preprocess: Linear(latent, 4*4*4*dim); its .view(-1, 4d, 4, 4) already
    # matches the NCHW-flat ordering used for every conv matrix below.
    layers.append((params["lin_w"].T, params["lin_b"]))
    shape = (4 * dim, 4, 4)

    # block1: ConvTranspose2d(4d, 2d, 5) ; Conv2d(2d, 2d, 3, pad=1) ; crop :7,:7
    m, shape = _layer_matrix(_conv_transpose2d_op(params["b1_dw"], 1), shape)
    layers.append((m, jnp.repeat(params["b1_db"], shape[1] * shape[2])))
    m, shape = _layer_matrix(_conv2d_op(params["b1_cw"], 1), shape)
    b = jnp.repeat(params["b1_cb"], shape[1] * shape[2])
    c, hh, ww = shape                             # fold the [:, :, :7, :7] crop
    m = m.reshape(-1, c, hh, ww)[:, :, :7, :7].reshape(m.shape[0], -1)
    b = b.reshape(c, hh, ww)[:, :7, :7].reshape(-1)
    shape = (c, 7, 7)
    layers.append((m, b))

    # block2: ConvTranspose2d(2d, d, 5) ; Conv2d(d, d, 3, pad=1)
    m, shape = _layer_matrix(_conv_transpose2d_op(params["b2_dw"], 1), shape)
    layers.append((m, jnp.repeat(params["b2_db"], shape[1] * shape[2])))
    m, shape = _layer_matrix(_conv2d_op(params["b2_cw"], 1), shape)
    layers.append((m, jnp.repeat(params["b2_cb"], shape[1] * shape[2])))

    # deconv_out: ConvTranspose2d(d, 1, 8, stride=2)
    m, shape = _layer_matrix(_conv_transpose2d_op(params["out_dw"], 2), shape)
    layers.append((m, jnp.repeat(params["out_db"], shape[1] * shape[2])))
    assert tuple(shape) == (1, 28, 28), shape

    flat = []
    for m, b in layers:
        m_q, sb = _quantize_layer(m, b)
        flat.append(m_q)                          # int8  (Din, Dout) weights
        flat.append(sb)                           # f32   (2, Dout) [scale; bias]
    return tuple(flat)


# ----------------------------------------------------------------------------
# Generator parameters (deterministic synthetic init, PyTorch layouts)
# ----------------------------------------------------------------------------
def init_generator_params(key, latent_dim, dim):
    ks = jax.random.split(key, 12)
    s = 0.05

    def nrm(k, shape):
        return (s * jax.random.normal(k, shape)).astype(jnp.float32)

    return {
        # preprocess: Linear(latent_dim, 4*4*4*dim)
        "lin_w": nrm(ks[0], (4 * 4 * 4 * dim, latent_dim)),
        "lin_b": nrm(ks[1], (4 * 4 * 4 * dim,)),
        # block1: ConvTranspose2d(4d, 2d, 5), Conv2d(2d, 2d, 3, pad=1)
        "b1_dw": nrm(ks[2], (4 * dim, 2 * dim, 5, 5)),
        "b1_db": nrm(ks[3], (2 * dim,)),
        "b1_cw": nrm(ks[4], (2 * dim, 2 * dim, 3, 3)),
        "b1_cb": nrm(ks[5], (2 * dim,)),
        # block2: ConvTranspose2d(2d, d, 5), Conv2d(d, d, 3, pad=1)
        "b2_dw": nrm(ks[6], (2 * dim, dim, 5, 5)),
        "b2_db": nrm(ks[7], (dim,)),
        "b2_cw": nrm(ks[8], (dim, dim, 3, 3)),
        "b2_cb": nrm(ks[9], (dim,)),
        # deconv_out: ConvTranspose2d(dim, 1, 8, stride=2)
        "out_dw": nrm(ks[10], (dim, 1, 8, 8)),
        "out_db": nrm(ks[11], (1,)),
    }


# ----------------------------------------------------------------------------
# Pure-JAX f32 reference of the PyTorch module (for a numerical check only)
# ----------------------------------------------------------------------------
def reference_forward(params, x, dim):
    B = x.shape[0]
    out = jnp.maximum(x @ params["lin_w"].T + params["lin_b"], 0.0)
    out = out.reshape(B, 4 * dim, 4, 4)
    out = jnp.maximum(_conv_transpose2d_op(params["b1_dw"], 1)(out)
                      + params["b1_db"][None, :, None, None], 0.0)
    out = jnp.maximum(_conv2d_op(params["b1_cw"], 1)(out)
                      + params["b1_cb"][None, :, None, None], 0.0)
    out = out[:, :, :7, :7]
    out = jnp.maximum(_conv_transpose2d_op(params["b2_dw"], 1)(out)
                      + params["b2_db"][None, :, None, None], 0.0)
    out = jnp.maximum(_conv2d_op(params["b2_cw"], 1)(out)
                      + params["b2_cb"][None, :, None, None], 0.0)
    out = (_conv_transpose2d_op(params["out_dw"], 2)(out)
           + params["out_db"][None, :, None, None])
    return jax.nn.sigmoid(out).reshape(B, 1, 28, 28)


if __name__ == "__main__":
    latent_dim = 16
    dim = 8
    batch = 2

    key = jax.random.PRNGKey(0)
    k_params, k_x = jax.random.split(key)
    params = init_generator_params(k_params, latent_dim, dim)
    x = jax.random.normal(k_x, (batch, latent_dim), dtype=jnp.float32)

    # One-time weight preprocessing + int8 quantization (outside the hot path).
    flat_params = preprocess_params(params, dim)

    fwd = jax.jit(generator_forward)
    y = jax.block_until_ready(fwd(flat_params, x))

    assert y.shape == (batch, 1, 28, 28), y.shape
    assert bool(jnp.all(jnp.isfinite(y)))
    assert bool(jnp.all((y >= 0.0) & (y <= 1.0)))      # sigmoid output range

    # Parity with the PyTorch-semantics f32 reference.  Kernel uses int8
    # weights (per-column scales) + bf16 activations across six chained
    # GEMMs -> loose but meaningful tolerance on the sigmoid output.
    y_ref = reference_forward(params, x, dim)
    assert bool(jnp.max(jnp.abs(y - y_ref)) < 5e-2)
    print("KERNEL_OK")
</pallas_src>

<mosaic_0001>
module attributes {stable_mosaic.version = 11 : i64} {
  func.func @_generator_kernel(%arg0: i32, %arg1: memref<2x16xf32, #tpu.memory_space<vmem>>, %arg2: memref<16x512xi8, #tpu.memory_space<vmem>>, %arg3: memref<2x512xf32, #tpu.memory_space<vmem>>, %arg4: memref<512x1024xi8, #tpu.memory_space<vmem>>, %arg5: memref<2x1024xf32, #tpu.memory_space<vmem>>, %arg6: memref<1024x784xi8, #tpu.memory_space<vmem>>, %arg7: memref<2x784xf32, #tpu.memory_space<vmem>>, %arg8: memref<784x968xi8, #tpu.memory_space<vmem>>, %arg9: memref<2x968xf32, #tpu.memory_space<vmem>>, %arg10: memref<968x968xi8, #tpu.memory_space<vmem>>, %arg11: memref<2x968xf32, #tpu.memory_space<vmem>>, %arg12: memref<968x784xi8, #tpu.memory_space<vmem>>, %arg13: memref<2x784xf32, #tpu.memory_space<vmem>>, %arg14: memref<2x784xf32, #tpu.memory_space<vmem>>) attributes {dimension_semantics = [#tpu.dimension_semantics<arbitrary>], iteration_bounds = array<i64: 1>, scalar_prefetch = 0 : i64, scratch_operands = 0 : i64, tpu.core_type = #tpu.core_type<tc>, window_params = [{pipeline_mode = #tpu.pipeline_mode<synchronous>, transform_indices = @transform_0, window_bounds = array<i64: 2, 16>}, {pipeline_mode = #tpu.pipeline_mode<synchronous>, transform_indices = @transform_1, window_bounds = array<i64: 16, 512>}, {pipeline_mode = #tpu.pipeline_mode<synchronous>, transform_indices = @transform_2, window_bounds = array<i64: 2, 512>}, {pipeline_mode = #tpu.pipeline_mode<synchronous>, transform_indices = @transform_3, window_bounds = array<i64: 512, 1024>}, {pipeline_mode = #tpu.pipeline_mode<synchronous>, transform_indices = @transform_4, window_bounds = array<i64: 2, 1024>}, {pipeline_mode = #tpu.pipeline_mode<synchronous>, transform_indices = @transform_5, window_bounds = array<i64: 1024, 784>}, {pipeline_mode = #tpu.pipeline_mode<synchronous>, transform_indices = @transform_6, window_bounds = array<i64: 2, 784>}, {pipeline_mode = #tpu.pipeline_mode<synchronous>, transform_indices = @transform_7, window_bounds = array<i64: 784, 968>}, {pipeline_mode = #tpu.pipeline_mode<synchronous>, transform_indices = @transform_8, window_bounds = array<i64: 2, 968>}, {pipeline_mode = #tpu.pipeline_mode<synchronous>, transform_indices = @transform_9, window_bounds = array<i64: 968, 968>}, {pipeline_mode = #tpu.pipeline_mode<synchronous>, transform_indices = @transform_10, window_bounds = array<i64: 2, 968>}, {pipeline_mode = #tpu.pipeline_mode<synchronous>, transform_indices = @transform_11, window_bounds = array<i64: 968, 784>}, {pipeline_mode = #tpu.pipeline_mode<synchronous>, transform_indices = @transform_12, window_bounds = array<i64: 2, 784>}, {pipeline_mode = #tpu.pipeline_mode<synchronous>, transform_indices = @transform_13, window_bounds = array<i64: 2, 784>}]} {
    %c0 = arith.constant 0 : index
    %c0_0 = arith.constant 0 : index
    %0 = vector.load %arg1[%c0, %c0_0] : memref<2x16xf32, #tpu.memory_space<vmem>>, vector<2x16xf32>
    %c0_1 = arith.constant 0 : index
    %c0_2 = arith.constant 0 : index
    %1 = vector.load %arg2[%c0_1, %c0_2] : memref<16x512xi8, #tpu.memory_space<vmem>>, vector<16x512xi8>
    %2 = arith.sitofp %1 : vector<16x512xi8> to vector<16x512xbf16>
    %3 = arith.truncf %0 : vector<2x16xf32> to vector<2x16xbf16>
    %cst = arith.constant dense<0.000000e+00> : vector<2x512xf32>
    %4 = tpu.matmul %3, %2, %cst {dimension_numbers = #tpu.dot_dimension_numbers<[1], [0], [0], [1], [0, 0, 1, 1], [], []>} : vector<2x16xbf16>, vector<16x512xbf16>, vector<2x512xf32> -> vector<2x512xf32>
    %c0_3 = arith.constant 0 : index
    %c0_4 = arith.constant 0 : index
    %5 = vector.load %arg3[%c0_3, %c0_4] : memref<2x512xf32, #tpu.memory_space<vmem>>, vector<1x512xf32>
    %6 = vector.broadcast %5 : vector<1x512xf32> to vector<2x512xf32>
    %7 = arith.mulf %4, %6 : vector<2x512xf32>
    %c1 = arith.constant 1 : index
    %c0_5 = arith.constant 0 : index
    %8 = vector.load %arg3[%c1, %c0_5] : memref<2x512xf32, #tpu.memory_space<vmem>>, vector<1x512xf32>
    %9 = vector.broadcast %8 : vector<1x512xf32> to vector<2x512xf32>
    %10 = arith.addf %7, %9 : vector<2x512xf32>
    %cst_6 = arith.constant 0.000000e+00 : f32
    %11 = vector.broadcast %cst_6 : f32 to vector<2x512xf32>
    %12 = arith.maximumf %10, %11 : vector<2x512xf32>
    %c0_7 = arith.constant 0 : index
    %c0_8 = arith.constant 0 : index
    %13 = vector.load %arg4[%c0_7, %c0_8] : memref<512x1024xi8, #tpu.memory_space<vmem>>, vector<512x1024xi8>
    %14 = arith.sitofp %13 : vector<512x1024xi8> to vector<512x1024xbf16>
    %15 = arith.truncf %12 : vector<2x512xf32> to vector<2x512xbf16>
    %cst_9 = arith.constant dense<0.000000e+00> : vector<2x1024xf32>
    %16 = tpu.matmul %15, %14, %cst_9 {dimension_numbers = #tpu.dot_dimension_numbers<[1], [0], [0], [1], [0, 0, 1, 1], [], []>} : vector<2x512xbf16>, vector<512x1024xbf16>, vector<2x1024xf32> -> vector<2x1024xf32>
    %c0_10 = arith.constant 0 : index
    %c0_11 = arith.constant 0 : index
    %17 = vector.load %arg5[%c0_10, %c0_11] : memref<2x1024xf32, #tpu.memory_space<vmem>>, vector<1x1024xf32>
    %18 = vector.broadcast %17 : vector<1x1024xf32> to vector<2x1024xf32>
    %19 = arith.mulf %16, %18 : vector<2x1024xf32>
    %c1_12 = arith.constant 1 : index
    %c0_13 = arith.constant 0 : index
    %20 = vector.load %arg5[%c1_12, %c0_13] : memref<2x1024xf32, #tpu.memory_space<vmem>>, vector<1x1024xf32>
    %21 = vector.broadcast %20 : vector<1x1024xf32> to vector<2x1024xf32>
    %22 = arith.addf %19, %21 : vector<2x1024xf32>
    %cst_14 = arith.constant 0.000000e+00 : f32
    %23 = vector.broadcast %cst_14 : f32 to vector<2x1024xf32>
    %24 = arith.maximumf %22, %23 : vector<2x1024xf32>
    %c0_15 = arith.constant 0 : index
    %c0_16 = arith.constant 0 : index
    %25 = vector.load %arg6[%c0_15, %c0_16] : memref<1024x784xi8, #tpu.memory_space<vmem>>, vector<1024x784xi8>
    %26 = arith.sitofp %25 : vector<1024x784xi8> to vector<1024x784xbf16>
    %27 = arith.truncf %24 : vector<2x1024xf32> to vector<2x1024xbf16>
    %cst_17 = arith.constant dense<0.000000e+00> : vector<2x784xf32>
    %28 = tpu.matmul %27, %26, %cst_17 {dimension_numbers = #tpu.dot_dimension_numbers<[1], [0], [0], [1], [0, 0, 1, 1], [], []>} : vector<2x1024xbf16>, vector<1024x784xbf16>, vector<2x784xf32> -> vector<2x784xf32>
    %c0_18 = arith.constant 0 : index
    %c0_19 = arith.constant 0 : index
    %29 = vector.load %arg7[%c0_18, %c0_19] : memref<2x784xf32, #tpu.memory_space<vmem>>, vector<1x784xf32>
    %30 = vector.broadcast %29 : vector<1x784xf32> to vector<2x784xf32>
    %31 = arith.mulf %28, %30 : vector<2x784xf32>
    %c1_20 = arith.constant 1 : index
    %c0_21 = arith.constant 0 : index
    %32 = vector.load %arg7[%c1_20, %c0_21] : memref<2x784xf32, #tpu.memory_space<vmem>>, vector<1x784xf32>
    %33 = vector.broadcast %32 : vector<1x784xf32> to vector<2x784xf32>
    %34 = arith.addf %31, %33 : vector<2x784xf32>
    %cst_22 = arith.constant 0.000000e+00 : f32
    %35 = vector.broadcast %cst_22 : f32 to vector<2x784xf32>
    %36 = arith.maximumf %34, %35 : vector<2x784xf32>
    %c0_23 = arith.constant 0 : index
    %c0_24 = arith.constant 0 : index
    %37 = vector.load %arg8[%c0_23, %c0_24] : memref<784x968xi8, #tpu.memory_space<vmem>>, vector<784x968xi8>
    %38 = arith.sitofp %37 : vector<784x968xi8> to vector<784x968xbf16>
    %39 = arith.truncf %36 : vector<2x784xf32> to vector<2x784xbf16>
    %cst_25 = arith.constant dense<0.000000e+00> : vector<2x968xf32>
    %40 = tpu.matmul %39, %38, %cst_25 {dimension_numbers = #tpu.dot_dimension_numbers<[1], [0], [0], [1], [0, 0, 1, 1], [], []>} : vector<2x784xbf16>, vector<784x968xbf16>, vector<2x968xf32> -> vector<2x968xf32>
    %c0_26 = arith.constant 0 : index
    %c0_27 = arith.constant 0 : index
    %41 = vector.load %arg9[%c0_26, %c0_27] : memref<2x968xf32, #tpu.memory_space<vmem>>, vector<1x968xf32>
    %42 = vector.broadcast %41 : vector<1x968xf32> to vector<2x968xf32>
    %43 = arith.mulf %40, %42 : vector<2x968xf32>
    %c1_28 = arith.constant 1 : index
    %c0_29 = arith.constant 0 : index
    %44 = vector.load %arg9[%c1_28, %c0_29] : memref<2x968xf32, #tpu.memory_space<vmem>>, vector<1x968xf32>
    %45 = vector.broadcast %44 : vector<1x968xf32> to vector<2x968xf32>
    %46 = arith.addf %43, %45 : vector<2x968xf32>
    %cst_30 = arith.constant 0.000000e+00 : f32
    %47 = vector.broadcast %cst_30 : f32 to vector<2x968xf32>
    %48 = arith.maximumf %46, %47 : vector<2x968xf32>
    %c0_31 = arith.constant 0 : index
    %c0_32 = arith.constant 0 : index
    %49 = vector.load %arg10[%c0_31, %c0_32] : memref<968x968xi8, #tpu.memory_space<vmem>>, vector<968x968xi8>
    %50 = arith.sitofp %49 : vector<968x968xi8> to vector<968x968xbf16>
    %51 = arith.truncf %48 : vector<2x968xf32> to vector<2x968xbf16>
    %cst_33 = arith.constant dense<0.000000e+00> : vector<2x968xf32>
    %52 = tpu.matmul %51, %50, %cst_33 {dimension_numbers = #tpu.dot_dimension_numbers<[1], [0], [0], [1], [0, 0, 1, 1], [], []>} : vector<2x968xbf16>, vector<968x968xbf16>, vector<2x968xf32> -> vector<2x968xf32>
    %c0_34 = arith.constant 0 : index
    %c0_35 = arith.constant 0 : index
    %53 = vector.load %arg11[%c0_34, %c0_35] : memref<2x968xf32, #tpu.memory_space<vmem>>, vector<1x968xf32>
    %54 = vector.broadcast %53 : vector<1x968xf32> to vector<2x968xf32>
    %55 = arith.mulf %52, %54 : vector<2x968xf32>
    %c1_36 = arith.constant 1 : index
    %c0_37 = arith.constant 0 : index
    %56 = vector.load %arg11[%c1_36, %c0_37] : memref<2x968xf32, #tpu.memory_space<vmem>>, vector<1x968xf32>
    %57 = vector.broadcast %56 : vector<1x968xf32> to vector<2x968xf32>
    %58 = arith.addf %55, %57 : vector<2x968xf32>
    %cst_38 = arith.constant 0.000000e+00 : f32
    %59 = vector.broadcast %cst_38 : f32 to vector<2x968xf32>
    %60 = arith.maximumf %58, %59 : vector<2x968xf32>
    %c0_39 = arith.constant 0 : index
    %c0_40 = arith.constant 0 : index
    %61 = vector.load %arg12[%c0_39, %c0_40] : memref<968x784xi8, #tpu.memory_space<vmem>>, vector<968x784xi8>
    %62 = arith.sitofp %61 : vector<968x784xi8> to vector<968x784xbf16>
    %63 = arith.truncf %60 : vector<2x968xf32> to vector<2x968xbf16>
    %cst_41 = arith.constant dense<0.000000e+00> : vector<2x784xf32>
    %64 = tpu.matmul %63, %62, %cst_41 {dimension_numbers = #tpu.dot_dimension_numbers<[1], [0], [0], [1], [0, 0, 1, 1], [], []>} : vector<2x968xbf16>, vector<968x784xbf16>, vector<2x784xf32> -> vector<2x784xf32>
    %c0_42 = arith.constant 0 : index
    %c0_43 = arith.constant 0 : index
    %65 = vector.load %arg13[%c0_42, %c0_43] : memref<2x784xf32, #tpu.memory_space<vmem>>, vector<1x784xf32>
    %66 = vector.broadcast %65 : vector<1x784xf32> to vector<2x784xf32>
    %67 = arith.mulf %64, %66 : vector<2x784xf32>
    %c1_44 = arith.constant 1 : index
    %c0_45 = arith.constant 0 : index
    %68 = vector.load %arg13[%c1_44, %c0_45] : memref<2x784xf32, #tpu.memory_space<vmem>>, vector<1x784xf32>
    %69 = vector.broadcast %68 : vector<1x784xf32> to vector<2x784xf32>
    %70 = arith.addf %67, %69 : vector<2x784xf32>
    %71 = arith.negf %70 : vector<2x784xf32>
    %72 = math.exp %71 : vector<2x784xf32>
    %cst_46 = arith.constant 1.000000e+00 : f32
    %73 = vector.broadcast %cst_46 : f32 to vector<2x784xf32>
    %74 = arith.addf %73, %72 : vector<2x784xf32>
    %75 = arith.divf %73, %74 : vector<2x784xf32>
    %c0_47 = arith.constant 0 : index
    %c0_48 = arith.constant 0 : index
    %76 = vector.load %arg14[%c0_47, %c0_48] : memref<2x784xf32, #tpu.memory_space<vmem>>, vector<2x784xf32>
    tpu.vector_store %arg14[%c0_47, %c0_48], %75 {strides = array<i32>} : memref<2x784xf32, #tpu.memory_space<vmem>>, vector<2x784xf32>,
    return
  }
  func.func @transform_0(%arg0: i32) -> (i32, i32) {
    %c0_i32 = arith.constant 0 : i32
    %c0_i32_0 = arith.constant 0 : i32
    %c0_i32_1 = arith.constant 0 : i32
    return %c0_i32, %c0_i32_0 : i32, i32
  }
  func.func @transform_1(%arg0: i32) -> (i32, i32) {
    %c0_i32 = arith.constant 0 : i32
    %c0_i32_0 = arith.constant 0 : i32
    %c0_i32_1 = arith.constant 0 : i32
    return %c0_i32, %c0_i32_0 : i32, i32
  }
  func.func @transform_2(%arg0: i32) -> (i32, i32) {
    %c0_i32 = arith.constant 0 : i32
    %c0_i32_0 = arith.constant 0 : i32
    %c0_i32_1 = arith.constant 0 : i32
    return %c0_i32, %c0_i32_0 : i32, i32
  }
  func.func @transform_3(%arg0: i32) -> (i32, i32) {
    %c0_i32 = arith.constant 0 : i32
    %c0_i32_0 = arith.constant 0 : i32
    %c0_i32_1 = arith.constant 0 : i32
    return %c0_i32, %c0_i32_0 : i32, i32
  }
  func.func @transform_4(%arg0: i32) -> (i32, i32) {
    %c0_i32 = arith.constant 0 : i32
    %c0_i32_0 = arith.constant 0 : i32
    %c0_i32_1 = arith.constant 0 : i32
    return %c0_i32, %c0_i32_0 : i32, i32
  }
  func.func @transform_5(%arg0: i32) -> (i32, i32) {
    %c0_i32 = arith.constant 0 : i32
    %c0_i32_0 = arith.constant 0 : i32
    %c0_i32_1 = arith.constant 0 : i32
    return %c0_i32, %c0_i32_0 : i32, i32
  }
  func.func @transform_6(%arg0: i32) -> (i32, i32) {
    %c0_i32 = arith.constant 0 : i32
    %c0_i32_0 = arith.constant 0 : i32
    %c0_i32_1 = arith.constant 0 : i32
    return %c0_i32, %c0_i32_0 : i32, i32
  }
  func.func @transform_7(%arg0: i32) -> (i32, i32) {
    %c0_i32 = arith.constant 0 : i32
    %c0_i32_0 = arith.constant 0 : i32
    %c0_i32_1 = arith.constant 0 : i32
    return %c0_i32, %c0_i32_0 : i32, i32
  }
  func.func @transform_8(%arg0: i32) -> (i32, i32) {
    %c0_i32 = arith.constant 0 : i32
    %c0_i32_0 = arith.constant 0 : i32
    %c0_i32_1 = arith.constant 0 : i32
    return %c0_i32, %c0_i32_0 : i32, i32
  }
  func.func @transform_9(%arg0: i32) -> (i32, i32) {
    %c0_i32 = arith.constant 0 : i32
    %c0_i32_0 = arith.constant 0 : i32
    %c0_i32_1 = arith.constant 0 : i32
    return %c0_i32, %c0_i32_0 : i32, i32
  }
  func.func @transform_10(%arg0: i32) -> (i32, i32) {
    %c0_i32 = arith.constant 0 : i32
    %c0_i32_0 = arith.constant 0 : i32
    %c0_i32_1 = arith.constant 0 : i32
    return %c0_i32, %c0_i32_0 : i32, i32
  }
  func.func @transform_11(%arg0: i32) -> (i32, i32) {
    %c0_i32 = arith.constant 0 : i32
    %c0_i32_0 = arith.constant 0 : i32
    %c0_i32_1 = arith.constant 0 : i32
    return %c0_i32, %c0_i32_0 : i32, i32
  }
  func.func @transform_12(%arg0: i32) -> (i32, i32) {
    %c0_i32 = arith.constant 0 : i32
    %c0_i32_0 = arith.constant 0 : i32
    %c0_i32_1 = arith.constant 0 : i32
    return %c0_i32, %c0_i32_0 : i32, i32
  }
  func.func @transform_13(%arg0: i32) -> (i32, i32) {
    %c0_i32 = arith.constant 0 : i32
    %c0_i32_0 = arith.constant 0 : i32
    %c0_i32_1 = arith.constant 0 : i32
    return %c0_i32, %c0_i32_0 : i32, i32
  }
}

</mosaic_0001>

<llo_original>
// kernel: generator_forward.1
$region0: #{generator_forward.1}
  #allocation0 [shape = 'u32[]', space=smem, size = 0x4, offset = 0x4, fixed_abs, tag = 'smem constant byte address 0x4 - core index']
  #allocation1 [shape = 'u32[144,128]{1,0:T(1,128)}', space=vmem, size = 0x12000, scoped, tag = 'internal scratch']
  %s0 = inlined_call_operand.vmem [shape: f32[2,16], index: 0, kind: input, shape index: {}]
  %s1 = inlined_call_operand.vmem [shape: s8[16,512], index: 1, kind: input, shape index: {}]
  %s2 = inlined_call_operand.vmem [shape: f32[2,512], index: 2, kind: input, shape index: {}]
  %s3 = inlined_call_operand.vmem [shape: s8[512,1024], index: 3, kind: input, shape index: {}]
  %s4 = inlined_call_operand.vmem [shape: f32[2,1024], index: 4, kind: input, shape index: {}]
  %s5 = inlined_call_operand.vmem [shape: s8[1024,784], index: 5, kind: input, shape index: {}]
  %s6 = inlined_call_operand.vmem [shape: f32[2,784], index: 6, kind: input, shape index: {}]
  %s7 = inlined_call_operand.vmem [shape: s8[784,968], index: 7, kind: input, shape index: {}]
  %s8 = inlined_call_operand.vmem [shape: f32[2,968], index: 8, kind: input, shape index: {}]
  %s9 = inlined_call_operand.vmem [shape: s8[968,968], index: 9, kind: input, shape index: {}]
  %s10 = inlined_call_operand.vmem [shape: f32[2,968], index: 10, kind: input, shape index: {}]
  %s11 = inlined_call_operand.vmem [shape: s8[968,784], index: 11, kind: input, shape index: {}]
  %s12 = inlined_call_operand.vmem [shape: f32[2,784], index: 12, kind: input, shape index: {}]
  %s13 = inlined_call_operand.vmem [shape: f32[2,784], index: 13, kind: output, shape index: {}]
  %s14 = sld [smem:[#allocation0]]
  $region62: #{generator_forward.1} parent=0
    _
  %s16 = ssub.s32 1, %s14
  %s17 = scalar_select 0, %s16, %s14
  // Predicated region
  $region2: #{generator_forward.1} parent=0 // pred_check
    _
  $region3: #{generator_forward.1} parent=0 // pred_check_branch
    %19 = sbr.rel (0) target = $region5
  $region4: #{generator_forward.1} parent=0 // pred_region
    _
  $region5: #{generator_forward.1} parent=0 // pred_fallthru
    _
  // Predicated region
  $region6: #{generator_forward.1} parent=0 // pred_check
    _
  $region7: #{generator_forward.1} parent=0 // pred_check_branch
    %21 = sbr.rel (0) target = $region9
  $region8: #{generator_forward.1} parent=0 // pred_region
    _
  $region9: #{generator_forward.1} parent=0 // pred_fallthru
    _
  // Predicated region
  $region10: #{generator_forward.1} parent=0 // pred_check
    _
  $region11: #{generator_forward.1} parent=0 // pred_check_branch
    %23 = sbr.rel (0) target = $region13
  $region12: #{generator_forward.1} parent=0 // pred_region
    _
  $region13: #{generator_forward.1} parent=0 // pred_fallthru
    _
  // Predicated region
  $region14: #{generator_forward.1} parent=0 // pred_check
    _
  $region15: #{generator_forward.1} parent=0 // pred_check_branch
    %25 = sbr.rel (0) target = $region17
  $region16: #{generator_forward.1} parent=0 // pred_region
    _
  $region17: #{generator_forward.1} parent=0 // pred_fallthru
    _
  // Predicated region
  $region18: #{generator_forward.1} parent=0 // pred_check
    _
  $region19: #{generator_forward.1} parent=0 // pred_check_branch
    %27 = sbr.rel (0) target = $region21
  $region20: #{generator_forward.1} parent=0 // pred_region
    _
  $region21: #{generator_forward.1} parent=0 // pred_fallthru
    _
  // Predicated region
  $region22: #{generator_forward.1} parent=0 // pred_check
    _
  $region23: #{generator_forward.1} parent=0 // pred_check_branch
    %29 = sbr.rel (0) target = $region25
  $region24: #{generator_forward.1} parent=0 // pred_region
    _
  $region25: #{generator_forward.1} parent=0 // pred_fallthru
    _
  // Predicated region
  $region26: #{generator_forward.1} parent=0 // pred_check
    _
  $region27: #{generator_forward.1} parent=0 // pred_check_branch
    %31 = sbr.rel (0) target = $region29
  $region28: #{generator_forward.1} parent=0 // pred_region
    _
  $region29: #{generator_forward.1} parent=0 // pred_fallthru
    _
  // Predicated region
  $region30: #{generator_forward.1} parent=0 // pred_check
    _
  $region31: #{generator_forward.1} parent=0 // pred_check_branch
    %33 = sbr.rel (0) target = $region33
  $region32: #{generator_forward.1} parent=0 // pred_region
    _
  $region33: #{generator_forward.1} parent=0 // pred_fallthru
    _
  // Predicated region
  $region34: #{generator_forward.1} parent=0 // pred_check
    _
  $region35: #{generator_forward.1} parent=0 // pred_check_branch
    %35 = sbr.rel (0) target = $region37
  $region36: #{generator_forward.1} parent=0 // pred_region
    _
  $region37: #{generator_forward.1} parent=0 // pred_fallthru
    _
  // Predicated region
  $region38: #{generator_forward.1} parent=0 // pred_check
    _
  $region39: #{generator_forward.1} parent=0 // pred_check_branch
    %37 = sbr.rel (0) target = $region41
  $region40: #{generator_forward.1} parent=0 // pred_region
    _
  $region41: #{generator_forward.1} parent=0 // pred_fallthru
    _
  // Predicated region
  $region42: #{generator_forward.1} parent=0 // pred_check
    _
  $region43: #{generator_forward.1} parent=0 // pred_check_branch
    %39 = sbr.rel (0) target = $region45
  $region44: #{generator_forward.1} parent=0 // pred_region
    _
  $region45: #{generator_forward.1} parent=0 // pred_fallthru
    _
  // Predicated region
  $region46: #{generator_forward.1} parent=0 // pred_check
    _
  $region47: #{generator_forward.1} parent=0 // pred_check_branch
    %41 = sbr.rel (0) target = $region49
  $region48: #{generator_forward.1} parent=0 // pred_region
    _
  $region49: #{generator_forward.1} parent=0 // pred_fallthru
    _
  // Predicated region
  $region50: #{generator_forward.1} parent=0 // pred_check
    _
  $region51: #{generator_forward.1} parent=0 // pred_check_branch
    %43 = sbr.rel (0) target = $region53
  $region52: #{generator_forward.1} parent=0 // pred_region
    _
  $region53: #{generator_forward.1} parent=0 // pred_fallthru
    _
  %v45 = vld [vmem:[%s0] sm:$0x3]
  %v46 = vld [vmem:[%s1] sm:$0xff]
  %v47 = vld [vmem:[%s1 + $0x8] sm:$0xff]
  %v48 = vunpack.c.l.s8.bf16 %v46
  %v49 = vunpack.c.h.s8.bf16 %v46
  %v50 = vunpack.c.l.s8.bf16 %v47
  %v51 = vunpack.c.h.s8.bf16 %v47
  %v52 = vpack.c.bf16 %v45, %v45
  %v57 = vunpack.c.l.b16 %v48
  %v58 = vunpack.c.h.b16 %v48
  %v59 = vunpack.c.l.b16 %v49
  %v60 = vunpack.c.h.b16 %v49
  %v61 = vunpack.c.l.b16 %v50
  %v62 = vunpack.c.h.b16 %v50
  %v63 = vunpack.c.l.b16 %v51
  %v64 = vunpack.c.h.b16 %v51
  %v65 = vpack.c.b16 %v61, %v57
  %v66 = vpack.c.b16 %v62, %v58
  %v67 = vpack.c.b16 %v63, %v59
  %v68 = vpack.c.b16 %v64, %v60
  %vm73 = vcmask 130048
  %v75 = vsel %vm73, %v52, 0
  %77 = vmatprep.subr.bf16.mxu0 %v66
  %78 = vmatpush1.bf16.msra.mxu0 %v65
  %79 = vmatprep.subr.bf16.mxu0 0
  %80 = vmatpush1.bf16.msra.mxu0 0
  %81 = vmatprep.subr.bf16.mxu0 0
  %82 = vmatpush1.bf16.msra.mxu0 0
  %83 = vmatprep.subr.bf16.mxu0 0
  %84 = vmatpush1.bf16.msra.mxu0 0
  %85 = vmatprep.subr.bf16.mxu0 0
  %86 = vmatpush1.bf16.msra.mxu0 0
  %87 = vmatprep.subr.bf16.mxu0 0
  %88 = vmatpush1.bf16.msra.mxu0 0
  %89 = vmatprep.subr.bf16.mxu0 0
  %90 = vmatpush1.bf16.msra.mxu0 0
  %91 = vmatprep.subr.bf16.mxu0 0
  %92 = vmatpush1.bf16.msra.mxu0 0
  %93 = vmatprep.subr.bf16.mxu0 0
  %94 = vmatpush1.bf16.msra.mxu0 0
  %95 = vmatprep.subr.bf16.mxu0 0
  %96 = vmatpush1.bf16.msra.mxu0 0
  %97 = vmatprep.subr.bf16.mxu0 0
  %98 = vmatpush1.bf16.msra.mxu0 0
  %99 = vmatprep.subr.bf16.mxu0 0
  %100 = vmatpush1.bf16.msra.mxu0 0
  %101 = vmatprep.subr.bf16.mxu0 0
  %102 = vmatpush1.bf16.msra.mxu0 0
  %103 = vmatprep.subr.bf16.mxu0 0
  %104 = vmatpush1.bf16.msra.mxu0 0
  %105 = vmatprep.subr.bf16.mxu0 0
  %106 = vmatpush1.bf16.msra.mxu0 0
  %107 = vmatprep.subr.bf16.mxu0 0
  %108 = vmatpush1.bf16.msra.mxu0 0
  %109 = vmatprep.mubr.bf16.mxu0 0
  %110 = vmatmul.mubr.bf16.gmra.mrb[0].mxu0 %v75
  %v111 = vpop.f32.mrb[0].mxu0
  %v112 = vadd.f32 0.0, %v111
  %v113 = vpop.f32.mrb[0].mxu0
  %v114 = vadd.f32 0.0, %v113
  %v115 = vpop.f32.mrb[0].mxu0
  %v116 = vpop.f32.mrb[0].mxu0
  %117 = vdwg.mxu0
  %118 = vmatprep.subr.bf16.mxu0 %v68
  %119 = vmatpush1.bf16.msra.mxu0 %v67
  %120 = vmatprep.subr.bf16.mxu0 0
  %121 = vmatpush1.bf16.msra.mxu0 0
  %122 = vmatprep.subr.bf16.mxu0 0
  %123 = vmatpush1.bf16.msra.mxu0 0
  %124 = vmatprep.subr.bf16.mxu0 0
  %125 = vmatpush1.bf16.msra.mxu0 0
  %126 = vmatprep.subr.bf16.mxu0 0
  %127 = vmatpush1.bf16.msra.mxu0 0
  %128 = vmatprep.subr.bf16.mxu0 0
  %129 = vmatpush1.bf16.msra.mxu0 0
  %130 = vmatprep.subr.bf16.mxu0 0
  %131 = vmatpush1.bf16.msra.mxu0 0
  %132 = vmatprep.subr.bf16.mxu0 0
  %133 = vmatpush1.bf16.msra.mxu0 0
  %134 = vmatprep.subr.bf16.mxu0 0
  %135 = vmatpush1.bf16.msra.mxu0 0
  %136 = vmatprep.subr.bf16.mxu0 0
  %137 = vmatpush1.bf16.msra.mxu0 0
  %138 = vmatprep.subr.bf16.mxu0 0
  %139 = vmatpush1.bf16.msra.mxu0 0
  %140 = vmatprep.subr.bf16.mxu0 0
  %141 = vmatpush1.bf16.msra.mxu0 0
  %142 = vmatprep.subr.bf16.mxu0 0
  %143 = vmatpush1.bf16.msra.mxu0 0
  %144 = vmatprep.subr.bf16.mxu0 0
  %145 = vmatpush1.bf16.msra.mxu0 0
  %146 = vmatprep.subr.bf16.mxu0 0
  %147 = vmatpush1.bf16.msra.mxu0 0
  %148 = vmatprep.subr.bf16.mxu0 0
  %149 = vmatpush1.bf16.msra.mxu0 0
  %150 = vmatprep.mubr.bf16.mxu0 0
  %151 = vmatmul.mubr.bf16.gmra.mrb[0].mxu0 %v75
  %v152 = vpop.f32.mrb[0].mxu0
  %v153 = vadd.f32 0.0, %v152
  %v154 = vpop.f32.mrb[0].mxu0
  %v155 = vadd.f32 0.0, %v154
  %v156 = vpop.f32.mrb[0].mxu0
  %v157 = vpop.f32.mrb[0].mxu0
  %158 = vdwg.mxu0
  %v159 = vld [vmem:[%s2] ss:$2 sm:$0xf]
  %v161 = vlaneseq
  %v162 = vshrl.u32 %v161, 7
  %v163 = vsub.s32 0, %v162
  %v164 = vrot.slane %v159, %v163
  %v165 = vlaneseq
  %v166 = vshrl.u32 %v165, 7
  %v167 = vsub.s32 1, %v166
  %v168 = vrot.slane %v159, %v167
  %v169 = vlaneseq
  %v170 = vshrl.u32 %v169, 7
  %v171 = vsub.s32 2, %v170
  %v172 = vrot.slane %v159, %v171
  %v173 = vlaneseq
  %v174 = vshrl.u32 %v173, 7
  %v175 = vsub.s32 3, %v174
  %v176 = vrot.slane %v159, %v175
  %v181 = vmul.f32 %v112, %v164
  %v182 = vmul.f32 %v114, %v168
  %v183 = vmul.f32 %v153, %v172
  %v184 = vmul.f32 %v155, %v176
  %s185 = scalar_lea.vmem %s2, 1
  %v186 = vld [vmem:[%s185] ss:$2 sm:$0xf]
  %v188 = vlaneseq
  %v189 = vshrl.u32 %v188, 7
  %v190 = vsub.s32 0, %v189
  %v191 = vrot.slane %v186, %v190
  %v192 = vlaneseq
  %v193 = vshrl.u32 %v192, 7
  %v194 = vsub.s32 1, %v193
  %v195 = vrot.slane %v186, %v194
  %v196 = vlaneseq
  %v197 = vshrl.u32 %v196, 7
  %v198 = vsub.s32 2, %v197
  %v199 = vrot.slane %v186, %v198
  %v200 = vlaneseq
  %v201 = vshrl.u32 %v200, 7
  %v202 = vsub.s32 3, %v201
  %v203 = vrot.slane %v186, %v202
  %v208 = vadd.f32 %v181, %v191
  %v209 = vadd.f32 %v182, %v195
  %v210 = vadd.f32 %v183, %v199
  %v211 = vadd.f32 %v184, %v203
  %v212 = vmax.f32 %v208, 0.0
  %v213 = vmax.f32 %v209, 0.0
  %v214 = vmax.f32 %v210, 0.0
  %v215 = vmax.f32 %v211, 0.0
  %v216 = vld [vmem:[%s3] sm:$0xff]
  %v217 = vld [vmem:[%s3 + $0x8] sm:$0xff]
  %v218 = vld [vmem:[%s3 + $0x10] sm:$0xff]
  %v219 = vld [vmem:[%s3 + $0x18] sm:$0xff]
  %v220 = vld [vmem:[%s3 + $0x20] sm:$0xff]
  %v221 = vld [vmem:[%s3 + $0x28] sm:$0xff]
  %v222 = vld [vmem:[%s3 + $0x30] sm:$0xff]
  %v223 = vld [vmem:[%s3 + $0x38] sm:$0xff]
  %v224 = vld [vmem:[%s3 + $0x40] sm:$0xff]
  %v225 = vld [vmem:[%s3 + $0x48] sm:$0xff]
  %v226 = vld [vmem:[%s3 + $0x50] sm:$0xff]
  %v227 = vld [vmem:[%s3 + $0x58] sm:$0xff]
  %v228 = vld [vmem:[%s3 + $0x60] sm:$0xff]
  %v229 = vld [vmem:[%s3 + $0x68] sm:$0xff]
  %v230 = vld [vmem:[%s3 + $0x70] sm:$0xff]
  %v231 = vld [vmem:[%s3 + $0x78] sm:$0xff]
  %v232 = vld [vmem:[%s3 + $0x80] sm:$0xff]
  %v233 = vld [vmem:[%s3 + $0x88] sm:$0xff]
  %v234 = vld [vmem:[%s3 + $0x90] sm:$0xff]
  %v235 = vld [vmem:[%s3 + $0x98] sm:$0xff]
  %v236 = vld [vmem:[%s3 + $0xa0] sm:$0xff]
  %v237 = vld [vmem:[%s3 + $0xa8] sm:$0xff]
  %v238 = vld [vmem:[%s3 + $0xb0] sm:$0xff]
  %v239 = vld [vmem:[%s3 + $0xb8] sm:$0xff]
  %v240 = vld [vmem:[%s3 + $0xc0] sm:$0xff]
  %v241 = vld [vmem:[%s3 + $0xc8] sm:$0xff]
  %v242 = vld [vmem:[%s3 + $0xd0] sm:$0xff]
  %v243 = vld [vmem:[%s3 + $0xd8] sm:$0xff]
  %v244 = vld [vmem:[%s3 + $0xe0] sm:$0xff]
  %v245 = vld [vmem:[%s3 + $0xe8] sm:$0xff]
  %v246 = vld [vmem:[%s3 + $0xf0] sm:$0xff]
  %v247 = vld [vmem:[%s3 + $0xf8] sm:$0xff]
  %v248 = vld [vmem:[%s3 + $0x100] sm:$0xff]
  %v249 = vld [vmem:[%s3 + $0x108] sm:$0xff]
  %v250 = vld [vmem:[%s3 + $0x110] sm:$0xff]
  %v251 = vld [vmem:[%s3 + $0x118] sm:$0xff]
  %v252 = vld [vmem:[%s3 + $0x120] sm:$0xff]
  %v253 = vld [vmem:[%s3 + $0x128] sm:$0xff]
  %v254 = vld [vmem:[%s3 + $0x130] sm:$0xff]
  %v255 = vld [vmem:[%s3 + $0x138] sm:$0xff]
  %v256 = vld [vmem:[%s3 + $0x140] sm:$0xff]
  %v257 = vld [vmem:[%s3 + $0x148] sm:$0xff]
  %v258 = vld [vmem:[%s3 + $0x150] sm:$0xff]
  %v259 = vld [vmem:[%s3 + $0x158] sm:$0xff]
  %v260 = vld [vmem:[%s3 + $0x160] sm:$0xff]
  %v261 = vld [vmem:[%s3 + $0x168] sm:$0xff]
  %v262 = vld [vmem:[%s3 + $0x170] sm:$0xff]
  %v263 = vld [vmem:[%s3 + $0x178] sm:$0xff]
  %v264 = vld [vmem:[%s3 + $0x180] sm:$0xff]
  %v265 = vld [vmem:[%s3 + $0x188] sm:$0xff]
  %v266 = vld [vmem:[%s3 + $0x190] sm:$0xff]
  %v267 = vld [vmem:[%s3 + $0x198] sm:$0xff]
  %v268 = vld [vmem:[%s3 + $0x1a0] sm:$0xff]
  %v269 = vld [vmem:[%s3 + $0x1a8] sm:$0xff]
  %v270 = vld [vmem:[%s3 + $0x1b0] sm:$0xff]
  %v271 = vld [vmem:[%s3 + $0x1b8] sm:$0xff]
  %v272 = vld [vmem:[%s3 + $0x1c0] sm:$0xff]
  %v273 = vld [vmem:[%s3 + $0x1c8] sm:$0xff]
  %v274 = vld [vmem:[%s3 + $0x1d0] sm:$0xff]
  %v275 = vld [vmem:[%s3 + $0x1d8] sm:$0xff]
  %v276 = vld [vmem:[%s3 + $0x1e0] sm:$0xff]
  %v277 = vld [vmem:[%s3 + $0x1e8] sm:$0xff]
  %v278 = vld [vmem:[%s3 + $0x1f0] sm:$0xff]
  %v279 = vld [vmem:[%s3 + $0x1f8] sm:$0xff]
  %v280 = vld [vmem:[%s3 + $0x200] sm:$0xff]
  %v281 = vld [vmem:[%s3 + $0x208] sm:$0xff]
  %v282 = vld [vmem:[%s3 + $0x210] sm:$0xff]
  %v283 = vld [vmem:[%s3 + $0x218] sm:$0xff]
  %v284 = vld [vmem:[%s3 + $0x220] sm:$0xff]
  %v285 = vld [vmem:[%s3 + $0x228] sm:$0xff]
  %v286 = vld [vmem:[%s3 + $0x230] sm:$0xff]
  %v287 = vld [vmem:[%s3 + $0x238] sm:$0xff]
  %v288 = vld [vmem:[%s3 + $0x240] sm:$0xff]
  %v289 = vld [vmem:[%s3 + $0x248] sm:$0xff]
  %v290 = vld [vmem:[%s3 + $0x250] sm:$0xff]
  %v291 = vld [vmem:[%s3 + $0x258] sm:$0xff]
  %v292 = vld [vmem:[%s3 + $0x260] sm:$0xff]
  %v293 = vld [vmem:[%s3 + $0x268] sm:$0xff]
  %v294 = vld [vmem:[%s3 + $0x270] sm:$0xff]
  %v295 = vld [vmem:[%s3 + $0x278] sm:$0xff]
  %v296 = vld [vmem:[%s3 + $0x280] sm:$0xff]
  %v297 = vld [vmem:[%s3 + $0x288] sm:$0xff]
  %v298 = vld [vmem:[%s3 + $0x290] sm:$0xff]
  %v299 = vld [vmem:[%s3 + $0x298] sm:$0xff]
  %v300 = vld [vmem:[%s3 + $0x2a0] sm:$0xff]
  %v301 = vld [vmem:[%s3 + $0x2a8] sm:$0xff]
  %v302 = vld [vmem:[%s3 + $0x2b0] sm:$0xff]
  %v303 = vld [vmem:[%s3 + $0x2b8] sm:$0xff]
  %v304 = vld [vmem:[%s3 + $0x2c0] sm:$0xff]
  %v305 = vld [vmem:[%s3 + $0x2c8] sm:$0xff]
  %v306 = vld [vmem:[%s3 + $0x2d0] sm:$0xff]
  %v307 = vld [vmem:[%s3 + $0x2d8] sm:$0xff]
  %v308 = vld [vmem:[%s3 + $0x2e0] sm:$0xff]
  %v309 = vld [vmem:[%s3 + $0x2e8] sm:$0xff]
  %v310 = vld [vmem:[%s3 + $0x2f0] sm:$0xff]
  %v311 = vld [vmem:[%s3 + $0x2f8] sm:$0xff]
  %v312 = vld [vmem:[%s3 + $0x300] sm:$0xff]
  %v313 = vld [vmem:[%s3 + $0x308] sm:$0xff]
  %v314 = vld [vmem:[%s3 + $0x310] sm:$0xff]
  %v315 = vld [vmem:[%s3 + $0x318] sm:$0xff]
  %v316 = vld [vmem:[%s3 + $0x320] sm:$0xff]
  %v317 = vld [vmem:[%s3 + $0x328] sm:$0xff]
  %v318 = vld [vmem:[%s3 + $0x330] sm:$0xff]
  %v319 = vld [vmem:[%s3 + $0x338] sm:$0xff]
  %v320 = vld [vmem:[%s3 + $0x340] sm:$0xff]
  %v321 = vld [vmem:[%s3 + $0x348] sm:$0xff]
  %v322 = vld [vmem:[%s3 + $0x350] sm:$0xff]
  %v323 = vld [vmem:[%s3 + $0x358] sm:$0xff]
  %v324 = vld [vmem:[%s3 + $0x360] sm:$0xff]
  %v325 = vld [vmem:[%s3 + $0x368] sm:$0xff]
  %v326 = vld [vmem:[%s3 + $0x370] sm:$0xff]
  %v327 = vld [vmem:[%s3 + $0x378] sm:$0xff]
  %v328 = vld [vmem:[%s3 + $0x380] sm:$0xff]
  %v329 = vld [vmem:[%s3 + $0x388] sm:$0xff]
  %v330 = vld [vmem:[%s3 + $0x390] sm:$0xff]
  %v331 = vld [vmem:[%s3 + $0x398] sm:$0xff]
  %v332 = vld [vmem:[%s3 + $0x3a0] sm:$0xff]
  %v333 = vld [vmem:[%s3 + $0x3a8] sm:$0xff]
  %v334 = vld [vmem:[%s3 + $0x3b0] sm:$0xff]
  %v335 = vld [vmem:[%s3 + $0x3b8] sm:$0xff]
  %v336 = vld [vmem:[%s3 + $0x3c0] sm:$0xff]
  %v337 = vld [vmem:[%s3 + $0x3c8] sm:$0xff]
  %v338 = vld [vmem:[%s3 + $0x3d0] sm:$0xff]
  %v339 = vld [vmem:[%s3 + $0x3d8] sm:$0xff]
  %v340 = vld [vmem:[%s3 + $0x3e0] sm:$0xff]
  %v341 = vld [vmem:[%s3 + $0x3e8] sm:$0xff]
  %v342 = vld [vmem:[%s3 + $0x3f0] sm:$0xff]
  %v343 = vld [vmem:[%s3 + $0x3f8] sm:$0xff]
  %v344 = vunpack.c.l.s8.bf16 %v216
  %v345 = vunpack.c.l.s8.bf16 %v217
  %v346 = vunpack.c.l.s8.bf16 %v218
  %v347 = vunpack.c.l.s8.bf16 %v219
  %v348 = vunpack.c.l.s8.bf16 %v220
  %v349 = vunpack.c.l.s8.bf16 %v221
  %v350 = vunpack.c.l.s8.bf16 %v222
  %v351 = vunpack.c.l.s8.bf16 %v223
  %v352 = vunpack.c.h.s8.bf16 %v216
  %v353 = vunpack.c.h.s8.bf16 %v217
  %v354 = vunpack.c.h.s8.bf16 %v218
  %v355 = vunpack.c.h.s8.bf16 %v219
  %v356 = vunpack.c.h.s8.bf16 %v220
  %v357 = vunpack.c.h.s8.bf16 %v221
  %v358 = vunpack.c.h.s8.bf16 %v222
  %v359 = vunpack.c.h.s8.bf16 %v223
  %v360 = vunpack.c.l.s8.bf16 %v224
  %v361 = vunpack.c.l.s8.bf16 %v225
  %v362 = vunpack.c.l.s8.bf16 %v226
  %v363 = vunpack.c.l.s8.bf16 %v227
  %v364 = vunpack.c.l.s8.bf16 %v228
  %v365 = vunpack.c.l.s8.bf16 %v229
  %v366 = vunpack.c.l.s8.bf16 %v230
  %v367 = vunpack.c.l.s8.bf16 %v231
  %v368 = vunpack.c.h.s8.bf16 %v224
  %v369 = vunpack.c.h.s8.bf16 %v225
  %v370 = vunpack.c.h.s8.bf16 %v226
  %v371 = vunpack.c.h.s8.bf16 %v227
  %v372 = vunpack.c.h.s8.bf16 %v228
  %v373 = vunpack.c.h.s8.bf16 %v229
  %v374 = vunpack.c.h.s8.bf16 %v230
  %v375 = vunpack.c.h.s8.bf16 %v231
  %v376 = vunpack.c.l.s8.bf16 %v232
  %v377 = vunpack.c.l.s8.bf16 %v233
  %v378 = vunpack.c.l.s8.bf16 %v234
  %v379 = vunpack.c.l.s8.bf16 %v235
  %v380 = vunpack.c.l.s8.bf16 %v236
  %v381 = vunpack.c.l.s8.bf16 %v237
  %v382 = vunpack.c.l.s8.bf16 %v238
  %v383 = vunpack.c.l.s8.bf16 %v239
  %v384 = vunpack.c.h.s8.bf16 %v232
  %v385 = vunpack.c.h.s8.bf16 %v233
  %v386 = vunpack.c.h.s8.bf16 %v234
  %v387 = vunpack.c.h.s8.bf16 %v235
  %v388 = vunpack.c.h.s8.bf16 %v236
  %v389 = vunpack.c.h.s8.bf16 %v237
  %v390 = vunpack.c.h.s8.bf16 %v238
  %v391 = vunpack.c.h.s8.bf16 %v239
  %v392 = vunpack.c.l.s8.bf16 %v240
  %v393 = vunpack.c.l.s8.bf16 %v241
  %v394 = vunpack.c.l.s8.bf16 %v242
  %v395 = vunpack.c.l.s8.bf16 %v243
  %v396 = vunpack.c.l.s8.bf16 %v244
  %v397 = vunpack.c.l.s8.bf16 %v245
  %v398 = vunpack.c.l.s8.bf16 %v246
  %v399 = vunpack.c.l.s8.bf16 %v247
  %v400 = vunpack.c.h.s8.bf16 %v240
  %v401 = vunpack.c.h.s8.bf16 %v241
  %v402 = vunpack.c.h.s8.bf16 %v242
  %v403 = vunpack.c.h.s8.bf16 %v243
  %v404 = vunpack.c.h.s8.bf16 %v244
  %v405 = vunpack.c.h.s8.bf16 %v245
  %v406 = vunpack.c.h.s8.bf16 %v246
  %v407 = vunpack.c.h.s8.bf16 %v247
  %v408 = vunpack.c.l.s8.bf16 %v248
  %v409 = vunpack.c.l.s8.bf16 %v249
  %v410 = vunpack.c.l.s8.bf16 %v250
  %v411 = vunpack.c.l.s8.bf16 %v251
  %v412 = vunpack.c.l.s8.bf16 %v252
  %v413 = vunpack.c.l.s8.bf16 %v253
  %v414 = vunpack.c.l.s8.bf16 %v254
  %v415 = vunpack.c.l.s8.bf16 %v255
  %v416 = vunpack.c.h.s8.bf16 %v248
  %v417 = vunpack.c.h.s8.bf16 %v249
  %v418 = vunpack.c.h.s8.bf16 %v250
  %v419 = vunpack.c.h.s8.bf16 %v251
  %v420 = vunpack.c.h.s8.bf16 %v252
  %v421 = vunpack.c.h.s8.bf16 %v253
  %v422 = vunpack.c.h.s8.bf16 %v254
  %v423 = vunpack.c.h.s8.bf16 %v255
  %v424 = vunpack.c.l.s8.bf16 %v256
  %v425 = vunpack.c.l.s8.bf16 %v257
  %v426 = vunpack.c.l.s8.bf16 %v258
  %v427 = vunpack.c.l.s8.bf16 %v259
  %v428 = vunpack.c.l.s8.bf16 %v260
  %v429 = vunpack.c.l.s8.bf16 %v261
  %v430 = vunpack.c.l.s8.bf16 %v262
  %v431 = vunpack.c.l.s8.bf16 %v263
  %v432 = vunpack.c.h.s8.bf16 %v256
  %v433 = vunpack.c.h.s8.bf16 %v257
  %v434 = vunpack.c.h.s8.bf16 %v258
  %v435 = vunpack.c.h.s8.bf16 %v259
  %v436 = vunpack.c.h.s8.bf16 %v260
  %v437 = vunpack.c.h.s8.bf16 %v261
  %v438 = vunpack.c.h.s8.bf16 %v262
  %v439 = vunpack.c.h.s8.bf16 %v263
  %v440 = vunpack.c.l.s8.bf16 %v264
  %v441 = vunpack.c.l.s8.bf16 %v265
  %v442 = vunpack.c.l.s8.bf16 %v266
  %v443 = vunpack.c.l.s8.bf16 %v267
  %v444 = vunpack.c.l.s8.bf16 %v268
  %v445 = vunpack.c.l.s8.bf16 %v269
  %v446 = vunpack.c.l.s8.bf16 %v270
  %v447 = vunpack.c.l.s8.bf16 %v271
  %v448 = vunpack.c.h.s8.bf16 %v264
  %v449 = vunpack.c.h.s8.bf16 %v265
  %v450 = vunpack.c.h.s8.bf16 %v266
  %v451 = vunpack.c.h.s8.bf16 %v267
  %v452 = vunpack.c.h.s8.bf16 %v268
  %v453 = vunpack.c.h.s8.bf16 %v269
  %v454 = vunpack.c.h.s8.bf16 %v270
  %v455 = vunpack.c.h.s8.bf16 %v271
  %v456 = vunpack.c.l.s8.bf16 %v272
  %v457 = vunpack.c.l.s8.bf16 %v273
  %v458 = vunpack.c.l.s8.bf16 %v274
  %v459 = vunpack.c.l.s8.bf16 %v275
  %v460 = vunpack.c.l.s8.bf16 %v276
  %v461 = vunpack.c.l.s8.bf16 %v277
  %v462 = vunpack.c.l.s8.bf16 %v278
  %v463 = vunpack.c.l.s8.bf16 %v279
  %v464 = vunpack.c.h.s8.bf16 %v272
  %v465 = vunpack.c.h.s8.bf16 %v273
  %v466 = vunpack.c.h.s8.bf16 %v274
  %v467 = vunpack.c.h.s8.bf16 %v275
  %v468 = vunpack.c.h.s8.bf16 %v276
  %v469 = vunpack.c.h.s8.bf16 %v277
  %v470 = vunpack.c.h.s8.bf16 %v278
  %v471 = vunpack.c.h.s8.bf16 %v279
  %v472 = vunpack.c.l.s8.bf16 %v280
  %v473 = vunpack.c.l.s8.bf16 %v281
  %v474 = vunpack.c.l.s8.bf16 %v282
  %v475 = vunpack.c.l.s8.bf16 %v283
  %v476 = vunpack.c.l.s8.bf16 %v284
  %v477 = vunpack.c.l.s8.bf16 %v285
  %v478 = vunpack.c.l.s8.bf16 %v286
  %v479 = vunpack.c.l.s8.bf16 %v287
  %v480 = vunpack.c.h.s8.bf16 %v280
  %v481 = vunpack.c.h.s8.bf16 %v281
  %v482 = vunpack.c.h.s8.bf16 %v282
  %v483 = vunpack.c.h.s8.bf16 %v283
  %v484 = vunpack.c.h.s8.bf16 %v284
  %v485 = vunpack.c.h.s8.bf16 %v285
  %v486 = vunpack.c.h.s8.bf16 %v286
  %v487 = vunpack.c.h.s8.bf16 %v287
  %v488 = vunpack.c.l.s8.bf16 %v288
  %v489 = vunpack.c.l.s8.bf16 %v289
  %v490 = vunpack.c.l.s8.bf16 %v290
  %v491 = vunpack.c.l.s8.bf16 %v291
  %v492 = vunpack.c.l.s8.bf16 %v292
  %v493 = vunpack.c.l.s8.bf16 %v293
  %v494 = vunpack.c.l.s8.bf16 %v294
  %v495 = vunpack.c.l.s8.bf16 %v295
  %v496 = vunpack.c.h.s8.bf16 %v288
  %v497 = vunpack.c.h.s8.bf16 %v289
  %v498 = vunpack.c.h.s8.bf16 %v290
  %v499 = vunpack.c.h.s8.bf16 %v291
  %v500 = vunpack.c.h.s8.bf16 %v292
  %v501 = vunpack.c.h.s8.bf16 %v293
  %v502 = vunpack.c.h.s8.bf16 %v294
  %v503 = vunpack.c.h.s8.bf16 %v295
  %v504 = vunpack.c.l.s8.bf16 %v296
  %v505 = vunpack.c.l.s8.bf16 %v297
  %v506 = vunpack.c.l.s8.bf16 %v298
  %v507 = vunpack.c.l.s8.bf16 %v299
  %v508 = vunpack.c.l.s8.bf16 %v300
  %v509 = vunpack.c.l.s8.bf16 %v301
  %v510 = vunpack.c.l.s8.bf16 %v302
  %v511 = vunpack.c.l.s8.bf16 %v303
  %v512 = vunpack.c.h.s8.bf16 %v296
  %v513 = vunpack.c.h.s8.bf16 %v297
  %v514 = vunpack.c.h.s8.bf16 %v298
  %v515 = vunpack.c.h.s8.bf16 %v299
  %v516 = vunpack.c.h.s8.bf16 %v300
  %v517 = vunpack.c.h.s8.bf16 %v301
  %v518 = vunpack.c.h.s8.bf16 %v302
  %v519 = vunpack.c.h.s8.bf16 %v303
  %v520 = vunpack.c.l.s8.bf16 %v304
  %v521 = vunpack.c.l.s8.bf16 %v305
  %v522 = vunpack.c.l.s8.bf16 %v306
  %v523 = vunpack.c.l.s8.bf16 %v307
  %v524 = vunpack.c.l.s8.bf16 %v308
  %v525 = vunpack.c.l.s8.bf16 %v309
  %v526 = vunpack.c.l.s8.bf16 %v310
  %v527 = vunpack.c.l.s8.bf16 %v311
  %v528 = vunpack.c.h.s8.bf16 %v304
  %v529 = vunpack.c.h.s8.bf16 %v305
  %v530 = vunpack.c.h.s8.bf16 %v306
  %v531 = vunpack.c.h.s8.bf16 %v307
  %v532 = vunpack.c.h.s8.bf16 %v308
  %v533 = vunpack.c.h.s8.bf16 %v309
  %v534 = vunpack.c.h.s8.bf16 %v310
  %v535 = vunpack.c.h.s8.bf16 %v311
  %v536 = vunpack.c.l.s8.bf16 %v312
  %v537 = vunpack.c.l.s8.bf16 %v313
  %v538 = vunpack.c.l.s8.bf16 %v314
  %v539 = vunpack.c.l.s8.bf16 %v315
  %v540 = vunpack.c.l.s8.bf16 %v316
  %v541 = vunpack.c.l.s8.bf16 %v317
  %v542 = vunpack.c.l.s8.bf16 %v318
  %v543 = vunpack.c.l.s8.bf16 %v319
  %v544 = vunpack.c.h.s8.bf16 %v312
  %v545 = vunpack.c.h.s8.bf16 %v313
  %v546 = vunpack.c.h.s8.bf16 %v314
  %v547 = vunpack.c.h.s8.bf16 %v315
  %v548 = vunpack.c.h.s8.bf16 %v316
  %v549 = vunpack.c.h.s8.bf16 %v317
  %v550 = vunpack.c.h.s8.bf16 %v318
  %v551 = vunpack.c.h.s8.bf16 %v319
  %v552 = vunpack.c.l.s8.bf16 %v320
  %v553 = vunpack.c.l.s8.bf16 %v321
  %v554 = vunpack.c.l.s8.bf16 %v322
  %v555 = vunpack.c.l.s8.bf16 %v323
  %v556 = vunpack.c.l.s8.bf16 %v324
  %v557 = vunpack.c.l.s8.bf16 %v325
  %v558 = vunpack.c.l.s8.bf16 %v326
  %v559 = vunpack.c.l.s8.bf16 %v327
  %v560 = vunpack.c.h.s8.bf16 %v320
  %v561 = vunpack.c.h.s8.bf16 %v321
  %v562 = vunpack.c.h.s8.bf16 %v322
  %v563 = vunpack.c.h.s8.bf16 %v323
  %v564 = vunpack.c.h.s8.bf16 %v324
  %v565 = vunpack.c.h.s8.bf16 %v325
  %v566 = vunpack.c.h.s8.bf16 %v326
  %v567 = vunpack.c.h.s8.bf16 %v327
  %v568 = vunpack.c.l.s8.bf16 %v328
  %v569 = vunpack.c.l.s8.bf16 %v329
  %v570 = vunpack.c.l.s8.bf16 %v330
  %v571 = vunpack.c.l.s8.bf16 %v331
  %v572 = vunpack.c.l.s8.bf16 %v332
  %v573 = vunpack.c.l.s8.bf16 %v333
  %v574 = vunpack.c.l.s8.bf16 %v334
  %v575 = vunpack.c.l.s8.bf16 %v335
  %v576 = vunpack.c.h.s8.bf16 %v328
  %v577 = vunpack.c.h.s8.bf16 %v329
  %v578 = vunpack.c.h.s8.bf16 %v330
  %v579 = vunpack.c.h.s8.bf16 %v331
  %v580 = vunpack.c.h.s8.bf16 %v332
  %v581 = vunpack.c.h.s8.bf16 %v333
  %v582 = vunpack.c.h.s8.bf16 %v334
  %v583 = vunpack.c.h.s8.bf16 %v335
  %v584 = vunpack.c.l.s8.bf16 %v336
  %v585 = vunpack.c.l.s8.bf16 %v337
  %v586 = vunpack.c.l.s8.bf16 %v338
  %v587 = vunpack.c.l.s8.bf16 %v339
  %v588 = vunpack.c.l.s8.bf16 %v340
  %v589 = vunpack.c.l.s8.bf16 %v341
  %v590 = vunpack.c.l.s8.bf16 %v342
  %v591 = vunpack.c.l.s8.bf16 %v343
  %v592 = vunpack.c.h.s8.bf16 %v336
  %v593 = vunpack.c.h.s8.bf16 %v337
  %v594 = vunpack.c.h.s8.bf16 %v338
  %v595 = vunpack.c.h.s8.bf16 %v339
  %v596 = vunpack.c.h.s8.bf16 %v340
  %v597 = vunpack.c.h.s8.bf16 %v341
  %v598 = vunpack.c.h.s8.bf16 %v342
  %v599 = vunpack.c.h.s8.bf16 %v343
  %v600 = vpack.c.bf16 %v212, %v212
  %v601 = vpack.c.bf16 %v213, %v213
  %v602 = vpack.c.bf16 %v214, %v214
  %v603 = vpack.c.bf16 %v215, %v215
  %604 = vmatprep.subr.bf16.mxu0 %v345
  %605 = vmatpush1.bf16.msra.mxu0 %v344
  %606 = vmatprep.subr.bf16.mxu0 %v353
  %607 = vmatpush1.bf16.msra.mxu0 %v352
  %608 = vmatprep.subr.bf16.mxu0 %v361
  %609 = vmatpush1.bf16.msra.mxu0 %v360
  %610 = vmatprep.subr.bf16.mxu0 %v369
  %611 = vmatpush1.bf16.msra.mxu0 %v368
  %612 = vmatprep.subr.bf16.mxu0 %v377
  %613 = vmatpush1.bf16.msra.mxu0 %v376
  %614 = vmatprep.subr.bf16.mxu0 %v385
  %615 = vmatpush1.bf16.msra.mxu0 %v384
  %616 = vmatprep.subr.bf16.mxu0 %v393
  %617 = vmatpush1.bf16.msra.mxu0 %v392
  %618 = vmatprep.subr.bf16.mxu0 %v401
  %619 = vmatpush1.bf16.msra.mxu0 %v400
  %620 = vmatprep.subr.bf16.mxu0 %v409
  %621 = vmatpush1.bf16.msra.mxu0 %v408
  %622 = vmatprep.subr.bf16.mxu0 %v417
  %623 = vmatpush1.bf16.msra.mxu0 %v416
  %624 = vmatprep.subr.bf16.mxu0 %v425
  %625 = vmatpush1.bf16.msra.mxu0 %v424
  %626 = vmatprep.subr.bf16.mxu0 %v433
  %627 = vmatpush1.bf16.msra.mxu0 %v432
  %628 = vmatprep.subr.bf16.mxu0 %v441
  %629 = vmatpush1.bf16.msra.mxu0 %v440
  %630 = vmatprep.subr.bf16.mxu0 %v449
  %631 = vmatpush1.bf16.msra.mxu0 %v448
  %632 = vmatprep.subr.bf16.mxu0 %v457
  %633 = vmatpush1.bf16.msra.mxu0 %v456
  %634 = vmatprep.subr.bf16.mxu0 %v465
  %635 = vmatpush1.bf16.msra.mxu0 %v464
  %636 = vmatprep.mubr.bf16.mxu0 %v601
  %637 = vmatmul.mubr.bf16.gmra.mrb[0].mxu0 %v600
  %v638 = vpop.f32.mrb[0].mxu0
  %v639 = vadd.f32 0.0, %v638
  %v640 = vpop.f32.mrb[0].mxu0
  %v641 = vadd.f32 0.0, %v640
  %v642 = vpop.f32.mrb[0].mxu0
  %v643 = vpop.f32.mrb[0].mxu0
  %644 = vdwg.mxu0
  %645 = vmatprep.subr.bf16.mxu0 %v473
  %646 = vmatpush1.bf16.msra.mxu0 %v472
  %647 = vmatprep.subr.bf16.mxu0 %v481
  %648 = vmatpush1.bf16.msra.mxu0 %v480
  %649 = vmatprep.subr.bf16.mxu0 %v489
  %650 = vmatpush1.bf16.msra.mxu0 %v488
  %651 = vmatprep.subr.bf16.mxu0 %v497
  %652 = vmatpush1.bf16.msra.mxu0 %v496
  %653 = vmatprep.subr.bf16.mxu0 %v505
  %654 = vmatpush1.bf16.msra.mxu0 %v504
  %655 = vmatprep.subr.bf16.mxu0 %v513
  %656 = vmatpush1.bf16.msra.mxu0 %v512
  %657 = vmatprep.subr.bf16.mxu0 %v521
  %658 = vmatpush1.bf16.msra.mxu0 %v520
  %659 = vmatprep.subr.bf16.mxu0 %v529
  %660 = vmatpush1.bf16.msra.mxu0 %v528
  %661 = vmatprep.subr.bf16.mxu0 %v537
  %662 = vmatpush1.bf16.msra.mxu0 %v536
  %663 = vmatprep.subr.bf16.mxu0 %v545
  %664 = vmatpush1.bf16.msra.mxu0 %v544
  %665 = vmatprep.subr.bf16.mxu0 %v553
  %666 = vmatpush1.bf16.msra.mxu0 %v552
  %667 = vmatprep.subr.bf16.mxu0 %v561
  %668 = vmatpush1.bf16.msra.mxu0 %v560
  %669 = vmatprep.subr.bf16.mxu0 %v569
  %670 = vmatpush1.bf16.msra.mxu0 %v568
  %671 = vmatprep.subr.bf16.mxu0 %v577
  %672 = vmatpush1.bf16.msra.mxu0 %v576
  %673 = vmatprep.subr.bf16.mxu0 %v585
  %674 = vmatpush1.bf16.msra.mxu0 %v584
  %675 = vmatprep.subr.bf16.mxu0 %v593
  %676 = vmatpush1.bf16.msra.mxu0 %v592
  %677 = vmatprep.mubr.bf16.mxu0 %v603
  %678 = vmatmul.mubr.bf16.gmra.mrb[0].mxu0 %v602
  %v679 = vpop.f32.mrb[0].mxu0
  %v680 = vadd.f32 %v639, %v679
  %v681 = vpop.f32.mrb[0].mxu0
  %v682 = vadd.f32 %v641, %v681
  %v683 = vpop.f32.mrb[0].mxu0
  %v684 = vpop.f32.mrb[0].mxu0
  %685 = vdwg.mxu0
  %686 = vmatprep.subr.bf16.mxu0 %v347
  %687 = vmatpush1.bf16.msra.mxu0 %v346
  %688 = vmatprep.subr.bf16.mxu0 %v355
  %689 = vmatpush1.bf16.msra.mxu0 %v354
  %690 = vmatprep.subr.bf16.mxu0 %v363
  %691 = vmatpush1.bf16.msra.mxu0 %v362
  %692 = vmatprep.subr.bf16.mxu0 %v371
  %693 = vmatpush1.bf16.msra.mxu0 %v370
  %694 = vmatprep.subr.bf16.mxu0 %v379
  %695 = vmatpush1.bf16.msra.mxu0 %v378
  %696 = vmatprep.subr.bf16.mxu0 %v387
  %697 = vmatpush1.bf16.msra.mxu0 %v386
  %698 = vmatprep.subr.bf16.mxu0 %v395
  %699 = vmatpush1.bf16.msra.mxu0 %v394
  %700 = vmatprep.subr.bf16.mxu0 %v403
  %701 = vmatpush1.bf16.msra.mxu0 %v402
  %702 = vmatprep.subr.bf16.mxu0 %v411
  %703 = vmatpush1.bf16.msra.mxu0 %v410
  %704 = vmatprep.subr.bf16.mxu0 %v419
  %705 = vmatpush1.bf16.msra.mxu0 %v418
  %706 = vmatprep.subr.bf16.mxu0 %v427
  %707 = vmatpush1.bf16.msra.mxu0 %v426
  %708 = vmatprep.subr.bf16.mxu0 %v435
  %709 = vmatpush1.bf16.msra.mxu0 %v434
  %710 = vmatprep.subr.bf16.mxu0 %v443
  %711 = vmatpush1.bf16.msra.mxu0 %v442
  %712 = vmatprep.subr.bf16.mxu0 %v451
  %713 = vmatpush1.bf16.msra.mxu0 %v450
  %714 = vmatprep.subr.bf16.mxu0 %v459
  %715 = vmatpush1.bf16.msra.mxu0 %v458
  %716 = vmatprep.subr.bf16.mxu0 %v467
  %717 = vmatpush1.bf16.msra.mxu0 %v466
  %718 = vmatprep.mubr.bf16.mxu0 %v601
  %719 = vmatmul.mubr.bf16.gmra.mrb[0].mxu0 %v600
  %v720 = vpop.f32.mrb[0].mxu0
  %v721 = vadd.f32 0.0, %v720
  %v722 = vpop.f32.mrb[0].mxu0
  %v723 = vadd.f32 0.0, %v722
  %v724 = vpop.f32.mrb[0].mxu0
  %v725 = vpop.f32.mrb[0].mxu0
  %726 = vdwg.mxu0
  %727 = vmatprep.subr.bf16.mxu0 %v475
  %728 = vmatpush1.bf16.msra.mxu0 %v474
  %729 = vmatprep.subr.bf16.mxu0 %v483
  %730 = vmatpush1.bf16.msra.mxu0 %v482
  %731 = vmatprep.subr.bf16.mxu0 %v491
  %732 = vmatpush1.bf16.msra.mxu0 %v490
  %733 = vmatprep.subr.bf16.mxu0 %v499
  %734 = vmatpush1.bf16.msra.mxu0 %v498
  %735 = vmatprep.subr.bf16.mxu0 %v507
  %736 = vmatpush1.bf16.msra.mxu0 %v506
  %737 = vmatprep.subr.bf16.mxu0 %v515
  %738 = vmatpush1.bf16.msra.mxu0 %v514
  %739 = vmatprep.subr.bf16.mxu0 %v523
  %740 = vmatpush1.bf16.msra.mxu0 %v522
  %741 = vmatprep.subr.bf16.mxu0 %v531
  %742 = vmatpush1.bf16.msra.mxu0 %v530
  %743 = vmatprep.subr.bf16.mxu0 %v539
  %744 = vmatpush1.bf16.msra.mxu0 %v538
  %745 = vmatprep.subr.bf16.mxu0 %v547
  %746 = vmatpush1.bf16.msra.mxu0 %v546
  %747 = vmatprep.subr.bf16.mxu0 %v555
  %748 = vmatpush1.bf16.msra.mxu0 %v554
  %749 = vmatprep.subr.bf16.mxu0 %v563
  %750 = vmatpush1.bf16.msra.mxu0 %v562
  %751 = vmatprep.subr.bf16.mxu0 %v571
  %752 = vmatpush1.bf16.msra.mxu0 %v570
  %753 = vmatprep.subr.bf16.mxu0 %v579
  %754 = vmatpush1.bf16.msra.mxu0 %v578
  %755 = vmatprep.subr.bf16.mxu0 %v587
  %756 = vmatpush1.bf16.msra.mxu0 %v586
  %757 = vmatprep.subr.bf16.mxu0 %v595
  %758 = vmatpush1.bf16.msra.mxu0 %v594
  %759 = vmatprep.mubr.bf16.mxu0 %v603
  %760 = vmatmul.mubr.bf16.gmra.mrb[0].mxu0 %v602
  %v761 = vpop.f32.mrb[0].mxu0
  %v762 = vadd.f32 %v721, %v761
  %v763 = vpop.f32.mrb[0].mxu0
  %v764 = vadd.f32 %v723, %v763
  %v765 = vpop.f32.mrb[0].mxu0
  %v766 = vpop.f32.mrb[0].mxu0
  %767 = vdwg.mxu0
  %768 = vmatprep.subr.bf16.mxu0 %v349
  %769 = vmatpush1.bf16.msra.mxu0 %v348
  %770 = vmatprep.subr.bf16.mxu0 %v357
  %771 = vmatpush1.bf16.msra.mxu0 %v356
  %772 = vmatprep.subr.bf16.mxu0 %v365
  %773 = vmatpush1.bf16.msra.mxu0 %v364
  %774 = vmatprep.subr.bf16.mxu0 %v373
  %775 = vmatpush1.bf16.msra.mxu0 %v372
  %776 = vmatprep.subr.bf16.mxu0 %v381
  %777 = vmatpush1.bf16.msra.mxu0 %v380
  %778 = vmatprep.subr.bf16.mxu0 %v389
  %779 = vmatpush1.bf16.msra.mxu0 %v388
  %780 = vmatprep.subr.bf16.mxu0 %v397
  %781 = vmatpush1.bf16.msra.mxu0 %v396
  %782 = vmatprep.subr.bf16.mxu0 %v405
  %783 = vmatpush1.bf16.msra.mxu0 %v404
  %784 = vmatprep.subr.bf16.mxu0 %v413
  %785 = vmatpush1.bf16.msra.mxu0 %v412
  %786 = vmatprep.subr.bf16.mxu0 %v421
  %787 = vmatpush1.bf16.msra.mxu0 %v420
  %788 = vmatprep.subr.bf16.mxu0 %v429
  %789 = vmatpush1.bf16.msra.mxu0 %v428
  %790 = vmatprep.subr.bf16.mxu0 %v437
  %791 = vmatpush1.bf16.msra.mxu0 %v436
  %792 = vmatprep.subr.bf16.mxu0 %v445
  %793 = vmatpush1.bf16.msra.mxu0 %v444
  %794 = vmatprep.subr.bf16.mxu0 %v453
  %795 = vmatpush1.bf16.msra.mxu0 %v452
  %796 = vmatprep.subr.bf16.mxu0 %v461
  %797 = vmatpush1.bf16.msra.mxu0 %v460
  %798 = vmatprep.subr.bf16.mxu0 %v469
  %799 = vmatpush1.bf16.msra.mxu0 %v468
  %800 = vmatprep.mubr.bf16.mxu0 %v601
  %801 = vmatmul.mubr.bf16.gmra.mrb[0].mxu0 %v600
  %v802 = vpop.f32.mrb[0].mxu0
  %v803 = vadd.f32 0.0, %v802
  %v804 = vpop.f32.mrb[0].mxu0
  %v805 = vadd.f32 0.0, %v804
  %v806 = vpop.f32.mrb[0].mxu0
  %v807 = vpop.f32.mrb[0].mxu0
  %808 = vdwg.mxu0
  %809 = vmatprep.subr.bf16.mxu0 %v477
  %810 = vmatpush1.bf16.msra.mxu0 %v476
  %811 = vmatprep.subr.bf16.mxu0 %v485
  %812 = vmatpush1.bf16.msra.mxu0 %v484
  %813 = vmatprep.subr.bf16.mxu0 %v493
  %814 = vmatpush1.bf16.msra.mxu0 %v492
  %815 = vmatprep.subr.bf16.mxu0 %v501
  %816 = vmatpush1.bf16.msra.mxu0 %v500
  %817 = vmatprep.subr.bf16.mxu0 %v509
  %818 = vmatpush1.bf16.msra.mxu0 %v508
  %819 = vmatprep.subr.bf16.mxu0 %v517
  %820 = vmatpush1.bf16.msra.mxu0 %v516
  %821 = vmatprep.subr.bf16.mxu0 %v525
  %822 = vmatpush1.bf16.msra.mxu0 %v524
  %823 = vmatprep.subr.bf16.mxu0 %v533
  %824 = vmatpush1.bf16.msra.mxu0 %v532
  %825 = vmatprep.subr.bf16.mxu0 %v541
  %826 = vmatpush1.bf16.msra.mxu0 %v540
  %827 = vmatprep.subr.bf16.mxu0 %v549
  %828 = vmatpush1.bf16.msra.mxu0 %v548
  %829 = vmatprep.subr.bf16.mxu0 %v557
  %830 = vmatpush1.bf16.msra.mxu0 %v556
  %831 = vmatprep.subr.bf16.mxu0 %v565
  %832 = vmatpush1.bf16.msra.mxu0 %v564
  %833 = vmatprep.subr.bf16.mxu0 %v573
  %834 = vmatpush1.bf16.msra.mxu0 %v572
  %835 = vmatprep.subr.bf16.mxu0 %v581
  %836 = vmatpush1.bf16.msra.mxu0 %v580
  %837 = vmatprep.subr.bf16.mxu0 %v589
  %838 = vmatpush1.bf16.msra.mxu0 %v588
  %839 = vmatprep.subr.bf16.mxu0 %v597
  %840 = vmatpush1.bf16.msra.mxu0 %v596
  %841 = vmatprep.mubr.bf16.mxu0 %v603
  %842 = vmatmul.mubr.bf16.gmra.mrb[0].mxu0 %v602
  %v843 = vpop.f32.mrb[0].mxu0
  %v844 = vadd.f32 %v803, %v843
  %v845 = vpop.f32.mrb[0].mxu0
  %v846 = vadd.f32 %v805, %v845
  %v847 = vpop.f32.mrb[0].mxu0
  %v848 = vpop.f32.mrb[0].mxu0
  %849 = vdwg.mxu0
  %850 = vmatprep.subr.bf16.mxu0 %v351
  %851 = vmatpush1.bf16.msra.mxu0 %v350
  %852 = vmatprep.subr.bf16.mxu0 %v359
  %853 = vmatpush1.bf16.msra.mxu0 %v358
  %854 = vmatprep.subr.bf16.mxu0 %v367
  %855 = vmatpush1.bf16.msra.mxu0 %v366
  %856 = vmatprep.subr.bf16.mxu0 %v375
  %857 = vmatpush1.bf16.msra.mxu0 %v374
  %858 = vmatprep.subr.bf16.mxu0 %v383
  %859 = vmatpush1.bf16.msra.mxu0 %v382
  %860 = vmatprep.subr.bf16.mxu0 %v391
  %861 = vmatpush1.bf16.msra.mxu0 %v390
  %862 = vmatprep.subr.bf16.mxu0 %v399
  %863 = vmatpush1.bf16.msra.mxu0 %v398
  %864 = vmatprep.subr.bf16.mxu0 %v407
  %865 = vmatpush1.bf16.msra.mxu0 %v406
  %866 = vmatprep.subr.bf16.mxu0 %v415
  %867 = vmatpush1.bf16.msra.mxu0 %v414
  %868 = vmatprep.subr.bf16.mxu0 %v423
  %869 = vmatpush1.bf16.msra.mxu0 %v422
  %870 = vmatprep.subr.bf16.mxu0 %v431
  %871 = vmatpush1.bf16.msra.mxu0 %v430
  %872 = vmatprep.subr.bf16.mxu0 %v439
  %873 = vmatpush1.bf16.msra.mxu0 %v438
  %874 = vmatprep.subr.bf16.mxu0 %v447
  %875 = vmatpush1.bf16.msra.mxu0 %v446
  %876 = vmatprep.subr.bf16.mxu0 %v455
  %877 = vmatpush1.bf16.msra.mxu0 %v454
  %878 = vmatprep.subr.bf16.mxu0 %v463
  %879 = vmatpush1.bf16.msra.mxu0 %v462
  %880 = vmatprep.subr.bf16.mxu0 %v471
  %881 = vmatpush1.bf16.msra.mxu0 %v470
  %882 = vmatprep.mubr.bf16.mxu0 %v601
  %883 = vmatmul.mubr.bf16.gmra.mrb[0].mxu0 %v600
  %v884 = vpop.f32.mrb[0].mxu0
  %v885 = vadd.f32 0.0, %v884
  %v886 = vpop.f32.mrb[0].mxu0
  %v887 = vadd.f32 0.0, %v886
  %v888 = vpop.f32.mrb[0].mxu0
  %v889 = vpop.f32.mrb[0].mxu0
  %890 = vdwg.mxu0
  %891 = vmatprep.subr.bf16.mxu0 %v479
  %892 = vmatpush1.bf16.msra.mxu0 %v478
  %893 = vmatprep.subr.bf16.mxu0 %v487
  %894 = vmatpush1.bf16.msra.mxu0 %v486
  %895 = vmatprep.subr.bf16.mxu0 %v495
  %896 = vmatpush1.bf16.msra.mxu0 %v494
  %897 = vmatprep.subr.bf16.mxu0 %v503
  %898 = vmatpush1.bf16.msra.mxu0 %v502
  %899 = vmatprep.subr.bf16.mxu0 %v511
  %900 = vmatpush1.bf16.msra.mxu0 %v510
  %901 = vmatprep.subr.bf16.mxu0 %v519
  %902 = vmatpush1.bf16.msra.mxu0 %v518
  %903 = vmatprep.subr.bf16.mxu0 %v527
  %904 = vmatpush1.bf16.msra.mxu0 %v526
  %905 = vmatprep.subr.bf16.mxu0 %v535
  %906 = vmatpush1.bf16.msra.mxu0 %v534
  %907 = vmatprep.subr.bf16.mxu0 %v543
  %908 = vmatpush1.bf16.msra.mxu0 %v542
  %909 = vmatprep.subr.bf16.mxu0 %v551
  %910 = vmatpush1.bf16.msra.mxu0 %v550
  %911 = vmatprep.subr.bf16.mxu0 %v559
  %912 = vmatpush1.bf16.msra.mxu0 %v558
  %913 = vmatprep.subr.bf16.mxu0 %v567
  %914 = vmatpush1.bf16.msra.mxu0 %v566
  %915 = vmatprep.subr.bf16.mxu0 %v575
  %916 = vmatpush1.bf16.msra.mxu0 %v574
  %917 = vmatprep.subr.bf16.mxu0 %v583
  %918 = vmatpush1.bf16.msra.mxu0 %v582
  %919 = vmatprep.subr.bf16.mxu0 %v591
  %920 = vmatpush1.bf16.msra.mxu0 %v590
  %921 = vmatprep.subr.bf16.mxu0 %v599
  %922 = vmatpush1.bf16.msra.mxu0 %v598
  %923 = vmatprep.mubr.bf16.mxu0 %v603
  %924 = vmatmul.mubr.bf16.gmra.mrb[0].mxu0 %v602
  %v925 = vpop.f32.mrb[0].mxu0
  %v926 = vadd.f32 %v885, %v925
  %v927 = vpop.f32.mrb[0].mxu0
  %v928 = vadd.f32 %v887, %v927
  %v929 = vpop.f32.mrb[0].mxu0
  %v930 = vpop.f32.mrb[0].mxu0
  %931 = vdwg.mxu0
  %v932 = vld [vmem:[%s4] ss:$2 sm:$0xff]
  %v934 = vlaneseq
  %v935 = vshrl.u32 %v934, 7
  %v936 = vsub.s32 0, %v935
  %v937 = vrot.slane %v932, %v936
  %v938 = vlaneseq
  %v939 = vshrl.u32 %v938, 7
  %v940 = vsub.s32 1, %v939
  %v941 = vrot.slane %v932, %v940
  %v942 = vlaneseq
  %v943 = vshrl.u32 %v942, 7
  %v944 = vsub.s32 2, %v943
  %v945 = vrot.slane %v932, %v944
  %v946 = vlaneseq
  %v947 = vshrl.u32 %v946, 7
  %v948 = vsub.s32 3, %v947
  %v949 = vrot.slane %v932, %v948
  %v950 = vlaneseq
  %v951 = vshrl.u32 %v950, 7
  %v952 = vsub.s32 4, %v951
  %v953 = vrot.slane %v932, %v952
  %v954 = vlaneseq
  %v955 = vshrl.u32 %v954, 7
  %v956 = vsub.s32 5, %v955
  %v957 = vrot.slane %v932, %v956
  %v958 = vlaneseq
  %v959 = vshrl.u32 %v958, 7
  %v960 = vsub.s32 6, %v959
  %v961 = vrot.slane %v932, %v960
  %v962 = vlaneseq
  %v963 = vshrl.u32 %v962, 7
  %v964 = vsub.s32 7, %v963
  %v965 = vrot.slane %v932, %v964
  %v974 = vmul.f32 %v680, %v937
  %v975 = vmul.f32 %v682, %v941
  %v976 = vmul.f32 %v762, %v945
  %v977 = vmul.f32 %v764, %v949
  %v978 = vmul.f32 %v844, %v953
  %v979 = vmul.f32 %v846, %v957
  %v980 = vmul.f32 %v926, %v961
  %v981 = vmul.f32 %v928, %v965
  %s982 = scalar_lea.vmem %s4, 1
  %v983 = vld [vmem:[%s982] ss:$2 sm:$0xff]
  %v985 = vlaneseq
  %v986 = vshrl.u32 %v985, 7
  %v987 = vsub.s32 0, %v986
  %v988 = vrot.slane %v983, %v987
  %v989 = vlaneseq
  %v990 = vshrl.u32 %v989, 7
  %v991 = vsub.s32 1, %v990
  %v992 = vrot.slane %v983, %v991
  %v993 = vlaneseq
  %v994 = vshrl.u32 %v993, 7
  %v995 = vsub.s32 2, %v994
  %v996 = vrot.slane %v983, %v995
  %v997 = vlaneseq
  %v998 = vshrl.u32 %v997, 7
  %v999 = vsub.s32 3, %v998
  %v1000 = vrot.slane %v983, %v999
  %v1001 = vlaneseq
  %v1002 = vshrl.u32 %v1001, 7
  %v1003 = vsub.s32 4, %v1002
  %v1004 = vrot.slane %v983, %v1003
  %v1005 = vlaneseq
  %v1006 = vshrl.u32 %v1005, 7
  %v1007 = vsub.s32 5, %v1006
  %v1008 = vrot.slane %v983, %v1007
  %v1009 = vlaneseq
  %v1010 = vshrl.u32 %v1009, 7
  %v1011 = vsub.s32 6, %v1010
  %v1012 = vrot.slane %v983, %v1011
  %v1013 = vlaneseq
  %v1014 = vshrl.u32 %v1013, 7
  %v1015 = vsub.s32 7, %v1014
  %v1016 = vrot.slane %v983, %v1015
  %v1025 = vadd.f32 %v974, %v988
  %v1026 = vadd.f32 %v975, %v992
  %v1027 = vadd.f32 %v976, %v996
  %v1028 = vadd.f32 %v977, %v1000
  %v1029 = vadd.f32 %v978, %v1004
  %v1030 = vadd.f32 %v979, %v1008
  %v1031 = vadd.f32 %v980, %v1012
  %v1032 = vadd.f32 %v981, %v1016
  %v1033 = vmax.f32 %v1025, 0.0
  %v1034 = vmax.f32 %v1026, 0.0
  %v1035 = vmax.f32 %v1027, 0.0
  %v1036 = vmax.f32 %v1028, 0.0
  %v1037 = vmax.f32 %v1029, 0.0
  %v1038 = vmax.f32 %v1030, 0.0
  %v1039 = vmax.f32 %v1031, 0.0
  %v1040 = vmax.f32 %v1032, 0.0
  %v1041 = vld [vmem:[%s5] sm:$0xff]
  %v1042 = vld [vmem:[%s5 + $0x8] sm:$0xff]
  %v1043 = vld [vmem:[%s5 + $0x10] sm:$0xff]
  %v1044 = vld [vmem:[%s5 + $0x18] sm:$0xff]
  %v1045 = vld [vmem:[%s5 + $0x20] sm:$0xff]
  %v1046 = vld [vmem:[%s5 + $0x28] sm:$0xff]
  %v1047 = vld [vmem:[%s5 + $0x30] sm:$0xff]
  %v1048 = vld [vmem:[%s5 + $0x38] sm:$0xff]
  %v1049 = vld [vmem:[%s5 + $0x40] sm:$0xff]
  %v1050 = vld [vmem:[%s5 + $0x48] sm:$0xff]
  %v1051 = vld [vmem:[%s5 + $0x50] sm:$0xff]
  %v1052 = vld [vmem:[%s5 + $0x58] sm:$0xff]
  %v1053 = vld [vmem:[%s5 + $0x60] sm:$0xff]
  %v1054 = vld [vmem:[%s5 + $0x68] sm:$0xff]
  %v1055 = vld [vmem:[%s5 + $0x70] sm:$0xff]
  %v1056 = vld [vmem:[%s5 + $0x78] sm:$0xff]
  %v1057 = vld [vmem:[%s5 + $0x80] sm:$0xff]
  %v1058 = vld [vmem:[%s5 + $0x88] sm:$0xff]
  %v1059 = vld [vmem:[%s5 + $0x90] sm:$0xff]
  %v1060 = vld [vmem:[%s5 + $0x98] sm:$0xff]
  %v1061 = vld [vmem:[%s5 + $0xa0] sm:$0xff]
  %v1062 = vld [vmem:[%s5 + $0xa8] sm:$0xff]
  %v1063 = vld [vmem:[%s5 + $0xb0] sm:$0xff]
  %v1064 = vld [vmem:[%s5 + $0xb8] sm:$0xff]
  %v1065 = vld [vmem:[%s5 + $0xc0] sm:$0xff]
  %v1066 = vld [vmem:[%s5 + $0xc8] sm:$0xff]
  %v1067 = vld [vmem:[%s5 + $0xd0] sm:$0xff]
  %v1068 = vld [vmem:[%s5 + $0xd8] sm:$0xff]
  %v1069 = vld [vmem:[%s5 + $0xe0] sm:$0xff]
  %v1070 = vld [vmem:[%s5 + $0xe8] sm:$0xff]
  %v1071 = vld [vmem:[%s5 + $0xf0] sm:$0xff]
  %v1072 = vld [vmem:[%s5 + $0xf8] sm:$0xff]
  %v1073 = vld [vmem:[%s5 + $0x100] sm:$0xff]
  %v1074 = vld [vmem:[%s5 + $0x108] sm:$0xff]
  %v1075 = vld [vmem:[%s5 + $0x110] sm:$0xff]
  %v1076 = vld [vmem:[%s5 + $0x118] sm:$0xff]
  %v1077 = vld [vmem:[%s5 + $0x120] sm:$0xff]
  %v1078 = vld [vmem:[%s5 + $0x128] sm:$0xff]
  %v1079 = vld [vmem:[%s5 + $0x130] sm:$0xff]
  %v1080 = vld [vmem:[%s5 + $0x138] sm:$0xff]
  %v1081 = vld [vmem:[%s5 + $0x140] sm:$0xff]
  %v1082 = vld [vmem:[%s5 + $0x148] sm:$0xff]
  %v1083 = vld [vmem:[%s5 + $0x150] sm:$0xff]
  %v1084 = vld [vmem:[%s5 + $0x158] sm:$0xff]
  %v1085 = vld [vmem:[%s5 + $0x160] sm:$0xff]
  %v1086 = vld [vmem:[%s5 + $0x168] sm:$0xff]
  %v1087 = vld [vmem:[%s5 + $0x170] sm:$0xff]
  %v1088 = vld [vmem:[%s5 + $0x178] sm:$0xff]
  %v1089 = vld [vmem:[%s5 + $0x180] sm:$0xff]
  %v1090 = vld [vmem:[%s5 + $0x188] sm:$0xff]
  %v1091 = vld [vmem:[%s5 + $0x190] sm:$0xff]
  %v1092 = vld [vmem:[%s5 + $0x198] sm:$0xff]
  %v1093 = vld [vmem:[%s5 + $0x1a0] sm:$0xff]
  %v1094 = vld [vmem:[%s5 + $0x1a8] sm:$0xff]
  %v1095 = vld [vmem:[%s5 + $0x1b0] sm:$0xff]
  %v1096 = vld [vmem:[%s5 + $0x1b8] sm:$0xff]
  %v1097 = vld [vmem:[%s5 + $0x1c0] sm:$0xff]
  %v1098 = vld [vmem:[%s5 + $0x1c8] sm:$0xff]
  %v1099 = vld [vmem:[%s5 + $0x1d0] sm:$0xff]
  %v1100 = vld [vmem:[%s5 + $0x1d8] sm:$0xff]
  %v1101 = vld [vmem:[%s5 + $0x1e0] sm:$0xff]
  %v1102 = vld [vmem:[%s5 + $0x1e8] sm:$0xff]
  %v1103 = vld [vmem:[%s5 + $0x1f0] sm:$0xff]
  %v1104 = vld [vmem:[%s5 + $0x1f8] sm:$0xff]
  %v1105 = vld [vmem:[%s5 + $0x200] sm:$0xff]
  %v1106 = vld [vmem:[%s5 + $0x208] sm:$0xff]
  %v1107 = vld [vmem:[%s5 + $0x210] sm:$0xff]
  %v1108 = vld [vmem:[%s5 + $0x218] sm:$0xff]
  %v1109 = vld [vmem:[%s5 + $0x220] sm:$0xff]
  %v1110 = vld [vmem:[%s5 + $0x228] sm:$0xff]
  %v1111 = vld [vmem:[%s5 + $0x230] sm:$0xff]
  %v1112 = vld [vmem:[%s5 + $0x238] sm:$0xff]
  %v1113 = vld [vmem:[%s5 + $0x240] sm:$0xff]
  %v1114 = vld [vmem:[%s5 + $0x248] sm:$0xff]
  %v1115 = vld [vmem:[%s5 + $0x250] sm:$0xff]
  %v1116 = vld [vmem:[%s5 + $0x258] sm:$0xff]
  %v1117 = vld [vmem:[%s5 + $0x260] sm:$0xff]
  %v1118 = vld [vmem:[%s5 + $0x268] sm:$0xff]
  %v1119 = vld [vmem:[%s5 + $0x270] sm:$0xff]
  %v1120 = vld [vmem:[%s5 + $0x278] sm:$0xff]
  %v1121 = vld [vmem:[%s5 + $0x280] sm:$0xff]
  %v1122 = vld [vmem:[%s5 + $0x288] sm:$0xff]
  %v1123 = vld [vmem:[%s5 + $0x290] sm:$0xff]
  %v1124 = vld [vmem:[%s5 + $0x298] sm:$0xff]
  %v1125 = vld [vmem:[%s5 + $0x2a0] sm:$0xff]
  %v1126 = vld [vmem:[%s5 + $0x2a8] sm:$0xff]
  %v1127 = vld [vmem:[%s5 + $0x2b0] sm:$0xff]
  %v1128 = vld [vmem:[%s5 + $0x2b8] sm:$0xff]
  %v1129 = vld [vmem:[%s5 + $0x2c0] sm:$0xff]
  %v1130 = vld [vmem:[%s5 + $0x2c8] sm:$0xff]
  %v1131 = vld [vmem:[%s5 + $0x2d0] sm:$0xff]
  %v1132 = vld [vmem:[%s5 + $0x2d8] sm:$0xff]
  %v1133 = vld [vmem:[%s5 + $0x2e0] sm:$0xff]
  %v1134 = vld [vmem:[%s5 + $0x2e8] sm:$0xff]
  %v1135 = vld [vmem:[%s5 + $0x2f0] sm:$0xff]
  %v1136 = vld [vmem:[%s5 + $0x2f8] sm:$0xff]
  %v1137 = vld [vmem:[%s5 + $0x300] sm:$0xff]
  %v1138 = vld [vmem:[%s5 + $0x308] sm:$0xff]
  %v1139 = vld [vmem:[%s5 + $0x310] sm:$0xff]
  %v1140 = vld [vmem:[%s5 + $0x318] sm:$0xff]
  %v1141 = vld [vmem:[%s5 + $0x320] sm:$0xff]
  %v1142 = vld [vmem:[%s5 + $0x328] sm:$0xff]
  %v1143 = vld [vmem:[%s5 + $0x330] sm:$0xff]
  %v1144 = vld [vmem:[%s5 + $0x338] sm:$0xff]
  %v1145 = vld [vmem:[%s5 + $0x340] sm:$0xff]
  %v1146 = vld [vmem:[%s5 + $0x348] sm:$0xff]
  %v1147 = vld [vmem:[%s5 + $0x350] sm:$0xff]
  %v1148 = vld [vmem:[%s5 + $0x358] sm:$0xff]
  %v1149 = vld [vmem:[%s5 + $0x360] sm:$0xff]
  %v1150 = vld [vmem:[%s5 + $0x368] sm:$0xff]
  %v1151 = vld [vmem:[%s5 + $0x370] sm:$0xff]
  %v1152 = vld [vmem:[%s5 + $0x378] sm:$0xff]
  %v1153 = vld [vmem:[%s5 + $0x380] sm:$0xff]
  %v1154 = vld [vmem:[%s5 + $0x388] sm:$0xff]
  %v1155 = vld [vmem:[%s5 + $0x390] sm:$0xff]
  %v1156 = vld [vmem:[%s5 + $0x398] sm:$0xff]
  %v1157 = vld [vmem:[%s5 + $0x3a0] sm:$0xff]
  %v1158 = vld [vmem:[%s5 + $0x3a8] sm:$0xff]
  %v1159 = vld [vmem:[%s5 + $0x3b0] sm:$0xff]
  %v1160 = vld [vmem:[%s5 + $0x3b8] sm:$0xff]
  %v1161 = vld [vmem:[%s5 + $0x3c0] sm:$0xff]
  %v1162 = vld [vmem:[%s5 + $0x3c8] sm:$0xff]
  %v1163 = vld [vmem:[%s5 + $0x3d0] sm:$0xff]
  %v1164 = vld [vmem:[%s5 + $0x3d8] sm:$0xff]
  %v1165 = vld [vmem:[%s5 + $0x3e0] sm:$0xff]
  %v1166 = vld [vmem:[%s5 + $0x3e8] sm:$0xff]
  %v1167 = vld [vmem:[%s5 + $0x3f0] sm:$0xff]
  %v1168 = vld [vmem:[%s5 + $0x3f8] sm:$0xff]
  %v1169 = vld [vmem:[%s5 + $0x400] sm:$0xff]
  %v1170 = vld [vmem:[%s5 + $0x408] sm:$0xff]
  %v1171 = vld [vmem:[%s5 + $0x410] sm:$0xff]
  %v1172 = vld [vmem:[%s5 + $0x418] sm:$0xff]
  %v1173 = vld [vmem:[%s5 + $0x420] sm:$0xff]
  %v1174 = vld [vmem:[%s5 + $0x428] sm:$0xff]
  %v1175 = vld [vmem:[%s5 + $0x430] sm:$0xff]
  %v1176 = vld [vmem:[%s5 + $0x438] sm:$0xff]
  %v1177 = vld [vmem:[%s5 + $0x440] sm:$0xff]
  %v1178 = vld [vmem:[%s5 + $0x448] sm:$0xff]
  %v1179 = vld [vmem:[%s5 + $0x450] sm:$0xff]
  %v1180 = vld [vmem:[%s5 + $0x458] sm:$0xff]
  %v1181 = vld [vmem:[%s5 + $0x460] sm:$0xff]
  %v1182 = vld [vmem:[%s5 + $0x468] sm:$0xff]
  %v1183 = vld [vmem:[%s5 + $0x470] sm:$0xff]
  %v1184 = vld [vmem:[%s5 + $0x478] sm:$0xff]
  %v1185 = vld [vmem:[%s5 + $0x480] sm:$0xff]
  %v1186 = vld [vmem:[%s5 + $0x488] sm:$0xff]
  %v1187 = vld [vmem:[%s5 + $0x490] sm:$0xff]
  %v1188 = vld [vmem:[%s5 + $0x498] sm:$0xff]
  %v1189 = vld [vmem:[%s5 + $0x4a0] sm:$0xff]
  %v1190 = vld [vmem:[%s5 + $0x4a8] sm:$0xff]
  %v1191 = vld [vmem:[%s5 + $0x4b0] sm:$0xff]
  %v1192 = vld [vmem:[%s5 + $0x4b8] sm:$0xff]
  %v1193 = vld [vmem:[%s5 + $0x4c0] sm:$0xff]
  %v1194 = vld [vmem:[%s5 + $0x4c8] sm:$0xff]
  %v1195 = vld [vmem:[%s5 + $0x4d0] sm:$0xff]
  %v1196 = vld [vmem:[%s5 + $0x4d8] sm:$0xff]
  %v1197 = vld [vmem:[%s5 + $0x4e0] sm:$0xff]
  %v1198 = vld [vmem:[%s5 + $0x4e8] sm:$0xff]
  %v1199 = vld [vmem:[%s5 + $0x4f0] sm:$0xff]
  %v1200 = vld [vmem:[%s5 + $0x4f8] sm:$0xff]
  %v1201 = vld [vmem:[%s5 + $0x500] sm:$0xff]
  %v1202 = vld [vmem:[%s5 + $0x508] sm:$0xff]
  %v1203 = vld [vmem:[%s5 + $0x510] sm:$0xff]
  %v1204 = vld [vmem:[%s5 + $0x518] sm:$0xff]
  %v1205 = vld [vmem:[%s5 + $0x520] sm:$0xff]
  %v1206 = vld [vmem:[%s5 + $0x528] sm:$0xff]
  %v1207 = vld [vmem:[%s5 + $0x530] sm:$0xff]
  %v1208 = vld [vmem:[%s5 + $0x538] sm:$0xff]
  %v1209 = vld [vmem:[%s5 + $0x540] sm:$0xff]
  %v1210 = vld [vmem:[%s5 + $0x548] sm:$0xff]
  %v1211 = vld [vmem:[%s5 + $0x550] sm:$0xff]
  %v1212 = vld [vmem:[%s5 + $0x558] sm:$0xff]
  %v1213 = vld [vmem:[%s5 + $0x560] sm:$0xff]
  %v1214 = vld [vmem:[%s5 + $0x568] sm:$0xff]
  %v1215 = vld [vmem:[%s5 + $0x570] sm:$0xff]
  %v1216 = vld [vmem:[%s5 + $0x578] sm:$0xff]
  %v1217 = vld [vmem:[%s5 + $0x580] sm:$0xff]
  %v1218 = vld [vmem:[%s5 + $0x588] sm:$0xff]
  %v1219 = vld [vmem:[%s5 + $0x590] sm:$0xff]
  %v1220 = vld [vmem:[%s5 + $0x598] sm:$0xff]
  %v1221 = vld [vmem:[%s5 + $0x5a0] sm:$0xff]
  %v1222 = vld [vmem:[%s5 + $0x5a8] sm:$0xff]
  %v1223 = vld [vmem:[%s5 + $0x5b0] sm:$0xff]
  %v1224 = vld [vmem:[%s5 + $0x5b8] sm:$0xff]
  %v1225 = vld [vmem:[%s5 + $0x5c0] sm:$0xff]
  %v1226 = vld [vmem:[%s5 + $0x5c8] sm:$0xff]
  %v1227 = vld [vmem:[%s5 + $0x5d0] sm:$0xff]
  %v1228 = vld [vmem:[%s5 + $0x5d8] sm:$0xff]
  %v1229 = vld [vmem:[%s5 + $0x5e0] sm:$0xff]
  %v1230 = vld [vmem:[%s5 + $0x5e8] sm:$0xff]
  %v1231 = vld [vmem:[%s5 + $0x5f0] sm:$0xff]
  %v1232 = vld [vmem:[%s5 + $0x5f8] sm:$0xff]
  %v1233 = vld [vmem:[%s5 + $0x600] sm:$0xff]
  %v1234 = vld [vmem:[%s5 + $0x608] sm:$0xff]
  %v1235 = vld [vmem:[%s5 + $0x610] sm:$0xff]
  %v1236 = vld [vmem:[%s5 + $0x618] sm:$0xff]
  %v1237 = vld [vmem:[%s5 + $0x620] sm:$0xff]
  %v1238 = vld [vmem:[%s5 + $0x628] sm:$0xff]
  %v1239 = vld [vmem:[%s5 + $0x630] sm:$0xff]
  %v1240 = vld [vmem:[%s5 + $0x638] sm:$0xff]
  %v1241 = vld [vmem:[%s5 + $0x640] sm:$0xff]
  %v1242 = vld [vmem:[%s5 + $0x648] sm:$0xff]
  %v1243 = vld [vmem:[%s5 + $0x650] sm:$0xff]
  %v1244 = vld [vmem:[%s5 + $0x658] sm:$0xff]
  %v1245 = vld [vmem:[%s5 + $0x660] sm:$0xff]
  %v1246 = vld [vmem:[%s5 + $0x668] sm:$0xff]
  %v1247 = vld [vmem:[%s5 + $0x670] sm:$0xff]
  %v1248 = vld [vmem:[%s5 + $0x678] sm:$0xff]
  %v1249 = vld [vmem:[%s5 + $0x680] sm:$0xff]
  %v1250 = vld [vmem:[%s5 + $0x688] sm:$0xff]
  %v1251 = vld [vmem:[%s5 + $0x690] sm:$0xff]
  %v1252 = vld [vmem:[%s5 + $0x698] sm:$0xff]
  %v1253 = vld [vmem:[%s5 + $0x6a0] sm:$0xff]
  %v1254 = vld [vmem:[%s5 + $0x6a8] sm:$0xff]
  %v1255 = vld [vmem:[%s5 + $0x6b0] sm:$0xff]
  %v1256 = vld [vmem:[%s5 + $0x6b8] sm:$0xff]
  %v1257 = vld [vmem:[%s5 + $0x6c0] sm:$0xff]
  %v1258 = vld [vmem:[%s5 + $0x6c8] sm:$0xff]
  %v1259 = vld [vmem:[%s5 + $0x6d0] sm:$0xff]
  %v1260 = vld [vmem:[%s5 + $0x6d8] sm:$0xff]
  %v1261 = vld [vmem:[%s5 + $0x6e0] sm:$0xff]
  %v1262 = vld [vmem:[%s5 + $0x6e8] sm:$0xff]
  %v1263 = vld [vmem:[%s5 + $0x6f0] sm:$0xff]
  %v1264 = vld [vmem:[%s5 + $0x6f8] sm:$0xff]
  %v1265 = vunpack.c.l.s8.bf16 %v1041
  %v1266 = vunpack.c.l.s8.bf16 %v1042
  %v1267 = vunpack.c.l.s8.bf16 %v1043
  %v1268 = vunpack.c.l.s8.bf16 %v1044
  %v1269 = vunpack.c.l.s8.bf16 %v1045
  %v1270 = vunpack.c.l.s8.bf16 %v1046
  %v1271 = vunpack.c.l.s8.bf16 %v1047
  %v1272 = vunpack.c.h.s8.bf16 %v1041
  %v1273 = vunpack.c.h.s8.bf16 %v1042
  %v1274 = vunpack.c.h.s8.bf16 %v1043
  %v1275 = vunpack.c.h.s8.bf16 %v1044
  %v1276 = vunpack.c.h.s8.bf16 %v1045
  %v1277 = vunpack.c.h.s8.bf16 %v1046
  %v1278 = vunpack.c.h.s8.bf16 %v1047
  %v1279 = vunpack.c.l.s8.bf16 %v1048
  %v1280 = vunpack.c.l.s8.bf16 %v1049
  %v1281 = vunpack.c.l.s8.bf16 %v1050
  %v1282 = vunpack.c.l.s8.bf16 %v1051
  %v1283 = vunpack.c.l.s8.bf16 %v1052
  %v1284 = vunpack.c.l.s8.bf16 %v1053
  %v1285 = vunpack.c.l.s8.bf16 %v1054
  %v1286 = vunpack.c.h.s8.bf16 %v1048
  %v1287 = vunpack.c.h.s8.bf16 %v1049
  %v1288 = vunpack.c.h.s8.bf16 %v1050
  %v1289 = vunpack.c.h.s8.bf16 %v1051
  %v1290 = vunpack.c.h.s8.bf16 %v1052
  %v1291 = vunpack.c.h.s8.bf16 %v1053
  %v1292 = vunpack.c.h.s8.bf16 %v1054
  %v1293 = vunpack.c.l.s8.bf16 %v1055
  %v1294 = vunpack.c.l.s8.bf16 %v1056
  %v1295 = vunpack.c.l.s8.bf16 %v1057
  %v1296 = vunpack.c.l.s8.bf16 %v1058
  %v1297 = vunpack.c.l.s8.bf16 %v1059
  %v1298 = vunpack.c.l.s8.bf16 %v1060
  %v1299 = vunpack.c.l.s8.bf16 %v1061
  %v1300 = vunpack.c.h.s8.bf16 %v1055
  %v1301 = vunpack.c.h.s8.bf16 %v1056
  %v1302 = vunpack.c.h.s8.bf16 %v1057
  %v1303 = vunpack.c.h.s8.bf16 %v1058
  %v1304 = vunpack.c.h.s8.bf16 %v1059
  %v1305 = vunpack.c.h.s8.bf16 %v1060
  %v1306 = vunpack.c.h.s8.bf16 %v1061
  %v1307 = vunpack.c.l.s8.bf16 %v1062
  %v1308 = vunpack.c.l.s8.bf16 %v1063
  %v1309 = vunpack.c.l.s8.bf16 %v1064
  %v1310 = vunpack.c.l.s8.bf16 %v1065
  %v1311 = vunpack.c.l.s8.bf16 %v1066
  %v1312 = vunpack.c.l.s8.bf16 %v1067
  %v1313 = vunpack.c.l.s8.bf16 %v1068
  %v1314 = vunpack.c.h.s8.bf16 %v1062
  %v1315 = vunpack.c.h.s8.bf16 %v1063
  %v1316 = vunpack.c.h.s8.bf16 %v1064
  %v1317 = vunpack.c.h.s8.bf16 %v1065
  %v1318 = vunpack.c.h.s8.bf16 %v1066
  %v1319 = vunpack.c.h.s8.bf16 %v1067
  %v1320 = vunpack.c.h.s8.bf16 %v1068
  %v1321 = vunpack.c.l.s8.bf16 %v1069
  %v1322 = vunpack.c.l.s8.bf16 %v1070
  %v1323 = vunpack.c.l.s8.bf16 %v1071
  %v1324 = vunpack.c.l.s8.bf16 %v1072
  %v1325 = vunpack.c.l.s8.bf16 %v1073
  %v1326 = vunpack.c.l.s8.bf16 %v1074
  %v1327 = vunpack.c.l.s8.bf16 %v1075
  %v1328 = vunpack.c.h.s8.bf16 %v1069
  %v1329 = vunpack.c.h.s8.bf16 %v1070
  %v1330 = vunpack.c.h.s8.bf16 %v1071
  %v1331 = vunpack.c.h.s8.bf16 %v1072
  %v1332 = vunpack.c.h.s8.bf16 %v1073
  %v1333 = vunpack.c.h.s8.bf16 %v1074
  %v1334 = vunpack.c.h.s8.bf16 %v1075
  %v1335 = vunpack.c.l.s8.bf16 %v1076
  %v1336 = vunpack.c.l.s8.bf16 %v1077
  %v1337 = vunpack.c.l.s8.bf16 %v1078
  %v1338 = vunpack.c.l.s8.bf16 %v1079
  %v1339 = vunpack.c.l.s8.bf16 %v1080
  %v1340 = vunpack.c.l.s8.bf16 %v1081
  %v1341 = vunpack.c.l.s8.bf16 %v1082
  %v1342 = vunpack.c.h.s8.bf16 %v1076
  %v1343 = vunpack.c.h.s8.bf16 %v1077
  %v1344 = vunpack.c.h.s8.bf16 %v1078
  %v1345 = vunpack.c.h.s8.bf16 %v1079
  %v1346 = vunpack.c.h.s8.bf16 %v1080
  %v1347 = vunpack.c.h.s8.bf16 %v1081
  %v1348 = vunpack.c.h.s8.bf16 %v1082
  %v1349 = vunpack.c.l.s8.bf16 %v1083
  %v1350 = vunpack.c.l.s8.bf16 %v1084
  %v1351 = vunpack.c.l.s8.bf16 %v1085
  %v1352 = vunpack.c.l.s8.bf16 %v1086
  %v1353 = vunpack.c.l.s8.bf16 %v1087
  %v1354 = vunpack.c.l.s8.bf16 %v1088
  %v1355 = vunpack.c.l.s8.bf16 %v1089
  %v1356 = vunpack.c.h.s8.bf16 %v1083
  %v1357 = vunpack.c.h.s8.bf16 %v1084
  %v1358 = vunpack.c.h.s8.bf16 %v1085
  %v1359 = vunpack.c.h.s8.bf16 %v1086
  %v1360 = vunpack.c.h.s8.bf16 %v1087
  %v1361 = vunpack.c.h.s8.bf16 %v1088
  %v1362 = vunpack.c.h.s8.bf16 %v1089
  %v1363 = vunpack.c.l.s8.bf16 %v1090
  %v1364 = vunpack.c.l.s8.bf16 %v1091
  %v1365 = vunpack.c.l.s8.bf16 %v1092
  %v1366 = vunpack.c.l.s8.bf16 %v1093
  %v1367 = vunpack.c.l.s8.bf16 %v1094
  %v1368 = vunpack.c.l.s8.bf16 %v1095
  %v1369 = vunpack.c.l.s8.bf16 %v1096
  %v1370 = vunpack.c.h.s8.bf16 %v1090
  %v1371 = vunpack.c.h.s8.bf16 %v1091
  %v1372 = vunpack.c.h.s8.bf16 %v1092
  %v1373 = vunpack.c.h.s8.bf16 %v1093
  %v1374 = vunpack.c.h.s8.bf16 %v1094
  %v1375 = vunpack.c.h.s8.bf16 %v1095
  %v1376 = vunpack.c.h.s8.bf16 %v1096
  %v1377 = vunpack.c.l.s8.bf16 %v1097
  %v1378 = vunpack.c.l.s8.bf16 %v1098
  %v1379 = vunpack.c.l.s8.bf16 %v1099
  %v1380 = vunpack.c.l.s8.bf16 %v1100
  %v1381 = vunpack.c.l.s8.bf16 %v1101
  %v1382 = vunpack.c.l.s8.bf16 %v1102
  %v1383 = vunpack.c.l.s8.bf16 %v1103
  %v1384 = vunpack.c.h.s8.bf16 %v1097
  %v1385 = vunpack.c.h.s8.bf16 %v1098
  %v1386 = vunpack.c.h.s8.bf16 %v1099
  %v1387 = vunpack.c.h.s8.bf16 %v1100
  %v1388 = vunpack.c.h.s8.bf16 %v1101
  %v1389 = vunpack.c.h.s8.bf16 %v1102
  %v1390 = vunpack.c.h.s8.bf16 %v1103
  %v1391 = vunpack.c.l.s8.bf16 %v1104
  %v1392 = vunpack.c.l.s8.bf16 %v1105
  %v1393 = vunpack.c.l.s8.bf16 %v1106
  %v1394 = vunpack.c.l.s8.bf16 %v1107
  %v1395 = vunpack.c.l.s8.bf16 %v1108
  %v1396 = vunpack.c.l.s8.bf16 %v1109
  %v1397 = vunpack.c.l.s8.bf16 %v1110
  %v1398 = vunpack.c.h.s8.bf16 %v1104
  %v1399 = vunpack.c.h.s8.bf16 %v1105
  %v1400 = vunpack.c.h.s8.bf16 %v1106
  %v1401 = vunpack.c.h.s8.bf16 %v1107
  %v1402 = vunpack.c.h.s8.bf16 %v1108
  %v1403 = vunpack.c.h.s8.bf16 %v1109
  %v1404 = vunpack.c.h.s8.bf16 %v1110
  %v1405 = vunpack.c.l.s8.bf16 %v1111
  %v1406 = vunpack.c.l.s8.bf16 %v1112
  %v1407 = vunpack.c.l.s8.bf16 %v1113
  %v1408 = vunpack.c.l.s8.bf16 %v1114
  %v1409 = vunpack.c.l.s8.bf16 %v1115
  %v1410 = vunpack.c.l.s8.bf16 %v1116
  %v1411 = vunpack.c.l.s8.bf16 %v1117
  %v1412 = vunpack.c.h.s8.bf16 %v1111
  %v1413 = vunpack.c.h.s8.bf16 %v1112
  %v1414 = vunpack.c.h.s8.bf16 %v1113
  %v1415 = vunpack.c.h.s8.bf16 %v1114
  %v1416 = vunpack.c.h.s8.bf16 %v1115
  %v1417 = vunpack.c.h.s8.bf16 %v1116
  %v1418 = vunpack.c.h.s8.bf16 %v1117
  %v1419 = vunpack.c.l.s8.bf16 %v1118
  %v1420 = vunpack.c.l.s8.bf16 %v1119
  %v1421 = vunpack.c.l.s8.bf16 %v1120
  %v1422 = vunpack.c.l.s8.bf16 %v1121
  %v1423 = vunpack.c.l.s8.bf16 %v1122
  %v1424 = vunpack.c.l.s8.bf16 %v1123
  %v1425 = vunpack.c.l.s8.bf16 %v1124
  %v1426 = vunpack.c.h.s8.bf16 %v1118
  %v1427 = vunpack.c.h.s8.bf16 %v1119
  %v1428 = vunpack.c.h.s8.bf16 %v1120
  %v1429 = vunpack.c.h.s8.bf16 %v1121
  %v1430 = vunpack.c.h.s8.bf16 %v1122
  %v1431 = vunpack.c.h.s8.bf16 %v1123
  %v1432 = vunpack.c.h.s8.bf16 %v1124
  %v1433 = vunpack.c.l.s8.bf16 %v1125
  %v1434 = vunpack.c.l.s8.bf16 %v1126
  %v1435 = vunpack.c.l.s8.bf16 %v1127
  %v1436 = vunpack.c.l.s8.bf16 %v1128
  %v1437 = vunpack.c.l.s8.bf16 %v1129
  %v1438 = vunpack.c.l.s8.bf16 %v1130
  %v1439 = vunpack.c.l.s8.bf16 %v1131
  %v1440 = vunpack.c.h.s8.bf16 %v1125
  %v1441 = vunpack.c.h.s8.bf16 %v1126
  %v1442 = vunpack.c.h.s8.bf16 %v1127
  %v1443 = vunpack.c.h.s8.bf16 %v1128
  %v1444 = vunpack.c.h.s8.bf16 %v1129
  %v1445 = vunpack.c.h.s8.bf16 %v1130
  %v1446 = vunpack.c.h.s8.bf16 %v1131
  %v1447 = vunpack.c.l.s8.bf16 %v1132
  %v1448 = vunpack.c.l.s8.bf16 %v1133
  %v1449 = vunpack.c.l.s8.bf16 %v1134
  %v1450 = vunpack.c.l.s8.bf16 %v1135
  %v1451 = vunpack.c.l.s8.bf16 %v1136
  %v1452 = vunpack.c.l.s8.bf16 %v1137
  %v1453 = vunpack.c.l.s8.bf16 %v1138
  %v1454 = vunpack.c.h.s8.bf16 %v1132
  %v1455 = vunpack.c.h.s8.bf16 %v1133
  %v1456 = vunpack.c.h.s8.bf16 %v1134
  %v1457 = vunpack.c.h.s8.bf16 %v1135
  %v1458 = vunpack.c.h.s8.bf16 %v1136
  %v1459 = vunpack.c.h.s8.bf16 %v1137
  %v1460 = vunpack.c.h.s8.bf16 %v1138
  %v1461 = vunpack.c.l.s8.bf16 %v1139
  %v1462 = vunpack.c.l.s8.bf16 %v1140
  %v1463 = vunpack.c.l.s8.bf16 %v1141
  %v1464 = vunpack.c.l.s8.bf16 %v1142
  %v1465 = vunpack.c.l.s8.bf16 %v1143
  %v1466 = vunpack.c.l.s8.bf16 %v1144
  %v1467 = vunpack.c.l.s8.bf16 %v1145
  %v1468 = vunpack.c.h.s8.bf16 %v1139
  %v1469 = vunpack.c.h.s8.bf16 %v1140
  %v1470 = vunpack.c.h.s8.bf16 %v1141
  %v1471 = vunpack.c.h.s8.bf16 %v1142
  %v1472 = vunpack.c.h.s8.bf16 %v1143
  %v1473 = vunpack.c.h.s8.bf16 %v1144
  %v1474 = vunpack.c.h.s8.bf16 %v1145
  %v1475 = vunpack.c.l.s8.bf16 %v1146
  %v1476 = vunpack.c.l.s8.bf16 %v1147
  %v1477 = vunpack.c.l.s8.bf16 %v1148
  %v1478 = vunpack.c.l.s8.bf16 %v1149
  %v1479 = vunpack.c.l.s8.bf16 %v1150
  %v1480 = vunpack.c.l.s8.bf16 %v1151
  %v1481 = vunpack.c.l.s8.bf16 %v1152
  %v1482 = vunpack.c.h.s8.bf16 %v1146
  %v1483 = vunpack.c.h.s8.bf16 %v1147
  %v1484 = vunpack.c.h.s8.bf16 %v1148
  %v1485 = vunpack.c.h.s8.bf16 %v1149
  %v1486 = vunpack.c.h.s8.bf16 %v1150
  %v1487 = vunpack.c.h.s8.bf16 %v1151
  %v1488 = vunpack.c.h.s8.bf16 %v1152
  %v1489 = vunpack.c.l.s8.bf16 %v1153
  %v1490 = vunpack.c.l.s8.bf16 %v1154
  %v1491 = vunpack.c.l.s8.bf16 %v1155
  %v1492 = vunpack.c.l.s8.bf16 %v1156
  %v1493 = vunpack.c.l.s8.bf16 %v1157
  %v1494 = vunpack.c.l.s8.bf16 %v1158
  %v1495 = vunpack.c.l.s8.bf16 %v1159
  %v1496 = vunpack.c.h.s8.bf16 %v1153
  %v1497 = vunpack.c.h.s8.bf16 %v1154
  %v1498 = vunpack.c.h.s8.bf16 %v1155
  %v1499 = vunpack.c.h.s8.bf16 %v1156
  %v1500 = vunpack.c.h.s8.bf16 %v1157
  %v1501 = vunpack.c.h.s8.bf16 %v1158
  %v1502 = vunpack.c.h.s8.bf16 %v1159
  %v1503 = vunpack.c.l.s8.bf16 %v1160
  %v1504 = vunpack.c.l.s8.bf16 %v1161
  %v1505 = vunpack.c.l.s8.bf16 %v1162
  %v1506 = vunpack.c.l.s8.bf16 %v1163
  %v1507 = vunpack.c.l.s8.bf16 %v1164
  %v1508 = vunpack.c.l.s8.bf16 %v1165
  %v1509 = vunpack.c.l.s8.bf16 %v1166
  %v1510 = vunpack.c.h.s8.bf16 %v1160
  %v1511 = vunpack.c.h.s8.bf16 %v1161
  %v1512 = vunpack.c.h.s8.bf16 %v1162
  %v1513 = vunpack.c.h.s8.bf16 %v1163
  %v1514 = vunpack.c.h.s8.bf16 %v1164
  %v1515 = vunpack.c.h.s8.bf16 %v1165
  %v1516 = vunpack.c.h.s8.bf16 %v1166
  %v1517 = vunpack.c.l.s8.bf16 %v1167
  %v1518 = vunpack.c.l.s8.bf16 %v1168
  %v1519 = vunpack.c.l.s8.bf16 %v1169
  %v1520 = vunpack.c.l.s8.bf16 %v1170
  %v1521 = vunpack.c.l.s8.bf16 %v1171
  %v1522 = vunpack.c.l.s8.bf16 %v1172
  %v1523 = vunpack.c.l.s8.bf16 %v1173
  %v1524 = vunpack.c.h.s8.bf16 %v1167
  %v1525 = vunpack.c.h.s8.bf16 %v1168
  %v1526 = vunpack.c.h.s8.bf16 %v1169
  %v1527 = vunpack.c.h.s8.bf16 %v1170
  %v1528 = vunpack.c.h.s8.bf16 %v1171
  %v1529 = vunpack.c.h.s8.bf16 %v1172
  %v1530 = vunpack.c.h.s8.bf16 %v1173
  %v1531 = vunpack.c.l.s8.bf16 %v1174
  %v1532 = vunpack.c.l.s8.bf16 %v1175
  %v1533 = vunpack.c.l.s8.bf16 %v1176
  %v1534 = vunpack.c.l.s8.bf16 %v1177
  %v1535 = vunpack.c.l.s8.bf16 %v1178
  %v1536 = vunpack.c.l.s8.bf16 %v1179
  %v1537 = vunpack.c.l.s8.bf16 %v1180
  %v1538 = vunpack.c.h.s8.bf16 %v1174
  %v1539 = vunpack.c.h.s8.bf16 %v1175
  %v1540 = vunpack.c.h.s8.bf16 %v1176
  %v1541 = vunpack.c.h.s8.bf16 %v1177
  %v1542 = vunpack.c.h.s8.bf16 %v1178
  %v1543 = vunpack.c.h.s8.bf16 %v1179
  %v1544 = vunpack.c.h.s8.bf16 %v1180
  %v1545 = vunpack.c.l.s8.bf16 %v1181
  %v1546 = vunpack.c.l.s8.bf16 %v1182
  %v1547 = vunpack.c.l.s8.bf16 %v1183
  %v1548 = vunpack.c.l.s8.bf16 %v1184
  %v1549 = vunpack.c.l.s8.bf16 %v1185
  %v1550 = vunpack.c.l.s8.bf16 %v1186
  %v1551 = vunpack.c.l.s8.bf16 %v1187
  %v1552 = vunpack.c.h.s8.bf16 %v1181
  %v1553 = vunpack.c.h.s8.bf16 %v1182
  %v1554 = vunpack.c.h.s8.bf16 %v1183
  %v1555 = vunpack.c.h.s8.bf16 %v1184
  %v1556 = vunpack.c.h.s8.bf16 %v1185
  %v1557 = vunpack.c.h.s8.bf16 %v1186
  %v1558 = vunpack.c.h.s8.bf16 %v1187
  %v1559 = vunpack.c.l.s8.bf16 %v1188
  %v1560 = vunpack.c.l.s8.bf16 %v1189
  %v1561 = vunpack.c.l.s8.bf16 %v1190
  %v1562 = vunpack.c.l.s8.bf16 %v1191
  %v1563 = vunpack.c.l.s8.bf16 %v1192
  %v1564 = vunpack.c.l.s8.bf16 %v1193
  %v1565 = vunpack.c.l.s8.bf16 %v1194
  %v1566 = vunpack.c.h.s8.bf16 %v1188
  %v1567 = vunpack.c.h.s8.bf16 %v1189
  %v1568 = vunpack.c.h.s8.bf16 %v1190
  %v1569 = vunpack.c.h.s8.bf16 %v1191
  %v1570 = vunpack.c.h.s8.bf16 %v1192
  %v1571 = vunpack.c.h.s8.bf16 %v1193
  %v1572 = vunpack.c.h.s8.bf16 %v1194
  %v1573 = vunpack.c.l.s8.bf16 %v1195
  %v1574 = vunpack.c.l.s8.bf16 %v1196
  %v1575 = vunpack.c.l.s8.bf16 %v1197
  %v1576 = vunpack.c.l.s8.bf16 %v1198
  %v1577 = vunpack.c.l.s8.bf16 %v1199
  %v1578 = vunpack.c.l.s8.bf16 %v1200
  %v1579 = vunpack.c.l.s8.bf16 %v1201
  %v1580 = vunpack.c.h.s8.bf16 %v1195
  %v1581 = vunpack.c.h.s8.bf16 %v1196
  %v1582 = vunpack.c.h.s8.bf16 %v1197
  %v1583 = vunpack.c.h.s8.bf16 %v1198
  %v1584 = vunpack.c.h.s8.bf16 %v1199
  %v1585 = vunpack.c.h.s8.bf16 %v1200
  %v1586 = vunpack.c.h.s8.bf16 %v1201
  %v1587 = vunpack.c.l.s8.bf16 %v1202
  %v1588 = vunpack.c.l.s8.bf16 %v1203
  %v1589 = vunpack.c.l.s8.bf16 %v1204
  %v1590 = vunpack.c.l.s8.bf16 %v1205
  %v1591 = vunpack.c.l.s8.bf16 %v1206
  %v1592 = vunpack.c.l.s8.bf16 %v1207
  %v1593 = vunpack.c.l.s8.bf16 %v1208
  %v1594 = vunpack.c.h.s8.bf16 %v1202
  %v1595 = vunpack.c.h.s8.bf16 %v1203
  %v1596 = vunpack.c.h.s8.bf16 %v1204
  %v1597 = vunpack.c.h.s8.bf16 %v1205
  %v1598 = vunpack.c.h.s8.bf16 %v1206
  %v1599 = vunpack.c.h.s8.bf16 %v1207
  %v1600 = vunpack.c.h.s8.bf16 %v1208
  %v1601 = vunpack.c.l.s8.bf16 %v1209
  %v1602 = vunpack.c.l.s8.bf16 %v1210
  %v1603 = vunpack.c.l.s8.bf16 %v1211
  %v1604 = vunpack.c.l.s8.bf16 %v1212
  %v1605 = vunpack.c.l.s8.bf16 %v1213
  %v1606 = vunpack.c.l.s8.bf16 %v1214
  %v1607 = vunpack.c.l.s8.bf16 %v1215
  %v1608 = vunpack.c.h.s8.bf16 %v1209
  %v1609 = vunpack.c.h.s8.bf16 %v1210
  %v1610 = vunpack.c.h.s8.bf16 %v1211
  %v1611 = vunpack.c.h.s8.bf16 %v1212
  %v1612 = vunpack.c.h.s8.bf16 %v1213
  %v1613 = vunpack.c.h.s8.bf16 %v1214
  %v1614 = vunpack.c.h.s8.bf16 %v1215
  %v1615 = vunpack.c.l.s8.bf16 %v1216
  %v1616 = vunpack.c.l.s8.bf16 %v1217
  %v1617 = vunpack.c.l.s8.bf16 %v1218
  %v1618 = vunpack.c.l.s8.bf16 %v1219
  %v1619 = vunpack.c.l.s8.bf16 %v1220
  %v1620 = vunpack.c.l.s8.bf16 %v1221
  %v1621 = vunpack.c.l.s8.bf16 %v1222
  %v1622 = vunpack.c.h.s8.bf16 %v1216
  %v1623 = vunpack.c.h.s8.bf16 %v1217
  %v1624 = vunpack.c.h.s8.bf16 %v1218
  %v1625 = vunpack.c.h.s8.bf16 %v1219
  %v1626 = vunpack.c.h.s8.bf16 %v1220
  %v1627 = vunpack.c.h.s8.bf16 %v1221
  %v1628 = vunpack.c.h.s8.bf16 %v1222
  %v1629 = vunpack.c.l.s8.bf16 %v1223
  %v1630 = vunpack.c.l.s8.bf16 %v1224
  %v1631 = vunpack.c.l.s8.bf16 %v1225
  %v1632 = vunpack.c.l.s8.bf16 %v1226
  %v1633 = vunpack.c.l.s8.bf16 %v1227
  %v1634 = vunpack.c.l.s8.bf16 %v1228
  %v1635 = vunpack.c.l.s8.bf16 %v1229
  %v1636 = vunpack.c.h.s8.bf16 %v1223
  %v1637 = vunpack.c.h.s8.bf16 %v1224
  %v1638 = vunpack.c.h.s8.bf16 %v1225
  %v1639 = vunpack.c.h.s8.bf16 %v1226
  %v1640 = vunpack.c.h.s8.bf16 %v1227
  %v1641 = vunpack.c.h.s8.bf16 %v1228
  %v1642 = vunpack.c.h.s8.bf16 %v1229
  %v1643 = vunpack.c.l.s8.bf16 %v1230
  %v1644 = vunpack.c.l.s8.bf16 %v1231
  %v1645 = vunpack.c.l.s8.bf16 %v1232
  %v1646 = vunpack.c.l.s8.bf16 %v1233
  %v1647 = vunpack.c.l.s8.bf16 %v1234
  %v1648 = vunpack.c.l.s8.bf16 %v1235
  %v1649 = vunpack.c.l.s8.bf16 %v1236
  %v1650 = vunpack.c.h.s8.bf16 %v1230
  %v1651 = vunpack.c.h.s8.bf16 %v1231
  %v1652 = vunpack.c.h.s8.bf16 %v1232
  %v1653 = vunpack.c.h.s8.bf16 %v1233
  %v1654 = vunpack.c.h.s8.bf16 %v1234
  %v1655 = vunpack.c.h.s8.bf16 %v1235
  %v1656 = vunpack.c.h.s8.bf16 %v1236
  %v1657 = vunpack.c.l.s8.bf16 %v1237
  %v1658 = vunpack.c.l.s8.bf16 %v1238
  %v1659 = vunpack.c.l.s8.bf16 %v1239
  %v1660 = vunpack.c.l.s8.bf16 %v1240
  %v1661 = vunpack.c.l.s8.bf16 %v1241
  %v1662 = vunpack.c.l.s8.bf16 %v1242
  %v1663 = vunpack.c.l.s8.bf16 %v1243
  %v1664 = vunpack.c.h.s8.bf16 %v1237
  %v1665 = vunpack.c.h.s8.bf16 %v1238
  %v1666 = vunpack.c.h.s8.bf16 %v1239
  %v1667 = vunpack.c.h.s8.bf16 %v1240
  %v1668 = vunpack.c.h.s8.bf16 %v1241
  %v1669 = vunpack.c.h.s8.bf16 %v1242
  %v1670 = vunpack.c.h.s8.bf16 %v1243
  %v1671 = vunpack.c.l.s8.bf16 %v1244
  %v1672 = vunpack.c.l.s8.bf16 %v1245
  %v1673 = vunpack.c.l.s8.bf16 %v1246
  %v1674 = vunpack.c.l.s8.bf16 %v1247
  %v1675 = vunpack.c.l.s8.bf16 %v1248
  %v1676 = vunpack.c.l.s8.bf16 %v1249
  %v1677 = vunpack.c.l.s8.bf16 %v1250
  %v1678 = vunpack.c.h.s8.bf16 %v1244
  %v1679 = vunpack.c.h.s8.bf16 %v1245
  %v1680 = vunpack.c.h.s8.bf16 %v1246
  %v1681 = vunpack.c.h.s8.bf16 %v1247
  %v1682 = vunpack.c.h.s8.bf16 %v1248
  %v1683 = vunpack.c.h.s8.bf16 %v1249
  %v1684 = vunpack.c.h.s8.bf16 %v1250
  %v1685 = vunpack.c.l.s8.bf16 %v1251
  %v1686 = vunpack.c.l.s8.bf16 %v1252
  %v1687 = vunpack.c.l.s8.bf16 %v1253
  %v1688 = vunpack.c.l.s8.bf16 %v1254
  %v1689 = vunpack.c.l.s8.bf16 %v1255
  %v1690 = vunpack.c.l.s8.bf16 %v1256
  %v1691 = vunpack.c.l.s8.bf16 %v1257
  %v1692 = vunpack.c.h.s8.bf16 %v1251
  %v1693 = vunpack.c.h.s8.bf16 %v1252
  %v1694 = vunpack.c.h.s8.bf16 %v1253
  %v1695 = vunpack.c.h.s8.bf16 %v1254
  %v1696 = vunpack.c.h.s8.bf16 %v1255
  %v1697 = vunpack.c.h.s8.bf16 %v1256
  %v1698 = vunpack.c.h.s8.bf16 %v1257
  %v1699 = vunpack.c.l.s8.bf16 %v1258
  %v1700 = vunpack.c.l.s8.bf16 %v1259
  %v1701 = vunpack.c.l.s8.bf16 %v1260
  %v1702 = vunpack.c.l.s8.bf16 %v1261
  %v1703 = vunpack.c.l.s8.bf16 %v1262
  %v1704 = vunpack.c.l.s8.bf16 %v1263
  %v1705 = vunpack.c.l.s8.bf16 %v1264
  %v1706 = vunpack.c.h.s8.bf16 %v1258
  %v1707 = vunpack.c.h.s8.bf16 %v1259
  %v1708 = vunpack.c.h.s8.bf16 %v1260
  %v1709 = vunpack.c.h.s8.bf16 %v1261
  %v1710 = vunpack.c.h.s8.bf16 %v1262
  %v1711 = vunpack.c.h.s8.bf16 %v1263
  %v1712 = vunpack.c.h.s8.bf16 %v1264
  %v1713 = vpack.c.bf16 %v1033, %v1033
  %v1714 = vpack.c.bf16 %v1034, %v1034
  %v1715 = vpack.c.bf16 %v1035, %v1035
  %v1716 = vpack.c.bf16 %v1036, %v1036
  %v1717 = vpack.c.bf16 %v1037, %v1037
  %v1718 = vpack.c.bf16 %v1038, %v1038
  %v1719 = vpack.c.bf16 %v1039, %v1039
  %v1720 = vpack.c.bf16 %v1040, %v1040
  %1721 = vmatprep.subr.bf16.mxu0 %v1266
  %1722 = vmatpush1.bf16.msra.mxu0 %v1265
  %1723 = vmatprep.subr.bf16.mxu0 %v1273
  %1724 = vmatpush1.bf16.msra.mxu0 %v1272
  %1725 = vmatprep.subr.bf16.mxu0 %v1280
  %1726 = vmatpush1.bf16.msra.mxu0 %v1279
  %1727 = vmatprep.subr.bf16.mxu0 %v1287
  %1728 = vmatpush1.bf16.msra.mxu0 %v1286
  %1729 = vmatprep.subr.bf16.mxu0 %v1294
  %1730 = vmatpush1.bf16.msra.mxu0 %v1293
  %1731 = vmatprep.subr.bf16.mxu0 %v1301
  %1732 = vmatpush1.bf16.msra.mxu0 %v1300
  %1733 = vmatprep.subr.bf16.mxu0 %v1308
  %1734 = vmatpush1.bf16.msra.mxu0 %v1307
  %1735 = vmatprep.subr.bf16.mxu0 %v1315
  %1736 = vmatpush1.bf16.msra.mxu0 %v1314
  %1737 = vmatprep.subr.bf16.mxu0 %v1322
  %1738 = vmatpush1.bf16.msra.mxu0 %v1321
  %1739 = vmatprep.subr.bf16.mxu0 %v1329
  %1740 = vmatpush1.bf16.msra.mxu0 %v1328
  %1741 = vmatprep.subr.bf16.mxu0 %v1336
  %1742 = vmatpush1.bf16.msra.mxu0 %v1335
  %1743 = vmatprep.subr.bf16.mxu0 %v1343
  %1744 = vmatpush1.bf16.msra.mxu0 %v1342
  %1745 = vmatprep.subr.bf16.mxu0 %v1350
  %1746 = vmatpush1.bf16.msra.mxu0 %v1349
  %1747 = vmatprep.subr.bf16.mxu0 %v1357
  %1748 = vmatpush1.bf16.msra.mxu0 %v1356
  %1749 = vmatprep.subr.bf16.mxu0 %v1364
  %1750 = vmatpush1.bf16.msra.mxu0 %v1363
  %1751 = vmatprep.subr.bf16.mxu0 %v1371
  %1752 = vmatpush1.bf16.msra.mxu0 %v1370
  %1753 = vmatprep.mubr.bf16.mxu0 %v1714
  %1754 = vmatmul.mubr.bf16.gmra.mrb[0].mxu0 %v1713
  %v1755 = vpop.f32.mrb[0].mxu0
  %v1756 = vadd.f32 0.0, %v1755
  %v1757 = vpop.f32.mrb[0].mxu0
  %v1758 = vadd.f32 0.0, %v1757
  %v1759 = vpop.f32.mrb[0].mxu0
  %v1760 = vpop.f32.mrb[0].mxu0
  %1761 = vdwg.mxu0
  %1762 = vmatprep.subr.bf16.mxu0 %v1378
  %1763 = vmatpush1.bf16.msra.mxu0 %v1377
  %1764 = vmatprep.subr.bf16.mxu0 %v1385
  %1765 = vmatpush1.bf16.msra.mxu0 %v1384
  %1766 = vmatprep.subr.bf16.mxu0 %v1392
  %1767 = vmatpush1.bf16.msra.mxu0 %v1391
  %1768 = vmatprep.subr.bf16.mxu0 %v1399
  %1769 = vmatpush1.bf16.msra.mxu0 %v1398
  %1770 = vmatprep.subr.bf16.mxu0 %v1406
  %1771 = vmatpush1.bf16.msra.mxu0 %v1405
  %1772 = vmatprep.subr.bf16.mxu0 %v1413
  %1773 = vmatpush1.bf16.msra.mxu0 %v1412
  %1774 = vmatprep.subr.bf16.mxu0 %v1420
  %1775 = vmatpush1.bf16.msra.mxu0 %v1419
  %1776 = vmatprep.subr.bf16.mxu0 %v1427
  %1777 = vmatpush1.bf16.msra.mxu0 %v1426
  %1778 = vmatprep.subr.bf16.mxu0 %v1434
  %1779 = vmatpush1.bf16.msra.mxu0 %v1433
  %1780 = vmatprep.subr.bf16.mxu0 %v1441
  %1781 = vmatpush1.bf16.msra.mxu0 %v1440
  %1782 = vmatprep.subr.bf16.mxu0 %v1448
  %1783 = vmatpush1.bf16.msra.mxu0 %v1447
  %1784 = vmatprep.subr.bf16.mxu0 %v1455
  %1785 = vmatpush1.bf16.msra.mxu0 %v1454
  %1786 = vmatprep.subr.bf16.mxu0 %v1462
  %1787 = vmatpush1.bf16.msra.mxu0 %v1461
  %1788 = vmatprep.subr.bf16.mxu0 %v1469
  %1789 = vmatpush1.bf16.msra.mxu0 %v1468
  %1790 = vmatprep.subr.bf16.mxu0 %v1476
  %1791 = vmatpush1.bf16.msra.mxu0 %v1475
  %1792 = vmatprep.subr.bf16.mxu0 %v1483
  %1793 = vmatpush1.bf16.msra.mxu0 %v1482
  %1794 = vmatprep.mubr.bf16.mxu0 %v1716
  %1795 = vmatmul.mubr.bf16.gmra.mrb[0].mxu0 %v1715
  %v1796 = vpop.f32.mrb[0].mxu0
  %v1797 = vadd.f32 %v1756, %v1796
  %v1798 = vpop.f32.mrb[0].mxu0
  %v1799 = vadd.f32 %v1758, %v1798
  %v1800 = vpop.f32.mrb[0].mxu0
  %v1801 = vpop.f32.mrb[0].mxu0
  %1802 = vdwg.mxu0
  %1803 = vmatprep.subr.bf16.mxu0 %v1490
  %1804 = vmatpush1.bf16.msra.mxu0 %v1489
  %1805 = vmatprep.subr.bf16.mxu0 %v1497
  %1806 = vmatpush1.bf16.msra.mxu0 %v1496
  %1807 = vmatprep.subr.bf16.mxu0 %v1504
  %1808 = vmatpush1.bf16.msra.mxu0 %v1503
  %1809 = vmatprep.subr.bf16.mxu0 %v1511
  %1810 = vmatpush1.bf16.msra.mxu0 %v1510
  %1811 = vmatprep.subr.bf16.mxu0 %v1518
  %1812 = vmatpush1.bf16.msra.mxu0 %v1517
  %1813 = vmatprep.subr.bf16.mxu0 %v1525
  %1814 = vmatpush1.bf16.msra.mxu0 %v1524
  %1815 = vmatprep.subr.bf16.mxu0 %v1532
  %1816 = vmatpush1.bf16.msra.mxu0 %v1531
  %1817 = vmatprep.subr.bf16.mxu0 %v1539
  %1818 = vmatpush1.bf16.msra.mxu0 %v1538
  %1819 = vmatprep.subr.bf16.mxu0 %v1546
  %1820 = vmatpush1.bf16.msra.mxu0 %v1545
  %1821 = vmatprep.subr.bf16.mxu0 %v1553
  %1822 = vmatpush1.bf16.msra.mxu0 %v1552
  %1823 = vmatprep.subr.bf16.mxu0 %v1560
  %1824 = vmatpush1.bf16.msra.mxu0 %v1559
  %1825 = vmatprep.subr.bf16.mxu0 %v1567
  %1826 = vmatpush1.bf16.msra.mxu0 %v1566
  %1827 = vmatprep.subr.bf16.mxu0 %v1574
  %1828 = vmatpush1.bf16.msra.mxu0 %v1573
  %1829 = vmatprep.subr.bf16.mxu0 %v1581
  %1830 = vmatpush1.bf16.msra.mxu0 %v1580
  %1831 = vmatprep.subr.bf16.mxu0 %v1588
  %1832 = vmatpush1.bf16.msra.mxu0 %v1587
  %1833 = vmatprep.subr.bf16.mxu0 %v1595
  %1834 = vmatpush1.bf16.msra.mxu0 %v1594
  %1835 = vmatprep.mubr.bf16.mxu0 %v1718
  %1836 = vmatmul.mubr.bf16.gmra.mrb[0].mxu0 %v1717
  %v1837 = vpop.f32.mrb[0].mxu0
  %v1838 = vadd.f32 %v1797, %v1837
  %v1839 = vpop.f32.mrb[0].mxu0
  %v1840 = vadd.f32 %v1799, %v1839
  %v1841 = vpop.f32.mrb[0].mxu0
  %v1842 = vpop.f32.mrb[0].mxu0
  %1843 = vdwg.mxu0
  %1844 = vmatprep.subr.bf16.mxu0 %v1602
  %1845 = vmatpush1.bf16.msra.mxu0 %v1601
  %1846 = vmatprep.subr.bf16.mxu0 %v1609
  %1847 = vmatpush1.bf16.msra.mxu0 %v1608
  %1848 = vmatprep.subr.bf16.mxu0 %v1616
  %1849 = vmatpush1.bf16.msra.mxu0 %v1615
  %1850 = vmatprep.subr.bf16.mxu0 %v1623
  %1851 = vmatpush1.bf16.msra.mxu0 %v1622
  %1852 = vmatprep.subr.bf16.mxu0 %v1630
  %1853 = vmatpush1.bf16.msra.mxu0 %v1629
  %1854 = vmatprep.subr.bf16.mxu0 %v1637
  %1855 = vmatpush1.bf16.msra.mxu0 %v1636
  %1856 = vmatprep.subr.bf16.mxu0 %v1644
  %1857 = vmatpush1.bf16.msra.mxu0 %v1643
  %1858 = vmatprep.subr.bf16.mxu0 %v1651
  %1859 = vmatpush1.bf16.msra.mxu0 %v1650
  %1860 = vmatprep.subr.bf16.mxu0 %v1658
  %1861 = vmatpush1.bf16.msra.mxu0 %v1657
  %1862 = vmatprep.subr.bf16.mxu0 %v1665
  %1863 = vmatpush1.bf16.msra.mxu0 %v1664
  %1864 = vmatprep.subr.bf16.mxu0 %v1672
  %1865 = vmatpush1.bf16.msra.mxu0 %v1671
  %1866 = vmatprep.subr.bf16.mxu0 %v1679
  %1867 = vmatpush1.bf16.msra.mxu0 %v1678
  %1868 = vmatprep.subr.bf16.mxu0 %v1686
  %1869 = vmatpush1.bf16.msra.mxu0 %v1685
  %1870 = vmatprep.subr.bf16.mxu0 %v1693
  %1871 = vmatpush1.bf16.msra.mxu0 %v1692
  %1872 = vmatprep.subr.bf16.mxu0 %v1700
  %1873 = vmatpush1.bf16.msra.mxu0 %v1699
  %1874 = vmatprep.subr.bf16.mxu0 %v1707
  %1875 = vmatpush1.bf16.msra.mxu0 %v1706
  %1876 = vmatprep.mubr.bf16.mxu0 %v1720
  %1877 = vmatmul.mubr.bf16.gmra.mrb[0].mxu0 %v1719
  %v1878 = vpop.f32.mrb[0].mxu0
  %v1879 = vadd.f32 %v1838, %v1878
  %v1880 = vpop.f32.mrb[0].mxu0
  %v1881 = vadd.f32 %v1840, %v1880
  %v1882 = vpop.f32.mrb[0].mxu0
  %v1883 = vpop.f32.mrb[0].mxu0
  %1884 = vdwg.mxu0
  %1885 = vmatprep.subr.bf16.mxu0 %v1268
  %1886 = vmatpush1.bf16.msra.mxu0 %v1267
  %1887 = vmatprep.subr.bf16.mxu0 %v1275
  %1888 = vmatpush1.bf16.msra.mxu0 %v1274
  %1889 = vmatprep.subr.bf16.mxu0 %v1282
  %1890 = vmatpush1.bf16.msra.mxu0 %v1281
  %1891 = vmatprep.subr.bf16.mxu0 %v1289
  %1892 = vmatpush1.bf16.msra.mxu0 %v1288
  %1893 = vmatprep.subr.bf16.mxu0 %v1296
  %1894 = vmatpush1.bf16.msra.mxu0 %v1295
  %1895 = vmatprep.subr.bf16.mxu0 %v1303
  %1896 = vmatpush1.bf16.msra.mxu0 %v1302
  %1897 = vmatprep.subr.bf16.mxu0 %v1310
  %1898 = vmatpush1.bf16.msra.mxu0 %v1309
  %1899 = vmatprep.subr.bf16.mxu0 %v1317
  %1900 = vmatpush1.bf16.msra.mxu0 %v1316
  %1901 = vmatprep.subr.bf16.mxu0 %v1324
  %1902 = vmatpush1.bf16.msra.mxu0 %v1323
  %1903 = vmatprep.subr.bf16.mxu0 %v1331
  %1904 = vmatpush1.bf16.msra.mxu0 %v1330
  %1905 = vmatprep.subr.bf16.mxu0 %v1338
  %1906 = vmatpush1.bf16.msra.mxu0 %v1337
  %1907 = vmatprep.subr.bf16.mxu0 %v1345
  %1908 = vmatpush1.bf16.msra.mxu0 %v1344
  %1909 = vmatprep.subr.bf16.mxu0 %v1352
  %1910 = vmatpush1.bf16.msra.mxu0 %v1351
  %1911 = vmatprep.subr.bf16.mxu0 %v1359
  %1912 = vmatpush1.bf16.msra.mxu0 %v1358
  %1913 = vmatprep.subr.bf16.mxu0 %v1366
  %1914 = vmatpush1.bf16.msra.mxu0 %v1365
  %1915 = vmatprep.subr.bf16.mxu0 %v1373
  %1916 = vmatpush1.bf16.msra.mxu0 %v1372
  %1917 = vmatprep.mubr.bf16.mxu0 %v1714
  %1918 = vmatmul.mubr.bf16.gmra.mrb[0].mxu0 %v1713
  %v1919 = vpop.f32.mrb[0].mxu0
  %v1920 = vadd.f32 0.0, %v1919
  %v1921 = vpop.f32.mrb[0].mxu0
  %v1922 = vadd.f32 0.0, %v1921
  %v1923 = vpop.f32.mrb[0].mxu0
  %v1924 = vpop.f32.mrb[0].mxu0
  %1925 = vdwg.mxu0
  %1926 = vmatprep.subr.bf16.mxu0 %v1380
  %1927 = vmatpush1.bf16.msra.mxu0 %v1379
  %1928 = vmatprep.subr.bf16.mxu0 %v1387
  %1929 = vmatpush1.bf16.msra.mxu0 %v1386
  %1930 = vmatprep.subr.bf16.mxu0 %v1394
  %1931 = vmatpush1.bf16.msra.mxu0 %v1393
  %1932 = vmatprep.subr.bf16.mxu0 %v1401
  %1933 = vmatpush1.bf16.msra.mxu0 %v1400
  %1934 = vmatprep.subr.bf16.mxu0 %v1408
  %1935 = vmatpush1.bf16.msra.mxu0 %v1407
  %1936 = vmatprep.subr.bf16.mxu0 %v1415
  %1937 = vmatpush1.bf16.msra.mxu0 %v1414
  %1938 = vmatprep.subr.bf16.mxu0 %v1422
  %1939 = vmatpush1.bf16.msra.mxu0 %v1421
  %1940 = vmatprep.subr.bf16.mxu0 %v1429
  %1941 = vmatpush1.bf16.msra.mxu0 %v1428
  %1942 = vmatprep.subr.bf16.mxu0 %v1436
  %1943 = vmatpush1.bf16.msra.mxu0 %v1435
  %1944 = vmatprep.subr.bf16.mxu0 %v1443
  %1945 = vmatpush1.bf16.msra.mxu0 %v1442
  %1946 = vmatprep.subr.bf16.mxu0 %v1450
  %1947 = vmatpush1.bf16.msra.mxu0 %v1449
  %1948 = vmatprep.subr.bf16.mxu0 %v1457
  %1949 = vmatpush1.bf16.msra.mxu0 %v1456
  %1950 = vmatprep.subr.bf16.mxu0 %v1464
  %1951 = vmatpush1.bf16.msra.mxu0 %v1463
  %1952 = vmatprep.subr.bf16.mxu0 %v1471
  %1953 = vmatpush1.bf16.msra.mxu0 %v1470
  %1954 = vmatprep.subr.bf16.mxu0 %v1478
  %1955 = vmatpush1.bf16.msra.mxu0 %v1477
  %1956 = vmatprep.subr.bf16.mxu0 %v1485
  %1957 = vmatpush1.bf16.msra.mxu0 %v1484
  %1958 = vmatprep.mubr.bf16.mxu0 %v1716
  %1959 = vmatmul.mubr.bf16.gmra.mrb[0].mxu0 %v1715
  %v1960 = vpop.f32.mrb[0].mxu0
  %v1961 = vadd.f32 %v1920, %v1960
  %v1962 = vpop.f32.mrb[0].mxu0
  %v1963 = vadd.f32 %v1922, %v1962
  %v1964 = vpop.f32.mrb[0].mxu0
  %v1965 = vpop.f32.mrb[0].mxu0
  %1966 = vdwg.mxu0
  %1967 = vmatprep.subr.bf16.mxu0 %v1492
  %1968 = vmatpush1.bf16.msra.mxu0 %v1491
  %1969 = vmatprep.subr.bf16.mxu0 %v1499
  %1970 = vmatpush1.bf16.msra.mxu0 %v1498
  %1971 = vmatprep.subr.bf16.mxu0 %v1506
  %1972 = vmatpush1.bf16.msra.mxu0 %v1505
  %1973 = vmatprep.subr.bf16.mxu0 %v1513
  %1974 = vmatpush1.bf16.msra.mxu0 %v1512
  %1975 = vmatprep.subr.bf16.mxu0 %v1520
  %1976 = vmatpush1.bf16.msra.mxu0 %v1519
  %1977 = vmatprep.subr.bf16.mxu0 %v1527
  %1978 = vmatpush1.bf16.msra.mxu0 %v1526
  %1979 = vmatprep.subr.bf16.mxu0 %v1534
  %1980 = vmatpush1.bf16.msra.mxu0 %v1533
  %1981 = vmatprep.subr.bf16.mxu0 %v1541
  %1982 = vmatpush1.bf16.msra.mxu0 %v1540
  %1983 = vmatprep.subr.bf16.mxu0 %v1548
  %1984 = vmatpush1.bf16.msra.mxu0 %v1547
  %1985 = vmatprep.subr.bf16.mxu0 %v1555
  %1986 = vmatpush1.bf16.msra.mxu0 %v1554
  %1987 = vmatprep.subr.bf16.mxu0 %v1562
  %1988 = vmatpush1.bf16.msra.mxu0 %v1561
  %1989 = vmatprep.subr.bf16.mxu0 %v1569
  %1990 = vmatpush1.bf16.msra.mxu0 %v1568
  %1991 = vmatprep.subr.bf16.mxu0 %v1576
  %1992 = vmatpush1.bf16.msra.mxu0 %v1575
  %1993 = vmatprep.subr.bf16.mxu0 %v1583
  %1994 = vmatpush1.bf16.msra.mxu0 %v1582
  %1995 = vmatprep.subr.bf16.mxu0 %v1590
  %1996 = vmatpush1.bf16.msra.mxu0 %v1589
  %1997 = vmatprep.subr.bf16.mxu0 %v1597
  %1998 = vmatpush1.bf16.msra.mxu0 %v1596
  %1999 = vmatprep.mubr.bf16.mxu0 %v1718
  %2000 = vmatmul.mubr.bf16.gmra.mrb[0].mxu0 %v1717
  %v2001 = vpop.f32.mrb[0].mxu0
  %v2002 = vadd.f32 %v1961, %v2001
  %v2003 = vpop.f32.mrb[0].mxu0
  %v2004 = vadd.f32 %v1963, %v2003
  %v2005 = vpop.f32.mrb[0].mxu0
  %v2006 = vpop.f32.mrb[0].mxu0
  %2007 = vdwg.mxu0
  %2008 = vmatprep.subr.bf16.mxu0 %v1604
  %2009 = vmatpush1.bf16.msra.mxu0 %v1603
  %2010 = vmatprep.subr.bf16.mxu0 %v1611
  %2011 = vmatpush1.bf16.msra.mxu0 %v1610
  %2012 = vmatprep.subr.bf16.mxu0 %v1618
  %2013 = vmatpush1.bf16.msra.mxu0 %v1617
  %2014 = vmatprep.subr.bf16.mxu0 %v1625
  %2015 = vmatpush1.bf16.msra.mxu0 %v1624
  %2016 = vmatprep.subr.bf16.mxu0 %v1632
  %2017 = vmatpush1.bf16.msra.mxu0 %v1631
  %2018 = vmatprep.subr.bf16.mxu0 %v1639
  %2019 = vmatpush1.bf16.msra.mxu0 %v1638
  %2020 = vmatprep.subr.bf16.mxu0 %v1646
  %2021 = vmatpush1.bf16.msra.mxu0 %v1645
  %2022 = vmatprep.subr.bf16.mxu0 %v1653
  %2023 = vmatpush1.bf16.msra.mxu0 %v1652
  %2024 = vmatprep.subr.bf16.mxu0 %v1660
  %2025 = vmatpush1.bf16.msra.mxu0 %v1659
  %2026 = vmatprep.subr.bf16.mxu0 %v1667
  %2027 = vmatpush1.bf16.msra.mxu0 %v1666
  %2028 = vmatprep.subr.bf16.mxu0 %v1674
  %2029 = vmatpush1.bf16.msra.mxu0 %v1673
  %2030 = vmatprep.subr.bf16.mxu0 %v1681
  %2031 = vmatpush1.bf16.msra.mxu0 %v1680
  %2032 = vmatprep.subr.bf16.mxu0 %v1688
  %2033 = vmatpush1.bf16.msra.mxu0 %v1687
  %2034 = vmatprep.subr.bf16.mxu0 %v1695
  %2035 = vmatpush1.bf16.msra.mxu0 %v1694
  %2036 = vmatprep.subr.bf16.mxu0 %v1702
  %2037 = vmatpush1.bf16.msra.mxu0 %v1701
  %2038 = vmatprep.subr.bf16.mxu0 %v1709
  %2039 = vmatpush1.bf16.msra.mxu0 %v1708
  %2040 = vmatprep.mubr.bf16.mxu0 %v1720
  %2041 = vmatmul.mubr.bf16.gmra.mrb[0].mxu0 %v1719
  %v2042 = vpop.f32.mrb[0].mxu0
  %v2043 = vadd.f32 %v2002, %v2042
  %v2044 = vpop.f32.mrb[0].mxu0
  %v2045 = vadd.f32 %v2004, %v2044
  %v2046 = vpop.f32.mrb[0].mxu0
  %v2047 = vpop.f32.mrb[0].mxu0
  %2048 = vdwg.mxu0
  %2049 = vmatprep.subr.bf16.mxu0 %v1270
  %2050 = vmatpush1.bf16.msra.mxu0 %v1269
  %2051 = vmatprep.subr.bf16.mxu0 %v1277
  %2052 = vmatpush1.bf16.msra.mxu0 %v1276
  %2053 = vmatprep.subr.bf16.mxu0 %v1284
  %2054 = vmatpush1.bf16.msra.mxu0 %v1283
  %2055 = vmatprep.subr.bf16.mxu0 %v1291
  %2056 = vmatpush1.bf16.msra.mxu0 %v1290
  %2057 = vmatprep.subr.bf16.mxu0 %v1298
  %2058 = vmatpush1.bf16.msra.mxu0 %v1297
  %2059 = vmatprep.subr.bf16.mxu0 %v1305
  %2060 = vmatpush1.bf16.msra.mxu0 %v1304
  %2061 = vmatprep.subr.bf16.mxu0 %v1312
  %2062 = vmatpush1.bf16.msra.mxu0 %v1311
  %2063 = vmatprep.subr.bf16.mxu0 %v1319
  %2064 = vmatpush1.bf16.msra.mxu0 %v1318
  %2065 = vmatprep.subr.bf16.mxu0 %v1326
  %2066 = vmatpush1.bf16.msra.mxu0 %v1325
  %2067 = vmatprep.subr.bf16.mxu0 %v1333
  %2068 = vmatpush1.bf16.msra.mxu0 %v1332
  %2069 = vmatprep.subr.bf16.mxu0 %v1340
  %2070 = vmatpush1.bf16.msra.mxu0 %v1339
  %2071 = vmatprep.subr.bf16.mxu0 %v1347
  %2072 = vmatpush1.bf16.msra.mxu0 %v1346
  %2073 = vmatprep.subr.bf16.mxu0 %v1354
  %2074 = vmatpush1.bf16.msra.mxu0 %v1353
  %2075 = vmatprep.subr.bf16.mxu0 %v1361
  %2076 = vmatpush1.bf16.msra.mxu0 %v1360
  %2077 = vmatprep.subr.bf16.mxu0 %v1368
  %2078 = vmatpush1.bf16.msra.mxu0 %v1367
  %2079 = vmatprep.subr.bf16.mxu0 %v1375
  %2080 = vmatpush1.bf16.msra.mxu0 %v1374
  %2081 = vmatprep.mubr.bf16.mxu0 %v1714
  %2082 = vmatmul.mubr.bf16.gmra.mrb[0].mxu0 %v1713
  %v2083 = vpop.f32.mrb[0].mxu0
  %v2084 = vadd.f32 0.0, %v2083
  %v2085 = vpop.f32.mrb[0].mxu0
  %v2086 = vadd.f32 0.0, %v2085
  %v2087 = vpop.f32.mrb[0].mxu0
  %v2088 = vpop.f32.mrb[0].mxu0
  %2089 = vdwg.mxu0
  %2090 = vmatprep.subr.bf16.mxu0 %v1382
  %2091 = vmatpush1.bf16.msra.mxu0 %v1381
  %2092 = vmatprep.subr.bf16.mxu0 %v1389
  %2093 = vmatpush1.bf16.msra.mxu0 %v1388
  %2094 = vmatprep.subr.bf16.mxu0 %v1396
  %2095 = vmatpush1.bf16.msra.mxu0 %v1395
  %2096 = vmatprep.subr.bf16.mxu0 %v1403
  %2097 = vmatpush1.bf16.msra.mxu0 %v1402
  %2098 = vmatprep.subr.bf16.mxu0 %v1410
  %2099 = vmatpush1.bf16.msra.mxu0 %v1409
  %2100 = vmatprep.subr.bf16.mxu0 %v1417
  %2101 = vmatpush1.bf16.msra.mxu0 %v1416
  %2102 = vmatprep.subr.bf16.mxu0 %v1424
  %2103 = vmatpush1.bf16.msra.mxu0 %v1423
  %2104 = vmatprep.subr.bf16.mxu0 %v1431
  %2105 = vmatpush1.bf16.msra.mxu0 %v1430
  %2106 = vmatprep.subr.bf16.mxu0 %v1438
  %2107 = vmatpush1.bf16.msra.mxu0 %v1437
  %2108 = vmatprep.subr.bf16.mxu0 %v1445
  %2109 = vmatpush1.bf16.msra.mxu0 %v1444
  %2110 = vmatprep.subr.bf16.mxu0 %v1452
  %2111 = vmatpush1.bf16.msra.mxu0 %v1451
  %2112 = vmatprep.subr.bf16.mxu0 %v1459
  %2113 = vmatpush1.bf16.msra.mxu0 %v1458
  %2114 = vmatprep.subr.bf16.mxu0 %v1466
  %2115 = vmatpush1.bf16.msra.mxu0 %v1465
  %2116 = vmatprep.subr.bf16.mxu0 %v1473
  %2117 = vmatpush1.bf16.msra.mxu0 %v1472
  %2118 = vmatprep.subr.bf16.mxu0 %v1480
  %2119 = vmatpush1.bf16.msra.mxu0 %v1479
  %2120 = vmatprep.subr.bf16.mxu0 %v1487
  %2121 = vmatpush1.bf16.msra.mxu0 %v1486
  %2122 = vmatprep.mubr.bf16.mxu0 %v1716
  %2123 = vmatmul.mubr.bf16.gmra.mrb[0].mxu0 %v1715
  %v2124 = vpop.f32.mrb[0].mxu0
  %v2125 = vadd.f32 %v2084, %v2124
  %v2126 = vpop.f32.mrb[0].mxu0
  %v2127 = vadd.f32 %v2086, %v2126
  %v2128 = vpop.f32.mrb[0].mxu0
  %v2129 = vpop.f32.mrb[0].mxu0
  %2130 = vdwg.mxu0
  %2131 = vmatprep.subr.bf16.mxu0 %v1494
  %2132 = vmatpush1.bf16.msra.mxu0 %v1493
  %2133 = vmatprep.subr.bf16.mxu0 %v1501
  %2134 = vmatpush1.bf16.msra.mxu0 %v1500
  %2135 = vmatprep.subr.bf16.mxu0 %v1508
  %2136 = vmatpush1.bf16.msra.mxu0 %v1507
  %2137 = vmatprep.subr.bf16.mxu0 %v1515
  %2138 = vmatpush1.bf16.msra.mxu0 %v1514
  %2139 = vmatprep.subr.bf16.mxu0 %v1522
  %2140 = vmatpush1.bf16.msra.mxu0 %v1521
  %2141 = vmatprep.subr.bf16.mxu0 %v1529
  %2142 = vmatpush1.bf16.msra.mxu0 %v1528
  %2143 = vmatprep.subr.bf16.mxu0 %v1536
  %2144 = vmatpush1.bf16.msra.mxu0 %v1535
  %2145 = vmatprep.subr.bf16.mxu0 %v1543
  %2146 = vmatpush1.bf16.msra.mxu0 %v1542
  %2147 = vmatprep.subr.bf16.mxu0 %v1550
  %2148 = vmatpush1.bf16.msra.mxu0 %v1549
  %2149 = vmatprep.subr.bf16.mxu0 %v1557
  %2150 = vmatpush1.bf16.msra.mxu0 %v1556
  %2151 = vmatprep.subr.bf16.mxu0 %v1564
  %2152 = vmatpush1.bf16.msra.mxu0 %v1563
  %2153 = vmatprep.subr.bf16.mxu0 %v1571
  %2154 = vmatpush1.bf16.msra.mxu0 %v1570
  %2155 = vmatprep.subr.bf16.mxu0 %v1578
  %2156 = vmatpush1.bf16.msra.mxu0 %v1577
  %2157 = vmatprep.subr.bf16.mxu0 %v1585
  %2158 = vmatpush1.bf16.msra.mxu0 %v1584
  %2159 = vmatprep.subr.bf16.mxu0 %v1592
  %2160 = vmatpush1.bf16.msra.mxu0 %v1591
  %2161 = vmatprep.subr.bf16.mxu0 %v1599
  %2162 = vmatpush1.bf16.msra.mxu0 %v1598
  %2163 = vmatprep.mubr.bf16.mxu0 %v1718
  %2164 = vmatmul.mubr.bf16.gmra.mrb[0].mxu0 %v1717
  %v2165 = vpop.f32.mrb[0].mxu0
  %v2166 = vadd.f32 %v2125, %v2165
  %v2167 = vpop.f32.mrb[0].mxu0
  %v2168 = vadd.f32 %v2127, %v2167
  %v2169 = vpop.f32.mrb[0].mxu0
  %v2170 = vpop.f32.mrb[0].mxu0
  %2171 = vdwg.mxu0
  %2172 = vmatprep.subr.bf16.mxu0 %v1606
  %2173 = vmatpush1.bf16.msra.mxu0 %v1605
  %2174 = vmatprep.subr.bf16.mxu0 %v1613
  %2175 = vmatpush1.bf16.msra.mxu0 %v1612
  %2176 = vmatprep.subr.bf16.mxu0 %v1620
  %2177 = vmatpush1.bf16.msra.mxu0 %v1619
  %2178 = vmatprep.subr.bf16.mxu0 %v1627
  %2179 = vmatpush1.bf16.msra.mxu0 %v1626
  %2180 = vmatprep.subr.bf16.mxu0 %v1634
  %2181 = vmatpush1.bf16.msra.mxu0 %v1633
  %2182 = vmatprep.subr.bf16.mxu0 %v1641
  %2183 = vmatpush1.bf16.msra.mxu0 %v1640
  %2184 = vmatprep.subr.bf16.mxu0 %v1648
  %2185 = vmatpush1.bf16.msra.mxu0 %v1647
  %2186 = vmatprep.subr.bf16.mxu0 %v1655
  %2187 = vmatpush1.bf16.msra.mxu0 %v1654
  %2188 = vmatprep.subr.bf16.mxu0 %v1662
  %2189 = vmatpush1.bf16.msra.mxu0 %v1661
  %2190 = vmatprep.subr.bf16.mxu0 %v1669
  %2191 = vmatpush1.bf16.msra.mxu0 %v1668
  %2192 = vmatprep.subr.bf16.mxu0 %v1676
  %2193 = vmatpush1.bf16.msra.mxu0 %v1675
  %2194 = vmatprep.subr.bf16.mxu0 %v1683
  %2195 = vmatpush1.bf16.msra.mxu0 %v1682
  %2196 = vmatprep.subr.bf16.mxu0 %v1690
  %2197 = vmatpush1.bf16.msra.mxu0 %v1689
  %2198 = vmatprep.subr.bf16.mxu0 %v1697
  %2199 = vmatpush1.bf16.msra.mxu0 %v1696
  %2200 = vmatprep.subr.bf16.mxu0 %v1704
  %2201 = vmatpush1.bf16.msra.mxu0 %v1703
  %2202 = vmatprep.subr.bf16.mxu0 %v1711
  %2203 = vmatpush1.bf16.msra.mxu0 %v1710
  %2204 = vmatprep.mubr.bf16.mxu0 %v1720
  %2205 = vmatmul.mubr.bf16.gmra.mrb[0].mxu0 %v1719
  %v2206 = vpop.f32.mrb[0].mxu0
  %v2207 = vadd.f32 %v2166, %v2206
  %v2208 = vpop.f32.mrb[0].mxu0
  %v2209 = vadd.f32 %v2168, %v2208
  %v2210 = vpop.f32.mrb[0].mxu0
  %v2211 = vpop.f32.mrb[0].mxu0
  %2212 = vdwg.mxu0
  %2213 = vmatprep.subr.bf16.mxu0 0
  %2214 = vmatpush1.bf16.msra.mxu0 %v1271
  %2215 = vmatprep.subr.bf16.mxu0 0
  %2216 = vmatpush1.bf16.msra.mxu0 %v1278
  %2217 = vmatprep.subr.bf16.mxu0 0
  %2218 = vmatpush1.bf16.msra.mxu0 %v1285
  %2219 = vmatprep.subr.bf16.mxu0 0
  %2220 = vmatpush1.bf16.msra.mxu0 %v1292
  %2221 = vmatprep.subr.bf16.mxu0 0
  %2222 = vmatpush1.bf16.msra.mxu0 %v1299
  %2223 = vmatprep.subr.bf16.mxu0 0
  %2224 = vmatpush1.bf16.msra.mxu0 %v1306
  %2225 = vmatprep.subr.bf16.mxu0 0
  %2226 = vmatpush1.bf16.msra.mxu0 %v1313
  %2227 = vmatprep.subr.bf16.mxu0 0
  %2228 = vmatpush1.bf16.msra.mxu0 %v1320
  %2229 = vmatprep.subr.bf16.mxu0 0
  %2230 = vmatpush1.bf16.msra.mxu0 %v1327
  %2231 = vmatprep.subr.bf16.mxu0 0
  %2232 = vmatpush1.bf16.msra.mxu0 %v1334
  %2233 = vmatprep.subr.bf16.mxu0 0
  %2234 = vmatpush1.bf16.msra.mxu0 %v1341
  %2235 = vmatprep.subr.bf16.mxu0 0
  %2236 = vmatpush1.bf16.msra.mxu0 %v1348
  %2237 = vmatprep.subr.bf16.mxu0 0
  %2238 = vmatpush1.bf16.msra.mxu0 %v1355
  %2239 = vmatprep.subr.bf16.mxu0 0
  %2240 = vmatpush1.bf16.msra.mxu0 %v1362
  %2241 = vmatprep.subr.bf16.mxu0 0
  %2242 = vmatpush1.bf16.msra.mxu0 %v1369
  %2243 = vmatprep.subr.bf16.mxu0 0
  %2244 = vmatpush1.bf16.msra.mxu0 %v1376
  %2245 = vmatprep.mubr.bf16.mxu0 %v1714
  %2246 = vmatmul.mubr.bf16.gmra.mrb[0].mxu0 %v1713
  %v2247 = vpop.f32.mrb[0].mxu0
  %v2248 = vadd.f32 0.0, %v2247
  %v2249 = vpop.f32.mrb[0].mxu0
  %v2250 = vpop.f32.mrb[0].mxu0
  %v2251 = vpop.f32.mrb[0].mxu0
  %2252 = vdwg.mxu0
  %2253 = vmatprep.subr.bf16.mxu0 0
  %2254 = vmatpush1.bf16.msra.mxu0 %v1383
  %2255 = vmatprep.subr.bf16.mxu0 0
  %2256 = vmatpush1.bf16.msra.mxu0 %v1390
  %2257 = vmatprep.subr.bf16.mxu0 0
  %2258 = vmatpush1.bf16.msra.mxu0 %v1397
  %2259 = vmatprep.subr.bf16.mxu0 0
  %2260 = vmatpush1.bf16.msra.mxu0 %v1404
  %2261 = vmatprep.subr.bf16.mxu0 0
  %2262 = vmatpush1.bf16.msra.mxu0 %v1411
  %2263 = vmatprep.subr.bf16.mxu0 0
  %2264 = vmatpush1.bf16.msra.mxu0 %v1418
  %2265 = vmatprep.subr.bf16.mxu0 0
  %2266 = vmatpush1.bf16.msra.mxu0 %v1425
  %2267 = vmatprep.subr.bf16.mxu0 0
  %2268 = vmatpush1.bf16.msra.mxu0 %v1432
  %2269 = vmatprep.subr.bf16.mxu0 0
  %2270 = vmatpush1.bf16.msra.mxu0 %v1439
  %2271 = vmatprep.subr.bf16.mxu0 0
  %2272 = vmatpush1.bf16.msra.mxu0 %v1446
  %2273 = vmatprep.subr.bf16.mxu0 0
  %2274 = vmatpush1.bf16.msra.mxu0 %v1453
  %2275 = vmatprep.subr.bf16.mxu0 0
  %2276 = vmatpush1.bf16.msra.mxu0 %v1460
  %2277 = vmatprep.subr.bf16.mxu0 0
  %2278 = vmatpush1.bf16.msra.mxu0 %v1467
  %2279 = vmatprep.subr.bf16.mxu0 0
  %2280 = vmatpush1.bf16.msra.mxu0 %v1474
  %2281 = vmatprep.subr.bf16.mxu0 0
  %2282 = vmatpush1.bf16.msra.mxu0 %v1481
  %2283 = vmatprep.subr.bf16.mxu0 0
  %2284 = vmatpush1.bf16.msra.mxu0 %v1488
  %2285 = vmatprep.mubr.bf16.mxu0 %v1716
  %2286 = vmatmul.mubr.bf16.gmra.mrb[0].mxu0 %v1715
  %v2287 = vpop.f32.mrb[0].mxu0
  %v2288 = vadd.f32 %v2248, %v2287
  %v2289 = vpop.f32.mrb[0].mxu0
  %v2290 = vpop.f32.mrb[0].mxu0
  %v2291 = vpop.f32.mrb[0].mxu0
  %2292 = vdwg.mxu0
  %2293 = vmatprep.subr.bf16.mxu0 0
  %2294 = vmatpush1.bf16.msra.mxu0 %v1495
  %2295 = vmatprep.subr.bf16.mxu0 0
  %2296 = vmatpush1.bf16.msra.mxu0 %v1502
  %2297 = vmatprep.subr.bf16.mxu0 0
  %2298 = vmatpush1.bf16.msra.mxu0 %v1509
  %2299 = vmatprep.subr.bf16.mxu0 0
  %2300 = vmatpush1.bf16.msra.mxu0 %v1516
  %2301 = vmatprep.subr.bf16.mxu0 0
  %2302 = vmatpush1.bf16.msra.mxu0 %v1523
  %2303 = vmatprep.subr.bf16.mxu0 0
  %2304 = vmatpush1.bf16.msra.mxu0 %v1530
  %2305 = vmatprep.subr.bf16.mxu0 0
  %2306 = vmatpush1.bf16.msra.mxu0 %v1537
  %2307 = vmatprep.subr.bf16.mxu0 0
  %2308 = vmatpush1.bf16.msra.mxu0 %v1544
  %2309 = vmatprep.subr.bf16.mxu0 0
  %2310 = vmatpush1.bf16.msra.mxu0 %v1551
  %2311 = vmatprep.subr.bf16.mxu0 0
  %2312 = vmatpush1.bf16.msra.mxu0 %v1558
  %2313 = vmatprep.subr.bf16.mxu0 0
  %2314 = vmatpush1.bf16.msra.mxu0 %v1565
  %2315 = vmatprep.subr.bf16.mxu0 0
  %2316 = vmatpush1.bf16.msra.mxu0 %v1572
  %2317 = vmatprep.subr.bf16.mxu0 0
  %2318 = vmatpush1.bf16.msra.mxu0 %v1579
  %2319 = vmatprep.subr.bf16.mxu0 0
  %2320 = vmatpush1.bf16.msra.mxu0 %v1586
  %2321 = vmatprep.subr.bf16.mxu0 0
  %2322 = vmatpush1.bf16.msra.mxu0 %v1593
  %2323 = vmatprep.subr.bf16.mxu0 0
  %2324 = vmatpush1.bf16.msra.mxu0 %v1600
  %2325 = vmatprep.mubr.bf16.mxu0 %v1718
  %2326 = vmatmul.mubr.bf16.gmra.mrb[0].mxu0 %v1717
  %v2327 = vpop.f32.mrb[0].mxu0
  %v2328 = vadd.f32 %v2288, %v2327
  %v2329 = vpop.f32.mrb[0].mxu0
  %v2330 = vpop.f32.mrb[0].mxu0
  %v2331 = vpop.f32.mrb[0].mxu0
  %2332 = vdwg.mxu0
  %2333 = vmatprep.subr.bf16.mxu0 0
  %2334 = vmatpush1.bf16.msra.mxu0 %v1607
  %2335 = vmatprep.subr.bf16.mxu0 0
  %2336 = vmatpush1.bf16.msra.mxu0 %v1614
  %2337 = vmatprep.subr.bf16.mxu0 0
  %2338 = vmatpush1.bf16.msra.mxu0 %v1621
  %2339 = vmatprep.subr.bf16.mxu0 0
  %2340 = vmatpush1.bf16.msra.mxu0 %v1628
  %2341 = vmatprep.subr.bf16.mxu0 0
  %2342 = vmatpush1.bf16.msra.mxu0 %v1635
  %2343 = vmatprep.subr.bf16.mxu0 0
  %2344 = vmatpush1.bf16.msra.mxu0 %v1642
  %2345 = vmatprep.subr.bf16.mxu0 0
  %2346 = vmatpush1.bf16.msra.mxu0 %v1649
  %2347 = vmatprep.subr.bf16.mxu0 0
  %2348 = vmatpush1.bf16.msra.mxu0 %v1656
  %2349 = vmatprep.subr.bf16.mxu0 0
  %2350 = vmatpush1.bf16.msra.mxu0 %v1663
  %2351 = vmatprep.subr.bf16.mxu0 0
  %2352 = vmatpush1.bf16.msra.mxu0 %v1670
  %2353 = vmatprep.subr.bf16.mxu0 0
  %2354 = vmatpush1.bf16.msra.mxu0 %v1677
  %2355 = vmatprep.subr.bf16.mxu0 0
  %2356 = vmatpush1.bf16.msra.mxu0 %v1684
  %2357 = vmatprep.subr.bf16.mxu0 0
  %2358 = vmatpush1.bf16.msra.mxu0 %v1691
  %2359 = vmatprep.subr.bf16.mxu0 0
  %2360 = vmatpush1.bf16.msra.mxu0 %v1698
  %2361 = vmatprep.subr.bf16.mxu0 0
  %2362 = vmatpush1.bf16.msra.mxu0 %v1705
  %2363 = vmatprep.subr.bf16.mxu0 0
  %2364 = vmatpush1.bf16.msra.mxu0 %v1712
  %2365 = vmatprep.mubr.bf16.mxu0 %v1720
  %2366 = vmatmul.mubr.bf16.gmra.mrb[0].mxu0 %v1719
  %v2367 = vpop.f32.mrb[0].mxu0
  %v2368 = vadd.f32 %v2328, %v2367
  %v2369 = vpop.f32.mrb[0].mxu0
  %v2370 = vpop.f32.mrb[0].mxu0
  %v2371 = vpop.f32.mrb[0].mxu0
  %2372 = vdwg.mxu0
  %v2373 = vld [vmem:[%s6] ss:$2 sm:$0x7f]
  %v2375 = vlaneseq
  %v2376 = vshrl.u32 %v2375, 7
  %v2377 = vsub.s32 0, %v2376
  %v2378 = vrot.slane %v2373, %v2377
  %v2379 = vlaneseq
  %v2380 = vshrl.u32 %v2379, 7
  %v2381 = vsub.s32 1, %v2380
  %v2382 = vrot.slane %v2373, %v2381
  %v2383 = vlaneseq
  %v2384 = vshrl.u32 %v2383, 7
  %v2385 = vsub.s32 2, %v2384
  %v2386 = vrot.slane %v2373, %v2385
  %v2387 = vlaneseq
  %v2388 = vshrl.u32 %v2387, 7
  %v2389 = vsub.s32 3, %v2388
  %v2390 = vrot.slane %v2373, %v2389
  %v2391 = vlaneseq
  %v2392 = vshrl.u32 %v2391, 7
  %v2393 = vsub.s32 4, %v2392
  %v2394 = vrot.slane %v2373, %v2393
  %v2395 = vlaneseq
  %v2396 = vshrl.u32 %v2395, 7
  %v2397 = vsub.s32 5, %v2396
  %v2398 = vrot.slane %v2373, %v2397
  %v2399 = vlaneseq
  %v2400 = vshrl.u32 %v2399, 7
  %v2401 = vsub.s32 6, %v2400
  %v2402 = vrot.slane %v2373, %v2401
  %v2410 = vmul.f32 %v1879, %v2378
  %v2411 = vmul.f32 %v1881, %v2382
  %v2412 = vmul.f32 %v2043, %v2386
  %v2413 = vmul.f32 %v2045, %v2390
  %v2414 = vmul.f32 %v2207, %v2394
  %v2415 = vmul.f32 %v2209, %v2398
  %v2416 = vmul.f32 %v2368, %v2402
  %s2417 = scalar_lea.vmem %s6, 1
  %v2418 = vld [vmem:[%s2417] ss:$2 sm:$0x7f]
  %v2420 = vlaneseq
  %v2421 = vshrl.u32 %v2420, 7
  %v2422 = vsub.s32 0, %v2421
  %v2423 = vrot.slane %v2418, %v2422
  %v2424 = vlaneseq
  %v2425 = vshrl.u32 %v2424, 7
  %v2426 = vsub.s32 1, %v2425
  %v2427 = vrot.slane %v2418, %v2426
  %v2428 = vlaneseq
  %v2429 = vshrl.u32 %v2428, 7
  %v2430 = vsub.s32 2, %v2429
  %v2431 = vrot.slane %v2418, %v2430
  %v2432 = vlaneseq
  %v2433 = vshrl.u32 %v2432, 7
  %v2434 = vsub.s32 3, %v2433
  %v2435 = vrot.slane %v2418, %v2434
  %v2436 = vlaneseq
  %v2437 = vshrl.u32 %v2436, 7
  %v2438 = vsub.s32 4, %v2437
  %v2439 = vrot.slane %v2418, %v2438
  %v2440 = vlaneseq
  %v2441 = vshrl.u32 %v2440, 7
  %v2442 = vsub.s32 5, %v2441
  %v2443 = vrot.slane %v2418, %v2442
  %v2444 = vlaneseq
  %v2445 = vshrl.u32 %v2444, 7
  %v2446 = vsub.s32 6, %v2445
  %v2447 = vrot.slane %v2418, %v2446
  %v2455 = vadd.f32 %v2410, %v2423
  %v2456 = vadd.f32 %v2411, %v2427
  %v2457 = vadd.f32 %v2412, %v2431
  %v2458 = vadd.f32 %v2413, %v2435
  %v2459 = vadd.f32 %v2414, %v2439
  %v2460 = vadd.f32 %v2415, %v2443
  %v2461 = vadd.f32 %v2416, %v2447
  %v2462 = vmax.f32 %v2455, 0.0
  %v2463 = vmax.f32 %v2456, 0.0
  %v2464 = vmax.f32 %v2457, 0.0
  %v2465 = vmax.f32 %v2458, 0.0
  %v2466 = vmax.f32 %v2459, 0.0
  %v2467 = vmax.f32 %v2460, 0.0
  %v2468 = vmax.f32 %v2461, 0.0
  %v2469 = vld [vmem:[%s7] sm:$0xff]
  %v2470 = vld [vmem:[%s7 + $0x8] sm:$0xff]
  %v2471 = vld [vmem:[%s7 + $0x10] sm:$0xff]
  %v2472 = vld [vmem:[%s7 + $0x18] sm:$0xff]
  %v2473 = vld [vmem:[%s7 + $0x20] sm:$0xff]
  %v2474 = vld [vmem:[%s7 + $0x28] sm:$0xff]
  %v2475 = vld [vmem:[%s7 + $0x30] sm:$0xff]
  %v2476 = vld [vmem:[%s7 + $0x38] sm:$0xff]
  %v2477 = vld [vmem:[%s7 + $0x40] sm:$0xff]
  %v2478 = vld [vmem:[%s7 + $0x48] sm:$0xff]
  %v2479 = vld [vmem:[%s7 + $0x50] sm:$0xff]
  %v2480 = vld [vmem:[%s7 + $0x58] sm:$0xff]
  %v2481 = vld [vmem:[%s7 + $0x60] sm:$0xff]
  %v2482 = vld [vmem:[%s7 + $0x68] sm:$0xff]
  %v2483 = vld [vmem:[%s7 + $0x70] sm:$0xff]
  %v2484 = vld [vmem:[%s7 + $0x78] sm:$0xff]
  %v2485 = vld [vmem:[%s7 + $0x80] sm:$0xff]
  %v2486 = vld [vmem:[%s7 + $0x88] sm:$0xff]
  %v2487 = vld [vmem:[%s7 + $0x90] sm:$0xff]
  %v2488 = vld [vmem:[%s7 + $0x98] sm:$0xff]
  %v2489 = vld [vmem:[%s7 + $0xa0] sm:$0xff]
  %v2490 = vld [vmem:[%s7 + $0xa8] sm:$0xff]
  %v2491 = vld [vmem:[%s7 + $0xb0] sm:$0xff]
  %v2492 = vld [vmem:[%s7 + $0xb8] sm:$0xff]
  %v2493 = vld [vmem:[%s7 + $0xc0] sm:$0xff]
  %v2494 = vld [vmem:[%s7 + $0xc8] sm:$0xff]
  %v2495 = vld [vmem:[%s7 + $0xd0] sm:$0xff]
  %v2496 = vld [vmem:[%s7 + $0xd8] sm:$0xff]
  %v2497 = vld [vmem:[%s7 + $0xe0] sm:$0xff]
  %v2498 = vld [vmem:[%s7 + $0xe8] sm:$0xff]
  %v2499 = vld [vmem:[%s7 + $0xf0] sm:$0xff]
  %v2500 = vld [vmem:[%s7 + $0xf8] sm:$0xff]
  %v2501 = vld [vmem:[%s7 + $0x100] sm:$0xff]
  %v2502 = vld [vmem:[%s7 + $0x108] sm:$0xff]
  %v2503 = vld [vmem:[%s7 + $0x110] sm:$0xff]
  %v2504 = vld [vmem:[%s7 + $0x118] sm:$0xff]
  %v2505 = vld [vmem:[%s7 + $0x120] sm:$0xff]
  %v2506 = vld [vmem:[%s7 + $0x128] sm:$0xff]
  %v2507 = vld [vmem:[%s7 + $0x130] sm:$0xff]
  %v2508 = vld [vmem:[%s7 + $0x138] sm:$0xff]
  %v2509 = vld [vmem:[%s7 + $0x140] sm:$0xff]
  %v2510 = vld [vmem:[%s7 + $0x148] sm:$0xff]
  %v2511 = vld [vmem:[%s7 + $0x150] sm:$0xff]
  %v2512 = vld [vmem:[%s7 + $0x158] sm:$0xff]
  %v2513 = vld [vmem:[%s7 + $0x160] sm:$0xff]
  %v2514 = vld [vmem:[%s7 + $0x168] sm:$0xff]
  %v2515 = vld [vmem:[%s7 + $0x170] sm:$0xff]
  %v2516 = vld [vmem:[%s7 + $0x178] sm:$0xff]
  %v2517 = vld [vmem:[%s7 + $0x180] sm:$0xff]
  %v2518 = vld [vmem:[%s7 + $0x188] sm:$0xff]
  %v2519 = vld [vmem:[%s7 + $0x190] sm:$0xff]
  %v2520 = vld [vmem:[%s7 + $0x198] sm:$0xff]
  %v2521 = vld [vmem:[%s7 + $0x1a0] sm:$0xff]
  %v2522 = vld [vmem:[%s7 + $0x1a8] sm:$0xff]
  %v2523 = vld [vmem:[%s7 + $0x1b0] sm:$0xff]
  %v2524 = vld [vmem:[%s7 + $0x1b8] sm:$0xff]
  %v2525 = vld [vmem:[%s7 + $0x1c0] sm:$0xff]
  %v2526 = vld [vmem:[%s7 + $0x1c8] sm:$0xff]
  %v2527 = vld [vmem:[%s7 + $0x1d0] sm:$0xff]
  %v2528 = vld [vmem:[%s7 + $0x1d8] sm:$0xff]
  %v2529 = vld [vmem:[%s7 + $0x1e0] sm:$0xff]
  %v2530 = vld [vmem:[%s7 + $0x1e8] sm:$0xff]
  %v2531 = vld [vmem:[%s7 + $0x1f0] sm:$0xff]
  %v2532 = vld [vmem:[%s7 + $0x1f8] sm:$0xff]
  %v2533 = vld [vmem:[%s7 + $0x200] sm:$0xff]
  %v2534 = vld [vmem:[%s7 + $0x208] sm:$0xff]
  %v2535 = vld [vmem:[%s7 + $0x210] sm:$0xff]
  %v2536 = vld [vmem:[%s7 + $0x218] sm:$0xff]
  %v2537 = vld [vmem:[%s7 + $0x220] sm:$0xff]
  %v2538 = vld [vmem:[%s7 + $0x228] sm:$0xff]
  %v2539 = vld [vmem:[%s7 + $0x230] sm:$0xff]
  %v2540 = vld [vmem:[%s7 + $0x238] sm:$0xff]
  %v2541 = vld [vmem:[%s7 + $0x240] sm:$0xff]
  %v2542 = vld [vmem:[%s7 + $0x248] sm:$0xff]
  %v2543 = vld [vmem:[%s7 + $0x250] sm:$0xff]
  %v2544 = vld [vmem:[%s7 + $0x258] sm:$0xff]
  %v2545 = vld [vmem:[%s7 + $0x260] sm:$0xff]
  %v2546 = vld [vmem:[%s7 + $0x268] sm:$0xff]
  %v2547 = vld [vmem:[%s7 + $0x270] sm:$0xff]
  %v2548 = vld [vmem:[%s7 + $0x278] sm:$0xff]
  %v2549 = vld [vmem:[%s7 + $0x280] sm:$0xff]
  %v2550 = vld [vmem:[%s7 + $0x288] sm:$0xff]
  %v2551 = vld [vmem:[%s7 + $0x290] sm:$0xff]
  %v2552 = vld [vmem:[%s7 + $0x298] sm:$0xff]
  %v2553 = vld [vmem:[%s7 + $0x2a0] sm:$0xff]
  %v2554 = vld [vmem:[%s7 + $0x2a8] sm:$0xff]
  %v2555 = vld [vmem:[%s7 + $0x2b0] sm:$0xff]
  %v2556 = vld [vmem:[%s7 + $0x2b8] sm:$0xff]
  %v2557 = vld [vmem:[%s7 + $0x2c0] sm:$0xff]
  %v2558 = vld [vmem:[%s7 + $0x2c8] sm:$0xff]
  %v2559 = vld [vmem:[%s7 + $0x2d0] sm:$0xff]
  %v2560 = vld [vmem:[%s7 + $0x2d8] sm:$0xff]
  %v2561 = vld [vmem:[%s7 + $0x2e0] sm:$0xff]
  %v2562 = vld [vmem:[%s7 + $0x2e8] sm:$0xff]
  %v2563 = vld [vmem:[%s7 + $0x2f0] sm:$0xff]
  %v2564 = vld [vmem:[%s7 + $0x2f8] sm:$0xff]
  %v2565 = vld [vmem:[%s7 + $0x300] sm:$0xff]
  %v2566 = vld [vmem:[%s7 + $0x308] sm:$0xff]
  %v2567 = vld [vmem:[%s7 + $0x310] sm:$0xff]
  %v2568 = vld [vmem:[%s7 + $0x318] sm:$0xff]
  %v2569 = vld [vmem:[%s7 + $0x320] sm:$0xff]
  %v2570 = vld [vmem:[%s7 + $0x328] sm:$0xff]
  %v2571 = vld [vmem:[%s7 + $0x330] sm:$0xff]
  %v2572 = vld [vmem:[%s7 + $0x338] sm:$0xff]
  %v2573 = vld [vmem:[%s7 + $0x340] sm:$0xff]
  %v2574 = vld [vmem:[%s7 + $0x348] sm:$0xff]
  %v2575 = vld [vmem:[%s7 + $0x350] sm:$0xff]
  %v2576 = vld [vmem:[%s7 + $0x358] sm:$0xff]
  %v2577 = vld [vmem:[%s7 + $0x360] sm:$0xff]
  %v2578 = vld [vmem:[%s7 + $0x368] sm:$0xff]
  %v2579 = vld [vmem:[%s7 + $0x370] sm:$0xff]
  %v2580 = vld [vmem:[%s7 + $0x378] sm:$0xff]
  %v2581 = vld [vmem:[%s7 + $0x380] sm:$0xff]
  %v2582 = vld [vmem:[%s7 + $0x388] sm:$0xff]
  %v2583 = vld [vmem:[%s7 + $0x390] sm:$0xff]
  %v2584 = vld [vmem:[%s7 + $0x398] sm:$0xff]
  %v2585 = vld [vmem:[%s7 + $0x3a0] sm:$0xff]
  %v2586 = vld [vmem:[%s7 + $0x3a8] sm:$0xff]
  %v2587 = vld [vmem:[%s7 + $0x3b0] sm:$0xff]
  %v2588 = vld [vmem:[%s7 + $0x3b8] sm:$0xff]
  %v2589 = vld [vmem:[%s7 + $0x3c0] sm:$0xff]
  %v2590 = vld [vmem:[%s7 + $0x3c8] sm:$0xff]
  %v2591 = vld [vmem:[%s7 + $0x3d0] sm:$0xff]
  %v2592 = vld [vmem:[%s7 + $0x3d8] sm:$0xff]
  %v2593 = vld [vmem:[%s7 + $0x3e0] sm:$0xff]
  %v2594 = vld [vmem:[%s7 + $0x3e8] sm:$0xff]
  %v2595 = vld [vmem:[%s7 + $0x3f0] sm:$0xff]
  %v2596 = vld [vmem:[%s7 + $0x3f8] sm:$0xff]
  %v2597 = vld [vmem:[%s7 + $0x400] sm:$0xff]
  %v2598 = vld [vmem:[%s7 + $0x408] sm:$0xff]
  %v2599 = vld [vmem:[%s7 + $0x410] sm:$0xff]
  %v2600 = vld [vmem:[%s7 + $0x418] sm:$0xff]
  %v2601 = vld [vmem:[%s7 + $0x420] sm:$0xff]
  %v2602 = vld [vmem:[%s7 + $0x428] sm:$0xff]
  %v2603 = vld [vmem:[%s7 + $0x430] sm:$0xff]
  %v2604 = vld [vmem:[%s7 + $0x438] sm:$0xff]
  %v2605 = vld [vmem:[%s7 + $0x440] sm:$0xff]
  %v2606 = vld [vmem:[%s7 + $0x448] sm:$0xff]
  %v2607 = vld [vmem:[%s7 + $0x450] sm:$0xff]
  %v2608 = vld [vmem:[%s7 + $0x458] sm:$0xff]
  %v2609 = vld [vmem:[%s7 + $0x460] sm:$0xff]
  %v2610 = vld [vmem:[%s7 + $0x468] sm:$0xff]
  %v2611 = vld [vmem:[%s7 + $0x470] sm:$0xff]
  %v2612 = vld [vmem:[%s7 + $0x478] sm:$0xff]
  %v2613 = vld [vmem:[%s7 + $0x480] sm:$0xff]
  %v2614 = vld [vmem:[%s7 + $0x488] sm:$0xff]
  %v2615 = vld [vmem:[%s7 + $0x490] sm:$0xff]
  %v2616 = vld [vmem:[%s7 + $0x498] sm:$0xff]
  %v2617 = vld [vmem:[%s7 + $0x4a0] sm:$0xff]
  %v2618 = vld [vmem:[%s7 + $0x4a8] sm:$0xff]
  %v2619 = vld [vmem:[%s7 + $0x4b0] sm:$0xff]
  %v2620 = vld [vmem:[%s7 + $0x4b8] sm:$0xff]
  %v2621 = vld [vmem:[%s7 + $0x4c0] sm:$0xff]
  %v2622 = vld [vmem:[%s7 + $0x4c8] sm:$0xff]
  %v2623 = vld [vmem:[%s7 + $0x4d0] sm:$0xff]
  %v2624 = vld [vmem:[%s7 + $0x4d8] sm:$0xff]
  %v2625 = vld [vmem:[%s7 + $0x4e0] sm:$0xff]
  %v2626 = vld [vmem:[%s7 + $0x4e8] sm:$0xff]
  %v2627 = vld [vmem:[%s7 + $0x4f0] sm:$0xff]
  %v2628 = vld [vmem:[%s7 + $0x4f8] sm:$0xff]
  %v2629 = vld [vmem:[%s7 + $0x500] sm:$0xff]
  %v2630 = vld [vmem:[%s7 + $0x508] sm:$0xff]
  %v2631 = vld [vmem:[%s7 + $0x510] sm:$0xff]
  %v2632 = vld [vmem:[%s7 + $0x518] sm:$0xff]
  %v2633 = vld [vmem:[%s7 + $0x520] sm:$0xff]
  %v2634 = vld [vmem:[%s7 + $0x528] sm:$0xff]
  %v2635 = vld [vmem:[%s7 + $0x530] sm:$0xff]
  %v2636 = vld [vmem:[%s7 + $0x538] sm:$0xff]
  %v2637 = vld [vmem:[%s7 + $0x540] sm:$0xff]
  %v2638 = vld [vmem:[%s7 + $0x548] sm:$0xff]
  %v2639 = vld [vmem:[%s7 + $0x550] sm:$0xff]
  %v2640 = vld [vmem:[%s7 + $0x558] sm:$0xff]
  %v2641 = vld [vmem:[%s7 + $0x560] sm:$0xff]
  %v2642 = vld [vmem:[%s7 + $0x568] sm:$0xff]
  %v2643 = vld [vmem:[%s7 + $0x570] sm:$0xff]
  %v2644 = vld [vmem:[%s7 + $0x578] sm:$0xff]
  %v2645 = vld [vmem:[%s7 + $0x580] sm:$0xff]
  %v2646 = vld [vmem:[%s7 + $0x588] sm:$0xff]
  %v2647 = vld [vmem:[%s7 + $0x590] sm:$0xff]
  %v2648 = vld [vmem:[%s7 + $0x598] sm:$0xff]
  %v2649 = vld [vmem:[%s7 + $0x5a0] sm:$0xff]
  %v2650 = vld [vmem:[%s7 + $0x5a8] sm:$0xff]
  %v2651 = vld [vmem:[%s7 + $0x5b0] sm:$0xff]
  %v2652 = vld [vmem:[%s7 + $0x5b8] sm:$0xff]
  %v2653 = vld [vmem:[%s7 + $0x5c0] sm:$0xff]
  %v2654 = vld [vmem:[%s7 + $0x5c8] sm:$0xff]
  %v2655 = vld [vmem:[%s7 + $0x5d0] sm:$0xff]
  %v2656 = vld [vmem:[%s7 + $0x5d8] sm:$0xff]
  %v2657 = vld [vmem:[%s7 + $0x5e0] sm:$0xff]
  %v2658 = vld [vmem:[%s7 + $0x5e8] sm:$0xff]
  %v2659 = vld [vmem:[%s7 + $0x5f0] sm:$0xff]
  %v2660 = vld [vmem:[%s7 + $0x5f8] sm:$0xff]
  %v2661 = vld [vmem:[%s7 + $0x600] sm:$0xff]
  %v2662 = vld [vmem:[%s7 + $0x608] sm:$0xff]
  %v2663 = vld [vmem:[%s7 + $0x610] sm:$0xff]
  %v2664 = vld [vmem:[%s7 + $0x618] sm:$0xff]
  %v2665 = vunpack.c.l.s8.bf16 %v2469
  %v2666 = vunpack.c.h.s8.bf16 %v2469
  %v2667 = vunpack.c.l.s8.bf16 %v2470
  %v2668 = vunpack.c.h.s8.bf16 %v2470
  %v2669 = vunpack.c.l.s8.bf16 %v2471
  %v2670 = vunpack.c.h.s8.bf16 %v2471
  %v2671 = vunpack.c.l.s8.bf16 %v2472
  %v2672 = vunpack.c.h.s8.bf16 %v2472
  %v2673 = vunpack.c.l.s8.bf16 %v2473
  %v2674 = vunpack.c.h.s8.bf16 %v2473
  %v2675 = vunpack.c.l.s8.bf16 %v2474
  %v2676 = vunpack.c.h.s8.bf16 %v2474
  %v2677 = vunpack.c.l.s8.bf16 %v2475
  %v2678 = vunpack.c.h.s8.bf16 %v2475
  %v2679 = vunpack.c.l.s8.bf16 %v2476
  %v2680 = vunpack.c.h.s8.bf16 %v2476
  %v2681 = vunpack.c.l.s8.bf16 %v2477
  %v2682 = vunpack.c.h.s8.bf16 %v2477
  %v2683 = vunpack.c.l.s8.bf16 %v2478
  %v2684 = vunpack.c.h.s8.bf16 %v2478
  %v2685 = vunpack.c.l.s8.bf16 %v2479
  %v2686 = vunpack.c.h.s8.bf16 %v2479
  %v2687 = vunpack.c.l.s8.bf16 %v2480
  %v2688 = vunpack.c.h.s8.bf16 %v2480
  %v2689 = vunpack.c.l.s8.bf16 %v2481
  %v2690 = vunpack.c.h.s8.bf16 %v2481
  %v2691 = vunpack.c.l.s8.bf16 %v2482
  %v2692 = vunpack.c.h.s8.bf16 %v2482
  %v2693 = vunpack.c.l.s8.bf16 %v2483
  %v2694 = vunpack.c.h.s8.bf16 %v2483
  %v2695 = vunpack.c.l.s8.bf16 %v2484
  %v2696 = vunpack.c.h.s8.bf16 %v2484
  %v2697 = vunpack.c.l.s8.bf16 %v2485
  %v2698 = vunpack.c.h.s8.bf16 %v2485
  %v2699 = vunpack.c.l.s8.bf16 %v2486
  %v2700 = vunpack.c.h.s8.bf16 %v2486
  %v2701 = vunpack.c.l.s8.bf16 %v2487
  %v2702 = vunpack.c.h.s8.bf16 %v2487
  %v2703 = vunpack.c.l.s8.bf16 %v2488
  %v2704 = vunpack.c.h.s8.bf16 %v2488
  %v2705 = vunpack.c.l.s8.bf16 %v2489
  %v2706 = vunpack.c.h.s8.bf16 %v2489
  %v2707 = vunpack.c.l.s8.bf16 %v2490
  %v2708 = vunpack.c.h.s8.bf16 %v2490
  %v2709 = vunpack.c.l.s8.bf16 %v2491
  %v2710 = vunpack.c.h.s8.bf16 %v2491
  %v2711 = vunpack.c.l.s8.bf16 %v2492
  %v2712 = vunpack.c.h.s8.bf16 %v2492
  %v2713 = vunpack.c.l.s8.bf16 %v2493
  %v2714 = vunpack.c.h.s8.bf16 %v2493
  %v2715 = vunpack.c.l.s8.bf16 %v2494
  %v2716 = vunpack.c.h.s8.bf16 %v2494
  %v2717 = vunpack.c.l.s8.bf16 %v2495
  %v2718 = vunpack.c.h.s8.bf16 %v2495
  %v2719 = vunpack.c.l.s8.bf16 %v2496
  %v2720 = vunpack.c.h.s8.bf16 %v2496
  %v2721 = vunpack.c.l.s8.bf16 %v2497
  %v2722 = vunpack.c.h.s8.bf16 %v2497
  %v2723 = vunpack.c.l.s8.bf16 %v2498
  %v2724 = vunpack.c.h.s8.bf16 %v2498
  %v2725 = vunpack.c.l.s8.bf16 %v2499
  %v2726 = vunpack.c.h.s8.bf16 %v2499
  %v2727 = vunpack.c.l.s8.bf16 %v2500
  %v2728 = vunpack.c.h.s8.bf16 %v2500
  %v2729 = vunpack.c.l.s8.bf16 %v2501
  %v2730 = vunpack.c.h.s8.bf16 %v2501
  %v2731 = vunpack.c.l.s8.bf16 %v2502
  %v2732 = vunpack.c.h.s8.bf16 %v2502
  %v2733 = vunpack.c.l.s8.bf16 %v2503
  %v2734 = vunpack.c.h.s8.bf16 %v2503
  %v2735 = vunpack.c.l.s8.bf16 %v2504
  %v2736 = vunpack.c.h.s8.bf16 %v2504
  %v2737 = vunpack.c.l.s8.bf16 %v2505
  %v2738 = vunpack.c.h.s8.bf16 %v2505
  %v2739 = vunpack.c.l.s8.bf16 %v2506
  %v2740 = vunpack.c.h.s8.bf16 %v2506
  %v2741 = vunpack.c.l.s8.bf16 %v2507
  %v2742 = vunpack.c.h.s8.bf16 %v2507
  %v2743 = vunpack.c.l.s8.bf16 %v2508
  %v2744 = vunpack.c.h.s8.bf16 %v2508
  %v2745 = vunpack.c.l.s8.bf16 %v2509
  %v2746 = vunpack.c.h.s8.bf16 %v2509
  %v2747 = vunpack.c.l.s8.bf16 %v2510
  %v2748 = vunpack.c.h.s8.bf16 %v2510
  %v2749 = vunpack.c.l.s8.bf16 %v2511
  %v2750 = vunpack.c.h.s8.bf16 %v2511
  %v2751 = vunpack.c.l.s8.bf16 %v2512
  %v2752 = vunpack.c.h.s8.bf16 %v2512
  %v2753 = vunpack.c.l.s8.bf16 %v2513
  %v2754 = vunpack.c.h.s8.bf16 %v2513
  %v2755 = vunpack.c.l.s8.bf16 %v2514
  %v2756 = vunpack.c.h.s8.bf16 %v2514
  %v2757 = vunpack.c.l.s8.bf16 %v2515
  %v2758 = vunpack.c.h.s8.bf16 %v2515
  %v2759 = vunpack.c.l.s8.bf16 %v2516
  %v2760 = vunpack.c.h.s8.bf16 %v2516
  %v2761 = vunpack.c.l.s8.bf16 %v2517
  %v2762 = vunpack.c.h.s8.bf16 %v2517
  %v2763 = vunpack.c.l.s8.bf16 %v2518
  %v2764 = vunpack.c.h.s8.bf16 %v2518
  %v2765 = vunpack.c.l.s8.bf16 %v2519
  %v2766 = vunpack.c.h.s8.bf16 %v2519
  %v2767 = vunpack.c.l.s8.bf16 %v2520
  %v2768 = vunpack.c.h.s8.bf16 %v2520
  %v2769 = vunpack.c.l.s8.bf16 %v2521
  %v2770 = vunpack.c.h.s8.bf16 %v2521
  %v2771 = vunpack.c.l.s8.bf16 %v2522
  %v2772 = vunpack.c.h.s8.bf16 %v2522
  %v2773 = vunpack.c.l.s8.bf16 %v2523
  %v2774 = vunpack.c.h.s8.bf16 %v2523
  %v2775 = vunpack.c.l.s8.bf16 %v2524
  %v2776 = vunpack.c.h.s8.bf16 %v2524
  %v2777 = vunpack.c.l.s8.bf16 %v2525
  %v2778 = vunpack.c.h.s8.bf16 %v2525
  %v2779 = vunpack.c.l.s8.bf16 %v2526
  %v2780 = vunpack.c.h.s8.bf16 %v2526
  %v2781 = vunpack.c.l.s8.bf16 %v2527
  %v2782 = vunpack.c.h.s8.bf16 %v2527
  %v2783 = vunpack.c.l.s8.bf16 %v2528
  %v2784 = vunpack.c.h.s8.bf16 %v2528
  %v2785 = vunpack.c.l.s8.bf16 %v2529
  %v2786 = vunpack.c.h.s8.bf16 %v2529
  %v2787 = vunpack.c.l.s8.bf16 %v2530
  %v2788 = vunpack.c.h.s8.bf16 %v2530
  %v2789 = vunpack.c.l.s8.bf16 %v2531
  %v2790 = vunpack.c.h.s8.bf16 %v2531
  %v2791 = vunpack.c.l.s8.bf16 %v2532
  %v2792 = vunpack.c.h.s8.bf16 %v2532
  %v2793 = vunpack.c.l.s8.bf16 %v2533
  %v2794 = vunpack.c.h.s8.bf16 %v2533
  %v2795 = vunpack.c.l.s8.bf16 %v2534
  %v2796 = vunpack.c.h.s8.bf16 %v2534
  %v2797 = vunpack.c.l.s8.bf16 %v2535
  %v2798 = vunpack.c.h.s8.bf16 %v2535
  %v2799 = vunpack.c.l.s8.bf16 %v2536
  %v2800 = vunpack.c.h.s8.bf16 %v2536
  %v2801 = vunpack.c.l.s8.bf16 %v2537
  %v2802 = vunpack.c.h.s8.bf16 %v2537
  %v2803 = vunpack.c.l.s8.bf16 %v2538
  %v2804 = vunpack.c.h.s8.bf16 %v2538
  %v2805 = vunpack.c.l.s8.bf16 %v2539
  %v2806 = vunpack.c.h.s8.bf16 %v2539
  %v2807 = vunpack.c.l.s8.bf16 %v2540
  %v2808 = vunpack.c.h.s8.bf16 %v2540
  %v2809 = vunpack.c.l.s8.bf16 %v2541
  %v2810 = vunpack.c.h.s8.bf16 %v2541
  %v2811 = vunpack.c.l.s8.bf16 %v2542
  %v2812 = vunpack.c.h.s8.bf16 %v2542
  %v2813 = vunpack.c.l.s8.bf16 %v2543
  %v2814 = vunpack.c.h.s8.bf16 %v2543
  %v2815 = vunpack.c.l.s8.bf16 %v2544
  %v2816 = vunpack.c.h.s8.bf16 %v2544
  %v2817 = vunpack.c.l.s8.bf16 %v2545
  %v2818 = vunpack.c.h.s8.bf16 %v2545
  %v2819 = vunpack.c.l.s8.bf16 %v2546
  %v2820 = vunpack.c.h.s8.bf16 %v2546
  %v2821 = vunpack.c.l.s8.bf16 %v2547
  %v2822 = vunpack.c.h.s8.bf16 %v2547
  %v2823 = vunpack.c.l.s8.bf16 %v2548
  %v2824 = vunpack.c.h.s8.bf16 %v2548
  %v2825 = vunpack.c.l.s8.bf16 %v2549
  %v2826 = vunpack.c.h.s8.bf16 %v2549
  %v2827 = vunpack.c.l.s8.bf16 %v2550
  %v2828 = vunpack.c.h.s8.bf16 %v2550
  %v2829 = vunpack.c.l.s8.bf16 %v2551
  %v2830 = vunpack.c.h.s8.bf16 %v2551
  %v2831 = vunpack.c.l.s8.bf16 %v2552
  %v2832 = vunpack.c.h.s8.bf16 %v2552
  %v2833 = vunpack.c.l.s8.bf16 %v2553
  %v2834 = vunpack.c.h.s8.bf16 %v2553
  %v2835 = vunpack.c.l.s8.bf16 %v2554
  %v2836 = vunpack.c.h.s8.bf16 %v2554
  %v2837 = vunpack.c.l.s8.bf16 %v2555
  %v2838 = vunpack.c.h.s8.bf16 %v2555
  %v2839 = vunpack.c.l.s8.bf16 %v2556
  %v2840 = vunpack.c.h.s8.bf16 %v2556
  %v2841 = vunpack.c.l.s8.bf16 %v2557
  %v2842 = vunpack.c.h.s8.bf16 %v2557
  %v2843 = vunpack.c.l.s8.bf16 %v2558
  %v2844 = vunpack.c.h.s8.bf16 %v2558
  %v2845 = vunpack.c.l.s8.bf16 %v2559
  %v2846 = vunpack.c.h.s8.bf16 %v2559
  %v2847 = vunpack.c.l.s8.bf16 %v2560
  %v2848 = vunpack.c.h.s8.bf16 %v2560
  %v2849 = vunpack.c.l.s8.bf16 %v2561
  %v2850 = vunpack.c.h.s8.bf16 %v2561
  %v2851 = vunpack.c.l.s8.bf16 %v2562
  %v2852 = vunpack.c.h.s8.bf16 %v2562
  %v2853 = vunpack.c.l.s8.bf16 %v2563
  %v2854 = vunpack.c.h.s8.bf16 %v2563
  %v2855 = vunpack.c.l.s8.bf16 %v2564
  %v2856 = vunpack.c.h.s8.bf16 %v2564
  %v2857 = vunpack.c.l.s8.bf16 %v2565
  %v2858 = vunpack.c.h.s8.bf16 %v2565
  %v2859 = vunpack.c.l.s8.bf16 %v2566
  %v2860 = vunpack.c.h.s8.bf16 %v2566
  %v2861 = vunpack.c.l.s8.bf16 %v2567
  %v2862 = vunpack.c.h.s8.bf16 %v2567
  %v2863 = vunpack.c.l.s8.bf16 %v2568
  %v2864 = vunpack.c.h.s8.bf16 %v2568
  %v2865 = vunpack.c.l.s8.bf16 %v2569
  %v2866 = vunpack.c.h.s8.bf16 %v2569
  %v2867 = vunpack.c.l.s8.bf16 %v2570
  %v2868 = vunpack.c.h.s8.bf16 %v2570
  %v2869 = vunpack.c.l.s8.bf16 %v2571
  %v2870 = vunpack.c.h.s8.bf16 %v2571
  %v2871 = vunpack.c.l.s8.bf16 %v2572
  %v2872 = vunpack.c.h.s8.bf16 %v2572
  %v2873 = vunpack.c.l.s8.bf16 %v2573
  %v2874 = vunpack.c.h.s8.bf16 %v2573
  %v2875 = vunpack.c.l.s8.bf16 %v2574
  %v2876 = vunpack.c.h.s8.bf16 %v2574
  %v2877 = vunpack.c.l.s8.bf16 %v2575
  %v2878 = vunpack.c.h.s8.bf16 %v2575
  %v2879 = vunpack.c.l.s8.bf16 %v2576
  %v2880 = vunpack.c.h.s8.bf16 %v2576
  %v2881 = vunpack.c.l.s8.bf16 %v2577
  %v2882 = vunpack.c.h.s8.bf16 %v2577
  %v2883 = vunpack.c.l.s8.bf16 %v2578
  %v2884 = vunpack.c.h.s8.bf16 %v2578
  %v2885 = vunpack.c.l.s8.bf16 %v2579
  %v2886 = vunpack.c.h.s8.bf16 %v2579
  %v2887 = vunpack.c.l.s8.bf16 %v2580
  %v2888 = vunpack.c.h.s8.bf16 %v2580
  %v2889 = vunpack.c.l.s8.bf16 %v2581
  %v2890 = vunpack.c.h.s8.bf16 %v2581
  %v2891 = vunpack.c.l.s8.bf16 %v2582
  %v2892 = vunpack.c.h.s8.bf16 %v2582
  %v2893 = vunpack.c.l.s8.bf16 %v2583
  %v2894 = vunpack.c.h.s8.bf16 %v2583
  %v2895 = vunpack.c.l.s8.bf16 %v2584
  %v2896 = vunpack.c.h.s8.bf16 %v2584
  %v2897 = vunpack.c.l.s8.bf16 %v2585
  %v2898 = vunpack.c.h.s8.bf16 %v2585
  %v2899 = vunpack.c.l.s8.bf16 %v2586
  %v2900 = vunpack.c.h.s8.bf16 %v2586
  %v2901 = vunpack.c.l.s8.bf16 %v2587
  %v2902 = vunpack.c.h.s8.bf16 %v2587
  %v2903 = vunpack.c.l.s8.bf16 %v2588
  %v2904 = vunpack.c.h.s8.bf16 %v2588
  %v2905 = vunpack.c.l.s8.bf16 %v2589
  %v2906 = vunpack.c.h.s8.bf16 %v2589
  %v2907 = vunpack.c.l.s8.bf16 %v2590
  %v2908 = vunpack.c.h.s8.bf16 %v2590
  %v2909 = vunpack.c.l.s8.bf16 %v2591
  %v2910 = vunpack.c.h.s8.bf16 %v2591
  %v2911 = vunpack.c.l.s8.bf16 %v2592
  %v2912 = vunpack.c.h.s8.bf16 %v2592
  %v2913 = vunpack.c.l.s8.bf16 %v2593
  %v2914 = vunpack.c.h.s8.bf16 %v2593
  %v2915 = vunpack.c.l.s8.bf16 %v2594
  %v2916 = vunpack.c.h.s8.bf16 %v2594
  %v2917 = vunpack.c.l.s8.bf16 %v2595
  %v2918 = vunpack.c.h.s8.bf16 %v2595
  %v2919 = vunpack.c.l.s8.bf16 %v2596
  %v2920 = vunpack.c.h.s8.bf16 %v2596
  %v2921 = vunpack.c.l.s8.bf16 %v2597
  %v2922 = vunpack.c.h.s8.bf16 %v2597
  %v2923 = vunpack.c.l.s8.bf16 %v2598
  %v2924 = vunpack.c.h.s8.bf16 %v2598
  %v2925 = vunpack.c.l.s8.bf16 %v2599
  %v2926 = vunpack.c.h.s8.bf16 %v2599
  %v2927 = vunpack.c.l.s8.bf16 %v2600
  %v2928 = vunpack.c.h.s8.bf16 %v2600
  %v2929 = vunpack.c.l.s8.bf16 %v2601
  %v2930 = vunpack.c.h.s8.bf16 %v2601
  %v2931 = vunpack.c.l.s8.bf16 %v2602
  %v2932 = vunpack.c.h.s8.bf16 %v2602
  %v2933 = vunpack.c.l.s8.bf16 %v2603
  %v2934 = vunpack.c.h.s8.bf16 %v2603
  %v2935 = vunpack.c.l.s8.bf16 %v2604
  %v2936 = vunpack.c.h.s8.bf16 %v2604
  %v2937 = vunpack.c.l.s8.bf16 %v2605
  %v2938 = vunpack.c.h.s8.bf16 %v2605
  %v2939 = vunpack.c.l.s8.bf16 %v2606
  %v2940 = vunpack.c.h.s8.bf16 %v2606
  %v2941 = vunpack.c.l.s8.bf16 %v2607
  %v2942 = vunpack.c.h.s8.bf16 %v2607
  %v2943 = vunpack.c.l.s8.bf16 %v2608
  %v2944 = vunpack.c.h.s8.bf16 %v2608
  %v2945 = vunpack.c.l.s8.bf16 %v2609
  %v2946 = vunpack.c.h.s8.bf16 %v2609
  %v2947 = vunpack.c.l.s8.bf16 %v2610
  %v2948 = vunpack.c.h.s8.bf16 %v2610
  %v2949 = vunpack.c.l.s8.bf16 %v2611
  %v2950 = vunpack.c.h.s8.bf16 %v2611
  %v2951 = vunpack.c.l.s8.bf16 %v2612
  %v2952 = vunpack.c.h.s8.bf16 %v2612
  %v2953 = vunpack.c.l.s8.bf16 %v2613
  %v2954 = vunpack.c.h.s8.bf16 %v2613
  %v2955 = vunpack.c.l.s8.bf16 %v2614
  %v2956 = vunpack.c.h.s8.bf16 %v2614
  %v2957 = vunpack.c.l.s8.bf16 %v2615
  %v2958 = vunpack.c.h.s8.bf16 %v2615
  %v2959 = vunpack.c.l.s8.bf16 %v2616
  %v2960 = vunpack.c.h.s8.bf16 %v2616
  %v2961 = vunpack.c.l.s8.bf16 %v2617
  %v2962 = vunpack.c.h.s8.bf16 %v2617
  %v2963 = vunpack.c.l.s8.bf16 %v2618
  %v2964 = vunpack.c.h.s8.bf16 %v2618
  %v2965 = vunpack.c.l.s8.bf16 %v2619
  %v2966 = vunpack.c.h.s8.bf16 %v2619
  %v2967 = vunpack.c.l.s8.bf16 %v2620
  %v2968 = vunpack.c.h.s8.bf16 %v2620
  %v2969 = vunpack.c.l.s8.bf16 %v2621
  %v2970 = vunpack.c.h.s8.bf16 %v2621
  %v2971 = vunpack.c.l.s8.bf16 %v2622
  %v2972 = vunpack.c.h.s8.bf16 %v2622
  %v2973 = vunpack.c.l.s8.bf16 %v2623
  %v2974 = vunpack.c.h.s8.bf16 %v2623
  %v2975 = vunpack.c.l.s8.bf16 %v2624
  %v2976 = vunpack.c.h.s8.bf16 %v2624
  %v2977 = vunpack.c.l.s8.bf16 %v2625
  %v2978 = vunpack.c.h.s8.bf16 %v2625
  %v2979 = vunpack.c.l.s8.bf16 %v2626
  %v2980 = vunpack.c.h.s8.bf16 %v2626
  %v2981 = vunpack.c.l.s8.bf16 %v2627
  %v2982 = vunpack.c.h.s8.bf16 %v2627
  %v2983 = vunpack.c.l.s8.bf16 %v2628
  %v2984 = vunpack.c.h.s8.bf16 %v2628
  %v2985 = vunpack.c.l.s8.bf16 %v2629
  %v2986 = vunpack.c.h.s8.bf16 %v2629
  %v2987 = vunpack.c.l.s8.bf16 %v2630
  %v2988 = vunpack.c.h.s8.bf16 %v2630
  %v2989 = vunpack.c.l.s8.bf16 %v2631
  %v2990 = vunpack.c.h.s8.bf16 %v2631
  %v2991 = vunpack.c.l.s8.bf16 %v2632
  %v2992 = vunpack.c.h.s8.bf16 %v2632
  %v2993 = vunpack.c.l.s8.bf16 %v2633
  %v2994 = vunpack.c.h.s8.bf16 %v2633
  %v2995 = vunpack.c.l.s8.bf16 %v2634
  %v2996 = vunpack.c.h.s8.bf16 %v2634
  %v2997 = vunpack.c.l.s8.bf16 %v2635
  %v2998 = vunpack.c.h.s8.bf16 %v2635
  %v2999 = vunpack.c.l.s8.bf16 %v2636
  %v3000 = vunpack.c.h.s8.bf16 %v2636
  %v3001 = vunpack.c.l.s8.bf16 %v2637
  %v3002 = vunpack.c.h.s8.bf16 %v2637
  %v3003 = vunpack.c.l.s8.bf16 %v2638
  %v3004 = vunpack.c.h.s8.bf16 %v2638
  %v3005 = vunpack.c.l.s8.bf16 %v2639
  %v3006 = vunpack.c.h.s8.bf16 %v2639
  %v3007 = vunpack.c.l.s8.bf16 %v2640
  %v3008 = vunpack.c.h.s8.bf16 %v2640
  %v3009 = vunpack.c.l.s8.bf16 %v2641
  %v3010 = vunpack.c.h.s8.bf16 %v2641
  %v3011 = vunpack.c.l.s8.bf16 %v2642
  %v3012 = vunpack.c.h.s8.bf16 %v2642
  %v3013 = vunpack.c.l.s8.bf16 %v2643
  %v3014 = vunpack.c.h.s8.bf16 %v2643
  %v3015 = vunpack.c.l.s8.bf16 %v2644
  %v3016 = vunpack.c.h.s8.bf16 %v2644
  %v3017 = vunpack.c.l.s8.bf16 %v2645
  %v3018 = vunpack.c.h.s8.bf16 %v2645
  %v3019 = vunpack.c.l.s8.bf16 %v2646
  %v3020 = vunpack.c.h.s8.bf16 %v2646
  %v3021 = vunpack.c.l.s8.bf16 %v2647
  %v3022 = vunpack.c.h.s8.bf16 %v2647
  %v3023 = vunpack.c.l.s8.bf16 %v2648
  %v3024 = vunpack.c.h.s8.bf16 %v2648
  %v3025 = vunpack.c.l.s8.bf16 %v2649
  %v3026 = vunpack.c.h.s8.bf16 %v2649
  %v3027 = vunpack.c.l.s8.bf16 %v2650
  %v3028 = vunpack.c.h.s8.bf16 %v2650
  %v3029 = vunpack.c.l.s8.bf16 %v2651
  %v3030 = vunpack.c.h.s8.bf16 %v2651
  %v3031 = vunpack.c.l.s8.bf16 %v2652
  %v3032 = vunpack.c.h.s8.bf16 %v2652
  %v3033 = vunpack.c.l.s8.bf16 %v2653
  %v3034 = vunpack.c.h.s8.bf16 %v2653
  %v3035 = vunpack.c.l.s8.bf16 %v2654
  %v3036 = vunpack.c.h.s8.bf16 %v2654
  %v3037 = vunpack.c.l.s8.bf16 %v2655
  %v3038 = vunpack.c.h.s8.bf16 %v2655
  %v3039 = vunpack.c.l.s8.bf16 %v2656
  %v3040 = vunpack.c.h.s8.bf16 %v2656
  %v3041 = vunpack.c.l.s8.bf16 %v2657
  %v3042 = vunpack.c.h.s8.bf16 %v2657
  %v3043 = vunpack.c.l.s8.bf16 %v2658
  %v3044 = vunpack.c.h.s8.bf16 %v2658
  %v3045 = vunpack.c.l.s8.bf16 %v2659
  %v3046 = vunpack.c.h.s8.bf16 %v2659
  %v3047 = vunpack.c.l.s8.bf16 %v2660
  %v3048 = vunpack.c.h.s8.bf16 %v2660
  %v3049 = vunpack.c.l.s8.bf16 %v2661
  %v3050 = vunpack.c.h.s8.bf16 %v2661
  %v3051 = vunpack.c.l.s8.bf16 %v2662
  %v3052 = vunpack.c.h.s8.bf16 %v2662
  %v3053 = vunpack.c.l.s8.bf16 %v2663
  %v3054 = vunpack.c.h.s8.bf16 %v2663
  %v3055 = vunpack.c.l.s8.bf16 %v2664
  %v3056 = vunpack.c.h.s8.bf16 %v2664
  %v3057 = vpack.c.bf16 %v2462, %v2462
  %v3058 = vpack.c.bf16 %v2463, %v2463
  %v3059 = vpack.c.bf16 %v2464, %v2464
  %v3060 = vpack.c.bf16 %v2465, %v2465
  %v3061 = vpack.c.bf16 %v2466, %v2466
  %v3062 = vpack.c.bf16 %v2467, %v2467
  %v3063 = vpack.c.bf16 %v2468, %v2468
  %v3456 = vunpack.c.l.b16 %v2665
  %v3457 = vunpack.c.h.b16 %v2665
  %v3458 = vunpack.c.l.b16 %v2666
  %v3459 = vunpack.c.h.b16 %v2666
  %v3460 = vunpack.c.l.b16 %v2667
  %v3461 = vunpack.c.h.b16 %v2667
  %v3462 = vunpack.c.l.b16 %v2668
  %v3463 = vunpack.c.h.b16 %v2668
  %v3464 = vunpack.c.l.b16 %v2669
  %v3465 = vunpack.c.h.b16 %v2669
  %v3466 = vunpack.c.l.b16 %v2670
  %v3467 = vunpack.c.h.b16 %v2670
  %v3468 = vunpack.c.l.b16 %v2671
  %v3469 = vunpack.c.h.b16 %v2671
  %v3470 = vunpack.c.l.b16 %v2672
  %v3471 = vunpack.c.h.b16 %v2672
  %v3472 = vunpack.c.l.b16 %v2673
  %v3473 = vunpack.c.h.b16 %v2673
  %v3474 = vunpack.c.l.b16 %v2674
  %v3475 = vunpack.c.h.b16 %v2674
  %v3476 = vunpack.c.l.b16 %v2675
  %v3477 = vunpack.c.h.b16 %v2675
  %v3478 = vunpack.c.l.b16 %v2676
  %v3479 = vunpack.c.h.b16 %v2676
  %v3480 = vunpack.c.l.b16 %v2677
  %v3481 = vunpack.c.h.b16 %v2677
  %v3482 = vunpack.c.l.b16 %v2678
  %v3483 = vunpack.c.h.b16 %v2678
  %v3484 = vunpack.c.l.b16 %v2679
  %v3485 = vunpack.c.h.b16 %v2679
  %v3486 = vunpack.c.l.b16 %v2680
  %v3487 = vunpack.c.h.b16 %v2680
  %v3488 = vunpack.c.l.b16 %v2681
  %v3489 = vunpack.c.h.b16 %v2681
  %v3490 = vunpack.c.l.b16 %v2682
  %v3491 = vunpack.c.h.b16 %v2682
  %v3492 = vunpack.c.l.b16 %v2683
  %v3493 = vunpack.c.h.b16 %v2683
  %v3494 = vunpack.c.l.b16 %v2684
  %v3495 = vunpack.c.h.b16 %v2684
  %v3496 = vunpack.c.l.b16 %v2685
  %v3497 = vunpack.c.h.b16 %v2685
  %v3498 = vunpack.c.l.b16 %v2686
  %v3499 = vunpack.c.h.b16 %v2686
  %v3500 = vunpack.c.l.b16 %v2687
  %v3501 = vunpack.c.h.b16 %v2687
  %v3502 = vunpack.c.l.b16 %v2688
  %v3503 = vunpack.c.h.b16 %v2688
  %v3504 = vunpack.c.l.b16 %v2689
  %v3505 = vunpack.c.h.b16 %v2689
  %v3506 = vunpack.c.l.b16 %v2690
  %v3507 = vunpack.c.h.b16 %v2690
  %v3508 = vunpack.c.l.b16 %v2691
  %v3509 = vunpack.c.h.b16 %v2691
  %v3510 = vunpack.c.l.b16 %v2692
  %v3511 = vunpack.c.h.b16 %v2692
  %v3512 = vunpack.c.l.b16 %v2693
  %v3513 = vunpack.c.h.b16 %v2693
  %v3514 = vunpack.c.l.b16 %v2694
  %v3515 = vunpack.c.h.b16 %v2694
  %v3516 = vunpack.c.l.b16 %v2695
  %v3517 = vunpack.c.h.b16 %v2695
  %v3518 = vunpack.c.l.b16 %v2696
  %v3519 = vunpack.c.h.b16 %v2696
  %v3520 = vunpack.c.l.b16 %v2697
  %v3521 = vunpack.c.h.b16 %v2697
  %v3522 = vunpack.c.l.b16 %v2698
  %v3523 = vunpack.c.h.b16 %v2698
  %v3524 = vunpack.c.l.b16 %v2699
  %v3525 = vunpack.c.h.b16 %v2699
  %v3526 = vunpack.c.l.b16 %v2700
  %v3527 = vunpack.c.h.b16 %v2700
  %v3528 = vunpack.c.l.b16 %v2701
  %v3529 = vunpack.c.h.b16 %v2701
  %v3530 = vunpack.c.l.b16 %v2702
  %v3531 = vunpack.c.h.b16 %v2702
  %v3532 = vunpack.c.l.b16 %v2703
  %v3533 = vunpack.c.h.b16 %v2703
  %v3534 = vunpack.c.l.b16 %v2704
  %v3535 = vunpack.c.h.b16 %v2704
  %v3536 = vunpack.c.l.b16 %v2705
  %v3537 = vunpack.c.h.b16 %v2705
  %v3538 = vunpack.c.l.b16 %v2706
  %v3539 = vunpack.c.h.b16 %v2706
  %v3540 = vunpack.c.l.b16 %v2707
  %v3541 = vunpack.c.h.b16 %v2707
  %v3542 = vunpack.c.l.b16 %v2708
  %v3543 = vunpack.c.h.b16 %v2708
  %v3544 = vunpack.c.l.b16 %v2709
  %v3545 = vunpack.c.h.b16 %v2709
  %v3546 = vunpack.c.l.b16 %v2710
  %v3547 = vunpack.c.h.b16 %v2710
  %v3548 = vunpack.c.l.b16 %v2711
  %v3549 = vunpack.c.h.b16 %v2711
  %v3550 = vunpack.c.l.b16 %v2712
  %v3551 = vunpack.c.h.b16 %v2712
  %v3552 = vunpack.c.l.b16 %v2713
  %v3553 = vunpack.c.h.b16 %v2713
  %v3554 = vunpack.c.l.b16 %v2714
  %v3555 = vunpack.c.h.b16 %v2714
  %v3556 = vunpack.c.l.b16 %v2715
  %v3557 = vunpack.c.h.b16 %v2715
  %v3558 = vunpack.c.l.b16 %v2716
  %v3559 = vunpack.c.h.b16 %v2716
  %v3560 = vunpack.c.l.b16 %v2717
  %v3561 = vunpack.c.h.b16 %v2717
  %v3562 = vunpack.c.l.b16 %v2718
  %v3563 = vunpack.c.h.b16 %v2718
  %v3564 = vunpack.c.l.b16 %v2719
  %v3565 = vunpack.c.h.b16 %v2719
  %v3566 = vunpack.c.l.b16 %v2720
  %v3567 = vunpack.c.h.b16 %v2720
  %v3568 = vunpack.c.l.b16 %v2721
  %v3569 = vunpack.c.h.b16 %v2721
  %v3570 = vunpack.c.l.b16 %v2722
  %v3571 = vunpack.c.h.b16 %v2722
  %v3572 = vunpack.c.l.b16 %v2723
  %v3573 = vunpack.c.h.b16 %v2723
  %v3574 = vunpack.c.l.b16 %v2724
  %v3575 = vunpack.c.h.b16 %v2724
  %v3576 = vunpack.c.l.b16 %v2725
  %v3577 = vunpack.c.h.b16 %v2725
  %v3578 = vunpack.c.l.b16 %v2726
  %v3579 = vunpack.c.h.b16 %v2726
  %v3580 = vunpack.c.l.b16 %v2727
  %v3581 = vunpack.c.h.b16 %v2727
  %v3582 = vunpack.c.l.b16 %v2728
  %v3583 = vunpack.c.h.b16 %v2728
  %v3584 = vunpack.c.l.b16 %v2729
  %v3585 = vunpack.c.h.b16 %v2729
  %v3586 = vunpack.c.l.b16 %v2730
  %v3587 = vunpack.c.h.b16 %v2730
  %v3588 = vunpack.c.l.b16 %v2731
  %v3589 = vunpack.c.h.b16 %v2731
  %v3590 = vunpack.c.l.b16 %v2732
  %v3591 = vunpack.c.h.b16 %v2732
  %v3592 = vunpack.c.l.b16 %v2733
  %v3593 = vunpack.c.h.b16 %v2733
  %v3594 = vunpack.c.l.b16 %v2734
  %v3595 = vunpack.c.h.b16 %v2734
  %v3596 = vunpack.c.l.b16 %v2735
  %v3597 = vunpack.c.h.b16 %v2735
  %v3598 = vunpack.c.l.b16 %v2736
  %v3599 = vunpack.c.h.b16 %v2736
  %v3600 = vunpack.c.l.b16 %v2737
  %v3601 = vunpack.c.h.b16 %v2737
  %v3602 = vunpack.c.l.b16 %v2738
  %v3603 = vunpack.c.h.b16 %v2738
  %v3604 = vunpack.c.l.b16 %v2739
  %v3605 = vunpack.c.h.b16 %v2739
  %v3606 = vunpack.c.l.b16 %v2740
  %v3607 = vunpack.c.h.b16 %v2740
  %v3608 = vunpack.c.l.b16 %v2741
  %v3609 = vunpack.c.h.b16 %v2741
  %v3610 = vunpack.c.l.b16 %v2742
  %v3611 = vunpack.c.h.b16 %v2742
  %v3612 = vunpack.c.l.b16 %v2743
  %v3613 = vunpack.c.h.b16 %v2743
  %v3614 = vunpack.c.l.b16 %v2744
  %v3615 = vunpack.c.h.b16 %v2744
  %v3616 = vunpack.c.l.b16 %v2745
  %v3617 = vunpack.c.h.b16 %v2745
  %v3618 = vunpack.c.l.b16 %v2746
  %v3619 = vunpack.c.h.b16 %v2746
  %v3620 = vunpack.c.l.b16 %v2747
  %v3621 = vunpack.c.h.b16 %v2747
  %v3622 = vunpack.c.l.b16 %v2748
  %v3623 = vunpack.c.h.b16 %v2748
  %v3624 = vunpack.c.l.b16 %v2749
  %v3625 = vunpack.c.h.b16 %v2749
  %v3626 = vunpack.c.l.b16 %v2750
  %v3627 = vunpack.c.h.b16 %v2750
  %v3628 = vunpack.c.l.b16 %v2751
  %v3629 = vunpack.c.h.b16 %v2751
  %v3630 = vunpack.c.l.b16 %v2752
  %v3631 = vunpack.c.h.b16 %v2752
  %v3632 = vunpack.c.l.b16 %v2753
  %v3633 = vunpack.c.h.b16 %v2753
  %v3634 = vunpack.c.l.b16 %v2754
  %v3635 = vunpack.c.h.b16 %v2754
  %v3636 = vunpack.c.l.b16 %v2755
  %v3637 = vunpack.c.h.b16 %v2755
  %v3638 = vunpack.c.l.b16 %v2756
  %v3639 = vunpack.c.h.b16 %v2756
  %v3640 = vunpack.c.l.b16 %v2757
  %v3641 = vunpack.c.h.b16 %v2757
  %v3642 = vunpack.c.l.b16 %v2758
  %v3643 = vunpack.c.h.b16 %v2758
  %v3644 = vunpack.c.l.b16 %v2759
  %v3645 = vunpack.c.h.b16 %v2759
  %v3646 = vunpack.c.l.b16 %v2760
  %v3647 = vunpack.c.h.b16 %v2760
  %v3648 = vunpack.c.l.b16 %v2761
  %v3649 = vunpack.c.h.b16 %v2761
  %v3650 = vunpack.c.l.b16 %v2762
  %v3651 = vunpack.c.h.b16 %v2762
  %v3652 = vunpack.c.l.b16 %v2763
  %v3653 = vunpack.c.h.b16 %v2763
  %v3654 = vunpack.c.l.b16 %v2764
  %v3655 = vunpack.c.h.b16 %v2764
  %v3656 = vunpack.c.l.b16 %v2765
  %v3657 = vunpack.c.h.b16 %v2765
  %v3658 = vunpack.c.l.b16 %v2766
  %v3659 = vunpack.c.h.b16 %v2766
  %v3660 = vunpack.c.l.b16 %v2767
  %v3661 = vunpack.c.h.b16 %v2767
  %v3662 = vunpack.c.l.b16 %v2768
  %v3663 = vunpack.c.h.b16 %v2768
  %v3664 = vunpack.c.l.b16 %v2769
  %v3665 = vunpack.c.h.b16 %v2769
  %v3666 = vunpack.c.l.b16 %v2770
  %v3667 = vunpack.c.h.b16 %v2770
  %v3668 = vunpack.c.l.b16 %v2771
  %v3669 = vunpack.c.h.b16 %v2771
  %v3670 = vunpack.c.l.b16 %v2772
  %v3671 = vunpack.c.h.b16 %v2772
  %v3672 = vunpack.c.l.b16 %v2773
  %v3673 = vunpack.c.h.b16 %v2773
  %v3674 = vunpack.c.l.b16 %v2774
  %v3675 = vunpack.c.h.b16 %v2774
  %v3676 = vunpack.c.l.b16 %v2775
  %v3677 = vunpack.c.h.b16 %v2775
  %v3678 = vunpack.c.l.b16 %v2776
  %v3679 = vunpack.c.h.b16 %v2776
  %v3680 = vunpack.c.l.b16 %v2777
  %v3681 = vunpack.c.h.b16 %v2777
  %v3682 = vunpack.c.l.b16 %v2778
  %v3683 = vunpack.c.h.b16 %v2778
  %v3684 = vunpack.c.l.b16 %v2779
  %v3685 = vunpack.c.h.b16 %v2779
  %v3686 = vunpack.c.l.b16 %v2780
  %v3687 = vunpack.c.h.b16 %v2780
  %v3688 = vunpack.c.l.b16 %v2781
  %v3689 = vunpack.c.h.b16 %v2781
  %v3690 = vunpack.c.l.b16 %v2782
  %v3691 = vunpack.c.h.b16 %v2782
  %v3692 = vunpack.c.l.b16 %v2783
  %v3693 = vunpack.c.h.b16 %v2783
  %v3694 = vunpack.c.l.b16 %v2784
  %v3695 = vunpack.c.h.b16 %v2784
  %v3696 = vunpack.c.l.b16 %v2785
  %v3697 = vunpack.c.h.b16 %v2785
  %v3698 = vunpack.c.l.b16 %v2786
  %v3699 = vunpack.c.h.b16 %v2786
  %v3700 = vunpack.c.l.b16 %v2787
  %v3701 = vunpack.c.h.b16 %v2787
  %v3702 = vunpack.c.l.b16 %v2788
  %v3703 = vunpack.c.h.b16 %v2788
  %v3704 = vunpack.c.l.b16 %v2789
  %v3705 = vunpack.c.h.b16 %v2789
  %v3706 = vunpack.c.l.b16 %v2790
  %v3707 = vunpack.c.h.b16 %v2790
  %v3708 = vunpack.c.l.b16 %v2791
  %v3709 = vunpack.c.h.b16 %v2791
  %v3710 = vunpack.c.l.b16 %v2792
  %v3711 = vunpack.c.h.b16 %v2792
  %v3712 = vunpack.c.l.b16 %v2793
  %v3713 = vunpack.c.h.b16 %v2793
  %v3714 = vunpack.c.l.b16 %v2794
  %v3715 = vunpack.c.h.b16 %v2794
  %v3716 = vunpack.c.l.b16 %v2795
  %v3717 = vunpack.c.h.b16 %v2795
  %v3718 = vunpack.c.l.b16 %v2796
  %v3719 = vunpack.c.h.b16 %v2796
  %v3720 = vunpack.c.l.b16 %v2797
  %v3721 = vunpack.c.h.b16 %v2797
  %v3722 = vunpack.c.l.b16 %v2798
  %v3723 = vunpack.c.h.b16 %v2798
  %v3724 = vunpack.c.l.b16 %v2799
  %v3725 = vunpack.c.h.b16 %v2799
  %v3726 = vunpack.c.l.b16 %v2800
  %v3727 = vunpack.c.h.b16 %v2800
  %v3728 = vunpack.c.l.b16 %v2801
  %v3729 = vunpack.c.h.b16 %v2801
  %v3730 = vunpack.c.l.b16 %v2802
  %v3731 = vunpack.c.h.b16 %v2802
  %v3732 = vunpack.c.l.b16 %v2803
  %v3733 = vunpack.c.h.b16 %v2803
  %v3734 = vunpack.c.l.b16 %v2804
  %v3735 = vunpack.c.h.b16 %v2804
  %v3736 = vunpack.c.l.b16 %v2805
  %v3737 = vunpack.c.h.b16 %v2805
  %v3738 = vunpack.c.l.b16 %v2806
  %v3739 = vunpack.c.h.b16 %v2806
  %v3740 = vunpack.c.l.b16 %v2807
  %v3741 = vunpack.c.h.b16 %v2807
  %v3742 = vunpack.c.l.b16 %v2808
  %v3743 = vunpack.c.h.b16 %v2808
  %v3744 = vunpack.c.l.b16 %v2809
  %v3745 = vunpack.c.h.b16 %v2809
  %v3746 = vunpack.c.l.b16 %v2810
  %v3747 = vunpack.c.h.b16 %v2810
  %v3748 = vunpack.c.l.b16 %v2811
  %v3749 = vunpack.c.h.b16 %v2811
  %v3750 = vunpack.c.l.b16 %v2812
  %v3751 = vunpack.c.h.b16 %v2812
  %v3752 = vunpack.c.l.b16 %v2813
  %v3753 = vunpack.c.h.b16 %v2813
  %v3754 = vunpack.c.l.b16 %v2814
  %v3755 = vunpack.c.h.b16 %v2814
  %v3756 = vunpack.c.l.b16 %v2815
  %v3757 = vunpack.c.h.b16 %v2815
  %v3758 = vunpack.c.l.b16 %v2816
  %v3759 = vunpack.c.h.b16 %v2816
  %v3760 = vunpack.c.l.b16 %v2817
  %v3761 = vunpack.c.h.b16 %v2817
  %v3762 = vunpack.c.l.b16 %v2818
  %v3763 = vunpack.c.h.b16 %v2818
  %v3764 = vunpack.c.l.b16 %v2819
  %v3765 = vunpack.c.h.b16 %v2819
  %v3766 = vunpack.c.l.b16 %v2820
  %v3767 = vunpack.c.h.b16 %v2820
  %v3768 = vunpack.c.l.b16 %v2821
  %v3769 = vunpack.c.h.b16 %v2821
  %v3770 = vunpack.c.l.b16 %v2822
  %v3771 = vunpack.c.h.b16 %v2822
  %v3772 = vunpack.c.l.b16 %v2823
  %v3773 = vunpack.c.h.b16 %v2823
  %v3774 = vunpack.c.l.b16 %v2824
  %v3775 = vunpack.c.h.b16 %v2824
  %v3776 = vunpack.c.l.b16 %v2825
  %v3777 = vunpack.c.h.b16 %v2825
  %v3778 = vunpack.c.l.b16 %v2826
  %v3779 = vunpack.c.h.b16 %v2826
  %v3780 = vunpack.c.l.b16 %v2827
  %v3781 = vunpack.c.h.b16 %v2827
  %v3782 = vunpack.c.l.b16 %v2828
  %v3783 = vunpack.c.h.b16 %v2828
  %v3784 = vunpack.c.l.b16 %v2829
  %v3785 = vunpack.c.h.b16 %v2829
  %v3786 = vunpack.c.l.b16 %v2830
  %v3787 = vunpack.c.h.b16 %v2830
  %v3788 = vunpack.c.l.b16 %v2831
  %v3789 = vunpack.c.h.b16 %v2831
  %v3790 = vunpack.c.l.b16 %v2832
  %v3791 = vunpack.c.h.b16 %v2832
  %v3792 = vunpack.c.l.b16 %v2833
  %v3793 = vunpack.c.h.b16 %v2833
  %v3794 = vunpack.c.l.b16 %v2834
  %v3795 = vunpack.c.h.b16 %v2834
  %v3796 = vunpack.c.l.b16 %v2835
  %v3797 = vunpack.c.h.b16 %v2835
  %v3798 = vunpack.c.l.b16 %v2836
  %v3799 = vunpack.c.h.b16 %v2836
  %v3800 = vunpack.c.l.b16 %v2837
  %v3801 = vunpack.c.h.b16 %v2837
  %v3802 = vunpack.c.l.b16 %v2838
  %v3803 = vunpack.c.h.b16 %v2838
  %v3804 = vunpack.c.l.b16 %v2839
  %v3805 = vunpack.c.h.b16 %v2839
  %v3806 = vunpack.c.l.b16 %v2840
  %v3807 = vunpack.c.h.b16 %v2840
  %v3808 = vunpack.c.l.b16 %v2841
  %v3809 = vunpack.c.h.b16 %v2841
  %v3810 = vunpack.c.l.b16 %v2842
  %v3811 = vunpack.c.h.b16 %v2842
  %v3812 = vunpack.c.l.b16 %v2843
  %v3813 = vunpack.c.h.b16 %v2843
  %v3814 = vunpack.c.l.b16 %v2844
  %v3815 = vunpack.c.h.b16 %v2844
  %v3816 = vunpack.c.l.b16 %v2845
  %v3817 = vunpack.c.h.b16 %v2845
  %v3818 = vunpack.c.l.b16 %v2846
  %v3819 = vunpack.c.h.b16 %v2846
  %v3820 = vunpack.c.l.b16 %v2847
  %v3821 = vunpack.c.h.b16 %v2847
  %v3822 = vunpack.c.l.b16 %v2848
  %v3823 = vunpack.c.h.b16 %v2848
  %v3824 = vunpack.c.l.b16 %v2849
  %v3825 = vunpack.c.h.b16 %v2849
  %v3826 = vunpack.c.l.b16 %v2850
  %v3827 = vunpack.c.h.b16 %v2850
  %v3828 = vunpack.c.l.b16 %v2851
  %v3829 = vunpack.c.h.b16 %v2851
  %v3830 = vunpack.c.l.b16 %v2852
  %v3831 = vunpack.c.h.b16 %v2852
  %v3832 = vunpack.c.l.b16 %v2853
  %v3833 = vunpack.c.h.b16 %v2853
  %v3834 = vunpack.c.l.b16 %v2854
  %v3835 = vunpack.c.h.b16 %v2854
  %v3836 = vunpack.c.l.b16 %v2855
  %v3837 = vunpack.c.h.b16 %v2855
  %v3838 = vunpack.c.l.b16 %v2856
  %v3839 = vunpack.c.h.b16 %v2856
  %v3840 = vunpack.c.l.b16 %v2857
  %v3841 = vunpack.c.h.b16 %v2857
  %v3842 = vunpack.c.l.b16 %v2858
  %v3843 = vunpack.c.h.b16 %v2858
  %v3844 = vunpack.c.l.b16 %v2859
  %v3845 = vunpack.c.h.b16 %v2859
  %v3846 = vunpack.c.l.b16 %v2860
  %v3847 = vunpack.c.h.b16 %v2860
  %v3848 = vunpack.c.l.b16 %v2861
  %v3849 = vunpack.c.h.b16 %v2861
  %v3850 = vunpack.c.l.b16 %v2862
  %v3851 = vunpack.c.h.b16 %v2862
  %v3852 = vunpack.c.l.b16 %v2863
  %v3853 = vunpack.c.h.b16 %v2863
  %v3854 = vunpack.c.l.b16 %v2864
  %v3855 = vunpack.c.h.b16 %v2864
  %v3856 = vunpack.c.l.b16 %v2865
  %v3857 = vunpack.c.h.b16 %v2865
  %v3858 = vunpack.c.l.b16 %v2866
  %v3859 = vunpack.c.h.b16 %v2866
  %v3860 = vunpack.c.l.b16 %v2867
  %v3861 = vunpack.c.h.b16 %v2867
  %v3862 = vunpack.c.l.b16 %v2868
  %v3863 = vunpack.c.h.b16 %v2868
  %v3864 = vunpack.c.l.b16 %v2869
  %v3865 = vunpack.c.h.b16 %v2869
  %v3866 = vunpack.c.l.b16 %v2870
  %v3867 = vunpack.c.h.b16 %v2870
  %v3868 = vunpack.c.l.b16 %v2871
  %v3869 = vunpack.c.h.b16 %v2871
  %v3870 = vunpack.c.l.b16 %v2872
  %v3871 = vunpack.c.h.b16 %v2872
  %v3872 = vunpack.c.l.b16 %v2873
  %v3873 = vunpack.c.h.b16 %v2873
  %v3874 = vunpack.c.l.b16 %v2874
  %v3875 = vunpack.c.h.b16 %v2874
  %v3876 = vunpack.c.l.b16 %v2875
  %v3877 = vunpack.c.h.b16 %v2875
  %v3878 = vunpack.c.l.b16 %v2876
  %v3879 = vunpack.c.h.b16 %v2876
  %v3880 = vunpack.c.l.b16 %v2877
  %v3881 = vunpack.c.h.b16 %v2877
  %v3882 = vunpack.c.l.b16 %v2878
  %v3883 = vunpack.c.h.b16 %v2878
  %v3884 = vunpack.c.l.b16 %v2879
  %v3885 = vunpack.c.h.b16 %v2879
  %v3886 = vunpack.c.l.b16 %v2880
  %v3887 = vunpack.c.h.b16 %v2880
  %v3888 = vunpack.c.l.b16 %v2881
  %v3889 = vunpack.c.h.b16 %v2881
  %v3890 = vunpack.c.l.b16 %v2882
  %v3891 = vunpack.c.h.b16 %v2882
  %v3892 = vunpack.c.l.b16 %v2883
  %v3893 = vunpack.c.h.b16 %v2883
  %v3894 = vunpack.c.l.b16 %v2884
  %v3895 = vunpack.c.h.b16 %v2884
  %v3896 = vunpack.c.l.b16 %v2885
  %v3897 = vunpack.c.h.b16 %v2885
  %v3898 = vunpack.c.l.b16 %v2886
  %v3899 = vunpack.c.h.b16 %v2886
  %v3900 = vunpack.c.l.b16 %v2887
  %v3901 = vunpack.c.h.b16 %v2887
  %v3902 = vunpack.c.l.b16 %v2888
  %v3903 = vunpack.c.h.b16 %v2888
  %v3904 = vunpack.c.l.b16 %v2889
  %v3905 = vunpack.c.h.b16 %v2889
  %v3906 = vunpack.c.l.b16 %v2890
  %v3907 = vunpack.c.h.b16 %v2890
  %v3908 = vunpack.c.l.b16 %v2891
  %v3909 = vunpack.c.h.b16 %v2891
  %v3910 = vunpack.c.l.b16 %v2892
  %v3911 = vunpack.c.h.b16 %v2892
  %v3912 = vunpack.c.l.b16 %v2893
  %v3913 = vunpack.c.h.b16 %v2893
  %v3914 = vunpack.c.l.b16 %v2894
  %v3915 = vunpack.c.h.b16 %v2894
  %v3916 = vunpack.c.l.b16 %v2895
  %v3917 = vunpack.c.h.b16 %v2895
  %v3918 = vunpack.c.l.b16 %v2896
  %v3919 = vunpack.c.h.b16 %v2896
  %v3920 = vunpack.c.l.b16 %v2897
  %v3921 = vunpack.c.h.b16 %v2897
  %v3922 = vunpack.c.l.b16 %v2898
  %v3923 = vunpack.c.h.b16 %v2898
  %v3924 = vunpack.c.l.b16 %v2899
  %v3925 = vunpack.c.h.b16 %v2899
  %v3926 = vunpack.c.l.b16 %v2900
  %v3927 = vunpack.c.h.b16 %v2900
  %v3928 = vunpack.c.l.b16 %v2901
  %v3929 = vunpack.c.h.b16 %v2901
  %v3930 = vunpack.c.l.b16 %v2902
  %v3931 = vunpack.c.h.b16 %v2902
  %v3932 = vunpack.c.l.b16 %v2903
  %v3933 = vunpack.c.h.b16 %v2903
  %v3934 = vunpack.c.l.b16 %v2904
  %v3935 = vunpack.c.h.b16 %v2904
  %v3936 = vunpack.c.l.b16 %v2905
  %v3937 = vunpack.c.h.b16 %v2905
  %v3938 = vunpack.c.l.b16 %v2906
  %v3939 = vunpack.c.h.b16 %v2906
  %v3940 = vunpack.c.l.b16 %v2907
  %v3941 = vunpack.c.h.b16 %v2907
  %v3942 = vunpack.c.l.b16 %v2908
  %v3943 = vunpack.c.h.b16 %v2908
  %v3944 = vunpack.c.l.b16 %v2909
  %v3945 = vunpack.c.h.b16 %v2909
  %v3946 = vunpack.c.l.b16 %v2910
  %v3947 = vunpack.c.h.b16 %v2910
  %v3948 = vunpack.c.l.b16 %v2911
  %v3949 = vunpack.c.h.b16 %v2911
  %v3950 = vunpack.c.l.b16 %v2912
  %v3951 = vunpack.c.h.b16 %v2912
  %v3952 = vunpack.c.l.b16 %v2913
  %v3953 = vunpack.c.h.b16 %v2913
  %v3954 = vunpack.c.l.b16 %v2914
  %v3955 = vunpack.c.h.b16 %v2914
  %v3956 = vunpack.c.l.b16 %v2915
  %v3957 = vunpack.c.h.b16 %v2915
  %v3958 = vunpack.c.l.b16 %v2916
  %v3959 = vunpack.c.h.b16 %v2916
  %v3960 = vunpack.c.l.b16 %v2917
  %v3961 = vunpack.c.h.b16 %v2917
  %v3962 = vunpack.c.l.b16 %v2918
  %v3963 = vunpack.c.h.b16 %v2918
  %v3964 = vunpack.c.l.b16 %v2919
  %v3965 = vunpack.c.h.b16 %v2919
  %v3966 = vunpack.c.l.b16 %v2920
  %v3967 = vunpack.c.h.b16 %v2920
  %v3968 = vunpack.c.l.b16 %v2921
  %v3969 = vunpack.c.h.b16 %v2921
  %v3970 = vunpack.c.l.b16 %v2922
  %v3971 = vunpack.c.h.b16 %v2922
  %v3972 = vunpack.c.l.b16 %v2923
  %v3973 = vunpack.c.h.b16 %v2923
  %v3974 = vunpack.c.l.b16 %v2924
  %v3975 = vunpack.c.h.b16 %v2924
  %v3976 = vunpack.c.l.b16 %v2925
  %v3977 = vunpack.c.h.b16 %v2925
  %v3978 = vunpack.c.l.b16 %v2926
  %v3979 = vunpack.c.h.b16 %v2926
  %v3980 = vunpack.c.l.b16 %v2927
  %v3981 = vunpack.c.h.b16 %v2927
  %v3982 = vunpack.c.l.b16 %v2928
  %v3983 = vunpack.c.h.b16 %v2928
  %v3984 = vunpack.c.l.b16 %v2929
  %v3985 = vunpack.c.h.b16 %v2929
  %v3986 = vunpack.c.l.b16 %v2930
  %v3987 = vunpack.c.h.b16 %v2930
  %v3988 = vunpack.c.l.b16 %v2931
  %v3989 = vunpack.c.h.b16 %v2931
  %v3990 = vunpack.c.l.b16 %v2932
  %v3991 = vunpack.c.h.b16 %v2932
  %v3992 = vunpack.c.l.b16 %v2933
  %v3993 = vunpack.c.h.b16 %v2933
  %v3994 = vunpack.c.l.b16 %v2934
  %v3995 = vunpack.c.h.b16 %v2934
  %v3996 = vunpack.c.l.b16 %v2935
  %v3997 = vunpack.c.h.b16 %v2935
  %v3998 = vunpack.c.l.b16 %v2936
  %v3999 = vunpack.c.h.b16 %v2936
  %v4000 = vunpack.c.l.b16 %v2937
  %v4001 = vunpack.c.h.b16 %v2937
  %v4002 = vunpack.c.l.b16 %v2938
  %v4003 = vunpack.c.h.b16 %v2938
  %v4004 = vunpack.c.l.b16 %v2939
  %v4005 = vunpack.c.h.b16 %v2939
  %v4006 = vunpack.c.l.b16 %v2940
  %v4007 = vunpack.c.h.b16 %v2940
  %v4008 = vunpack.c.l.b16 %v2941
  %v4009 = vunpack.c.h.b16 %v2941
  %v4010 = vunpack.c.l.b16 %v2942
  %v4011 = vunpack.c.h.b16 %v2942
  %v4012 = vunpack.c.l.b16 %v2943
  %v4013 = vunpack.c.h.b16 %v2943
  %v4014 = vunpack.c.l.b16 %v2944
  %v4015 = vunpack.c.h.b16 %v2944
  %v4016 = vunpack.c.l.b16 %v2945
  %v4017 = vunpack.c.h.b16 %v2945
  %v4018 = vunpack.c.l.b16 %v2946
  %v4019 = vunpack.c.h.b16 %v2946
  %v4020 = vunpack.c.l.b16 %v2947
  %v4021 = vunpack.c.h.b16 %v2947
  %v4022 = vunpack.c.l.b16 %v2948
  %v4023 = vunpack.c.h.b16 %v2948
  %v4024 = vunpack.c.l.b16 %v2949
  %v4025 = vunpack.c.h.b16 %v2949
  %v4026 = vunpack.c.l.b16 %v2950
  %v4027 = vunpack.c.h.b16 %v2950
  %v4028 = vunpack.c.l.b16 %v2951
  %v4029 = vunpack.c.h.b16 %v2951
  %v4030 = vunpack.c.l.b16 %v2952
  %v4031 = vunpack.c.h.b16 %v2952
  %v4032 = vunpack.c.l.b16 %v2953
  %v4033 = vunpack.c.h.b16 %v2953
  %v4034 = vunpack.c.l.b16 %v2954
  %v4035 = vunpack.c.h.b16 %v2954
  %v4036 = vunpack.c.l.b16 %v2955
  %v4037 = vunpack.c.h.b16 %v2955
  %v4038 = vunpack.c.l.b16 %v2956
  %v4039 = vunpack.c.h.b16 %v2956
  %v4040 = vunpack.c.l.b16 %v2957
  %v4041 = vunpack.c.h.b16 %v2957
  %v4042 = vunpack.c.l.b16 %v2958
  %v4043 = vunpack.c.h.b16 %v2958
  %v4044 = vunpack.c.l.b16 %v2959
  %v4045 = vunpack.c.h.b16 %v2959
  %v4046 = vunpack.c.l.b16 %v2960
  %v4047 = vunpack.c.h.b16 %v2960
  %v4048 = vunpack.c.l.b16 %v2961
  %v4049 = vunpack.c.h.b16 %v2961
  %v4050 = vunpack.c.l.b16 %v2962
  %v4051 = vunpack.c.h.b16 %v2962
  %v4052 = vunpack.c.l.b16 %v2963
  %v4053 = vunpack.c.h.b16 %v2963
  %v4054 = vunpack.c.l.b16 %v2964
  %v4055 = vunpack.c.h.b16 %v2964
  %v4056 = vunpack.c.l.b16 %v2965
  %v4057 = vunpack.c.h.b16 %v2965
  %v4058 = vunpack.c.l.b16 %v2966
  %v4059 = vunpack.c.h.b16 %v2966
  %v4060 = vunpack.c.l.b16 %v2967
  %v4061 = vunpack.c.h.b16 %v2967
  %v4062 = vunpack.c.l.b16 %v2968
  %v4063 = vunpack.c.h.b16 %v2968
  %v4064 = vunpack.c.l.b16 %v2969
  %v4065 = vunpack.c.h.b16 %v2969
  %v4066 = vunpack.c.l.b16 %v2970
  %v4067 = vunpack.c.h.b16 %v2970
  %v4068 = vunpack.c.l.b16 %v2971
  %v4069 = vunpack.c.h.b16 %v2971
  %v4070 = vunpack.c.l.b16 %v2972
  %v4071 = vunpack.c.h.b16 %v2972
  %v4072 = vunpack.c.l.b16 %v2973
  %v4073 = vunpack.c.h.b16 %v2973
  %v4074 = vunpack.c.l.b16 %v2974
  %v4075 = vunpack.c.h.b16 %v2974
  %v4076 = vunpack.c.l.b16 %v2975
  %v4077 = vunpack.c.h.b16 %v2975
  %v4078 = vunpack.c.l.b16 %v2976
  %v4079 = vunpack.c.h.b16 %v2976
  %v4080 = vunpack.c.l.b16 %v2977
  %v4081 = vunpack.c.h.b16 %v2977
  %v4082 = vunpack.c.l.b16 %v2978
  %v4083 = vunpack.c.h.b16 %v2978
  %v4084 = vunpack.c.l.b16 %v2979
  %v4085 = vunpack.c.h.b16 %v2979
  %v4086 = vunpack.c.l.b16 %v2980
  %v4087 = vunpack.c.h.b16 %v2980
  %v4088 = vunpack.c.l.b16 %v2981
  %v4089 = vunpack.c.h.b16 %v2981
  %v4090 = vunpack.c.l.b16 %v2982
  %v4091 = vunpack.c.h.b16 %v2982
  %v4092 = vunpack.c.l.b16 %v2983
  %v4093 = vunpack.c.h.b16 %v2983
  %v4094 = vunpack.c.l.b16 %v2984
  %v4095 = vunpack.c.h.b16 %v2984
  %v4096 = vunpack.c.l.b16 %v2985
  %v4097 = vunpack.c.h.b16 %v2985
  %v4098 = vunpack.c.l.b16 %v2986
  %v4099 = vunpack.c.h.b16 %v2986
  %v4100 = vunpack.c.l.b16 %v2987
  %v4101 = vunpack.c.h.b16 %v2987
  %v4102 = vunpack.c.l.b16 %v2988
  %v4103 = vunpack.c.h.b16 %v2988
  %v4104 = vunpack.c.l.b16 %v2989
  %v4105 = vunpack.c.h.b16 %v2989
  %v4106 = vunpack.c.l.b16 %v2990
  %v4107 = vunpack.c.h.b16 %v2990
  %v4108 = vunpack.c.l.b16 %v2991
  %v4109 = vunpack.c.h.b16 %v2991
  %v4110 = vunpack.c.l.b16 %v2992
  %v4111 = vunpack.c.h.b16 %v2992
  %v4112 = vunpack.c.l.b16 %v2993
  %v4113 = vunpack.c.h.b16 %v2993
  %v4114 = vunpack.c.l.b16 %v2994
  %v4115 = vunpack.c.h.b16 %v2994
  %v4116 = vunpack.c.l.b16 %v2995
  %v4117 = vunpack.c.h.b16 %v2995
  %v4118 = vunpack.c.l.b16 %v2996
  %v4119 = vunpack.c.h.b16 %v2996
  %v4120 = vunpack.c.l.b16 %v2997
  %v4121 = vunpack.c.h.b16 %v2997
  %v4122 = vunpack.c.l.b16 %v2998
  %v4123 = vunpack.c.h.b16 %v2998
  %v4124 = vunpack.c.l.b16 %v2999
  %v4125 = vunpack.c.h.b16 %v2999
  %v4126 = vunpack.c.l.b16 %v3000
  %v4127 = vunpack.c.h.b16 %v3000
  %v4128 = vunpack.c.l.b16 %v3001
  %v4129 = vunpack.c.h.b16 %v3001
  %v4130 = vunpack.c.l.b16 %v3002
  %v4131 = vunpack.c.h.b16 %v3002
  %v4132 = vunpack.c.l.b16 %v3003
  %v4133 = vunpack.c.h.b16 %v3003
  %v4134 = vunpack.c.l.b16 %v3004
  %v4135 = vunpack.c.h.b16 %v3004
  %v4136 = vunpack.c.l.b16 %v3005
  %v4137 = vunpack.c.h.b16 %v3005
  %v4138 = vunpack.c.l.b16 %v3006
  %v4139 = vunpack.c.h.b16 %v3006
  %v4140 = vunpack.c.l.b16 %v3007
  %v4141 = vunpack.c.h.b16 %v3007
  %v4142 = vunpack.c.l.b16 %v3008
  %v4143 = vunpack.c.h.b16 %v3008
  %v4144 = vunpack.c.l.b16 %v3009
  %v4145 = vunpack.c.h.b16 %v3009
  %v4146 = vunpack.c.l.b16 %v3010
  %v4147 = vunpack.c.h.b16 %v3010
  %v4148 = vunpack.c.l.b16 %v3011
  %v4149 = vunpack.c.h.b16 %v3011
  %v4150 = vunpack.c.l.b16 %v3012
  %v4151 = vunpack.c.h.b16 %v3012
  %v4152 = vunpack.c.l.b16 %v3013
  %v4153 = vunpack.c.h.b16 %v3013
  %v4154 = vunpack.c.l.b16 %v3014
  %v4155 = vunpack.c.h.b16 %v3014
  %v4156 = vunpack.c.l.b16 %v3015
  %v4157 = vunpack.c.h.b16 %v3015
  %v4158 = vunpack.c.l.b16 %v3016
  %v4159 = vunpack.c.h.b16 %v3016
  %v4160 = vunpack.c.l.b16 %v3017
  %v4161 = vunpack.c.h.b16 %v3017
  %v4162 = vunpack.c.l.b16 %v3018
  %v4163 = vunpack.c.h.b16 %v3018
  %v4164 = vunpack.c.l.b16 %v3019
  %v4165 = vunpack.c.h.b16 %v3019
  %v4166 = vunpack.c.l.b16 %v3020
  %v4167 = vunpack.c.h.b16 %v3020
  %v4168 = vunpack.c.l.b16 %v3021
  %v4169 = vunpack.c.h.b16 %v3021
  %v4170 = vunpack.c.l.b16 %v3022
  %v4171 = vunpack.c.h.b16 %v3022
  %v4172 = vunpack.c.l.b16 %v3023
  %v4173 = vunpack.c.h.b16 %v3023
  %v4174 = vunpack.c.l.b16 %v3024
  %v4175 = vunpack.c.h.b16 %v3024
  %v4176 = vunpack.c.l.b16 %v3025
  %v4177 = vunpack.c.h.b16 %v3025
  %v4178 = vunpack.c.l.b16 %v3026
  %v4179 = vunpack.c.h.b16 %v3026
  %v4180 = vunpack.c.l.b16 %v3027
  %v4181 = vunpack.c.h.b16 %v3027
  %v4182 = vunpack.c.l.b16 %v3028
  %v4183 = vunpack.c.h.b16 %v3028
  %v4184 = vunpack.c.l.b16 %v3029
  %v4185 = vunpack.c.h.b16 %v3029
  %v4186 = vunpack.c.l.b16 %v3030
  %v4187 = vunpack.c.h.b16 %v3030
  %v4188 = vunpack.c.l.b16 %v3031
  %v4189 = vunpack.c.h.b16 %v3031
  %v4190 = vunpack.c.l.b16 %v3032
  %v4191 = vunpack.c.h.b16 %v3032
  %v4192 = vunpack.c.l.b16 %v3033
  %v4193 = vunpack.c.h.b16 %v3033
  %v4194 = vunpack.c.l.b16 %v3034
  %v4195 = vunpack.c.h.b16 %v3034
  %v4196 = vunpack.c.l.b16 %v3035
  %v4197 = vunpack.c.h.b16 %v3035
  %v4198 = vunpack.c.l.b16 %v3036
  %v4199 = vunpack.c.h.b16 %v3036
  %v4200 = vunpack.c.l.b16 %v3037
  %v4201 = vunpack.c.h.b16 %v3037
  %v4202 = vunpack.c.l.b16 %v3038
  %v4203 = vunpack.c.h.b16 %v3038
  %v4204 = vunpack.c.l.b16 %v3039
  %v4205 = vunpack.c.h.b16 %v3039
  %v4206 = vunpack.c.l.b16 %v3040
  %v4207 = vunpack.c.h.b16 %v3040
  %v4208 = vunpack.c.l.b16 %v3041
  %v4209 = vunpack.c.h.b16 %v3041
  %v4210 = vunpack.c.l.b16 %v3042
  %v4211 = vunpack.c.h.b16 %v3042
  %v4212 = vunpack.c.l.b16 %v3043
  %v4213 = vunpack.c.h.b16 %v3043
  %v4214 = vunpack.c.l.b16 %v3044
  %v4215 = vunpack.c.h.b16 %v3044
  %v4216 = vunpack.c.l.b16 %v3045
  %v4217 = vunpack.c.h.b16 %v3045
  %v4218 = vunpack.c.l.b16 %v3046
  %v4219 = vunpack.c.h.b16 %v3046
  %v4220 = vunpack.c.l.b16 %v3047
  %v4221 = vunpack.c.h.b16 %v3047
  %v4222 = vunpack.c.l.b16 %v3048
  %v4223 = vunpack.c.h.b16 %v3048
  %v4224 = vunpack.c.l.b16 %v3049
  %v4225 = vunpack.c.h.b16 %v3049
  %v4226 = vunpack.c.l.b16 %v3050
  %v4227 = vunpack.c.h.b16 %v3050
  %v4228 = vunpack.c.l.b16 %v3051
  %v4229 = vunpack.c.h.b16 %v3051
  %v4230 = vunpack.c.l.b16 %v3052
  %v4231 = vunpack.c.h.b16 %v3052
  %v4232 = vunpack.c.l.b16 %v3053
  %v4233 = vunpack.c.h.b16 %v3053
  %v4234 = vunpack.c.l.b16 %v3054
  %v4235 = vunpack.c.h.b16 %v3054
  %v4236 = vunpack.c.l.b16 %v3055
  %v4237 = vunpack.c.h.b16 %v3055
  %v4238 = vunpack.c.l.b16 %v3056
  %v4239 = vunpack.c.h.b16 %v3056
  %v4240 = vpack.c.b16 %v3464, %v3456
  %v4241 = vpack.c.b16 %v3465, %v3457
  %v4242 = vpack.c.b16 %v3466, %v3458
  %v4243 = vpack.c.b16 %v3467, %v3459
  %v4244 = vpack.c.b16 %v3468, %v3460
  %v4245 = vpack.c.b16 %v3469, %v3461
  %v4246 = vpack.c.b16 %v3470, %v3462
  %v4247 = vpack.c.b16 %v3471, %v3463
  %v4248 = vpack.c.b16 %v3480, %v3472
  %v4249 = vpack.c.b16 %v3481, %v3473
  %v4250 = vpack.c.b16 %v3482, %v3474
  %v4251 = vpack.c.b16 %v3483, %v3475
  %v4252 = vpack.c.b16 %v3484, %v3476
  %v4253 = vpack.c.b16 %v3485, %v3477
  %v4254 = vpack.c.b16 %v3486, %v3478
  %v4255 = vpack.c.b16 %v3487, %v3479
  %v4256 = vpack.c.b16 %v3496, %v3488
  %v4257 = vpack.c.b16 %v3497, %v3489
  %v4258 = vpack.c.b16 %v3498, %v3490
  %v4259 = vpack.c.b16 %v3499, %v3491
  %v4260 = vpack.c.b16 %v3500, %v3492
  %v4261 = vpack.c.b16 %v3501, %v3493
  %v4262 = vpack.c.b16 %v3502, %v3494
  %v4263 = vpack.c.b16 %v3503, %v3495
  %v4264 = vpack.c.b16 %v3512, %v3504
  %v4265 = vpack.c.b16 %v3513, %v3505
  %v4266 = vpack.c.b16 %v3514, %v3506
  %v4267 = vpack.c.b16 %v3515, %v3507
  %v4268 = vpack.c.b16 %v3516, %v3508
  %v4269 = vpack.c.b16 %v3517, %v3509
  %v4270 = vpack.c.b16 %v3518, %v3510
  %v4271 = vpack.c.b16 %v3519, %v3511
  %v4272 = vpack.c.b16 %v3528, %v3520
  %v4273 = vpack.c.b16 %v3529, %v3521
  %v4274 = vpack.c.b16 %v3530, %v3522
  %v4275 = vpack.c.b16 %v3531, %v3523
  %v4276 = vpack.c.b16 %v3532, %v3524
  %v4277 = vpack.c.b16 %v3533, %v3525
  %v4278 = vpack.c.b16 %v3534, %v3526
  %v4279 = vpack.c.b16 %v3535, %v3527
  %v4280 = vpack.c.b16 %v3544, %v3536
  %v4281 = vpack.c.b16 %v3545, %v3537
  %v4282 = vpack.c.b16 %v3546, %v3538
  %v4283 = vpack.c.b16 %v3547, %v3539
  %v4284 = vpack.c.b16 %v3548, %v3540
  %v4285 = vpack.c.b16 %v3549, %v3541
  %v4286 = vpack.c.b16 %v3550, %v3542
  %v4287 = vpack.c.b16 %v3551, %v3543
  %v4288 = vpack.c.b16 %v3560, %v3552
  %v4289 = vpack.c.b16 %v3561, %v3553
  %v4290 = vpack.c.b16 %v3562, %v3554
  %v4291 = vpack.c.b16 %v3563, %v3555
  %v4292 = vpack.c.b16 %v3564, %v3556
  %v4293 = vpack.c.b16 %v3565, %v3557
  %v4294 = vpack.c.b16 %v3566, %v3558
  %v4295 = vpack.c.b16 %v3567, %v3559
  %v4296 = vpack.c.b16 %v3576, %v3568
  %v4297 = vpack.c.b16 %v3577, %v3569
  %v4298 = vpack.c.b16 %v3578, %v3570
  %v4299 = vpack.c.b16 %v3579, %v3571
  %v4300 = vpack.c.b16 %v3580, %v3572
  %v4301 = vpack.c.b16 %v3581, %v3573
  %v4302 = vpack.c.b16 %v3582, %v3574
  %v4303 = vpack.c.b16 %v3583, %v3575
  %v4304 = vpack.c.b16 %v3592, %v3584
  %v4305 = vpack.c.b16 %v3593, %v3585
  %v4306 = vpack.c.b16 %v3594, %v3586
  %v4307 = vpack.c.b16 %v3595, %v3587
  %v4308 = vpack.c.b16 %v3596, %v3588
  %v4309 = vpack.c.b16 %v3597, %v3589
  %v4310 = vpack.c.b16 %v3598, %v3590
  %v4311 = vpack.c.b16 %v3599, %v3591
  %v4312 = vpack.c.b16 %v3608, %v3600
  %v4313 = vpack.c.b16 %v3609, %v3601
  %v4314 = vpack.c.b16 %v3610, %v3602
  %v4315 = vpack.c.b16 %v3611, %v3603
  %v4316 = vpack.c.b16 %v3612, %v3604
  %v4317 = vpack.c.b16 %v3613, %v3605
  %v4318 = vpack.c.b16 %v3614, %v3606
  %v4319 = vpack.c.b16 %v3615, %v3607
  %v4320 = vpack.c.b16 %v3624, %v3616
  %v4321 = vpack.c.b16 %v3625, %v3617
  %v4322 = vpack.c.b16 %v3626, %v3618
  %v4323 = vpack.c.b16 %v3627, %v3619
  %v4324 = vpack.c.b16 %v3628, %v3620
  %v4325 = vpack.c.b16 %v3629, %v3621
  %v4326 = vpack.c.b16 %v3630, %v3622
  %v4327 = vpack.c.b16 %v3631, %v3623
  %v4328 = vpack.c.b16 %v3640, %v3632
  %v4329 = vpack.c.b16 %v3641, %v3633
  %v4330 = vpack.c.b16 %v3642, %v3634
  %v4331 = vpack.c.b16 %v3643, %v3635
  %v4332 = vpack.c.b16 %v3644, %v3636
  %v4333 = vpack.c.b16 %v3645, %v3637
  %v4334 = vpack.c.b16 %v3646, %v3638
  %v4335 = vpack.c.b16 %v3647, %v3639
  %v4336 = vpack.c.b16 %v3656, %v3648
  %v4337 = vpack.c.b16 %v3657, %v3649
  %v4338 = vpack.c.b16 %v3658, %v3650
  %v4339 = vpack.c.b16 %v3659, %v3651
  %v4340 = vpack.c.b16 %v3660, %v3652
  %v4341 = vpack.c.b16 %v3661, %v3653
  %v4342 = vpack.c.b16 %v3662, %v3654
  %v4343 = vpack.c.b16 %v3663, %v3655
  %v4344 = vpack.c.b16 %v3672, %v3664
  %v4345 = vpack.c.b16 %v3673, %v3665
  %v4346 = vpack.c.b16 %v3674, %v3666
  %v4347 = vpack.c.b16 %v3675, %v3667
  %v4348 = vpack.c.b16 %v3676, %v3668
  %v4349 = vpack.c.b16 %v3677, %v3669
  %v4350 = vpack.c.b16 %v3678, %v3670
  %v4351 = vpack.c.b16 %v3679, %v3671
  %v4352 = vpack.c.b16 %v3688, %v3680
  %v4353 = vpack.c.b16 %v3689, %v3681
  %v4354 = vpack.c.b16 %v3690, %v3682
  %v4355 = vpack.c.b16 %v3691, %v3683
  %v4356 = vpack.c.b16 %v3692, %v3684
  %v4357 = vpack.c.b16 %v3693, %v3685
  %v4358 = vpack.c.b16 %v3694, %v3686
  %v4359 = vpack.c.b16 %v3695, %v3687
  %v4360 = vpack.c.b16 %v3704, %v3696
  %v4361 = vpack.c.b16 %v3705, %v3697
  %v4362 = vpack.c.b16 %v3706, %v3698
  %v4363 = vpack.c.b16 %v3707, %v3699
  %v4364 = vpack.c.b16 %v3708, %v3700
  %v4365 = vpack.c.b16 %v3709, %v3701
  %v4366 = vpack.c.b16 %v3710, %v3702
  %v4367 = vpack.c.b16 %v3711, %v3703
  %v4368 = vpack.c.b16 %v3720, %v3712
  %v4369 = vpack.c.b16 %v3721, %v3713
  %v4370 = vpack.c.b16 %v3722, %v3714
  %v4371 = vpack.c.b16 %v3723, %v3715
  %v4372 = vpack.c.b16 %v3724, %v3716
  %v4373 = vpack.c.b16 %v3725, %v3717
  %v4374 = vpack.c.b16 %v3726, %v3718
  %v4375 = vpack.c.b16 %v3727, %v3719
  %v4376 = vpack.c.b16 %v3736, %v3728
  %v4377 = vpack.c.b16 %v3737, %v3729
  %v4378 = vpack.c.b16 %v3738, %v3730
  %v4379 = vpack.c.b16 %v3739, %v3731
  %v4380 = vpack.c.b16 %v3740, %v3732
  %v4381 = vpack.c.b16 %v3741, %v3733
  %v4382 = vpack.c.b16 %v3742, %v3734
  %v4383 = vpack.c.b16 %v3743, %v3735
  %v4384 = vpack.c.b16 %v3752, %v3744
  %v4385 = vpack.c.b16 %v3753, %v3745
  %v4386 = vpack.c.b16 %v3754, %v3746
  %v4387 = vpack.c.b16 %v3755, %v3747
  %v4388 = vpack.c.b16 %v3756, %v3748
  %v4389 = vpack.c.b16 %v3757, %v3749
  %v4390 = vpack.c.b16 %v3758, %v3750
  %v4391 = vpack.c.b16 %v3759, %v3751
  %v4392 = vpack.c.b16 %v3768, %v3760
  %v4393 = vpack.c.b16 %v3769, %v3761
  %v4394 = vpack.c.b16 %v3770, %v3762
  %v4395 = vpack.c.b16 %v3771, %v3763
  %v4396 = vpack.c.b16 %v3772, %v3764
  %v4397 = vpack.c.b16 %v3773, %v3765
  %v4398 = vpack.c.b16 %v3774, %v3766
  %v4399 = vpack.c.b16 %v3775, %v3767
  %v4400 = vpack.c.b16 %v3784, %v3776
  %v4401 = vpack.c.b16 %v3785, %v3777
  %v4402 = vpack.c.b16 %v3786, %v3778
  %v4403 = vpack.c.b16 %v3787, %v3779
  %v4404 = vpack.c.b16 %v3788, %v3780
  %v4405 = vpack.c.b16 %v3789, %v3781
  %v4406 = vpack.c.b16 %v3790, %v3782
  %v4407 = vpack.c.b16 %v3791, %v3783
  %v4408 = vpack.c.b16 %v3800, %v3792
  %v4409 = vpack.c.b16 %v3801, %v3793
  %v4410 = vpack.c.b16 %v3802, %v3794
  %v4411 = vpack.c.b16 %v3803, %v3795
  %v4412 = vpack.c.b16 %v3804, %v3796
  %v4413 = vpack.c.b16 %v3805, %v3797
  %v4414 = vpack.c.b16 %v3806, %v3798
  %v4415 = vpack.c.b16 %v3807, %v3799
  %v4416 = vpack.c.b16 %v3816, %v3808
  %v4417 = vpack.c.b16 %v3817, %v3809
  %v4418 = vpack.c.b16 %v3818, %v3810
  %v4419 = vpack.c.b16 %v3819, %v3811
  %v4420 = vpack.c.b16 %v3820, %v3812
  %v4421 = vpack.c.b16 %v3821, %v3813
  %v4422 = vpack.c.b16 %v3822, %v3814
  %v4423 = vpack.c.b16 %v3823, %v3815
  %v4424 = vpack.c.b16 %v3832, %v3824
  %v4425 = vpack.c.b16 %v3833, %v3825
  %v4426 = vpack.c.b16 %v3834, %v3826
  %v4427 = vpack.c.b16 %v3835, %v3827
  %v4428 = vpack.c.b16 %v3836, %v3828
  %v4429 = vpack.c.b16 %v3837, %v3829
  %v4430 = vpack.c.b16 %v3838, %v3830
  %v4431 = vpack.c.b16 %v3839, %v3831
  %v4432 = vpack.c.b16 %v3848, %v3840
  %v4433 = vpack.c.b16 %v3849, %v3841
  %v4434 = vpack.c.b16 %v3850, %v3842
  %v4435 = vpack.c.b16 %v3851, %v3843
  %v4436 = vpack.c.b16 %v3852, %v3844
  %v4437 = vpack.c.b16 %v3853, %v3845
  %v4438 = vpack.c.b16 %v3854, %v3846
  %v4439 = vpack.c.b16 %v3855, %v3847
  %v4440 = vpack.c.b16 %v3864, %v3856
  %v4441 = vpack.c.b16 %v3865, %v3857
  %v4442 = vpack.c.b16 %v3866, %v3858
  %v4443 = vpack.c.b16 %v3867, %v3859
  %v4444 = vpack.c.b16 %v3868, %v3860
  %v4445 = vpack.c.b16 %v3869, %v3861
  %v4446 = vpack.c.b16 %v3870, %v3862
  %v4447 = vpack.c.b16 %v3871, %v3863
  %v4448 = vpack.c.b16 %v3880, %v3872
  %v4449 = vpack.c.b16 %v3881, %v3873
  %v4450 = vpack.c.b16 %v3882, %v3874
  %v4451 = vpack.c.b16 %v3883, %v3875
  %v4452 = vpack.c.b16 %v3884, %v3876
  %v4453 = vpack.c.b16 %v3885, %v3877
  %v4454 = vpack.c.b16 %v3886, %v3878
  %v4455 = vpack.c.b16 %v3887, %v3879
  %v4456 = vpack.c.b16 %v3896, %v3888
  %v4457 = vpack.c.b16 %v3897, %v3889
  %v4458 = vpack.c.b16 %v3898, %v3890
  %v4459 = vpack.c.b16 %v3899, %v3891
  %v4460 = vpack.c.b16 %v3900, %v3892
  %v4461 = vpack.c.b16 %v3901, %v3893
  %v4462 = vpack.c.b16 %v3902, %v3894
  %v4463 = vpack.c.b16 %v3903, %v3895
  %v4464 = vpack.c.b16 %v3912, %v3904
  %v4465 = vpack.c.b16 %v3913, %v3905
  %v4466 = vpack.c.b16 %v3914, %v3906
  %v4467 = vpack.c.b16 %v3915, %v3907
  %v4468 = vpack.c.b16 %v3916, %v3908
  %v4469 = vpack.c.b16 %v3917, %v3909
  %v4470 = vpack.c.b16 %v3918, %v3910
  %v4471 = vpack.c.b16 %v3919, %v3911
  %v4472 = vpack.c.b16 %v3928, %v3920
  %v4473 = vpack.c.b16 %v3929, %v3921
  %v4474 = vpack.c.b16 %v3930, %v3922
  %v4475 = vpack.c.b16 %v3931, %v3923
  %v4476 = vpack.c.b16 %v3932, %v3924
  %v4477 = vpack.c.b16 %v3933, %v3925
  %v4478 = vpack.c.b16 %v3934, %v3926
  %v4479 = vpack.c.b16 %v3935, %v3927
  %v4480 = vpack.c.b16 %v3944, %v3936
  %v4481 = vpack.c.b16 %v3945, %v3937
  %v4482 = vpack.c.b16 %v3946, %v3938
  %v4483 = vpack.c.b16 %v3947, %v3939
  %v4484 = vpack.c.b16 %v3948, %v3940
  %v4485 = vpack.c.b16 %v3949, %v3941
  %v4486 = vpack.c.b16 %v3950, %v3942
  %v4487 = vpack.c.b16 %v3951, %v3943
  %v4488 = vpack.c.b16 %v3960, %v3952
  %v4489 = vpack.c.b16 %v3961, %v3953
  %v4490 = vpack.c.b16 %v3962, %v3954
  %v4491 = vpack.c.b16 %v3963, %v3955
  %v4492 = vpack.c.b16 %v3964, %v3956
  %v4493 = vpack.c.b16 %v3965, %v3957
  %v4494 = vpack.c.b16 %v3966, %v3958
  %v4495 = vpack.c.b16 %v3967, %v3959
  %v4496 = vpack.c.b16 %v3976, %v3968
  %v4497 = vpack.c.b16 %v3977, %v3969
  %v4498 = vpack.c.b16 %v3978, %v3970
  %v4499 = vpack.c.b16 %v3979, %v3971
  %v4500 = vpack.c.b16 %v3980, %v3972
  %v4501 = vpack.c.b16 %v3981, %v3973
  %v4502 = vpack.c.b16 %v3982, %v3974
  %v4503 = vpack.c.b16 %v3983, %v3975
  %v4504 = vpack.c.b16 %v3992, %v3984
  %v4505 = vpack.c.b16 %v3993, %v3985
  %v4506 = vpack.c.b16 %v3994, %v3986
  %v4507 = vpack.c.b16 %v3995, %v3987
  %v4508 = vpack.c.b16 %v3996, %v3988
  %v4509 = vpack.c.b16 %v3997, %v3989
  %v4510 = vpack.c.b16 %v3998, %v3990
  %v4511 = vpack.c.b16 %v3999, %v3991
  %v4512 = vpack.c.b16 %v4008, %v4000
  %v4513 = vpack.c.b16 %v4009, %v4001
  %v4514 = vpack.c.b16 %v4010, %v4002
  %v4515 = vpack.c.b16 %v4011, %v4003
  %v4516 = vpack.c.b16 %v4012, %v4004
  %v4517 = vpack.c.b16 %v4013, %v4005
  %v4518 = vpack.c.b16 %v4014, %v4006
  %v4519 = vpack.c.b16 %v4015, %v4007
  %v4520 = vpack.c.b16 %v4024, %v4016
  %v4521 = vpack.c.b16 %v4025, %v4017
  %v4522 = vpack.c.b16 %v4026, %v4018
  %v4523 = vpack.c.b16 %v4027, %v4019
  %v4524 = vpack.c.b16 %v4028, %v4020
  %v4525 = vpack.c.b16 %v4029, %v4021
  %v4526 = vpack.c.b16 %v4030, %v4022
  %v4527 = vpack.c.b16 %v4031, %v4023
  %v4528 = vpack.c.b16 %v4040, %v4032
  %v4529 = vpack.c.b16 %v4041, %v4033
  %v4530 = vpack.c.b16 %v4042, %v4034
  %v4531 = vpack.c.b16 %v4043, %v4035
  %v4532 = vpack.c.b16 %v4044, %v4036
  %v4533 = vpack.c.b16 %v4045, %v4037
  %v4534 = vpack.c.b16 %v4046, %v4038
  %v4535 = vpack.c.b16 %v4047, %v4039
  %v4536 = vpack.c.b16 %v4056, %v4048
  %v4537 = vpack.c.b16 %v4057, %v4049
  %v4538 = vpack.c.b16 %v4058, %v4050
  %v4539 = vpack.c.b16 %v4059, %v4051
  %v4540 = vpack.c.b16 %v4060, %v4052
  %v4541 = vpack.c.b16 %v4061, %v4053
  %v4542 = vpack.c.b16 %v4062, %v4054
  %v4543 = vpack.c.b16 %v4063, %v4055
  %v4544 = vpack.c.b16 %v4072, %v4064
  %v4545 = vpack.c.b16 %v4073, %v4065
  %v4546 = vpack.c.b16 %v4074, %v4066
  %v4547 = vpack.c.b16 %v4075, %v4067
  %v4548 = vpack.c.b16 %v4076, %v4068
  %v4549 = vpack.c.b16 %v4077, %v4069
  %v4550 = vpack.c.b16 %v4078, %v4070
  %v4551 = vpack.c.b16 %v4079, %v4071
  %v4552 = vpack.c.b16 %v4088, %v4080
  %v4553 = vpack.c.b16 %v4089, %v4081
  %v4554 = vpack.c.b16 %v4090, %v4082
  %v4555 = vpack.c.b16 %v4091, %v4083
  %v4556 = vpack.c.b16 %v4092, %v4084
  %v4557 = vpack.c.b16 %v4093, %v4085
  %v4558 = vpack.c.b16 %v4094, %v4086
  %v4559 = vpack.c.b16 %v4095, %v4087
  %v4560 = vpack.c.b16 %v4104, %v4096
  %v4561 = vpack.c.b16 %v4105, %v4097
  %v4562 = vpack.c.b16 %v4106, %v4098
  %v4563 = vpack.c.b16 %v4107, %v4099
  %v4564 = vpack.c.b16 %v4108, %v4100
  %v4565 = vpack.c.b16 %v4109, %v4101
  %v4566 = vpack.c.b16 %v4110, %v4102
  %v4567 = vpack.c.b16 %v4111, %v4103
  %v4568 = vpack.c.b16 %v4120, %v4112
  %v4569 = vpack.c.b16 %v4121, %v4113
  %v4570 = vpack.c.b16 %v4122, %v4114
  %v4571 = vpack.c.b16 %v4123, %v4115
  %v4572 = vpack.c.b16 %v4124, %v4116
  %v4573 = vpack.c.b16 %v4125, %v4117
  %v4574 = vpack.c.b16 %v4126, %v4118
  %v4575 = vpack.c.b16 %v4127, %v4119
  %v4576 = vpack.c.b16 %v4136, %v4128
  %v4577 = vpack.c.b16 %v4137, %v4129
  %v4578 = vpack.c.b16 %v4138, %v4130
  %v4579 = vpack.c.b16 %v4139, %v4131
  %v4580 = vpack.c.b16 %v4140, %v4132
  %v4581 = vpack.c.b16 %v4141, %v4133
  %v4582 = vpack.c.b16 %v4142, %v4134
  %v4583 = vpack.c.b16 %v4143, %v4135
  %v4584 = vpack.c.b16 %v4152, %v4144
  %v4585 = vpack.c.b16 %v4153, %v4145
  %v4586 = vpack.c.b16 %v4154, %v4146
  %v4587 = vpack.c.b16 %v4155, %v4147
  %v4588 = vpack.c.b16 %v4156, %v4148
  %v4589 = vpack.c.b16 %v4157, %v4149
  %v4590 = vpack.c.b16 %v4158, %v4150
  %v4591 = vpack.c.b16 %v4159, %v4151
  %v4592 = vpack.c.b16 %v4168, %v4160
  %v4593 = vpack.c.b16 %v4169, %v4161
  %v4594 = vpack.c.b16 %v4170, %v4162
  %v4595 = vpack.c.b16 %v4171, %v4163
  %v4596 = vpack.c.b16 %v4172, %v4164
  %v4597 = vpack.c.b16 %v4173, %v4165
  %v4598 = vpack.c.b16 %v4174, %v4166
  %v4599 = vpack.c.b16 %v4175, %v4167
  %v4600 = vpack.c.b16 %v4184, %v4176
  %v4601 = vpack.c.b16 %v4185, %v4177
  %v4602 = vpack.c.b16 %v4186, %v4178
  %v4603 = vpack.c.b16 %v4187, %v4179
  %v4604 = vpack.c.b16 %v4188, %v4180
  %v4605 = vpack.c.b16 %v4189, %v4181
  %v4606 = vpack.c.b16 %v4190, %v4182
  %v4607 = vpack.c.b16 %v4191, %v4183
  %v4608 = vpack.c.b16 %v4200, %v4192
  %v4609 = vpack.c.b16 %v4201, %v4193
  %v4610 = vpack.c.b16 %v4202, %v4194
  %v4611 = vpack.c.b16 %v4203, %v4195
  %v4612 = vpack.c.b16 %v4204, %v4196
  %v4613 = vpack.c.b16 %v4205, %v4197
  %v4614 = vpack.c.b16 %v4206, %v4198
  %v4615 = vpack.c.b16 %v4207, %v4199
  %v4616 = vpack.c.b16 %v4216, %v4208
  %v4617 = vpack.c.b16 %v4217, %v4209
  %v4618 = vpack.c.b16 %v4218, %v4210
  %v4619 = vpack.c.b16 %v4219, %v4211
  %v4620 = vpack.c.b16 %v4220, %v4212
  %v4621 = vpack.c.b16 %v4221, %v4213
  %v4622 = vpack.c.b16 %v4222, %v4214
  %v4623 = vpack.c.b16 %v4223, %v4215
  %v4624 = vpack.c.b16 %v4232, %v4224
  %v4625 = vpack.c.b16 %v4233, %v4225
  %v4626 = vpack.c.b16 %v4234, %v4226
  %v4627 = vpack.c.b16 %v4235, %v4227
  %v4628 = vpack.c.b16 %v4236, %v4228
  %v4629 = vpack.c.b16 %v4237, %v4229
  %v4630 = vpack.c.b16 %v4238, %v4230
  %v4631 = vpack.c.b16 %v4239, %v4231
  %v5025 = vsel %vm73, %v3063, 0
  %5027 = vmatprep.subr.bf16.mxu0 %v4241
  %5028 = vmatpush1.bf16.msra.mxu0 %v4240
  %5029 = vmatprep.subr.bf16.mxu0 %v4249
  %5030 = vmatpush1.bf16.msra.mxu0 %v4248
  %5031 = vmatprep.subr.bf16.mxu0 %v4257
  %5032 = vmatpush1.bf16.msra.mxu0 %v4256
  %5033 = vmatprep.subr.bf16.mxu0 %v4265
  %5034 = vmatpush1.bf16.msra.mxu0 %v4264
  %5035 = vmatprep.subr.bf16.mxu0 %v4273
  %5036 = vmatpush1.bf16.msra.mxu0 %v4272
  %5037 = vmatprep.subr.bf16.mxu0 %v4281
  %5038 = vmatpush1.bf16.msra.mxu0 %v4280
  %5039 = vmatprep.subr.bf16.mxu0 %v4289
  %5040 = vmatpush1.bf16.msra.mxu0 %v4288
  %5041 = vmatprep.subr.bf16.mxu0 %v4297
  %5042 = vmatpush1.bf16.msra.mxu0 %v4296
  %5043 = vmatprep.subr.bf16.mxu0 %v4305
  %5044 = vmatpush1.bf16.msra.mxu0 %v4304
  %5045 = vmatprep.subr.bf16.mxu0 %v4313
  %5046 = vmatpush1.bf16.msra.mxu0 %v4312
  %5047 = vmatprep.subr.bf16.mxu0 %v4321
  %5048 = vmatpush1.bf16.msra.mxu0 %v4320
  %5049 = vmatprep.subr.bf16.mxu0 %v4329
  %5050 = vmatpush1.bf16.msra.mxu0 %v4328
  %5051 = vmatprep.subr.bf16.mxu0 %v4337
  %5052 = vmatpush1.bf16.msra.mxu0 %v4336
  %5053 = vmatprep.subr.bf16.mxu0 %v4345
  %5054 = vmatpush1.bf16.msra.mxu0 %v4344
  %5055 = vmatprep.subr.bf16.mxu0 %v4353
  %5056 = vmatpush1.bf16.msra.mxu0 %v4352
  %5057 = vmatprep.subr.bf16.mxu0 %v4361
  %5058 = vmatpush1.bf16.msra.mxu0 %v4360
  %5059 = vmatprep.mubr.bf16.mxu0 %v3058
  %5060 = vmatmul.mubr.bf16.gmra.mrb[0].mxu0 %v3057
  %v5061 = vpop.f32.mrb[0].mxu0
  %v5062 = vadd.f32 0.0, %v5061
  %v5063 = vpop.f32.mrb[0].mxu0
  %v5064 = vadd.f32 0.0, %v5063
  %v5065 = vpop.f32.mrb[0].mxu0
  %v5066 = vpop.f32.mrb[0].mxu0
  %5067 = vdwg.mxu0
  %5068 = vmatprep.subr.bf16.mxu0 %v4369
  %5069 = vmatpush1.bf16.msra.mxu0 %v4368
  %5070 = vmatprep.subr.bf16.mxu0 %v4377
  %5071 = vmatpush1.bf16.msra.mxu0 %v4376
  %5072 = vmatprep.subr.bf16.mxu0 %v4385
  %5073 = vmatpush1.bf16.msra.mxu0 %v4384
  %5074 = vmatprep.subr.bf16.mxu0 %v4393
  %5075 = vmatpush1.bf16.msra.mxu0 %v4392
  %5076 = vmatprep.subr.bf16.mxu0 %v4401
  %5077 = vmatpush1.bf16.msra.mxu0 %v4400
  %5078 = vmatprep.subr.bf16.mxu0 %v4409
  %5079 = vmatpush1.bf16.msra.mxu0 %v4408
  %5080 = vmatprep.subr.bf16.mxu0 %v4417
  %5081 = vmatpush1.bf16.msra.mxu0 %v4416
  %5082 = vmatprep.subr.bf16.mxu0 %v4425
  %5083 = vmatpush1.bf16.msra.mxu0 %v4424
  %5084 = vmatprep.subr.bf16.mxu0 %v4433
  %5085 = vmatpush1.bf16.msra.mxu0 %v4432
  %5086 = vmatprep.subr.bf16.mxu0 %v4441
  %5087 = vmatpush1.bf16.msra.mxu0 %v4440
  %5088 = vmatprep.subr.bf16.mxu0 %v4449
  %5089 = vmatpush1.bf16.msra.mxu0 %v4448
  %5090 = vmatprep.subr.bf16.mxu0 %v4457
  %5091 = vmatpush1.bf16.msra.mxu0 %v4456
  %5092 = vmatprep.subr.bf16.mxu0 %v4465
  %5093 = vmatpush1.bf16.msra.mxu0 %v4464
  %5094 = vmatprep.subr.bf16.mxu0 %v4473
  %5095 = vmatpush1.bf16.msra.mxu0 %v4472
  %5096 = vmatprep.subr.bf16.mxu0 %v4481
  %5097 = vmatpush1.bf16.msra.mxu0 %v4480
  %5098 = vmatprep.subr.bf16.mxu0 %v4489
  %5099 = vmatpush1.bf16.msra.mxu0 %v4488
  %5100 = vmatprep.mubr.bf16.mxu0 %v3060
  %5101 = vmatmul.mubr.bf16.gmra.mrb[0].mxu0 %v3059
  %v5102 = vpop.f32.mrb[0].mxu0
  %v5103 = vadd.f32 %v5062, %v5102
  %v5104 = vpop.f32.mrb[0].mxu0
  %v5105 = vadd.f32 %v5064, %v5104
  %v5106 = vpop.f32.mrb[0].mxu0
  %v5107 = vpop.f32.mrb[0].mxu0
  %5108 = vdwg.mxu0
  %5109 = vmatprep.subr.bf16.mxu0 %v4497
  %5110 = vmatpush1.bf16.msra.mxu0 %v4496
  %5111 = vmatprep.subr.bf16.mxu0 %v4505
  %5112 = vmatpush1.bf16.msra.mxu0 %v4504
  %5113 = vmatprep.subr.bf16.mxu0 %v4513
  %5114 = vmatpush1.bf16.msra.mxu0 %v4512
  %5115 = vmatprep.subr.bf16.mxu0 %v4521
  %5116 = vmatpush1.bf16.msra.mxu0 %v4520
  %5117 = vmatprep.subr.bf16.mxu0 %v4529
  %5118 = vmatpush1.bf16.msra.mxu0 %v4528
  %5119 = vmatprep.subr.bf16.mxu0 %v4537
  %5120 = vmatpush1.bf16.msra.mxu0 %v4536
  %5121 = vmatprep.subr.bf16.mxu0 %v4545
  %5122 = vmatpush1.bf16.msra.mxu0 %v4544
  %5123 = vmatprep.subr.bf16.mxu0 %v4553
  %5124 = vmatpush1.bf16.msra.mxu0 %v4552
  %5125 = vmatprep.subr.bf16.mxu0 %v4561
  %5126 = vmatpush1.bf16.msra.mxu0 %v4560
  %5127 = vmatprep.subr.bf16.mxu0 %v4569
  %5128 = vmatpush1.bf16.msra.mxu0 %v4568
  %5129 = vmatprep.subr.bf16.mxu0 %v4577
  %5130 = vmatpush1.bf16.msra.mxu0 %v4576
  %5131 = vmatprep.subr.bf16.mxu0 %v4585
  %5132 = vmatpush1.bf16.msra.mxu0 %v4584
  %5133 = vmatprep.subr.bf16.mxu0 %v4593
  %5134 = vmatpush1.bf16.msra.mxu0 %v4592
  %5135 = vmatprep.subr.bf16.mxu0 %v4601
  %5136 = vmatpush1.bf16.msra.mxu0 %v4600
  %5137 = vmatprep.subr.bf16.mxu0 %v4609
  %5138 = vmatpush1.bf16.msra.mxu0 %v4608
  %5139 = vmatprep.subr.bf16.mxu0 %v4617
  %5140 = vmatpush1.bf16.msra.mxu0 %v4616
  %5141 = vmatprep.mubr.bf16.mxu0 %v3062
  %5142 = vmatmul.mubr.bf16.gmra.mrb[0].mxu0 %v3061
  %v5143 = vpop.f32.mrb[0].mxu0
  %v5144 = vadd.f32 %v5103, %v5143
  %v5145 = vpop.f32.mrb[0].mxu0
  %v5146 = vadd.f32 %v5105, %v5145
  %v5147 = vpop.f32.mrb[0].mxu0
  %v5148 = vpop.f32.mrb[0].mxu0
  %5149 = vdwg.mxu0
  %5150 = vmatprep.subr.bf16.mxu0 %v4625
  %5151 = vmatpush1.bf16.msra.mxu0 %v4624
  %5152 = vmatprep.subr.bf16.mxu0 0
  %5153 = vmatpush1.bf16.msra.mxu0 0
  %5154 = vmatprep.subr.bf16.mxu0 0
  %5155 = vmatpush1.bf16.msra.mxu0 0
  %5156 = vmatprep.subr.bf16.mxu0 0
  %5157 = vmatpush1.bf16.msra.mxu0 0
  %5158 = vmatprep.subr.bf16.mxu0 0
  %5159 = vmatpush1.bf16.msra.mxu0 0
  %5160 = vmatprep.subr.bf16.mxu0 0
  %5161 = vmatpush1.bf16.msra.mxu0 0
  %5162 = vmatprep.subr.bf16.mxu0 0
  %5163 = vmatpush1.bf16.msra.mxu0 0
  %5164 = vmatprep.subr.bf16.mxu0 0
  %5165 = vmatpush1.bf16.msra.mxu0 0
  %5166 = vmatprep.subr.bf16.mxu0 0
  %5167 = vmatpush1.bf16.msra.mxu0 0
  %5168 = vmatprep.subr.bf16.mxu0 0
  %5169 = vmatpush1.bf16.msra.mxu0 0
  %5170 = vmatprep.subr.bf16.mxu0 0
  %5171 = vmatpush1.bf16.msra.mxu0 0
  %5172 = vmatprep.subr.bf16.mxu0 0
  %5173 = vmatpush1.bf16.msra.mxu0 0
  %5174 = vmatprep.subr.bf16.mxu0 0
  %5175 = vmatpush1.bf16.msra.mxu0 0
  %5176 = vmatprep.subr.bf16.mxu0 0
  %5177 = vmatpush1.bf16.msra.mxu0 0
  %5178 = vmatprep.subr.bf16.mxu0 0
  %5179 = vmatpush1.bf16.msra.mxu0 0
  %5180 = vmatprep.subr.bf16.mxu0 0
  %5181 = vmatpush1.bf16.msra.mxu0 0
  %5182 = vmatprep.mubr.bf16.mxu0 0
  %5183 = vmatmul.mubr.bf16.gmra.mrb[0].mxu0 %v5025
  %v5184 = vpop.f32.mrb[0].mxu0
  %v5185 = vadd.f32 %v5144, %v5184
  %v5186 = vpop.f32.mrb[0].mxu0
  %v5187 = vadd.f32 %v5146, %v5186
  %v5188 = vpop.f32.mrb[0].mxu0
  %v5189 = vpop.f32.mrb[0].mxu0
  %5190 = vdwg.mxu0
  %5191 = vmatprep.subr.bf16.mxu0 %v4243
  %5192 = vmatpush1.bf16.msra.mxu0 %v4242
  %5193 = vmatprep.subr.bf16.mxu0 %v4251
  %5194 = vmatpush1.bf16.msra.mxu0 %v4250
  %5195 = vmatprep.subr.bf16.mxu0 %v4259
  %5196 = vmatpush1.bf16.msra.mxu0 %v4258
  %5197 = vmatprep.subr.bf16.mxu0 %v4267
  %5198 = vmatpush1.bf16.msra.mxu0 %v4266
  %5199 = vmatprep.subr.bf16.mxu0 %v4275
  %5200 = vmatpush1.bf16.msra.mxu0 %v4274
  %5201 = vmatprep.subr.bf16.mxu0 %v4283
  %5202 = vmatpush1.bf16.msra.mxu0 %v4282
  %5203 = vmatprep.subr.bf16.mxu0 %v4291
  %5204 = vmatpush1.bf16.msra.mxu0 %v4290
  %5205 = vmatprep.subr.bf16.mxu0 %v4299
  %5206 = vmatpush1.bf16.msra.mxu0 %v4298
  %5207 = vmatprep.subr.bf16.mxu0 %v4307
  %5208 = vmatpush1.bf16.msra.mxu0 %v4306
  %5209 = vmatprep.subr.bf16.mxu0 %v4315
  %5210 = vmatpush1.bf16.msra.mxu0 %v4314
  %5211 = vmatprep.subr.bf16.mxu0 %v4323
  %5212 = vmatpush1.bf16.msra.mxu0 %v4322
  %5213 = vmatprep.subr.bf16.mxu0 %v4331
  %5214 = vmatpush1.bf16.msra.mxu0 %v4330
  %5215 = vmatprep.subr.bf16.mxu0 %v4339
  %5216 = vmatpush1.bf16.msra.mxu0 %v4338
  %5217 = vmatprep.subr.bf16.mxu0 %v4347
  %5218 = vmatpush1.bf16.msra.mxu0 %v4346
  %5219 = vmatprep.subr.bf16.mxu0 %v4355
  %5220 = vmatpush1.bf16.msra.mxu0 %v4354
  %5221 = vmatprep.subr.bf16.mxu0 %v4363
  %5222 = vmatpush1.bf16.msra.mxu0 %v4362
  %5223 = vmatprep.mubr.bf16.mxu0 %v3058
  %5224 = vmatmul.mubr.bf16.gmra.mrb[0].mxu0 %v3057
  %v5225 = vpop.f32.mrb[0].mxu0
  %v5226 = vadd.f32 0.0, %v5225
  %v5227 = vpop.f32.mrb[0].mxu0
  %v5228 = vadd.f32 0.0, %v5227
  %v5229 = vpop.f32.mrb[0].mxu0
  %v5230 = vpop.f32.mrb[0].mxu0
  %5231 = vdwg.mxu0
  %5232 = vmatprep.subr.bf16.mxu0 %v4371
  %5233 = vmatpush1.bf16.msra.mxu0 %v4370
  %5234 = vmatprep.subr.bf16.mxu0 %v4379
  %5235 = vmatpush1.bf16.msra.mxu0 %v4378
  %5236 = vmatprep.subr.bf16.mxu0 %v4387
  %5237 = vmatpush1.bf16.msra.mxu0 %v4386
  %5238 = vmatprep.subr.bf16.mxu0 %v4395
  %5239 = vmatpush1.bf16.msra.mxu0 %v4394
  %5240 = vmatprep.subr.bf16.mxu0 %v4403
  %5241 = vmatpush1.bf16.msra.mxu0 %v4402
  %5242 = vmatprep.subr.bf16.mxu0 %v4411
  %5243 = vmatpush1.bf16.msra.mxu0 %v4410
  %5244 = vmatprep.subr.bf16.mxu0 %v4419
  %5245 = vmatpush1.bf16.msra.mxu0 %v4418
  %5246 = vmatprep.subr.bf16.mxu0 %v4427
  %5247 = vmatpush1.bf16.msra.mxu0 %v4426
  %5248 = vmatprep.subr.bf16.mxu0 %v4435
  %5249 = vmatpush1.bf16.msra.mxu0 %v4434
  %5250 = vmatprep.subr.bf16.mxu0 %v4443
  %5251 = vmatpush1.bf16.msra.mxu0 %v4442
  %5252 = vmatprep.subr.bf16.mxu0 %v4451
  %5253 = vmatpush1.bf16.msra.mxu0 %v4450
  %5254 = vmatprep.subr.bf16.mxu0 %v4459
  %5255 = vmatpush1.bf16.msra.mxu0 %v4458
  %5256 = vmatprep.subr.bf16.mxu0 %v4467
  %5257 = vmatpush1.bf16.msra.mxu0 %v4466
  %5258 = vmatprep.subr.bf16.mxu0 %v4475
  %5259 = vmatpush1.bf16.msra.mxu0 %v4474
  %5260 = vmatprep.subr.bf16.mxu0 %v4483
  %5261 = vmatpush1.bf16.msra.mxu0 %v4482
  %5262 = vmatprep.subr.bf16.mxu0 %v4491
  %5263 = vmatpush1.bf16.msra.mxu0 %v4490
  %5264 = vmatprep.mubr.bf16.mxu0 %v3060
  %5265 = vmatmul.mubr.bf16.gmra.mrb[0].mxu0 %v3059
  %v5266 = vpop.f32.mrb[0].mxu0
  %v5267 = vadd.f32 %v5226, %v5266
  %v5268 = vpop.f32.mrb[0].mxu0
  %v5269 = vadd.f32 %v5228, %v5268
  %v5270 = vpop.f32.mrb[0].mxu0
  %v5271 = vpop.f32.mrb[0].mxu0
  %5272 = vdwg.mxu0
  %5273 = vmatprep.subr.bf16.mxu0 %v4499
  %5274 = vmatpush1.bf16.msra.mxu0 %v4498
  %5275 = vmatprep.subr.bf16.mxu0 %v4507
  %5276 = vmatpush1.bf16.msra.mxu0 %v4506
  %5277 = vmatprep.subr.bf16.mxu0 %v4515
  %5278 = vmatpush1.bf16.msra.mxu0 %v4514
  %5279 = vmatprep.subr.bf16.mxu0 %v4523
  %5280 = vmatpush1.bf16.msra.mxu0 %v4522
  %5281 = vmatprep.subr.bf16.mxu0 %v4531
  %5282 = vmatpush1.bf16.msra.mxu0 %v4530
  %5283 = vmatprep.subr.bf16.mxu0 %v4539
  %5284 = vmatpush1.bf16.msra.mxu0 %v4538
  %5285 = vmatprep.subr.bf16.mxu0 %v4547
  %5286 = vmatpush1.bf16.msra.mxu0 %v4546
  %5287 = vmatprep.subr.bf16.mxu0 %v4555
  %5288 = vmatpush1.bf16.msra.mxu0 %v4554
  %5289 = vmatprep.subr.bf16.mxu0 %v4563
  %5290 = vmatpush1.bf16.msra.mxu0 %v4562
  %5291 = vmatprep.subr.bf16.mxu0 %v4571
  %5292 = vmatpush1.bf16.msra.mxu0 %v4570
  %5293 = vmatprep.subr.bf16.mxu0 %v4579
  %5294 = vmatpush1.bf16.msra.mxu0 %v4578
  %5295 = vmatprep.subr.bf16.mxu0 %v4587
  %5296 = vmatpush1.bf16.msra.mxu0 %v4586
  %5297 = vmatprep.subr.bf16.mxu0 %v4595
  %5298 = vmatpush1.bf16.msra.mxu0 %v4594
  %5299 = vmatprep.subr.bf16.mxu0 %v4603
  %5300 = vmatpush1.bf16.msra.mxu0 %v4602
  %5301 = vmatprep.subr.bf16.mxu0 %v4611
  %5302 = vmatpush1.bf16.msra.mxu0 %v4610
  %5303 = vmatprep.subr.bf16.mxu0 %v4619
  %5304 = vmatpush1.bf16.msra.mxu0 %v4618
  %5305 = vmatprep.mubr.bf16.mxu0 %v3062
  %5306 = vmatmul.mubr.bf16.gmra.mrb[0].mxu0 %v3061
  %v5307 = vpop.f32.mrb[0].mxu0
  %v5308 = vadd.f32 %v5267, %v5307
  %v5309 = vpop.f32.mrb[0].mxu0
  %v5310 = vadd.f32 %v5269, %v5309
  %v5311 = vpop.f32.mrb[0].mxu0
  %v5312 = vpop.f32.mrb[0].mxu0
  %5313 = vdwg.mxu0
  %5314 = vmatprep.subr.bf16.mxu0 %v4627
  %5315 = vmatpush1.bf16.msra.mxu0 %v4626
  %5316 = vmatprep.subr.bf16.mxu0 0
  %5317 = vmatpush1.bf16.msra.mxu0 0
  %5318 = vmatprep.subr.bf16.mxu0 0
  %5319 = vmatpush1.bf16.msra.mxu0 0
  %5320 = vmatprep.subr.bf16.mxu0 0
  %5321 = vmatpush1.bf16.msra.mxu0 0
  %5322 = vmatprep.subr.bf16.mxu0 0
  %5323 = vmatpush1.bf16.msra.mxu0 0
  %5324 = vmatprep.subr.bf16.mxu0 0
  %5325 = vmatpush1.bf16.msra.mxu0 0
  %5326 = vmatprep.subr.bf16.mxu0 0
  %5327 = vmatpush1.bf16.msra.mxu0 0
  %5328 = vmatprep.subr.bf16.mxu0 0
  %5329 = vmatpush1.bf16.msra.mxu0 0
  %5330 = vmatprep.subr.bf16.mxu0 0
  %5331 = vmatpush1.bf16.msra.mxu0 0
  %5332 = vmatprep.subr.bf16.mxu0 0
  %5333 = vmatpush1.bf16.msra.mxu0 0
  %5334 = vmatprep.subr.bf16.mxu0 0
  %5335 = vmatpush1.bf16.msra.mxu0 0
  %5336 = vmatprep.subr.bf16.mxu0 0
  %5337 = vmatpush1.bf16.msra.mxu0 0
  %5338 = vmatprep.subr.bf16.mxu0 0
  %5339 = vmatpush1.bf16.msra.mxu0 0
  %5340 = vmatprep.subr.bf16.mxu0 0
  %5341 = vmatpush1.bf16.msra.mxu0 0
  %5342 = vmatprep.subr.bf16.mxu0 0
  %5343 = vmatpush1.bf16.msra.mxu0 0
  %5344 = vmatprep.subr.bf16.mxu0 0
  %5345 = vmatpush1.bf16.msra.mxu0 0
  %5346 = vmatprep.mubr.bf16.mxu0 0
  %5347 = vmatmul.mubr.bf16.gmra.mrb[0].mxu0 %v5025
  %v5348 = vpop.f32.mrb[0].mxu0
  %v5349 = vadd.f32 %v5308, %v5348
  %v5350 = vpop.f32.mrb[0].mxu0
  %v5351 = vadd.f32 %v5310, %v5350
  %v5352 = vpop.f32.mrb[0].mxu0
  %v5353 = vpop.f32.mrb[0].mxu0
  %5354 = vdwg.mxu0
  %5355 = vmatprep.subr.bf16.mxu0 %v4245
  %5356 = vmatpush1.bf16.msra.mxu0 %v4244
  %5357 = vmatprep.subr.bf16.mxu0 %v4253
  %5358 = vmatpush1.bf16.msra.mxu0 %v4252
  %5359 = vmatprep.subr.bf16.mxu0 %v4261
  %5360 = vmatpush1.bf16.msra.mxu0 %v4260
  %5361 = vmatprep.subr.bf16.mxu0 %v4269
  %5362 = vmatpush1.bf16.msra.mxu0 %v4268
  %5363 = vmatprep.subr.bf16.mxu0 %v4277
  %5364 = vmatpush1.bf16.msra.mxu0 %v4276
  %5365 = vmatprep.subr.bf16.mxu0 %v4285
  %5366 = vmatpush1.bf16.msra.mxu0 %v4284
  %5367 = vmatprep.subr.bf16.mxu0 %v4293
  %5368 = vmatpush1.bf16.msra.mxu0 %v4292
  %5369 = vmatprep.subr.bf16.mxu0 %v4301
  %5370 = vmatpush1.bf16.msra.mxu0 %v4300
  %5371 = vmatprep.subr.bf16.mxu0 %v4309
  %5372 = vmatpush1.bf16.msra.mxu0 %v4308
  %5373 = vmatprep.subr.bf16.mxu0 %v4317
  %5374 = vmatpush1.bf16.msra.mxu0 %v4316
  %5375 = vmatprep.subr.bf16.mxu0 %v4325
  %5376 = vmatpush1.bf16.msra.mxu0 %v4324
  %5377 = vmatprep.subr.bf16.mxu0 %v4333
  %5378 = vmatpush1.bf16.msra.mxu0 %v4332
  %5379 = vmatprep.subr.bf16.mxu0 %v4341
  %5380 = vmatpush1.bf16.msra.mxu0 %v4340
  %5381 = vmatprep.subr.bf16.mxu0 %v4349
  %5382 = vmatpush1.bf16.msra.mxu0 %v4348
  %5383 = vmatprep.subr.bf16.mxu0 %v4357
  %5384 = vmatpush1.bf16.msra.mxu0 %v4356
  %5385 = vmatprep.subr.bf16.mxu0 %v4365
  %5386 = vmatpush1.bf16.msra.mxu0 %v4364
  %5387 = vmatprep.mubr.bf16.mxu0 %v3058
  %5388 = vmatmul.mubr.bf16.gmra.mrb[0].mxu0 %v3057
  %v5389 = vpop.f32.mrb[0].mxu0
  %v5390 = vadd.f32 0.0, %v5389
  %v5391 = vpop.f32.mrb[0].mxu0
  %v5392 = vadd.f32 0.0, %v5391
  %v5393 = vpop.f32.mrb[0].mxu0
  %v5394 = vpop.f32.mrb[0].mxu0
  %5395 = vdwg.mxu0
  %5396 = vmatprep.subr.bf16.mxu0 %v4373
  %5397 = vmatpush1.bf16.msra.mxu0 %v4372
  %5398 = vmatprep.subr.bf16.mxu0 %v4381
  %5399 = vmatpush1.bf16.msra.mxu0 %v4380
  %5400 = vmatprep.subr.bf16.mxu0 %v4389
  %5401 = vmatpush1.bf16.msra.mxu0 %v4388
  %5402 = vmatprep.subr.bf16.mxu0 %v4397
  %5403 = vmatpush1.bf16.msra.mxu0 %v4396
  %5404 = vmatprep.subr.bf16.mxu0 %v4405
  %5405 = vmatpush1.bf16.msra.mxu0 %v4404
  %5406 = vmatprep.subr.bf16.mxu0 %v4413
  %5407 = vmatpush1.bf16.msra.mxu0 %v4412
  %5408 = vmatprep.subr.bf16.mxu0 %v4421
  %5409 = vmatpush1.bf16.msra.mxu0 %v4420
  %5410 = vmatprep.subr.bf16.mxu0 %v4429
  %5411 = vmatpush1.bf16.msra.mxu0 %v4428
  %5412 = vmatprep.subr.bf16.mxu0 %v4437
  %5413 = vmatpush1.bf16.msra.mxu0 %v4436
  %5414 = vmatprep.subr.bf16.mxu0 %v4445
  %5415 = vmatpush1.bf16.msra.mxu0 %v4444
  %5416 = vmatprep.subr.bf16.mxu0 %v4453
  %5417 = vmatpush1.bf16.msra.mxu0 %v4452
  %5418 = vmatprep.subr.bf16.mxu0 %v4461
  %5419 = vmatpush1.bf16.msra.mxu0 %v4460
  %5420 = vmatprep.subr.bf16.mxu0 %v4469
  %5421 = vmatpush1.bf16.msra.mxu0 %v4468
  %5422 = vmatprep.subr.bf16.mxu0 %v4477
  %5423 = vmatpush1.bf16.msra.mxu0 %v4476
  %5424 = vmatprep.subr.bf16.mxu0 %v4485
  %5425 = vmatpush1.bf16.msra.mxu0 %v4484
  %5426 = vmatprep.subr.bf16.mxu0 %v4493
  %5427 = vmatpush1.bf16.msra.mxu0 %v4492
  %5428 = vmatprep.mubr.bf16.mxu0 %v3060
  %5429 = vmatmul.mubr.bf16.gmra.mrb[0].mxu0 %v3059
  %v5430 = vpop.f32.mrb[0].mxu0
  %v5431 = vadd.f32 %v5390, %v5430
  %v5432 = vpop.f32.mrb[0].mxu0
  %v5433 = vadd.f32 %v5392, %v5432
  %v5434 = vpop.f32.mrb[0].mxu0
  %v5435 = vpop.f32.mrb[0].mxu0
  %5436 = vdwg.mxu0
  %5437 = vmatprep.subr.bf16.mxu0 %v4501
  %5438 = vmatpush1.bf16.msra.mxu0 %v4500
  %5439 = vmatprep.subr.bf16.mxu0 %v4509
  %5440 = vmatpush1.bf16.msra.mxu0 %v4508
  %5441 = vmatprep.subr.bf16.mxu0 %v4517
  %5442 = vmatpush1.bf16.msra.mxu0 %v4516
  %5443 = vmatprep.subr.bf16.mxu0 %v4525
  %5444 = vmatpush1.bf16.msra.mxu0 %v4524
  %5445 = vmatprep.subr.bf16.mxu0 %v4533
  %5446 = vmatpush1.bf16.msra.mxu0 %v4532
  %5447 = vmatprep.subr.bf16.mxu0 %v4541
  %5448 = vmatpush1.bf16.msra.mxu0 %v4540
  %5449 = vmatprep.subr.bf16.mxu0 %v4549
  %5450 = vmatpush1.bf16.msra.mxu0 %v4548
  %5451 = vmatprep.subr.bf16.mxu0 %v4557
  %5452 = vmatpush1.bf16.msra.mxu0 %v4556
  %5453 = vmatprep.subr.bf16.mxu0 %v4565
  %5454 = vmatpush1.bf16.msra.mxu0 %v4564
  %5455 = vmatprep.subr.bf16.mxu0 %v4573
  %5456 = vmatpush1.bf16.msra.mxu0 %v4572
  %5457 = vmatprep.subr.bf16.mxu0 %v4581
  %5458 = vmatpush1.bf16.msra.mxu0 %v4580
  %5459 = vmatprep.subr.bf16.mxu0 %v4589
  %5460 = vmatpush1.bf16.msra.mxu0 %v4588
  %5461 = vmatprep.subr.bf16.mxu0 %v4597
  %5462 = vmatpush1.bf16.msra.mxu0 %v4596
  %5463 = vmatprep.subr.bf16.mxu0 %v4605
  %5464 = vmatpush1.bf16.msra.mxu0 %v4604
  %5465 = vmatprep.subr.bf16.mxu0 %v4613
  %5466 = vmatpush1.bf16.msra.mxu0 %v4612
  %5467 = vmatprep.subr.bf16.mxu0 %v4621
  %5468 = vmatpush1.bf16.msra.mxu0 %v4620
  %5469 = vmatprep.mubr.bf16.mxu0 %v3062
  %5470 = vmatmul.mubr.bf16.gmra.mrb[0].mxu0 %v3061
  %v5471 = vpop.f32.mrb[0].mxu0
  %v5472 = vadd.f32 %v5431, %v5471
  %v5473 = vpop.f32.mrb[0].mxu0
  %v5474 = vadd.f32 %v5433, %v5473
  %v5475 = vpop.f32.mrb[0].mxu0
  %v5476 = vpop.f32.mrb[0].mxu0
  %5477 = vdwg.mxu0
  %5478 = vmatprep.subr.bf16.mxu0 %v4629
  %5479 = vmatpush1.bf16.msra.mxu0 %v4628
  %5480 = vmatprep.subr.bf16.mxu0 0
  %5481 = vmatpush1.bf16.msra.mxu0 0
  %5482 = vmatprep.subr.bf16.mxu0 0
  %5483 = vmatpush1.bf16.msra.mxu0 0
  %5484 = vmatprep.subr.bf16.mxu0 0
  %5485 = vmatpush1.bf16.msra.mxu0 0
  %5486 = vmatprep.subr.bf16.mxu0 0
  %5487 = vmatpush1.bf16.msra.mxu0 0
  %5488 = vmatprep.subr.bf16.mxu0 0
  %5489 = vmatpush1.bf16.msra.mxu0 0
  %5490 = vmatprep.subr.bf16.mxu0 0
  %5491 = vmatpush1.bf16.msra.mxu0 0
  %5492 = vmatprep.subr.bf16.mxu0 0
  %5493 = vmatpush1.bf16.msra.mxu0 0
  %5494 = vmatprep.subr.bf16.mxu0 0
  %5495 = vmatpush1.bf16.msra.mxu0 0
  %5496 = vmatprep.subr.bf16.mxu0 0
  %5497 = vmatpush1.bf16.msra.mxu0 0
  %5498 = vmatprep.subr.bf16.mxu0 0
  %5499 = vmatpush1.bf16.msra.mxu0 0
  %5500 = vmatprep.subr.bf16.mxu0 0
  %5501 = vmatpush1.bf16.msra.mxu0 0
  %5502 = vmatprep.subr.bf16.mxu0 0
  %5503 = vmatpush1.bf16.msra.mxu0 0
  %5504 = vmatprep.subr.bf16.mxu0 0
  %5505 = vmatpush1.bf16.msra.mxu0 0
  %5506 = vmatprep.subr.bf16.mxu0 0
  %5507 = vmatpush1.bf16.msra.mxu0 0
  %5508 = vmatprep.subr.bf16.mxu0 0
  %5509 = vmatpush1.bf16.msra.mxu0 0
  %5510 = vmatprep.mubr.bf16.mxu0 0
  %5511 = vmatmul.mubr.bf16.gmra.mrb[0].mxu0 %v5025
  %v5512 = vpop.f32.mrb[0].mxu0
  %v5513 = vadd.f32 %v5472, %v5512
  %v5514 = vpop.f32.mrb[0].mxu0
  %v5515 = vadd.f32 %v5474, %v5514
  %v5516 = vpop.f32.mrb[0].mxu0
  %v5517 = vpop.f32.mrb[0].mxu0
  %5518 = vdwg.mxu0
  %5519 = vmatprep.subr.bf16.mxu0 %v4247
  %5520 = vmatpush1.bf16.msra.mxu0 %v4246
  %5521 = vmatprep.subr.bf16.mxu0 %v4255
  %5522 = vmatpush1.bf16.msra.mxu0 %v4254
  %5523 = vmatprep.subr.bf16.mxu0 %v4263
  %5524 = vmatpush1.bf16.msra.mxu0 %v4262
  %5525 = vmatprep.subr.bf16.mxu0 %v4271
  %5526 = vmatpush1.bf16.msra.mxu0 %v4270
  %5527 = vmatprep.subr.bf16.mxu0 %v4279
  %5528 = vmatpush1.bf16.msra.mxu0 %v4278
  %5529 = vmatprep.subr.bf16.mxu0 %v4287
  %5530 = vmatpush1.bf16.msra.mxu0 %v4286
  %5531 = vmatprep.subr.bf16.mxu0 %v4295
  %5532 = vmatpush1.bf16.msra.mxu0 %v4294
  %5533 = vmatprep.subr.bf16.mxu0 %v4303
  %5534 = vmatpush1.bf16.msra.mxu0 %v4302
  %5535 = vmatprep.subr.bf16.mxu0 %v4311
  %5536 = vmatpush1.bf16.msra.mxu0 %v4310
  %5537 = vmatprep.subr.bf16.mxu0 %v4319
  %5538 = vmatpush1.bf16.msra.mxu0 %v4318
  %5539 = vmatprep.subr.bf16.mxu0 %v4327
  %5540 = vmatpush1.bf16.msra.mxu0 %v4326
  %5541 = vmatprep.subr.bf16.mxu0 %v4335
  %5542 = vmatpush1.bf16.msra.mxu0 %v4334
  %5543 = vmatprep.subr.bf16.mxu0 %v4343
  %5544 = vmatpush1.bf16.msra.mxu0 %v4342
  %5545 = vmatprep.subr.bf16.mxu0 %v4351
  %5546 = vmatpush1.bf16.msra.mxu0 %v4350
  %5547 = vmatprep.subr.bf16.mxu0 %v4359
  %5548 = vmatpush1.bf16.msra.mxu0 %v4358
  %5549 = vmatprep.subr.bf16.mxu0 %v4367
  %5550 = vmatpush1.bf16.msra.mxu0 %v4366
  %5551 = vmatprep.mubr.bf16.mxu0 %v3058
  %5552 = vmatmul.mubr.bf16.gmra.mrb[0].mxu0 %v3057
  %v5553 = vpop.f32.mrb[0].mxu0
  %v5554 = vadd.f32 0.0, %v5553
  %v5555 = vpop.f32.mrb[0].mxu0
  %v5556 = vadd.f32 0.0, %v5555
  %v5557 = vpop.f32.mrb[0].mxu0
  %v5558 = vpop.f32.mrb[0].mxu0
  %5559 = vdwg.mxu0
  %5560 = vmatprep.subr.bf16.mxu0 %v4375
  %5561 = vmatpush1.bf16.msra.mxu0 %v4374
  %5562 = vmatprep.subr.bf16.mxu0 %v4383
  %5563 = vmatpush1.bf16.msra.mxu0 %v4382
  %5564 = vmatprep.subr.bf16.mxu0 %v4391
  %5565 = vmatpush1.bf16.msra.mxu0 %v4390
  %5566 = vmatprep.subr.bf16.mxu0 %v4399
  %5567 = vmatpush1.bf16.msra.mxu0 %v4398
  %5568 = vmatprep.subr.bf16.mxu0 %v4407
  %5569 = vmatpush1.bf16.msra.mxu0 %v4406
  %5570 = vmatprep.subr.bf16.mxu0 %v4415
  %5571 = vmatpush1.bf16.msra.mxu0 %v4414
  %5572 = vmatprep.subr.bf16.mxu0 %v4423
  %5573 = vmatpush1.bf16.msra.mxu0 %v4422
  %5574 = vmatprep.subr.bf16.mxu0 %v4431
  %5575 = vmatpush1.bf16.msra.mxu0 %v4430
  %5576 = vmatprep.subr.bf16.mxu0 %v4439
  %5577 = vmatpush1.bf16.msra.mxu0 %v4438
  %5578 = vmatprep.subr.bf16.mxu0 %v4447
  %5579 = vmatpush1.bf16.msra.mxu0 %v4446
  %5580 = vmatprep.subr.bf16.mxu0 %v4455
  %5581 = vmatpush1.bf16.msra.mxu0 %v4454
  %5582 = vmatprep.subr.bf16.mxu0 %v4463
  %5583 = vmatpush1.bf16.msra.mxu0 %v4462
  %5584 = vmatprep.subr.bf16.mxu0 %v4471
  %5585 = vmatpush1.bf16.msra.mxu0 %v4470
  %5586 = vmatprep.subr.bf16.mxu0 %v4479
  %5587 = vmatpush1.bf16.msra.mxu0 %v4478
  %5588 = vmatprep.subr.bf16.mxu0 %v4487
  %5589 = vmatpush1.bf16.msra.mxu0 %v4486
  %5590 = vmatprep.subr.bf16.mxu0 %v4495
  %5591 = vmatpush1.bf16.msra.mxu0 %v4494
  %5592 = vmatprep.mubr.bf16.mxu0 %v3060
  %5593 = vmatmul.mubr.bf16.gmra.mrb[0].mxu0 %v3059
  %v5594 = vpop.f32.mrb[0].mxu0
  %v5595 = vadd.f32 %v5554, %v5594
  %v5596 = vpop.f32.mrb[0].mxu0
  %v5597 = vadd.f32 %v5556, %v5596
  %v5598 = vpop.f32.mrb[0].mxu0
  %v5599 = vpop.f32.mrb[0].mxu0
  %5600 = vdwg.mxu0
  %5601 = vmatprep.subr.bf16.mxu0 %v4503
  %5602 = vmatpush1.bf16.msra.mxu0 %v4502
  %5603 = vmatprep.subr.bf16.mxu0 %v4511
  %5604 = vmatpush1.bf16.msra.mxu0 %v4510
  %5605 = vmatprep.subr.bf16.mxu0 %v4519
  %5606 = vmatpush1.bf16.msra.mxu0 %v4518
  %5607 = vmatprep.subr.bf16.mxu0 %v4527
  %5608 = vmatpush1.bf16.msra.mxu0 %v4526
  %5609 = vmatprep.subr.bf16.mxu0 %v4535
  %5610 = vmatpush1.bf16.msra.mxu0 %v4534
  %5611 = vmatprep.subr.bf16.mxu0 %v4543
  %5612 = vmatpush1.bf16.msra.mxu0 %v4542
  %5613 = vmatprep.subr.bf16.mxu0 %v4551
  %5614 = vmatpush1.bf16.msra.mxu0 %v4550
  %5615 = vmatprep.subr.bf16.mxu0 %v4559
  %5616 = vmatpush1.bf16.msra.mxu0 %v4558
  %5617 = vmatprep.subr.bf16.mxu0 %v4567
  %5618 = vmatpush1.bf16.msra.mxu0 %v4566
  %5619 = vmatprep.subr.bf16.mxu0 %v4575
  %5620 = vmatpush1.bf16.msra.mxu0 %v4574
  %5621 = vmatprep.subr.bf16.mxu0 %v4583
  %5622 = vmatpush1.bf16.msra.mxu0 %v4582
  %5623 = vmatprep.subr.bf16.mxu0 %v4591
  %5624 = vmatpush1.bf16.msra.mxu0 %v4590
  %5625 = vmatprep.subr.bf16.mxu0 %v4599
  %5626 = vmatpush1.bf16.msra.mxu0 %v4598
  %5627 = vmatprep.subr.bf16.mxu0 %v4607
  %5628 = vmatpush1.bf16.msra.mxu0 %v4606
  %5629 = vmatprep.subr.bf16.mxu0 %v4615
  %5630 = vmatpush1.bf16.msra.mxu0 %v4614
  %5631 = vmatprep.subr.bf16.mxu0 %v4623
  %5632 = vmatpush1.bf16.msra.mxu0 %v4622
  %5633 = vmatprep.mubr.bf16.mxu0 %v3062
  %5634 = vmatmul.mubr.bf16.gmra.mrb[0].mxu0 %v3061
  %v5635 = vpop.f32.mrb[0].mxu0
  %v5636 = vadd.f32 %v5595, %v5635
  %v5637 = vpop.f32.mrb[0].mxu0
  %v5638 = vadd.f32 %v5597, %v5637
  %v5639 = vpop.f32.mrb[0].mxu0
  %v5640 = vpop.f32.mrb[0].mxu0
  %5641 = vdwg.mxu0
  %5642 = vmatprep.subr.bf16.mxu0 %v4631
  %5643 = vmatpush1.bf16.msra.mxu0 %v4630
  %5644 = vmatprep.subr.bf16.mxu0 0
  %5645 = vmatpush1.bf16.msra.mxu0 0
  %5646 = vmatprep.subr.bf16.mxu0 0
  %5647 = vmatpush1.bf16.msra.mxu0 0
  %5648 = vmatprep.subr.bf16.mxu0 0
  %5649 = vmatpush1.bf16.msra.mxu0 0
  %5650 = vmatprep.subr.bf16.mxu0 0
  %5651 = vmatpush1.bf16.msra.mxu0 0
  %5652 = vmatprep.subr.bf16.mxu0 0
  %5653 = vmatpush1.bf16.msra.mxu0 0
  %5654 = vmatprep.subr.bf16.mxu0 0
  %5655 = vmatpush1.bf16.msra.mxu0 0
  %5656 = vmatprep.subr.bf16.mxu0 0
  %5657 = vmatpush1.bf16.msra.mxu0 0
  %5658 = vmatprep.subr.bf16.mxu0 0
  %5659 = vmatpush1.bf16.msra.mxu0 0
  %5660 = vmatprep.subr.bf16.mxu0 0
  %5661 = vmatpush1.bf16.msra.mxu0 0
  %5662 = vmatprep.subr.bf16.mxu0 0
  %5663 = vmatpush1.bf16.msra.mxu0 0
  %5664 = vmatprep.subr.bf16.mxu0 0
  %5665 = vmatpush1.bf16.msra.mxu0 0
  %5666 = vmatprep.subr.bf16.mxu0 0
  %5667 = vmatpush1.bf16.msra.mxu0 0
  %5668 = vmatprep.subr.bf16.mxu0 0
  %5669 = vmatpush1.bf16.msra.mxu0 0
  %5670 = vmatprep.subr.bf16.mxu0 0
  %5671 = vmatpush1.bf16.msra.mxu0 0
  %5672 = vmatprep.subr.bf16.mxu0 0
  %5673 = vmatpush1.bf16.msra.mxu0 0
  %5674 = vmatprep.mubr.bf16.mxu0 0
  %5675 = vmatmul.mubr.bf16.gmra.mrb[0].mxu0 %v5025
  %v5676 = vpop.f32.mrb[0].mxu0
  %v5677 = vadd.f32 %v5636, %v5676
  %v5678 = vpop.f32.mrb[0].mxu0
  %v5679 = vadd.f32 %v5638, %v5678
  %v5680 = vpop.f32.mrb[0].mxu0
  %v5681 = vpop.f32.mrb[0].mxu0
  %5682 = vdwg.mxu0
  %v5683 = vld [vmem:[%s8] ss:$2 sm:$0xff]
  %v5685 = vlaneseq
  %v5686 = vshrl.u32 %v5685, 7
  %v5687 = vsub.s32 0, %v5686
  %v5688 = vrot.slane %v5683, %v5687
  %v5689 = vlaneseq
  %v5690 = vshrl.u32 %v5689, 7
  %v5691 = vsub.s32 1, %v5690
  %v5692 = vrot.slane %v5683, %v5691
  %v5693 = vlaneseq
  %v5694 = vshrl.u32 %v5693, 7
  %v5695 = vsub.s32 2, %v5694
  %v5696 = vrot.slane %v5683, %v5695
  %v5697 = vlaneseq
  %v5698 = vshrl.u32 %v5697, 7
  %v5699 = vsub.s32 3, %v5698
  %v5700 = vrot.slane %v5683, %v5699
  %v5701 = vlaneseq
  %v5702 = vshrl.u32 %v5701, 7
  %v5703 = vsub.s32 4, %v5702
  %v5704 = vrot.slane %v5683, %v5703
  %v5705 = vlaneseq
  %v5706 = vshrl.u32 %v5705, 7
  %v5707 = vsub.s32 5, %v5706
  %v5708 = vrot.slane %v5683, %v5707
  %v5709 = vlaneseq
  %v5710 = vshrl.u32 %v5709, 7
  %v5711 = vsub.s32 6, %v5710
  %v5712 = vrot.slane %v5683, %v5711
  %v5713 = vlaneseq
  %v5714 = vshrl.u32 %v5713, 7
  %v5715 = vsub.s32 7, %v5714
  %v5716 = vrot.slane %v5683, %v5715
  %v5725 = vmul.f32 %v5185, %v5688
  %v5726 = vmul.f32 %v5187, %v5692
  %v5727 = vmul.f32 %v5349, %v5696
  %v5728 = vmul.f32 %v5351, %v5700
  %v5729 = vmul.f32 %v5513, %v5704
  %v5730 = vmul.f32 %v5515, %v5708
  %v5731 = vmul.f32 %v5677, %v5712
  %v5732 = vmul.f32 %v5679, %v5716
  %s5733 = scalar_lea.vmem %s8, 1
  %v5734 = vld [vmem:[%s5733] ss:$2 sm:$0xff]
  %v5736 = vlaneseq
  %v5737 = vshrl.u32 %v5736, 7
  %v5738 = vsub.s32 0, %v5737
  %v5739 = vrot.slane %v5734, %v5738
  %v5740 = vlaneseq
  %v5741 = vshrl.u32 %v5740, 7
  %v5742 = vsub.s32 1, %v5741
  %v5743 = vrot.slane %v5734, %v5742
  %v5744 = vlaneseq
  %v5745 = vshrl.u32 %v5744, 7
  %v5746 = vsub.s32 2, %v5745
  %v5747 = vrot.slane %v5734, %v5746
  %v5748 = vlaneseq
  %v5749 = vshrl.u32 %v5748, 7
  %v5750 = vsub.s32 3, %v5749
  %v5751 = vrot.slane %v5734, %v5750
  %v5752 = vlaneseq
  %v5753 = vshrl.u32 %v5752, 7
  %v5754 = vsub.s32 4, %v5753
  %v5755 = vrot.slane %v5734, %v5754
  %v5756 = vlaneseq
  %v5757 = vshrl.u32 %v5756, 7
  %v5758 = vsub.s32 5, %v5757
  %v5759 = vrot.slane %v5734, %v5758
  %v5760 = vlaneseq
  %v5761 = vshrl.u32 %v5760, 7
  %v5762 = vsub.s32 6, %v5761
  %v5763 = vrot.slane %v5734, %v5762
  %v5764 = vlaneseq
  %v5765 = vshrl.u32 %v5764, 7
  %v5766 = vsub.s32 7, %v5765
  %v5767 = vrot.slane %v5734, %v5766
  %v5776 = vadd.f32 %v5725, %v5739
  %v5777 = vadd.f32 %v5726, %v5743
  %v5778 = vadd.f32 %v5727, %v5747
  %v5779 = vadd.f32 %v5728, %v5751
  %v5780 = vadd.f32 %v5729, %v5755
  %v5781 = vadd.f32 %v5730, %v5759
  %v5782 = vadd.f32 %v5731, %v5763
  %v5783 = vadd.f32 %v5732, %v5767
  %v5784 = vmax.f32 %v5776, 0.0
  %v5785 = vmax.f32 %v5777, 0.0
  %v5786 = vmax.f32 %v5778, 0.0
  %v5787 = vmax.f32 %v5779, 0.0
  %v5788 = vmax.f32 %v5780, 0.0
  %v5789 = vmax.f32 %v5781, 0.0
  %v5790 = vmax.f32 %v5782, 0.0
  %v5791 = vmax.f32 %v5783, 0.0
  %v5792 = vld [vmem:[%s9] sm:$0xff]
  %v5793 = vld [vmem:[%s9 + $0x8] sm:$0xff]
  %v5794 = vld [vmem:[%s9 + $0x10] sm:$0xff]
  %v5795 = vld [vmem:[%s9 + $0x18] sm:$0xff]
  %v5796 = vld [vmem:[%s9 + $0x20] sm:$0xff]
  %v5797 = vld [vmem:[%s9 + $0x28] sm:$0xff]
  %v5798 = vld [vmem:[%s9 + $0x30] sm:$0xff]
  %v5799 = vld [vmem:[%s9 + $0x38] sm:$0xff]
  %v5800 = vld [vmem:[%s9 + $0x40] sm:$0xff]
  %v5801 = vld [vmem:[%s9 + $0x48] sm:$0xff]
  %v5802 = vld [vmem:[%s9 + $0x50] sm:$0xff]
  %v5803 = vld [vmem:[%s9 + $0x58] sm:$0xff]
  %v5804 = vld [vmem:[%s9 + $0x60] sm:$0xff]
  %v5805 = vld [vmem:[%s9 + $0x68] sm:$0xff]
  %v5806 = vld [vmem:[%s9 + $0x70] sm:$0xff]
  %v5807 = vld [vmem:[%s9 + $0x78] sm:$0xff]
  %v5808 = vld [vmem:[%s9 + $0x80] sm:$0xff]
  %v5809 = vld [vmem:[%s9 + $0x88] sm:$0xff]
  %v5810 = vld [vmem:[%s9 + $0x90] sm:$0xff]
  %v5811 = vld [vmem:[%s9 + $0x98] sm:$0xff]
  %v5812 = vld [vmem:[%s9 + $0xa0] sm:$0xff]
  %v5813 = vld [vmem:[%s9 + $0xa8] sm:$0xff]
  %v5814 = vld [vmem:[%s9 + $0xb0] sm:$0xff]
  %v5815 = vld [vmem:[%s9 + $0xb8] sm:$0xff]
  %v5816 = vld [vmem:[%s9 + $0xc0] sm:$0xff]
  %v5817 = vld [vmem:[%s9 + $0xc8] sm:$0xff]
  %v5818 = vld [vmem:[%s9 + $0xd0] sm:$0xff]
  %v5819 = vld [vmem:[%s9 + $0xd8] sm:$0xff]
  %v5820 = vld [vmem:[%s9 + $0xe0] sm:$0xff]
  %v5821 = vld [vmem:[%s9 + $0xe8] sm:$0xff]
  %v5822 = vld [vmem:[%s9 + $0xf0] sm:$0xff]
  %v5823 = vld [vmem:[%s9 + $0xf8] sm:$0xff]
  %v5824 = vld [vmem:[%s9 + $0x100] sm:$0xff]
  %v5825 = vld [vmem:[%s9 + $0x108] sm:$0xff]
  %v5826 = vld [vmem:[%s9 + $0x110] sm:$0xff]
  %v5827 = vld [vmem:[%s9 + $0x118] sm:$0xff]
  %v5828 = vld [vmem:[%s9 + $0x120] sm:$0xff]
  %v5829 = vld [vmem:[%s9 + $0x128] sm:$0xff]
  %v5830 = vld [vmem:[%s9 + $0x130] sm:$0xff]
  %v5831 = vld [vmem:[%s9 + $0x138] sm:$0xff]
  %v5832 = vld [vmem:[%s9 + $0x140] sm:$0xff]
  %v5833 = vld [vmem:[%s9 + $0x148] sm:$0xff]
  %v5834 = vld [vmem:[%s9 + $0x150] sm:$0xff]
  %v5835 = vld [vmem:[%s9 + $0x158] sm:$0xff]
  %v5836 = vld [vmem:[%s9 + $0x160] sm:$0xff]
  %v5837 = vld [vmem:[%s9 + $0x168] sm:$0xff]
  %v5838 = vld [vmem:[%s9 + $0x170] sm:$0xff]
  %v5839 = vld [vmem:[%s9 + $0x178] sm:$0xff]
  %v5840 = vld [vmem:[%s9 + $0x180] sm:$0xff]
  %v5841 = vld [vmem:[%s9 + $0x188] sm:$0xff]
  %v5842 = vld [vmem:[%s9 + $0x190] sm:$0xff]
  %v5843 = vld [vmem:[%s9 + $0x198] sm:$0xff]
  %v5844 = vld [vmem:[%s9 + $0x1a0] sm:$0xff]
  %v5845 = vld [vmem:[%s9 + $0x1a8] sm:$0xff]
  %v5846 = vld [vmem:[%s9 + $0x1b0] sm:$0xff]
  %v5847 = vld [vmem:[%s9 + $0x1b8] sm:$0xff]
  %v5848 = vld [vmem:[%s9 + $0x1c0] sm:$0xff]
  %v5849 = vld [vmem:[%s9 + $0x1c8] sm:$0xff]
  %v5850 = vld [vmem:[%s9 + $0x1d0] sm:$0xff]
  %v5851 = vld [vmem:[%s9 + $0x1d8] sm:$0xff]
  %v5852 = vld [vmem:[%s9 + $0x1e0] sm:$0xff]
  %v5853 = vld [vmem:[%s9 + $0x1e8] sm:$0xff]
  %v5854 = vld [vmem:[%s9 + $0x1f0] sm:$0xff]
  %v5855 = vld [vmem:[%s9 + $0x1f8] sm:$0xff]
  %v5856 = vld [vmem:[%s9 + $0x200] sm:$0xff]
  %v5857 = vld [vmem:[%s9 + $0x208] sm:$0xff]
  %v5858 = vld [vmem:[%s9 + $0x210] sm:$0xff]
  %v5859 = vld [vmem:[%s9 + $0x218] sm:$0xff]
  %v5860 = vld [vmem:[%s9 + $0x220] sm:$0xff]
  %v5861 = vld [vmem:[%s9 + $0x228] sm:$0xff]
  %v5862 = vld [vmem:[%s9 + $0x230] sm:$0xff]
  %v5863 = vld [vmem:[%s9 + $0x238] sm:$0xff]
  %v5864 = vld [vmem:[%s9 + $0x240] sm:$0xff]
  %v5865 = vld [vmem:[%s9 + $0x248] sm:$0xff]
  %v5866 = vld [vmem:[%s9 + $0x250] sm:$0xff]
  %v5867 = vld [vmem:[%s9 + $0x258] sm:$0xff]
  %v5868 = vld [vmem:[%s9 + $0x260] sm:$0xff]
  %v5869 = vld [vmem:[%s9 + $0x268] sm:$0xff]
  %v5870 = vld [vmem:[%s9 + $0x270] sm:$0xff]
  %v5871 = vld [vmem:[%s9 + $0x278] sm:$0xff]
  %v5872 = vld [vmem:[%s9 + $0x280] sm:$0xff]
  %v5873 = vld [vmem:[%s9 + $0x288] sm:$0xff]
  %v5874 = vld [vmem:[%s9 + $0x290] sm:$0xff]
  %v5875 = vld [vmem:[%s9 + $0x298] sm:$0xff]
  %v5876 = vld [vmem:[%s9 + $0x2a0] sm:$0xff]
  %v5877 = vld [vmem:[%s9 + $0x2a8] sm:$0xff]
  %v5878 = vld [vmem:[%s9 + $0x2b0] sm:$0xff]
  %v5879 = vld [vmem:[%s9 + $0x2b8] sm:$0xff]
  %v5880 = vld [vmem:[%s9 + $0x2c0] sm:$0xff]
  %v5881 = vld [vmem:[%s9 + $0x2c8] sm:$0xff]
  %v5882 = vld [vmem:[%s9 + $0x2d0] sm:$0xff]
  %v5883 = vld [vmem:[%s9 + $0x2d8] sm:$0xff]
  %v5884 = vld [vmem:[%s9 + $0x2e0] sm:$0xff]
  %v5885 = vld [vmem:[%s9 + $0x2e8] sm:$0xff]
  %v5886 = vld [vmem:[%s9 + $0x2f0] sm:$0xff]
  %v5887 = vld [vmem:[%s9 + $0x2f8] sm:$0xff]
  %v5888 = vld [vmem:[%s9 + $0x300] sm:$0xff]
  %v5889 = vld [vmem:[%s9 + $0x308] sm:$0xff]
  %v5890 = vld [vmem:[%s9 + $0x310] sm:$0xff]
  %v5891 = vld [vmem:[%s9 + $0x318] sm:$0xff]
  %v5892 = vld [vmem:[%s9 + $0x320] sm:$0xff]
  %v5893 = vld [vmem:[%s9 + $0x328] sm:$0xff]
  %v5894 = vld [vmem:[%s9 + $0x330] sm:$0xff]
  %v5895 = vld [vmem:[%s9 + $0x338] sm:$0xff]
  %v5896 = vld [vmem:[%s9 + $0x340] sm:$0xff]
  %v5897 = vld [vmem:[%s9 + $0x348] sm:$0xff]
  %v5898 = vld [vmem:[%s9 + $0x350] sm:$0xff]
  %v5899 = vld [vmem:[%s9 + $0x358] sm:$0xff]
  %v5900 = vld [vmem:[%s9 + $0x360] sm:$0xff]
  %v5901 = vld [vmem:[%s9 + $0x368] sm:$0xff]
  %v5902 = vld [vmem:[%s9 + $0x370] sm:$0xff]
  %v5903 = vld [vmem:[%s9 + $0x378] sm:$0xff]
  %v5904 = vld [vmem:[%s9 + $0x380] sm:$0xff]
  %v5905 = vld [vmem:[%s9 + $0x388] sm:$0xff]
  %v5906 = vld [vmem:[%s9 + $0x390] sm:$0xff]
  %v5907 = vld [vmem:[%s9 + $0x398] sm:$0xff]
  %v5908 = vld [vmem:[%s9 + $0x3a0] sm:$0xff]
  %v5909 = vld [vmem:[%s9 + $0x3a8] sm:$0xff]
  %v5910 = vld [vmem:[%s9 + $0x3b0] sm:$0xff]
  %v5911 = vld [vmem:[%s9 + $0x3b8] sm:$0xff]
  %v5912 = vld [vmem:[%s9 + $0x3c0] sm:$0xff]
  %v5913 = vld [vmem:[%s9 + $0x3c8] sm:$0xff]
  %v5914 = vld [vmem:[%s9 + $0x3d0] sm:$0xff]
  %v5915 = vld [vmem:[%s9 + $0x3d8] sm:$0xff]
  %v5916 = vld [vmem:[%s9 + $0x3e0] sm:$0xff]
  %v5917 = vld [vmem:[%s9 + $0x3e8] sm:$0xff]
  %v5918 = vld [vmem:[%s9 + $0x3f0] sm:$0xff]
  %v5919 = vld [vmem:[%s9 + $0x3f8] sm:$0xff]
  %v5920 = vld [vmem:[%s9 + $0x400] sm:$0xff]
  %v5921 = vld [vmem:[%s9 + $0x408] sm:$0xff]
  %v5922 = vld [vmem:[%s9 + $0x410] sm:$0xff]
  %v5923 = vld [vmem:[%s9 + $0x418] sm:$0xff]
  %v5924 = vld [vmem:[%s9 + $0x420] sm:$0xff]
  %v5925 = vld [vmem:[%s9 + $0x428] sm:$0xff]
  %v5926 = vld [vmem:[%s9 + $0x430] sm:$0xff]
  %v5927 = vld [vmem:[%s9 + $0x438] sm:$0xff]
  %v5928 = vld [vmem:[%s9 + $0x440] sm:$0xff]
  %v5929 = vld [vmem:[%s9 + $0x448] sm:$0xff]
  %v5930 = vld [vmem:[%s9 + $0x450] sm:$0xff]
  %v5931 = vld [vmem:[%s9 + $0x458] sm:$0xff]
  %v5932 = vld [vmem:[%s9 + $0x460] sm:$0xff]
  %v5933 = vld [vmem:[%s9 + $0x468] sm:$0xff]
  %v5934 = vld [vmem:[%s9 + $0x470] sm:$0xff]
  %v5935 = vld [vmem:[%s9 + $0x478] sm:$0xff]
  %v5936 = vld [vmem:[%s9 + $0x480] sm:$0xff]
  %v5937 = vld [vmem:[%s9 + $0x488] sm:$0xff]
  %v5938 = vld [vmem:[%s9 + $0x490] sm:$0xff]
  %v5939 = vld [vmem:[%s9 + $0x498] sm:$0xff]
  %v5940 = vld [vmem:[%s9 + $0x4a0] sm:$0xff]
  %v5941 = vld [vmem:[%s9 + $0x4a8] sm:$0xff]
  %v5942 = vld [vmem:[%s9 + $0x4b0] sm:$0xff]
  %v5943 = vld [vmem:[%s9 + $0x4b8] sm:$0xff]
  %v5944 = vld [vmem:[%s9 + $0x4c0] sm:$0xff]
  %v5945 = vld [vmem:[%s9 + $0x4c8] sm:$0xff]
  %v5946 = vld [vmem:[%s9 + $0x4d0] sm:$0xff]
  %v5947 = vld [vmem:[%s9 + $0x4d8] sm:$0xff]
  %v5948 = vld [vmem:[%s9 + $0x4e0] sm:$0xff]
  %v5949 = vld [vmem:[%s9 + $0x4e8] sm:$0xff]
  %v5950 = vld [vmem:[%s9 + $0x4f0] sm:$0xff]
  %v5951 = vld [vmem:[%s9 + $0x4f8] sm:$0xff]
  %v5952 = vld [vmem:[%s9 + $0x500] sm:$0xff]
  %v5953 = vld [vmem:[%s9 + $0x508] sm:$0xff]
  %v5954 = vld [vmem:[%s9 + $0x510] sm:$0xff]
  %v5955 = vld [vmem:[%s9 + $0x518] sm:$0xff]
  %v5956 = vld [vmem:[%s9 + $0x520] sm:$0xff]
  %v5957 = vld [vmem:[%s9 + $0x528] sm:$0xff]
  %v5958 = vld [vmem:[%s9 + $0x530] sm:$0xff]
  %v5959 = vld [vmem:[%s9 + $0x538] sm:$0xff]
  %v5960 = vld [vmem:[%s9 + $0x540] sm:$0xff]
  %v5961 = vld [vmem:[%s9 + $0x548] sm:$0xff]
  %v5962 = vld [vmem:[%s9 + $0x550] sm:$0xff]
  %v5963 = vld [vmem:[%s9 + $0x558] sm:$0xff]
  %v5964 = vld [vmem:[%s9 + $0x560] sm:$0xff]
  %v5965 = vld [vmem:[%s9 + $0x568] sm:$0xff]
  %v5966 = vld [vmem:[%s9 + $0x570] sm:$0xff]
  %v5967 = vld [vmem:[%s9 + $0x578] sm:$0xff]
  %v5968 = vld [vmem:[%s9 + $0x580] sm:$0xff]
  %v5969 = vld [vmem:[%s9 + $0x588] sm:$0xff]
  %v5970 = vld [vmem:[%s9 + $0x590] sm:$0xff]
  %v5971 = vld [vmem:[%s9 + $0x598] sm:$0xff]
  %v5972 = vld [vmem:[%s9 + $0x5a0] sm:$0xff]
  %v5973 = vld [vmem:[%s9 + $0x5a8] sm:$0xff]
  %v5974 = vld [vmem:[%s9 + $0x5b0] sm:$0xff]
  %v5975 = vld [vmem:[%s9 + $0x5b8] sm:$0xff]
  %v5976 = vld [vmem:[%s9 + $0x5c0] sm:$0xff]
  %v5977 = vld [vmem:[%s9 + $0x5c8] sm:$0xff]
  %v5978 = vld [vmem:[%s9 + $0x5d0] sm:$0xff]
  %v5979 = vld [vmem:[%s9 + $0x5d8] sm:$0xff]
  %v5980 = vld [vmem:[%s9 + $0x5e0] sm:$0xff]
  %v5981 = vld [vmem:[%s9 + $0x5e8] sm:$0xff]
  %v5982 = vld [vmem:[%s9 + $0x5f0] sm:$0xff]
  %v5983 = vld [vmem:[%s9 + $0x5f8] sm:$0xff]
  %v5984 = vld [vmem:[%s9 + $0x600] sm:$0xff]
  %v5985 = vld [vmem:[%s9 + $0x608] sm:$0xff]
  %v5986 = vld [vmem:[%s9 + $0x610] sm:$0xff]
  %v5987 = vld [vmem:[%s9 + $0x618] sm:$0xff]
  %v5988 = vld [vmem:[%s9 + $0x620] sm:$0xff]
  %v5989 = vld [vmem:[%s9 + $0x628] sm:$0xff]
  %v5990 = vld [vmem:[%s9 + $0x630] sm:$0xff]
  %v5991 = vld [vmem:[%s9 + $0x638] sm:$0xff]
  %v5992 = vld [vmem:[%s9 + $0x640] sm:$0xff]
  %v5993 = vld [vmem:[%s9 + $0x648] sm:$0xff]
  %v5994 = vld [vmem:[%s9 + $0x650] sm:$0xff]
  %v5995 = vld [vmem:[%s9 + $0x658] sm:$0xff]
  %v5996 = vld [vmem:[%s9 + $0x660] sm:$0xff]
  %v5997 = vld [vmem:[%s9 + $0x668] sm:$0xff]
  %v5998 = vld [vmem:[%s9 + $0x670] sm:$0xff]
  %v5999 = vld [vmem:[%s9 + $0x678] sm:$0xff]
  %v6000 = vld [vmem:[%s9 + $0x680] sm:$0xff]
  %v6001 = vld [vmem:[%s9 + $0x688] sm:$0xff]
  %v6002 = vld [vmem:[%s9 + $0x690] sm:$0xff]
  %v6003 = vld [vmem:[%s9 + $0x698] sm:$0xff]
  %v6004 = vld [vmem:[%s9 + $0x6a0] sm:$0xff]
  %v6005 = vld [vmem:[%s9 + $0x6a8] sm:$0xff]
  %v6006 = vld [vmem:[%s9 + $0x6b0] sm:$0xff]
  %v6007 = vld [vmem:[%s9 + $0x6b8] sm:$0xff]
  %v6008 = vld [vmem:[%s9 + $0x6c0] sm:$0xff]
  %v6009 = vld [vmem:[%s9 + $0x6c8] sm:$0xff]
  %v6010 = vld [vmem:[%s9 + $0x6d0] sm:$0xff]
  %v6011 = vld [vmem:[%s9 + $0x6d8] sm:$0xff]
  %v6012 = vld [vmem:[%s9 + $0x6e0] sm:$0xff]
  %v6013 = vld [vmem:[%s9 + $0x6e8] sm:$0xff]
  %v6014 = vld [vmem:[%s9 + $0x6f0] sm:$0xff]
  %v6015 = vld [vmem:[%s9 + $0x6f8] sm:$0xff]
  %v6016 = vld [vmem:[%s9 + $0x700] sm:$0xff]
  %v6017 = vld [vmem:[%s9 + $0x708] sm:$0xff]
  %v6018 = vld [vmem:[%s9 + $0x710] sm:$0xff]
  %v6019 = vld [vmem:[%s9 + $0x718] sm:$0xff]
  %v6020 = vld [vmem:[%s9 + $0x720] sm:$0xff]
  %v6021 = vld [vmem:[%s9 + $0x728] sm:$0xff]
  %v6022 = vld [vmem:[%s9 + $0x730] sm:$0xff]
  %v6023 = vld [vmem:[%s9 + $0x738] sm:$0xff]
  %v6024 = vld [vmem:[%s9 + $0x740] sm:$0xff]
  %v6025 = vld [vmem:[%s9 + $0x748] sm:$0xff]
  %v6026 = vld [vmem:[%s9 + $0x750] sm:$0xff]
  %v6027 = vld [vmem:[%s9 + $0x758] sm:$0xff]
  %v6028 = vld [vmem:[%s9 + $0x760] sm:$0xff]
  %v6029 = vld [vmem:[%s9 + $0x768] sm:$0xff]
  %v6030 = vld [vmem:[%s9 + $0x770] sm:$0xff]
  %v6031 = vld [vmem:[%s9 + $0x778] sm:$0xff]
  %v6032 = vld [vmem:[%s9 + $0x780] sm:$0xff]
  %v6033 = vld [vmem:[%s9 + $0x788] sm:$0xff]
  %v6034 = vunpack.c.l.s8.bf16 %v5792
  %v6035 = vunpack.c.h.s8.bf16 %v5792
  %v6036 = vunpack.c.l.s8.bf16 %v5793
  %v6037 = vunpack.c.h.s8.bf16 %v5793
  %v6038 = vunpack.c.l.s8.bf16 %v5794
  %v6039 = vunpack.c.h.s8.bf16 %v5794
  %v6040 = vunpack.c.l.s8.bf16 %v5795
  %v6041 = vunpack.c.h.s8.bf16 %v5795
  %v6042 = vunpack.c.l.s8.bf16 %v5796
  %v6043 = vunpack.c.h.s8.bf16 %v5796
  %v6044 = vunpack.c.l.s8.bf16 %v5797
  %v6045 = vunpack.c.h.s8.bf16 %v5797
  %v6046 = vunpack.c.l.s8.bf16 %v5798
  %v6047 = vunpack.c.h.s8.bf16 %v5798
  %v6048 = vunpack.c.l.s8.bf16 %v5799
  %v6049 = vunpack.c.h.s8.bf16 %v5799
  %v6050 = vunpack.c.l.s8.bf16 %v5800
  %v6051 = vunpack.c.h.s8.bf16 %v5800
  %v6052 = vunpack.c.l.s8.bf16 %v5801
  %v6053 = vunpack.c.h.s8.bf16 %v5801
  %v6054 = vunpack.c.l.s8.bf16 %v5802
  %v6055 = vunpack.c.h.s8.bf16 %v5802
  %v6056 = vunpack.c.l.s8.bf16 %v5803
  %v6057 = vunpack.c.h.s8.bf16 %v5803
  %v6058 = vunpack.c.l.s8.bf16 %v5804
  %v6059 = vunpack.c.h.s8.bf16 %v5804
  %v6060 = vunpack.c.l.s8.bf16 %v5805
  %v6061 = vunpack.c.h.s8.bf16 %v5805
  %v6062 = vunpack.c.l.s8.bf16 %v5806
  %v6063 = vunpack.c.h.s8.bf16 %v5806
  %v6064 = vunpack.c.l.s8.bf16 %v5807
  %v6065 = vunpack.c.h.s8.bf16 %v5807
  %v6066 = vunpack.c.l.s8.bf16 %v5808
  %v6067 = vunpack.c.h.s8.bf16 %v5808
  %v6068 = vunpack.c.l.s8.bf16 %v5809
  %v6069 = vunpack.c.h.s8.bf16 %v5809
  %v6070 = vunpack.c.l.s8.bf16 %v5810
  %v6071 = vunpack.c.h.s8.bf16 %v5810
  %v6072 = vunpack.c.l.s8.bf16 %v5811
  %v6073 = vunpack.c.h.s8.bf16 %v5811
  %v6074 = vunpack.c.l.s8.bf16 %v5812
  %v6075 = vunpack.c.h.s8.bf16 %v5812
  %v6076 = vunpack.c.l.s8.bf16 %v5813
  %v6077 = vunpack.c.h.s8.bf16 %v5813
  %v6078 = vunpack.c.l.s8.bf16 %v5814
  %v6079 = vunpack.c.h.s8.bf16 %v5814
  %v6080 = vunpack.c.l.s8.bf16 %v5815
  %v6081 = vunpack.c.h.s8.bf16 %v5815
  %v6082 = vunpack.c.l.s8.bf16 %v5816
  %v6083 = vunpack.c.h.s8.bf16 %v5816
  %v6084 = vunpack.c.l.s8.bf16 %v5817
  %v6085 = vunpack.c.h.s8.bf16 %v5817
  %v6086 = vunpack.c.l.s8.bf16 %v5818
  %v6087 = vunpack.c.h.s8.bf16 %v5818
  %v6088 = vunpack.c.l.s8.bf16 %v5819
  %v6089 = vunpack.c.h.s8.bf16 %v5819
  %v6090 = vunpack.c.l.s8.bf16 %v5820
  %v6091 = vunpack.c.h.s8.bf16 %v5820
  %v6092 = vunpack.c.l.s8.bf16 %v5821
  %v6093 = vunpack.c.h.s8.bf16 %v5821
  %v6094 = vunpack.c.l.s8.bf16 %v5822
  %v6095 = vunpack.c.h.s8.bf16 %v5822
  %v6096 = vunpack.c.l.s8.bf16 %v5823
  %v6097 = vunpack.c.h.s8.bf16 %v5823
  %v6098 = vunpack.c.l.s8.bf16 %v5824
  %v6099 = vunpack.c.h.s8.bf16 %v5824
  %v6100 = vunpack.c.l.s8.bf16 %v5825
  %v6101 = vunpack.c.h.s8.bf16 %v5825
  %v6102 = vunpack.c.l.s8.bf16 %v5826
  %v6103 = vunpack.c.h.s8.bf16 %v5826
  %v6104 = vunpack.c.l.s8.bf16 %v5827
  %v6105 = vunpack.c.h.s8.bf16 %v5827
  %v6106 = vunpack.c.l.s8.bf16 %v5828
  %v6107 = vunpack.c.h.s8.bf16 %v5828
  %v6108 = vunpack.c.l.s8.bf16 %v5829
  %v6109 = vunpack.c.h.s8.bf16 %v5829
  %v6110 = vunpack.c.l.s8.bf16 %v5830
  %v6111 = vunpack.c.h.s8.bf16 %v5830
  %v6112 = vunpack.c.l.s8.bf16 %v5831
  %v6113 = vunpack.c.h.s8.bf16 %v5831
  %v6114 = vunpack.c.l.s8.bf16 %v5832
  %v6115 = vunpack.c.h.s8.bf16 %v5832
  %v6116 = vunpack.c.l.s8.bf16 %v5833
  %v6117 = vunpack.c.h.s8.bf16 %v5833
  %v6118 = vunpack.c.l.s8.bf16 %v5834
  %v6119 = vunpack.c.h.s8.bf16 %v5834
  %v6120 = vunpack.c.l.s8.bf16 %v5835
  %v6121 = vunpack.c.h.s8.bf16 %v5835
  %v6122 = vunpack.c.l.s8.bf16 %v5836
  %v6123 = vunpack.c.h.s8.bf16 %v5836
  %v6124 = vunpack.c.l.s8.bf16 %v5837
  %v6125 = vunpack.c.h.s8.bf16 %v5837
  %v6126 = vunpack.c.l.s8.bf16 %v5838
  %v6127 = vunpack.c.h.s8.bf16 %v5838
  %v6128 = vunpack.c.l.s8.bf16 %v5839
  %v6129 = vunpack.c.h.s8.bf16 %v5839
  %v6130 = vunpack.c.l.s8.bf16 %v5840
  %v6131 = vunpack.c.h.s8.bf16 %v5840
  %v6132 = vunpack.c.l.s8.bf16 %v5841
  %v6133 = vunpack.c.h.s8.bf16 %v5841
  %v6134 = vunpack.c.l.s8.bf16 %v5842
  %v6135 = vunpack.c.h.s8.bf16 %v5842
  %v6136 = vunpack.c.l.s8.bf16 %v5843
  %v6137 = vunpack.c.h.s8.bf16 %v5843
  %v6138 = vunpack.c.l.s8.bf16 %v5844
  %v6139 = vunpack.c.h.s8.bf16 %v5844
  %v6140 = vunpack.c.l.s8.bf16 %v5845
  %v6141 = vunpack.c.h.s8.bf16 %v5845
  %v6142 = vunpack.c.l.s8.bf16 %v5846
  %v6143 = vunpack.c.h.s8.bf16 %v5846
  %v6144 = vunpack.c.l.s8.bf16 %v5847
  %v6145 = vunpack.c.h.s8.bf16 %v5847
  %v6146 = vunpack.c.l.s8.bf16 %v5848
  %v6147 = vunpack.c.h.s8.bf16 %v5848
  %v6148 = vunpack.c.l.s8.bf16 %v5849
  %v6149 = vunpack.c.h.s8.bf16 %v5849
  %v6150 = vunpack.c.l.s8.bf16 %v5850
  %v6151 = vunpack.c.h.s8.bf16 %v5850
  %v6152 = vunpack.c.l.s8.bf16 %v5851
  %v6153 = vunpack.c.h.s8.bf16 %v5851
  %v6154 = vunpack.c.l.s8.bf16 %v5852
  %v6155 = vunpack.c.h.s8.bf16 %v5852
  %v6156 = vunpack.c.l.s8.bf16 %v5853
  %v6157 = vunpack.c.h.s8.bf16 %v5853
  %v6158 = vunpack.c.l.s8.bf16 %v5854
  %v6159 = vunpack.c.h.s8.bf16 %v5854
  %v6160 = vunpack.c.l.s8.bf16 %v5855
  %v6161 = vunpack.c.h.s8.bf16 %v5855
  %v6162 = vunpack.c.l.s8.bf16 %v5856
  %v6163 = vunpack.c.h.s8.bf16 %v5856
  %v6164 = vunpack.c.l.s8.bf16 %v5857
  %v6165 = vunpack.c.h.s8.bf16 %v5857
  %v6166 = vunpack.c.l.s8.bf16 %v5858
  %v6167 = vunpack.c.h.s8.bf16 %v5858
  %v6168 = vunpack.c.l.s8.bf16 %v5859
  %v6169 = vunpack.c.h.s8.bf16 %v5859
  %v6170 = vunpack.c.l.s8.bf16 %v5860
  %v6171 = vunpack.c.h.s8.bf16 %v5860
  %v6172 = vunpack.c.l.s8.bf16 %v5861
  %v6173 = vunpack.c.h.s8.bf16 %v5861
  %v6174 = vunpack.c.l.s8.bf16 %v5862
  %v6175 = vunpack.c.h.s8.bf16 %v5862
  %v6176 = vunpack.c.l.s8.bf16 %v5863
  %v6177 = vunpack.c.h.s8.bf16 %v5863
  %v6178 = vunpack.c.l.s8.bf16 %v5864
  %v6179 = vunpack.c.h.s8.bf16 %v5864
  %v6180 = vunpack.c.l.s8.bf16 %v5865
  %v6181 = vunpack.c.h.s8.bf16 %v5865
  %v6182 = vunpack.c.l.s8.bf16 %v5866
  %v6183 = vunpack.c.h.s8.bf16 %v5866
  %v6184 = vunpack.c.l.s8.bf16 %v5867
  %v6185 = vunpack.c.h.s8.bf16 %v5867
  %v6186 = vunpack.c.l.s8.bf16 %v5868
  %v6187 = vunpack.c.h.s8.bf16 %v5868
  %v6188 = vunpack.c.l.s8.bf16 %v5869
  %v6189 = vunpack.c.h.s8.bf16 %v5869
  %v6190 = vunpack.c.l.s8.bf16 %v5870
  %v6191 = vunpack.c.h.s8.bf16 %v5870
  %v6192 = vunpack.c.l.s8.bf16 %v5871
  %v6193 = vunpack.c.h.s8.bf16 %v5871
  %v6194 = vunpack.c.l.s8.bf16 %v5872
  %v6195 = vunpack.c.h.s8.bf16 %v5872
  %v6196 = vunpack.c.l.s8.bf16 %v5873
  %v6197 = vunpack.c.h.s8.bf16 %v5873
  %v6198 = vunpack.c.l.s8.bf16 %v5874
  %v6199 = vunpack.c.h.s8.bf16 %v5874
  %v6200 = vunpack.c.l.s8.bf16 %v5875
  %v6201 = vunpack.c.h.s8.bf16 %v5875
  %v6202 = vunpack.c.l.s8.bf16 %v5876
  %v6203 = vunpack.c.h.s8.bf16 %v5876
  %v6204 = vunpack.c.l.s8.bf16 %v5877
  %v6205 = vunpack.c.h.s8.bf16 %v5877
  %v6206 = vunpack.c.l.s8.bf16 %v5878
  %v6207 = vunpack.c.h.s8.bf16 %v5878
  %v6208 = vunpack.c.l.s8.bf16 %v5879
  %v6209 = vunpack.c.h.s8.bf16 %v5879
  %v6210 = vunpack.c.l.s8.bf16 %v5880
  %v6211 = vunpack.c.h.s8.bf16 %v5880
  %v6212 = vunpack.c.l.s8.bf16 %v5881
  %v6213 = vunpack.c.h.s8.bf16 %v5881
  %v6214 = vunpack.c.l.s8.bf16 %v5882
  %v6215 = vunpack.c.h.s8.bf16 %v5882
  %v6216 = vunpack.c.l.s8.bf16 %v5883
  %v6217 = vunpack.c.h.s8.bf16 %v5883
  %v6218 = vunpack.c.l.s8.bf16 %v5884
  %v6219 = vunpack.c.h.s8.bf16 %v5884
  %v6220 = vunpack.c.l.s8.bf16 %v5885
  %v6221 = vunpack.c.h.s8.bf16 %v5885
  %v6222 = vunpack.c.l.s8.bf16 %v5886
  %v6223 = vunpack.c.h.s8.bf16 %v5886
  %v6224 = vunpack.c.l.s8.bf16 %v5887
  %v6225 = vunpack.c.h.s8.bf16 %v5887
  %v6226 = vunpack.c.l.s8.bf16 %v5888
  %v6227 = vunpack.c.h.s8.bf16 %v5888
  %v6228 = vunpack.c.l.s8.bf16 %v5889
  %v6229 = vunpack.c.h.s8.bf16 %v5889
  %v6230 = vunpack.c.l.s8.bf16 %v5890
  %v6231 = vunpack.c.h.s8.bf16 %v5890
  %v6232 = vunpack.c.l.s8.bf16 %v5891
  %v6233 = vunpack.c.h.s8.bf16 %v5891
  %v6234 = vunpack.c.l.s8.bf16 %v5892
  %v6235 = vunpack.c.h.s8.bf16 %v5892
  %v6236 = vunpack.c.l.s8.bf16 %v5893
  %v6237 = vunpack.c.h.s8.bf16 %v5893
  %v6238 = vunpack.c.l.s8.bf16 %v5894
  %v6239 = vunpack.c.h.s8.bf16 %v5894
  %v6240 = vunpack.c.l.s8.bf16 %v5895
  %v6241 = vunpack.c.h.s8.bf16 %v5895
  %v6242 = vunpack.c.l.s8.bf16 %v5896
  %v6243 = vunpack.c.h.s8.bf16 %v5896
  %v6244 = vunpack.c.l.s8.bf16 %v5897
  %v6245 = vunpack.c.h.s8.bf16 %v5897
  %v6246 = vunpack.c.l.s8.bf16 %v5898
  %v6247 = vunpack.c.h.s8.bf16 %v5898
  %v6248 = vunpack.c.l.s8.bf16 %v5899
  %v6249 = vunpack.c.h.s8.bf16 %v5899
  %v6250 = vunpack.c.l.s8.bf16 %v5900
  %v6251 = vunpack.c.h.s8.bf16 %v5900
  %v6252 = vunpack.c.l.s8.bf16 %v5901
  %v6253 = vunpack.c.h.s8.bf16 %v5901
  %v6254 = vunpack.c.l.s8.bf16 %v5902
  %v6255 = vunpack.c.h.s8.bf16 %v5902
  %v6256 = vunpack.c.l.s8.bf16 %v5903
  %v6257 = vunpack.c.h.s8.bf16 %v5903
  %v6258 = vunpack.c.l.s8.bf16 %v5904
  %v6259 = vunpack.c.h.s8.bf16 %v5904
  %v6260 = vunpack.c.l.s8.bf16 %v5905
  %v6261 = vunpack.c.h.s8.bf16 %v5905
  %v6262 = vunpack.c.l.s8.bf16 %v5906
  %v6263 = vunpack.c.h.s8.bf16 %v5906
  %v6264 = vunpack.c.l.s8.bf16 %v5907
  %v6265 = vunpack.c.h.s8.bf16 %v5907
  %v6266 = vunpack.c.l.s8.bf16 %v5908
  %v6267 = vunpack.c.h.s8.bf16 %v5908
  %v6268 = vunpack.c.l.s8.bf16 %v5909
  %v6269 = vunpack.c.h.s8.bf16 %v5909
  %v6270 = vunpack.c.l.s8.bf16 %v5910
  %v6271 = vunpack.c.h.s8.bf16 %v5910
  %v6272 = vunpack.c.l.s8.bf16 %v5911
  %v6273 = vunpack.c.h.s8.bf16 %v5911
  %v6274 = vunpack.c.l.s8.bf16 %v5912
  %v6275 = vunpack.c.h.s8.bf16 %v5912
  %v6276 = vunpack.c.l.s8.bf16 %v5913
  %v6277 = vunpack.c.h.s8.bf16 %v5913
  %v6278 = vunpack.c.l.s8.bf16 %v5914
  %v6279 = vunpack.c.h.s8.bf16 %v5914
  %v6280 = vunpack.c.l.s8.bf16 %v5915
  %v6281 = vunpack.c.h.s8.bf16 %v5915
  %v6282 = vunpack.c.l.s8.bf16 %v5916
  %v6283 = vunpack.c.h.s8.bf16 %v5916
  %v6284 = vunpack.c.l.s8.bf16 %v5917
  %v6285 = vunpack.c.h.s8.bf16 %v5917
  %v6286 = vunpack.c.l.s8.bf16 %v5918
  %v6287 = vunpack.c.h.s8.bf16 %v5918
  %v6288 = vunpack.c.l.s8.bf16 %v5919
  %v6289 = vunpack.c.h.s8.bf16 %v5919
  %v6290 = vunpack.c.l.s8.bf16 %v5920
  %v6291 = vunpack.c.h.s8.bf16 %v5920
  %v6292 = vunpack.c.l.s8.bf16 %v5921
  %v6293 = vunpack.c.h.s8.bf16 %v5921
  %v6294 = vunpack.c.l.s8.bf16 %v5922
  %v6295 = vunpack.c.h.s8.bf16 %v5922
  %v6296 = vunpack.c.l.s8.bf16 %v5923
  %v6297 = vunpack.c.h.s8.bf16 %v5923
  %v6298 = vunpack.c.l.s8.bf16 %v5924
  %v6299 = vunpack.c.h.s8.bf16 %v5924
  %v6300 = vunpack.c.l.s8.bf16 %v5925
  %v6301 = vunpack.c.h.s8.bf16 %v5925
  %v6302 = vunpack.c.l.s8.bf16 %v5926
  %v6303 = vunpack.c.h.s8.bf16 %v5926
  %v6304 = vunpack.c.l.s8.bf16 %v5927
  %v6305 = vunpack.c.h.s8.bf16 %v5927
  %v6306 = vunpack.c.l.s8.bf16 %v5928
  %v6307 = vunpack.c.h.s8.bf16 %v5928
  %v6308 = vunpack.c.l.s8.bf16 %v5929
  %v6309 = vunpack.c.h.s8.bf16 %v5929
  %v6310 = vunpack.c.l.s8.bf16 %v5930
  %v6311 = vunpack.c.h.s8.bf16 %v5930
  %v6312 = vunpack.c.l.s8.bf16 %v5931
  %v6313 = vunpack.c.h.s8.bf16 %v5931
  %v6314 = vunpack.c.l.s8.bf16 %v5932
  %v6315 = vunpack.c.h.s8.bf16 %v5932
  %v6316 = vunpack.c.l.s8.bf16 %v5933
  %v6317 = vunpack.c.h.s8.bf16 %v5933
  %v6318 = vunpack.c.l.s8.bf16 %v5934
  %v6319 = vunpack.c.h.s8.bf16 %v5934
  %v6320 = vunpack.c.l.s8.bf16 %v5935
  %v6321 = vunpack.c.h.s8.bf16 %v5935
  %v6322 = vunpack.c.l.s8.bf16 %v5936
  %v6323 = vunpack.c.h.s8.bf16 %v5936
  %v6324 = vunpack.c.l.s8.bf16 %v5937
  %v6325 = vunpack.c.h.s8.bf16 %v5937
  %v6326 = vunpack.c.l.s8.bf16 %v5938
  %v6327 = vunpack.c.h.s8.bf16 %v5938
  %v6328 = vunpack.c.l.s8.bf16 %v5939
  %v6329 = vunpack.c.h.s8.bf16 %v5939
  %v6330 = vunpack.c.l.s8.bf16 %v5940
  %v6331 = vunpack.c.h.s8.bf16 %v5940
  %v6332 = vunpack.c.l.s8.bf16 %v5941
  %v6333 = vunpack.c.h.s8.bf16 %v5941
  %v6334 = vunpack.c.l.s8.bf16 %v5942
  %v6335 = vunpack.c.h.s8.bf16 %v5942
  %v6336 = vunpack.c.l.s8.bf16 %v5943
  %v6337 = vunpack.c.h.s8.bf16 %v5943
  %v6338 = vunpack.c.l.s8.bf16 %v5944
  %v6339 = vunpack.c.h.s8.bf16 %v5944
  %v6340 = vunpack.c.l.s8.bf16 %v5945
  %v6341 = vunpack.c.h.s8.bf16 %v5945
  %v6342 = vunpack.c.l.s8.bf16 %v5946
  %v6343 = vunpack.c.h.s8.bf16 %v5946
  %v6344 = vunpack.c.l.s8.bf16 %v5947
  %v6345 = vunpack.c.h.s8.bf16 %v5947
  %v6346 = vunpack.c.l.s8.bf16 %v5948
  %v6347 = vunpack.c.h.s8.bf16 %v5948
  %v6348 = vunpack.c.l.s8.bf16 %v5949
  %v6349 = vunpack.c.h.s8.bf16 %v5949
  %v6350 = vunpack.c.l.s8.bf16 %v5950
  %v6351 = vunpack.c.h.s8.bf16 %v5950
  %v6352 = vunpack.c.l.s8.bf16 %v5951
  %v6353 = vunpack.c.h.s8.bf16 %v5951
  %v6354 = vunpack.c.l.s8.bf16 %v5952
  %v6355 = vunpack.c.h.s8.bf16 %v5952
  %v6356 = vunpack.c.l.s8.bf16 %v5953
  %v6357 = vunpack.c.h.s8.bf16 %v5953
  %v6358 = vunpack.c.l.s8.bf16 %v5954
  %v6359 = vunpack.c.h.s8.bf16 %v5954
  %v6360 = vunpack.c.l.s8.bf16 %v5955
  %v6361 = vunpack.c.h.s8.bf16 %v5955
  %v6362 = vunpack.c.l.s8.bf16 %v5956
  %v6363 = vunpack.c.h.s8.bf16 %v5956
  %v6364 = vunpack.c.l.s8.bf16 %v5957
  %v6365 = vunpack.c.h.s8.bf16 %v5957
  %v6366 = vunpack.c.l.s8.bf16 %v5958
  %v6367 = vunpack.c.h.s8.bf16 %v5958
  %v6368 = vunpack.c.l.s8.bf16 %v5959
  %v6369 = vunpack.c.h.s8.bf16 %v5959
  %v6370 = vunpack.c.l.s8.bf16 %v5960
  %v6371 = vunpack.c.h.s8.bf16 %v5960
  %v6372 = vunpack.c.l.s8.bf16 %v5961
  %v6373 = vunpack.c.h.s8.bf16 %v5961
  %v6374 = vunpack.c.l.s8.bf16 %v5962
  %v6375 = vunpack.c.h.s8.bf16 %v5962
  %v6376 = vunpack.c.l.s8.bf16 %v5963
  %v6377 = vunpack.c.h.s8.bf16 %v5963
  %v6378 = vunpack.c.l.s8.bf16 %v5964
  %v6379 = vunpack.c.h.s8.bf16 %v5964
  %v6380 = vunpack.c.l.s8.bf16 %v5965
  %v6381 = vunpack.c.h.s8.bf16 %v5965
  %v6382 = vunpack.c.l.s8.bf16 %v5966
  %v6383 = vunpack.c.h.s8.bf16 %v5966
  %v6384 = vunpack.c.l.s8.bf16 %v5967
  %v6385 = vunpack.c.h.s8.bf16 %v5967
  %v6386 = vunpack.c.l.s8.bf16 %v5968
  %v6387 = vunpack.c.h.s8.bf16 %v5968
  %v6388 = vunpack.c.l.s8.bf16 %v5969
  %v6389 = vunpack.c.h.s8.bf16 %v5969
  %v6390 = vunpack.c.l.s8.bf16 %v5970
  %v6391 = vunpack.c.h.s8.bf16 %v5970
  %v6392 = vunpack.c.l.s8.bf16 %v5971
  %v6393 = vunpack.c.h.s8.bf16 %v5971
  %v6394 = vunpack.c.l.s8.bf16 %v5972
  %v6395 = vunpack.c.h.s8.bf16 %v5972
  %v6396 = vunpack.c.l.s8.bf16 %v5973
  %v6397 = vunpack.c.h.s8.bf16 %v5973
  %v6398 = vunpack.c.l.s8.bf16 %v5974
  %v6399 = vunpack.c.h.s8.bf16 %v5974
  %v6400 = vunpack.c.l.s8.bf16 %v5975
  %v6401 = vunpack.c.h.s8.bf16 %v5975
  %v6402 = vunpack.c.l.s8.bf16 %v5976
  %v6403 = vunpack.c.h.s8.bf16 %v5976
  %v6404 = vunpack.c.l.s8.bf16 %v5977
  %v6405 = vunpack.c.h.s8.bf16 %v5977
  %v6406 = vunpack.c.l.s8.bf16 %v5978
  %v6407 = vunpack.c.h.s8.bf16 %v5978
  %v6408 = vunpack.c.l.s8.bf16 %v5979
  %v6409 = vunpack.c.h.s8.bf16 %v5979
  %v6410 = vunpack.c.l.s8.bf16 %v5980
  %v6411 = vunpack.c.h.s8.bf16 %v5980
  %v6412 = vunpack.c.l.s8.bf16 %v5981
  %v6413 = vunpack.c.h.s8.bf16 %v5981
  %v6414 = vunpack.c.l.s8.bf16 %v5982
  %v6415 = vunpack.c.h.s8.bf16 %v5982
  %v6416 = vunpack.c.l.s8.bf16 %v5983
  %v6417 = vunpack.c.h.s8.bf16 %v5983
  %v6418 = vunpack.c.l.s8.bf16 %v5984
  %v6419 = vunpack.c.h.s8.bf16 %v5984
  %v6420 = vunpack.c.l.s8.bf16 %v5985
  %v6421 = vunpack.c.h.s8.bf16 %v5985
  %v6422 = vunpack.c.l.s8.bf16 %v5986
  %v6423 = vunpack.c.h.s8.bf16 %v5986
  %v6424 = vunpack.c.l.s8.bf16 %v5987
  %v6425 = vunpack.c.h.s8.bf16 %v5987
  %v6426 = vunpack.c.l.s8.bf16 %v5988
  %v6427 = vunpack.c.h.s8.bf16 %v5988
  %v6428 = vunpack.c.l.s8.bf16 %v5989
  %v6429 = vunpack.c.h.s8.bf16 %v5989
  %v6430 = vunpack.c.l.s8.bf16 %v5990
  %v6431 = vunpack.c.h.s8.bf16 %v5990
  %v6432 = vunpack.c.l.s8.bf16 %v5991
  %v6433 = vunpack.c.h.s8.bf16 %v5991
  %v6434 = vunpack.c.l.s8.bf16 %v5992
  %v6435 = vunpack.c.h.s8.bf16 %v5992
  %v6436 = vunpack.c.l.s8.bf16 %v5993
  %v6437 = vunpack.c.h.s8.bf16 %v5993
  %v6438 = vunpack.c.l.s8.bf16 %v5994
  %v6439 = vunpack.c.h.s8.bf16 %v5994
  %v6440 = vunpack.c.l.s8.bf16 %v5995
  %v6441 = vunpack.c.h.s8.bf16 %v5995
  %v6442 = vunpack.c.l.s8.bf16 %v5996
  %v6443 = vunpack.c.h.s8.bf16 %v5996
  %v6444 = vunpack.c.l.s8.bf16 %v5997
  %v6445 = vunpack.c.h.s8.bf16 %v5997
  %v6446 = vunpack.c.l.s8.bf16 %v5998
  %v6447 = vunpack.c.h.s8.bf16 %v5998
  %v6448 = vunpack.c.l.s8.bf16 %v5999
  %v6449 = vunpack.c.h.s8.bf16 %v5999
  %v6450 = vunpack.c.l.s8.bf16 %v6000
  %v6451 = vunpack.c.h.s8.bf16 %v6000
  %v6452 = vunpack.c.l.s8.bf16 %v6001
  %v6453 = vunpack.c.h.s8.bf16 %v6001
  %v6454 = vunpack.c.l.s8.bf16 %v6002
  %v6455 = vunpack.c.h.s8.bf16 %v6002
  %v6456 = vunpack.c.l.s8.bf16 %v6003
  %v6457 = vunpack.c.h.s8.bf16 %v6003
  %v6458 = vunpack.c.l.s8.bf16 %v6004
  %v6459 = vunpack.c.h.s8.bf16 %v6004
  %v6460 = vunpack.c.l.s8.bf16 %v6005
  %v6461 = vunpack.c.h.s8.bf16 %v6005
  %v6462 = vunpack.c.l.s8.bf16 %v6006
  %v6463 = vunpack.c.h.s8.bf16 %v6006
  %v6464 = vunpack.c.l.s8.bf16 %v6007
  %v6465 = vunpack.c.h.s8.bf16 %v6007
  %v6466 = vunpack.c.l.s8.bf16 %v6008
  %v6467 = vunpack.c.h.s8.bf16 %v6008
  %v6468 = vunpack.c.l.s8.bf16 %v6009
  %v6469 = vunpack.c.h.s8.bf16 %v6009
  %v6470 = vunpack.c.l.s8.bf16 %v6010
  %v6471 = vunpack.c.h.s8.bf16 %v6010
  %v6472 = vunpack.c.l.s8.bf16 %v6011
  %v6473 = vunpack.c.h.s8.bf16 %v6011
  %v6474 = vunpack.c.l.s8.bf16 %v6012
  %v6475 = vunpack.c.h.s8.bf16 %v6012
  %v6476 = vunpack.c.l.s8.bf16 %v6013
  %v6477 = vunpack.c.h.s8.bf16 %v6013
  %v6478 = vunpack.c.l.s8.bf16 %v6014
  %v6479 = vunpack.c.h.s8.bf16 %v6014
  %v6480 = vunpack.c.l.s8.bf16 %v6015
  %v6481 = vunpack.c.h.s8.bf16 %v6015
  %v6482 = vunpack.c.l.s8.bf16 %v6016
  %v6483 = vunpack.c.h.s8.bf16 %v6016
  %v6484 = vunpack.c.l.s8.bf16 %v6017
  %v6485 = vunpack.c.h.s8.bf16 %v6017
  %v6486 = vunpack.c.l.s8.bf16 %v6018
  %v6487 = vunpack.c.h.s8.bf16 %v6018
  %v6488 = vunpack.c.l.s8.bf16 %v6019
  %v6489 = vunpack.c.h.s8.bf16 %v6019
  %v6490 = vunpack.c.l.s8.bf16 %v6020
  %v6491 = vunpack.c.h.s8.bf16 %v6020
  %v6492 = vunpack.c.l.s8.bf16 %v6021
  %v6493 = vunpack.c.h.s8.bf16 %v6021
  %v6494 = vunpack.c.l.s8.bf16 %v6022
  %v6495 = vunpack.c.h.s8.bf16 %v6022
  %v6496 = vunpack.c.l.s8.bf16 %v6023
  %v6497 = vunpack.c.h.s8.bf16 %v6023
  %v6498 = vunpack.c.l.s8.bf16 %v6024
  %v6499 = vunpack.c.h.s8.bf16 %v6024
  %v6500 = vunpack.c.l.s8.bf16 %v6025
  %v6501 = vunpack.c.h.s8.bf16 %v6025
  %v6502 = vunpack.c.l.s8.bf16 %v6026
  %v6503 = vunpack.c.h.s8.bf16 %v6026
  %v6504 = vunpack.c.l.s8.bf16 %v6027
  %v6505 = vunpack.c.h.s8.bf16 %v6027
  %v6506 = vunpack.c.l.s8.bf16 %v6028
  %v6507 = vunpack.c.h.s8.bf16 %v6028
  %v6508 = vunpack.c.l.s8.bf16 %v6029
  %v6509 = vunpack.c.h.s8.bf16 %v6029
  %v6510 = vunpack.c.l.s8.bf16 %v6030
  %v6511 = vunpack.c.h.s8.bf16 %v6030
  %v6512 = vunpack.c.l.s8.bf16 %v6031
  %v6513 = vunpack.c.h.s8.bf16 %v6031
  %v6514 = vunpack.c.l.s8.bf16 %v6032
  %v6515 = vunpack.c.h.s8.bf16 %v6032
  %v6516 = vunpack.c.l.s8.bf16 %v6033
  %v6517 = vunpack.c.h.s8.bf16 %v6033
  %v6518 = vpack.c.bf16 %v5784, %v5784
  %v6519 = vpack.c.bf16 %v5785, %v5785
  %v6520 = vpack.c.bf16 %v5786, %v5786
  %v6521 = vpack.c.bf16 %v5787, %v5787
  %v6522 = vpack.c.bf16 %v5788, %v5788
  %v6523 = vpack.c.bf16 %v5789, %v5789
  %v6524 = vpack.c.bf16 %v5790, %v5790
  %v6525 = vpack.c.bf16 %v5791, %v5791
  %v7010 = vunpack.c.l.b16 %v6034
  %v7011 = vunpack.c.h.b16 %v6034
  %v7012 = vunpack.c.l.b16 %v6035
  %v7013 = vunpack.c.h.b16 %v6035
  %v7014 = vunpack.c.l.b16 %v6036
  %v7015 = vunpack.c.h.b16 %v6036
  %v7016 = vunpack.c.l.b16 %v6037
  %v7017 = vunpack.c.h.b16 %v6037
  %v7018 = vunpack.c.l.b16 %v6038
  %v7019 = vunpack.c.h.b16 %v6038
  %v7020 = vunpack.c.l.b16 %v6039
  %v7021 = vunpack.c.h.b16 %v6039
  %v7022 = vunpack.c.l.b16 %v6040
  %v7023 = vunpack.c.h.b16 %v6040
  %v7024 = vunpack.c.l.b16 %v6041
  %v7025 = vunpack.c.h.b16 %v6041
  %v7026 = vunpack.c.l.b16 %v6042
  %v7027 = vunpack.c.h.b16 %v6042
  %v7028 = vunpack.c.l.b16 %v6043
  %v7029 = vunpack.c.h.b16 %v6043
  %v7030 = vunpack.c.l.b16 %v6044
  %v7031 = vunpack.c.h.b16 %v6044
  %v7032 = vunpack.c.l.b16 %v6045
  %v7033 = vunpack.c.h.b16 %v6045
  %v7034 = vunpack.c.l.b16 %v6046
  %v7035 = vunpack.c.h.b16 %v6046
  %v7036 = vunpack.c.l.b16 %v6047
  %v7037 = vunpack.c.h.b16 %v6047
  %v7038 = vunpack.c.l.b16 %v6048
  %v7039 = vunpack.c.h.b16 %v6048
  %v7040 = vunpack.c.l.b16 %v6049
  %v7041 = vunpack.c.h.b16 %v6049
  %v7042 = vunpack.c.l.b16 %v6050
  %v7043 = vunpack.c.h.b16 %v6050
  %v7044 = vunpack.c.l.b16 %v6051
  %v7045 = vunpack.c.h.b16 %v6051
  %v7046 = vunpack.c.l.b16 %v6052
  %v7047 = vunpack.c.h.b16 %v6052
  %v7048 = vunpack.c.l.b16 %v6053
  %v7049 = vunpack.c.h.b16 %v6053
  %v7050 = vunpack.c.l.b16 %v6054
  %v7051 = vunpack.c.h.b16 %v6054
  %v7052 = vunpack.c.l.b16 %v6055
  %v7053 = vunpack.c.h.b16 %v6055
  %v7054 = vunpack.c.l.b16 %v6056
  %v7055 = vunpack.c.h.b16 %v6056
  %v7056 = vunpack.c.l.b16 %v6057
  %v7057 = vunpack.c.h.b16 %v6057
  %v7058 = vunpack.c.l.b16 %v6058
  %v7059 = vunpack.c.h.b16 %v6058
  %v7060 = vunpack.c.l.b16 %v6059
  %v7061 = vunpack.c.h.b16 %v6059
  %v7062 = vunpack.c.l.b16 %v6060
  %v7063 = vunpack.c.h.b16 %v6060
  %v7064 = vunpack.c.l.b16 %v6061
  %v7065 = vunpack.c.h.b16 %v6061
  %v7066 = vunpack.c.l.b16 %v6062
  %v7067 = vunpack.c.h.b16 %v6062
  %v7068 = vunpack.c.l.b16 %v6063
  %v7069 = vunpack.c.h.b16 %v6063
  %v7070 = vunpack.c.l.b16 %v6064
  %v7071 = vunpack.c.h.b16 %v6064
  %v7072 = vunpack.c.l.b16 %v6065
  %v7073 = vunpack.c.h.b16 %v6065
  %v7074 = vunpack.c.l.b16 %v6066
  %v7075 = vunpack.c.h.b16 %v6066
  %v7076 = vunpack.c.l.b16 %v6067
  %v7077 = vunpack.c.h.b16 %v6067
  %v7078 = vunpack.c.l.b16 %v6068
  %v7079 = vunpack.c.h.b16 %v6068
  %v7080 = vunpack.c.l.b16 %v6069
  %v7081 = vunpack.c.h.b16 %v6069
  %v7082 = vunpack.c.l.b16 %v6070
  %v7083 = vunpack.c.h.b16 %v6070
  %v7084 = vunpack.c.l.b16 %v6071
  %v7085 = vunpack.c.h.b16 %v6071
  %v7086 = vunpack.c.l.b16 %v6072
  %v7087 = vunpack.c.h.b16 %v6072
  %v7088 = vunpack.c.l.b16 %v6073
  %v7089 = vunpack.c.h.b16 %v6073
  %v7090 = vunpack.c.l.b16 %v6074
  %v7091 = vunpack.c.h.b16 %v6074
  %v7092 = vunpack.c.l.b16 %v6075
  %v7093 = vunpack.c.h.b16 %v6075
  %v7094 = vunpack.c.l.b16 %v6076
  %v7095 = vunpack.c.h.b16 %v6076
  %v7096 = vunpack.c.l.b16 %v6077
  %v7097 = vunpack.c.h.b16 %v6077
  %v7098 = vunpack.c.l.b16 %v6078
  %v7099 = vunpack.c.h.b16 %v6078
  %v7100 = vunpack.c.l.b16 %v6079
  %v7101 = vunpack.c.h.b16 %v6079
  %v7102 = vunpack.c.l.b16 %v6080
  %v7103 = vunpack.c.h.b16 %v6080
  %v7104 = vunpack.c.l.b16 %v6081
  %v7105 = vunpack.c.h.b16 %v6081
  %v7106 = vunpack.c.l.b16 %v6082
  %v7107 = vunpack.c.h.b16 %v6082
  %v7108 = vunpack.c.l.b16 %v6083
  %v7109 = vunpack.c.h.b16 %v6083
  %v7110 = vunpack.c.l.b16 %v6084
  %v7111 = vunpack.c.h.b16 %v6084
  %v7112 = vunpack.c.l.b16 %v6085
  %v7113 = vunpack.c.h.b16 %v6085
  %v7114 = vunpack.c.l.b16 %v6086
  %v7115 = vunpack.c.h.b16 %v6086
  %v7116 = vunpack.c.l.b16 %v6087
  %v7117 = vunpack.c.h.b16 %v6087
  %v7118 = vunpack.c.l.b16 %v6088
  %v7119 = vunpack.c.h.b16 %v6088
  %v7120 = vunpack.c.l.b16 %v6089
  %v7121 = vunpack.c.h.b16 %v6089
  %v7122 = vunpack.c.l.b16 %v6090
  %v7123 = vunpack.c.h.b16 %v6090
  %v7124 = vunpack.c.l.b16 %v6091
  %v7125 = vunpack.c.h.b16 %v6091
  %v7126 = vunpack.c.l.b16 %v6092
  %v7127 = vunpack.c.h.b16 %v6092
  %v7128 = vunpack.c.l.b16 %v6093
  %v7129 = vunpack.c.h.b16 %v6093
  %v7130 = vunpack.c.l.b16 %v6094
  %v7131 = vunpack.c.h.b16 %v6094
  %v7132 = vunpack.c.l.b16 %v6095
  %v7133 = vunpack.c.h.b16 %v6095
  %v7134 = vunpack.c.l.b16 %v6096
  %v7135 = vunpack.c.h.b16 %v6096
  %v7136 = vunpack.c.l.b16 %v6097
  %v7137 = vunpack.c.h.b16 %v6097
  %v7138 = vunpack.c.l.b16 %v6098
  %v7139 = vunpack.c.h.b16 %v6098
  %v7140 = vunpack.c.l.b16 %v6099
  %v7141 = vunpack.c.h.b16 %v6099
  %v7142 = vunpack.c.l.b16 %v6100
  %v7143 = vunpack.c.h.b16 %v6100
  %v7144 = vunpack.c.l.b16 %v6101
  %v7145 = vunpack.c.h.b16 %v6101
  %v7146 = vunpack.c.l.b16 %v6102
  %v7147 = vunpack.c.h.b16 %v6102
  %v7148 = vunpack.c.l.b16 %v6103
  %v7149 = vunpack.c.h.b16 %v6103
  %v7150 = vunpack.c.l.b16 %v6104
  %v7151 = vunpack.c.h.b16 %v6104
  %v7152 = vunpack.c.l.b16 %v6105
  %v7153 = vunpack.c.h.b16 %v6105
  %v7154 = vunpack.c.l.b16 %v6106
  %v7155 = vunpack.c.h.b16 %v6106
  %v7156 = vunpack.c.l.b16 %v6107
  %v7157 = vunpack.c.h.b16 %v6107
  %v7158 = vunpack.c.l.b16 %v6108
  %v7159 = vunpack.c.h.b16 %v6108
  %v7160 = vunpack.c.l.b16 %v6109
  %v7161 = vunpack.c.h.b16 %v6109
  %v7162 = vunpack.c.l.b16 %v6110
  %v7163 = vunpack.c.h.b16 %v6110
  %v7164 = vunpack.c.l.b16 %v6111
  %v7165 = vunpack.c.h.b16 %v6111
  %v7166 = vunpack.c.l.b16 %v6112
  %v7167 = vunpack.c.h.b16 %v6112
  %v7168 = vunpack.c.l.b16 %v6113
  %v7169 = vunpack.c.h.b16 %v6113
  %v7170 = vunpack.c.l.b16 %v6114
  %v7171 = vunpack.c.h.b16 %v6114
  %v7172 = vunpack.c.l.b16 %v6115
  %v7173 = vunpack.c.h.b16 %v6115
  %v7174 = vunpack.c.l.b16 %v6116
  %v7175 = vunpack.c.h.b16 %v6116
  %v7176 = vunpack.c.l.b16 %v6117
  %v7177 = vunpack.c.h.b16 %v6117
  %v7178 = vunpack.c.l.b16 %v6118
  %v7179 = vunpack.c.h.b16 %v6118
  %v7180 = vunpack.c.l.b16 %v6119
  %v7181 = vunpack.c.h.b16 %v6119
  %v7182 = vunpack.c.l.b16 %v6120
  %v7183 = vunpack.c.h.b16 %v6120
  %v7184 = vunpack.c.l.b16 %v6121
  %v7185 = vunpack.c.h.b16 %v6121
  %v7186 = vunpack.c.l.b16 %v6122
  %v7187 = vunpack.c.h.b16 %v6122
  %v7188 = vunpack.c.l.b16 %v6123
  %v7189 = vunpack.c.h.b16 %v6123
  %v7190 = vunpack.c.l.b16 %v6124
  %v7191 = vunpack.c.h.b16 %v6124
  %v7192 = vunpack.c.l.b16 %v6125
  %v7193 = vunpack.c.h.b16 %v6125
  %v7194 = vunpack.c.l.b16 %v6126
  %v7195 = vunpack.c.h.b16 %v6126
  %v7196 = vunpack.c.l.b16 %v6127
  %v7197 = vunpack.c.h.b16 %v6127
  %v7198 = vunpack.c.l.b16 %v6128
  %v7199 = vunpack.c.h.b16 %v6128
  %v7200 = vunpack.c.l.b16 %v6129
  %v7201 = vunpack.c.h.b16 %v6129
  %v7202 = vunpack.c.l.b16 %v6130
  %v7203 = vunpack.c.h.b16 %v6130
  %v7204 = vunpack.c.l.b16 %v6131
  %v7205 = vunpack.c.h.b16 %v6131
  %v7206 = vunpack.c.l.b16 %v6132
  %v7207 = vunpack.c.h.b16 %v6132
  %v7208 = vunpack.c.l.b16 %v6133
  %v7209 = vunpack.c.h.b16 %v6133
  %v7210 = vunpack.c.l.b16 %v6134
  %v7211 = vunpack.c.h.b16 %v6134
  %v7212 = vunpack.c.l.b16 %v6135
  %v7213 = vunpack.c.h.b16 %v6135
  %v7214 = vunpack.c.l.b16 %v6136
  %v7215 = vunpack.c.h.b16 %v6136
  %v7216 = vunpack.c.l.b16 %v6137
  %v7217 = vunpack.c.h.b16 %v6137
  %v7218 = vunpack.c.l.b16 %v6138
  %v7219 = vunpack.c.h.b16 %v6138
  %v7220 = vunpack.c.l.b16 %v6139
  %v7221 = vunpack.c.h.b16 %v6139
  %v7222 = vunpack.c.l.b16 %v6140
  %v7223 = vunpack.c.h.b16 %v6140
  %v7224 = vunpack.c.l.b16 %v6141
  %v7225 = vunpack.c.h.b16 %v6141
  %v7226 = vunpack.c.l.b16 %v6142
  %v7227 = vunpack.c.h.b16 %v6142
  %v7228 = vunpack.c.l.b16 %v6143
  %v7229 = vunpack.c.h.b16 %v6143
  %v7230 = vunpack.c.l.b16 %v6144
  %v7231 = vunpack.c.h.b16 %v6144
  %v7232 = vunpack.c.l.b16 %v6145
  %v7233 = vunpack.c.h.b16 %v6145
  %v7234 = vunpack.c.l.b16 %v6146
  %v7235 = vunpack.c.h.b16 %v6146
  %v7236 = vunpack.c.l.b16 %v6147
  %v7237 = vunpack.c.h.b16 %v6147
  %v7238 = vunpack.c.l.b16 %v6148
  %v7239 = vunpack.c.h.b16 %v6148
  %v7240 = vunpack.c.l.b16 %v6149
  %v7241 = vunpack.c.h.b16 %v6149
  %v7242 = vunpack.c.l.b16 %v6150
  %v7243 = vunpack.c.h.b16 %v6150
  %v7244 = vunpack.c.l.b16 %v6151
  %v7245 = vunpack.c.h.b16 %v6151
  %v7246 = vunpack.c.l.b16 %v6152
  %v7247 = vunpack.c.h.b16 %v6152
  %v7248 = vunpack.c.l.b16 %v6153
  %v7249 = vunpack.c.h.b16 %v6153
  %v7250 = vunpack.c.l.b16 %v6154
  %v7251 = vunpack.c.h.b16 %v6154
  %v7252 = vunpack.c.l.b16 %v6155
  %v7253 = vunpack.c.h.b16 %v6155
  %v7254 = vunpack.c.l.b16 %v6156
  %v7255 = vunpack.c.h.b16 %v6156
  %v7256 = vunpack.c.l.b16 %v6157
  %v7257 = vunpack.c.h.b16 %v6157
  %v7258 = vunpack.c.l.b16 %v6158
  %v7259 = vunpack.c.h.b16 %v6158
  %v7260 = vunpack.c.l.b16 %v6159
  %v7261 = vunpack.c.h.b16 %v6159
  %v7262 = vunpack.c.l.b16 %v6160
  %v7263 = vunpack.c.h.b16 %v6160
  %v7264 = vunpack.c.l.b16 %v6161
  %v7265 = vunpack.c.h.b16 %v6161
  %v7266 = vunpack.c.l.b16 %v6162
  %v7267 = vunpack.c.h.b16 %v6162
  %v7268 = vunpack.c.l.b16 %v6163
  %v7269 = vunpack.c.h.b16 %v6163
  %v7270 = vunpack.c.l.b16 %v6164
  %v7271 = vunpack.c.h.b16 %v6164
  %v7272 = vunpack.c.l.b16 %v6165
  %v7273 = vunpack.c.h.b16 %v6165
  %v7274 = vunpack.c.l.b16 %v6166
  %v7275 = vunpack.c.h.b16 %v6166
  %v7276 = vunpack.c.l.b16 %v6167
  %v7277 = vunpack.c.h.b16 %v6167
  %v7278 = vunpack.c.l.b16 %v6168
  %v7279 = vunpack.c.h.b16 %v6168
  %v7280 = vunpack.c.l.b16 %v6169
  %v7281 = vunpack.c.h.b16 %v6169
  %v7282 = vunpack.c.l.b16 %v6170
  %v7283 = vunpack.c.h.b16 %v6170
  %v7284 = vunpack.c.l.b16 %v6171
  %v7285 = vunpack.c.h.b16 %v6171
  %v7286 = vunpack.c.l.b16 %v6172
  %v7287 = vunpack.c.h.b16 %v6172
  %v7288 = vunpack.c.l.b16 %v6173
  %v7289 = vunpack.c.h.b16 %v6173
  %v7290 = vunpack.c.l.b16 %v6174
  %v7291 = vunpack.c.h.b16 %v6174
  %v7292 = vunpack.c.l.b16 %v6175
  %v7293 = vunpack.c.h.b16 %v6175
  %v7294 = vunpack.c.l.b16 %v6176
  %v7295 = vunpack.c.h.b16 %v6176
  %v7296 = vunpack.c.l.b16 %v6177
  %v7297 = vunpack.c.h.b16 %v6177
  %v7298 = vunpack.c.l.b16 %v6178
  %v7299 = vunpack.c.h.b16 %v6178
  %v7300 = vunpack.c.l.b16 %v6179
  %v7301 = vunpack.c.h.b16 %v6179
  %v7302 = vunpack.c.l.b16 %v6180
  %v7303 = vunpack.c.h.b16 %v6180
  %v7304 = vunpack.c.l.b16 %v6181
  %v7305 = vunpack.c.h.b16 %v6181
  %v7306 = vunpack.c.l.b16 %v6182
  %v7307 = vunpack.c.h.b16 %v6182
  %v7308 = vunpack.c.l.b16 %v6183
  %v7309 = vunpack.c.h.b16 %v6183
  %v7310 = vunpack.c.l.b16 %v6184
  %v7311 = vunpack.c.h.b16 %v6184
  %v7312 = vunpack.c.l.b16 %v6185
  %v7313 = vunpack.c.h.b16 %v6185
  %v7314 = vunpack.c.l.b16 %v6186
  %v7315 = vunpack.c.h.b16 %v6186
  %v7316 = vunpack.c.l.b16 %v6187
  %v7317 = vunpack.c.h.b16 %v6187
  %v7318 = vunpack.c.l.b16 %v6188
  %v7319 = vunpack.c.h.b16 %v6188
  %v7320 = vunpack.c.l.b16 %v6189
  %v7321 = vunpack.c.h.b16 %v6189
  %v7322 = vunpack.c.l.b16 %v6190
  %v7323 = vunpack.c.h.b16 %v6190
  %v7324 = vunpack.c.l.b16 %v6191
  %v7325 = vunpack.c.h.b16 %v6191
  %v7326 = vunpack.c.l.b16 %v6192
  %v7327 = vunpack.c.h.b16 %v6192
  %v7328 = vunpack.c.l.b16 %v6193
  %v7329 = vunpack.c.h.b16 %v6193
  %v7330 = vunpack.c.l.b16 %v6194
  %v7331 = vunpack.c.h.b16 %v6194
  %v7332 = vunpack.c.l.b16 %v6195
  %v7333 = vunpack.c.h.b16 %v6195
  %v7334 = vunpack.c.l.b16 %v6196
  %v7335 = vunpack.c.h.b16 %v6196
  %v7336 = vunpack.c.l.b16 %v6197
  %v7337 = vunpack.c.h.b16 %v6197
  %v7338 = vunpack.c.l.b16 %v6198
  %v7339 = vunpack.c.h.b16 %v6198
  %v7340 = vunpack.c.l.b16 %v6199
  %v7341 = vunpack.c.h.b16 %v6199
  %v7342 = vunpack.c.l.b16 %v6200
  %v7343 = vunpack.c.h.b16 %v6200
  %v7344 = vunpack.c.l.b16 %v6201
  %v7345 = vunpack.c.h.b16 %v6201
  %v7346 = vunpack.c.l.b16 %v6202
  %v7347 = vunpack.c.h.b16 %v6202
  %v7348 = vunpack.c.l.b16 %v6203
  %v7349 = vunpack.c.h.b16 %v6203
  %v7350 = vunpack.c.l.b16 %v6204
  %v7351 = vunpack.c.h.b16 %v6204
  %v7352 = vunpack.c.l.b16 %v6205
  %v7353 = vunpack.c.h.b16 %v6205
  %v7354 = vunpack.c.l.b16 %v6206
  %v7355 = vunpack.c.h.b16 %v6206
  %v7356 = vunpack.c.l.b16 %v6207
  %v7357 = vunpack.c.h.b16 %v6207
  %v7358 = vunpack.c.l.b16 %v6208
  %v7359 = vunpack.c.h.b16 %v6208
  %v7360 = vunpack.c.l.b16 %v6209
  %v7361 = vunpack.c.h.b16 %v6209
  %v7362 = vunpack.c.l.b16 %v6210
  %v7363 = vunpack.c.h.b16 %v6210
  %v7364 = vunpack.c.l.b16 %v6211
  %v7365 = vunpack.c.h.b16 %v6211
  %v7366 = vunpack.c.l.b16 %v6212
  %v7367 = vunpack.c.h.b16 %v6212
  %v7368 = vunpack.c.l.b16 %v6213
  %v7369 = vunpack.c.h.b16 %v6213
  %v7370 = vunpack.c.l.b16 %v6214
  %v7371 = vunpack.c.h.b16 %v6214
  %v7372 = vunpack.c.l.b16 %v6215
  %v7373 = vunpack.c.h.b16 %v6215
  %v7374 = vunpack.c.l.b16 %v6216
  %v7375 = vunpack.c.h.b16 %v6216
  %v7376 = vunpack.c.l.b16 %v6217
  %v7377 = vunpack.c.h.b16 %v6217
  %v7378 = vunpack.c.l.b16 %v6218
  %v7379 = vunpack.c.h.b16 %v6218
  %v7380 = vunpack.c.l.b16 %v6219
  %v7381 = vunpack.c.h.b16 %v6219
  %v7382 = vunpack.c.l.b16 %v6220
  %v7383 = vunpack.c.h.b16 %v6220
  %v7384 = vunpack.c.l.b16 %v6221
  %v7385 = vunpack.c.h.b16 %v6221
  %v7386 = vunpack.c.l.b16 %v6222
  %v7387 = vunpack.c.h.b16 %v6222
  %v7388 = vunpack.c.l.b16 %v6223
  %v7389 = vunpack.c.h.b16 %v6223
  %v7390 = vunpack.c.l.b16 %v6224
  %v7391 = vunpack.c.h.b16 %v6224
  %v7392 = vunpack.c.l.b16 %v6225
  %v7393 = vunpack.c.h.b16 %v6225
  %v7394 = vunpack.c.l.b16 %v6226
  %v7395 = vunpack.c.h.b16 %v6226
  %v7396 = vunpack.c.l.b16 %v6227
  %v7397 = vunpack.c.h.b16 %v6227
  %v7398 = vunpack.c.l.b16 %v6228
  %v7399 = vunpack.c.h.b16 %v6228
  %v7400 = vunpack.c.l.b16 %v6229
  %v7401 = vunpack.c.h.b16 %v6229
  %v7402 = vunpack.c.l.b16 %v6230
  %v7403 = vunpack.c.h.b16 %v6230
  %v7404 = vunpack.c.l.b16 %v6231
  %v7405 = vunpack.c.h.b16 %v6231
  %v7406 = vunpack.c.l.b16 %v6232
  %v7407 = vunpack.c.h.b16 %v6232
  %v7408 = vunpack.c.l.b16 %v6233
  %v7409 = vunpack.c.h.b16 %v6233
  %v7410 = vunpack.c.l.b16 %v6234
  %v7411 = vunpack.c.h.b16 %v6234
  %v7412 = vunpack.c.l.b16 %v6235
  %v7413 = vunpack.c.h.b16 %v6235
  %v7414 = vunpack.c.l.b16 %v6236
  %v7415 = vunpack.c.h.b16 %v6236
  %v7416 = vunpack.c.l.b16 %v6237
  %v7417 = vunpack.c.h.b16 %v6237
  %v7418 = vunpack.c.l.b16 %v6238
  %v7419 = vunpack.c.h.b16 %v6238
  %v7420 = vunpack.c.l.b16 %v6239
  %v7421 = vunpack.c.h.b16 %v6239
  %v7422 = vunpack.c.l.b16 %v6240
  %v7423 = vunpack.c.h.b16 %v6240
  %v7424 = vunpack.c.l.b16 %v6241
  %v7425 = vunpack.c.h.b16 %v6241
  %v7426 = vunpack.c.l.b16 %v6242
  %v7427 = vunpack.c.h.b16 %v6242
  %v7428 = vunpack.c.l.b16 %v6243
  %v7429 = vunpack.c.h.b16 %v6243
  %v7430 = vunpack.c.l.b16 %v6244
  %v7431 = vunpack.c.h.b16 %v6244
  %v7432 = vunpack.c.l.b16 %v6245
  %v7433 = vunpack.c.h.b16 %v6245
  %v7434 = vunpack.c.l.b16 %v6246
  %v7435 = vunpack.c.h.b16 %v6246
  %v7436 = vunpack.c.l.b16 %v6247
  %v7437 = vunpack.c.h.b16 %v6247
  %v7438 = vunpack.c.l.b16 %v6248
  %v7439 = vunpack.c.h.b16 %v6248
  %v7440 = vunpack.c.l.b16 %v6249
  %v7441 = vunpack.c.h.b16 %v6249
  %v7442 = vunpack.c.l.b16 %v6250
  %v7443 = vunpack.c.h.b16 %v6250
  %v7444 = vunpack.c.l.b16 %v6251
  %v7445 = vunpack.c.h.b16 %v6251
  %v7446 = vunpack.c.l.b16 %v6252
  %v7447 = vunpack.c.h.b16 %v6252
  %v7448 = vunpack.c.l.b16 %v6253
  %v7449 = vunpack.c.h.b16 %v6253
  %v7450 = vunpack.c.l.b16 %v6254
  %v7451 = vunpack.c.h.b16 %v6254
  %v7452 = vunpack.c.l.b16 %v6255
  %v7453 = vunpack.c.h.b16 %v6255
  %v7454 = vunpack.c.l.b16 %v6256
  %v7455 = vunpack.c.h.b16 %v6256
  %v7456 = vunpack.c.l.b16 %v6257
  %v7457 = vunpack.c.h.b16 %v6257
  %v7458 = vunpack.c.l.b16 %v6258
  %v7459 = vunpack.c.h.b16 %v6258
  %v7460 = vunpack.c.l.b16 %v6259
  %v7461 = vunpack.c.h.b16 %v6259
  %v7462 = vunpack.c.l.b16 %v6260
  %v7463 = vunpack.c.h.b16 %v6260
  %v7464 = vunpack.c.l.b16 %v6261
  %v7465 = vunpack.c.h.b16 %v6261
  %v7466 = vunpack.c.l.b16 %v6262
  %v7467 = vunpack.c.h.b16 %v6262
  %v7468 = vunpack.c.l.b16 %v6263
  %v7469 = vunpack.c.h.b16 %v6263
  %v7470 = vunpack.c.l.b16 %v6264
  %v7471 = vunpack.c.h.b16 %v6264
  %v7472 = vunpack.c.l.b16 %v6265
  %v7473 = vunpack.c.h.b16 %v6265
  %v7474 = vunpack.c.l.b16 %v6266
  %v7475 = vunpack.c.h.b16 %v6266
  %v7476 = vunpack.c.l.b16 %v6267
  %v7477 = vunpack.c.h.b16 %v6267
  %v7478 = vunpack.c.l.b16 %v6268
  %v7479 = vunpack.c.h.b16 %v6268
  %v7480 = vunpack.c.l.b16 %v6269
  %v7481 = vunpack.c.h.b16 %v6269
  %v7482 = vunpack.c.l.b16 %v6270
  %v7483 = vunpack.c.h.b16 %v6270
  %v7484 = vunpack.c.l.b16 %v6271
  %v7485 = vunpack.c.h.b16 %v6271
  %v7486 = vunpack.c.l.b16 %v6272
  %v7487 = vunpack.c.h.b16 %v6272
  %v7488 = vunpack.c.l.b16 %v6273
  %v7489 = vunpack.c.h.b16 %v6273
  %v7490 = vunpack.c.l.b16 %v6274
  %v7491 = vunpack.c.h.b16 %v6274
  %v7492 = vunpack.c.l.b16 %v6275
  %v7493 = vunpack.c.h.b16 %v6275
  %v7494 = vunpack.c.l.b16 %v6276
  %v7495 = vunpack.c.h.b16 %v6276
  %v7496 = vunpack.c.l.b16 %v6277
  %v7497 = vunpack.c.h.b16 %v6277
  %v7498 = vunpack.c.l.b16 %v6278
  %v7499 = vunpack.c.h.b16 %v6278
  %v7500 = vunpack.c.l.b16 %v6279
  %v7501 = vunpack.c.h.b16 %v6279
  %v7502 = vunpack.c.l.b16 %v6280
  %v7503 = vunpack.c.h.b16 %v6280
  %v7504 = vunpack.c.l.b16 %v6281
  %v7505 = vunpack.c.h.b16 %v6281
  %v7506 = vunpack.c.l.b16 %v6282
  %v7507 = vunpack.c.h.b16 %v6282
  %v7508 = vunpack.c.l.b16 %v6283
  %v7509 = vunpack.c.h.b16 %v6283
  %v7510 = vunpack.c.l.b16 %v6284
  %v7511 = vunpack.c.h.b16 %v6284
  %v7512 = vunpack.c.l.b16 %v6285
  %v7513 = vunpack.c.h.b16 %v6285
  %v7514 = vunpack.c.l.b16 %v6286
  %v7515 = vunpack.c.h.b16 %v6286
  %v7516 = vunpack.c.l.b16 %v6287
  %v7517 = vunpack.c.h.b16 %v6287
  %v7518 = vunpack.c.l.b16 %v6288
  %v7519 = vunpack.c.h.b16 %v6288
  %v7520 = vunpack.c.l.b16 %v6289
  %v7521 = vunpack.c.h.b16 %v6289
  %v7522 = vunpack.c.l.b16 %v6290
  %v7523 = vunpack.c.h.b16 %v6290
  %v7524 = vunpack.c.l.b16 %v6291
  %v7525 = vunpack.c.h.b16 %v6291
  %v7526 = vunpack.c.l.b16 %v6292
  %v7527 = vunpack.c.h.b16 %v6292
  %v7528 = vunpack.c.l.b16 %v6293
  %v7529 = vunpack.c.h.b16 %v6293
  %v7530 = vunpack.c.l.b16 %v6294
  %v7531 = vunpack.c.h.b16 %v6294
  %v7532 = vunpack.c.l.b16 %v6295
  %v7533 = vunpack.c.h.b16 %v6295
  %v7534 = vunpack.c.l.b16 %v6296
  %v7535 = vunpack.c.h.b16 %v6296
  %v7536 = vunpack.c.l.b16 %v6297
  %v7537 = vunpack.c.h.b16 %v6297
  %v7538 = vunpack.c.l.b16 %v6298
  %v7539 = vunpack.c.h.b16 %v6298
  %v7540 = vunpack.c.l.b16 %v6299
  %v7541 = vunpack.c.h.b16 %v6299
  %v7542 = vunpack.c.l.b16 %v6300
  %v7543 = vunpack.c.h.b16 %v6300
  %v7544 = vunpack.c.l.b16 %v6301
  %v7545 = vunpack.c.h.b16 %v6301
  %v7546 = vunpack.c.l.b16 %v6302
  %v7547 = vunpack.c.h.b16 %v6302
  %v7548 = vunpack.c.l.b16 %v6303
  %v7549 = vunpack.c.h.b16 %v6303
  %v7550 = vunpack.c.l.b16 %v6304
  %v7551 = vunpack.c.h.b16 %v6304
  %v7552 = vunpack.c.l.b16 %v6305
  %v7553 = vunpack.c.h.b16 %v6305
  %v7554 = vunpack.c.l.b16 %v6306
  %v7555 = vunpack.c.h.b16 %v6306
  %v7556 = vunpack.c.l.b16 %v6307
  %v7557 = vunpack.c.h.b16 %v6307
  %v7558 = vunpack.c.l.b16 %v6308
  %v7559 = vunpack.c.h.b16 %v6308
  %v7560 = vunpack.c.l.b16 %v6309
  %v7561 = vunpack.c.h.b16 %v6309
  %v7562 = vunpack.c.l.b16 %v6310
  %v7563 = vunpack.c.h.b16 %v6310
  %v7564 = vunpack.c.l.b16 %v6311
  %v7565 = vunpack.c.h.b16 %v6311
  %v7566 = vunpack.c.l.b16 %v6312
  %v7567 = vunpack.c.h.b16 %v6312
  %v7568 = vunpack.c.l.b16 %v6313
  %v7569 = vunpack.c.h.b16 %v6313
  %v7570 = vunpack.c.l.b16 %v6314
  %v7571 = vunpack.c.h.b16 %v6314
  %v7572 = vunpack.c.l.b16 %v6315
  %v7573 = vunpack.c.h.b16 %v6315
  %v7574 = vunpack.c.l.b16 %v6316
  %v7575 = vunpack.c.h.b16 %v6316
  %v7576 = vunpack.c.l.b16 %v6317
  %v7577 = vunpack.c.h.b16 %v6317
  %v7578 = vunpack.c.l.b16 %v6318
  %v7579 = vunpack.c.h.b16 %v6318
  %v7580 = vunpack.c.l.b16 %v6319
  %v7581 = vunpack.c.h.b16 %v6319
  %v7582 = vunpack.c.l.b16 %v6320
  %v7583 = vunpack.c.h.b16 %v6320
  %v7584 = vunpack.c.l.b16 %v6321
  %v7585 = vunpack.c.h.b16 %v6321
  %v7586 = vunpack.c.l.b16 %v6322
  %v7587 = vunpack.c.h.b16 %v6322
  %v7588 = vunpack.c.l.b16 %v6323
  %v7589 = vunpack.c.h.b16 %v6323
  %v7590 = vunpack.c.l.b16 %v6324
  %v7591 = vunpack.c.h.b16 %v6324
  %v7592 = vunpack.c.l.b16 %v6325
  %v7593 = vunpack.c.h.b16 %v6325
  %v7594 = vunpack.c.l.b16 %v6326
  %v7595 = vunpack.c.h.b16 %v6326
  %v7596 = vunpack.c.l.b16 %v6327
  %v7597 = vunpack.c.h.b16 %v6327
  %v7598 = vunpack.c.l.b16 %v6328
  %v7599 = vunpack.c.h.b16 %v6328
  %v7600 = vunpack.c.l.b16 %v6329
  %v7601 = vunpack.c.h.b16 %v6329
  %v7602 = vunpack.c.l.b16 %v6330
  %v7603 = vunpack.c.h.b16 %v6330
  %v7604 = vunpack.c.l.b16 %v6331
  %v7605 = vunpack.c.h.b16 %v6331
  %v7606 = vunpack.c.l.b16 %v6332
  %v7607 = vunpack.c.h.b16 %v6332
  %v7608 = vunpack.c.l.b16 %v6333
  %v7609 = vunpack.c.h.b16 %v6333
  %v7610 = vunpack.c.l.b16 %v6334
  %v7611 = vunpack.c.h.b16 %v6334
  %v7612 = vunpack.c.l.b16 %v6335
  %v7613 = vunpack.c.h.b16 %v6335
  %v7614 = vunpack.c.l.b16 %v6336
  %v7615 = vunpack.c.h.b16 %v6336
  %v7616 = vunpack.c.l.b16 %v6337
  %v7617 = vunpack.c.h.b16 %v6337
  %v7618 = vunpack.c.l.b16 %v6338
  %v7619 = vunpack.c.h.b16 %v6338
  %v7620 = vunpack.c.l.b16 %v6339
  %v7621 = vunpack.c.h.b16 %v6339
  %v7622 = vunpack.c.l.b16 %v6340
  %v7623 = vunpack.c.h.b16 %v6340
  %v7624 = vunpack.c.l.b16 %v6341
  %v7625 = vunpack.c.h.b16 %v6341
  %v7626 = vunpack.c.l.b16 %v6342
  %v7627 = vunpack.c.h.b16 %v6342
  %v7628 = vunpack.c.l.b16 %v6343
  %v7629 = vunpack.c.h.b16 %v6343
  %v7630 = vunpack.c.l.b16 %v6344
  %v7631 = vunpack.c.h.b16 %v6344
  %v7632 = vunpack.c.l.b16 %v6345
  %v7633 = vunpack.c.h.b16 %v6345
  %v7634 = vunpack.c.l.b16 %v6346
  %v7635 = vunpack.c.h.b16 %v6346
  %v7636 = vunpack.c.l.b16 %v6347
  %v7637 = vunpack.c.h.b16 %v6347
  %v7638 = vunpack.c.l.b16 %v6348
  %v7639 = vunpack.c.h.b16 %v6348
  %v7640 = vunpack.c.l.b16 %v6349
  %v7641 = vunpack.c.h.b16 %v6349
  %v7642 = vunpack.c.l.b16 %v6350
  %v7643 = vunpack.c.h.b16 %v6350
  %v7644 = vunpack.c.l.b16 %v6351
  %v7645 = vunpack.c.h.b16 %v6351
  %v7646 = vunpack.c.l.b16 %v6352
  %v7647 = vunpack.c.h.b16 %v6352
  %v7648 = vunpack.c.l.b16 %v6353
  %v7649 = vunpack.c.h.b16 %v6353
  %v7650 = vunpack.c.l.b16 %v6354
  %v7651 = vunpack.c.h.b16 %v6354
  %v7652 = vunpack.c.l.b16 %v6355
  %v7653 = vunpack.c.h.b16 %v6355
  %v7654 = vunpack.c.l.b16 %v6356
  %v7655 = vunpack.c.h.b16 %v6356
  %v7656 = vunpack.c.l.b16 %v6357
  %v7657 = vunpack.c.h.b16 %v6357
  %v7658 = vunpack.c.l.b16 %v6358
  %v7659 = vunpack.c.h.b16 %v6358
  %v7660 = vunpack.c.l.b16 %v6359
  %v7661 = vunpack.c.h.b16 %v6359
  %v7662 = vunpack.c.l.b16 %v6360
  %v7663 = vunpack.c.h.b16 %v6360
  %v7664 = vunpack.c.l.b16 %v6361
  %v7665 = vunpack.c.h.b16 %v6361
  %v7666 = vunpack.c.l.b16 %v6362
  %v7667 = vunpack.c.h.b16 %v6362
  %v7668 = vunpack.c.l.b16 %v6363
  %v7669 = vunpack.c.h.b16 %v6363
  %v7670 = vunpack.c.l.b16 %v6364
  %v7671 = vunpack.c.h.b16 %v6364
  %v7672 = vunpack.c.l.b16 %v6365
  %v7673 = vunpack.c.h.b16 %v6365
  %v7674 = vunpack.c.l.b16 %v6366
  %v7675 = vunpack.c.h.b16 %v6366
  %v7676 = vunpack.c.l.b16 %v6367
  %v7677 = vunpack.c.h.b16 %v6367
  %v7678 = vunpack.c.l.b16 %v6368
  %v7679 = vunpack.c.h.b16 %v6368
  %v7680 = vunpack.c.l.b16 %v6369
  %v7681 = vunpack.c.h.b16 %v6369
  %v7682 = vunpack.c.l.b16 %v6370
  %v7683 = vunpack.c.h.b16 %v6370
  %v7684 = vunpack.c.l.b16 %v6371
  %v7685 = vunpack.c.h.b16 %v6371
  %v7686 = vunpack.c.l.b16 %v6372
  %v7687 = vunpack.c.h.b16 %v6372
  %v7688 = vunpack.c.l.b16 %v6373
  %v7689 = vunpack.c.h.b16 %v6373
  %v7690 = vunpack.c.l.b16 %v6374
  %v7691 = vunpack.c.h.b16 %v6374
  %v7692 = vunpack.c.l.b16 %v6375
  %v7693 = vunpack.c.h.b16 %v6375
  %v7694 = vunpack.c.l.b16 %v6376
  %v7695 = vunpack.c.h.b16 %v6376
  %v7696 = vunpack.c.l.b16 %v6377
  %v7697 = vunpack.c.h.b16 %v6377
  %v7698 = vunpack.c.l.b16 %v6378
  %v7699 = vunpack.c.h.b16 %v6378
  %v7700 = vunpack.c.l.b16 %v6379
  %v7701 = vunpack.c.h.b16 %v6379
  %v7702 = vunpack.c.l.b16 %v6380
  %v7703 = vunpack.c.h.b16 %v6380
  %v7704 = vunpack.c.l.b16 %v6381
  %v7705 = vunpack.c.h.b16 %v6381
  %v7706 = vunpack.c.l.b16 %v6382
  %v7707 = vunpack.c.h.b16 %v6382
  %v7708 = vunpack.c.l.b16 %v6383
  %v7709 = vunpack.c.h.b16 %v6383
  %v7710 = vunpack.c.l.b16 %v6384
  %v7711 = vunpack.c.h.b16 %v6384
  %v7712 = vunpack.c.l.b16 %v6385
  %v7713 = vunpack.c.h.b16 %v6385
  %v7714 = vunpack.c.l.b16 %v6386
  %v7715 = vunpack.c.h.b16 %v6386
  %v7716 = vunpack.c.l.b16 %v6387
  %v7717 = vunpack.c.h.b16 %v6387
  %v7718 = vunpack.c.l.b16 %v6388
  %v7719 = vunpack.c.h.b16 %v6388
  %v7720 = vunpack.c.l.b16 %v6389
  %v7721 = vunpack.c.h.b16 %v6389
  %v7722 = vunpack.c.l.b16 %v6390
  %v7723 = vunpack.c.h.b16 %v6390
  %v7724 = vunpack.c.l.b16 %v6391
  %v7725 = vunpack.c.h.b16 %v6391
  %v7726 = vunpack.c.l.b16 %v6392
  %v7727 = vunpack.c.h.b16 %v6392
  %v7728 = vunpack.c.l.b16 %v6393
  %v7729 = vunpack.c.h.b16 %v6393
  %v7730 = vunpack.c.l.b16 %v6394
  %v7731 = vunpack.c.h.b16 %v6394
  %v7732 = vunpack.c.l.b16 %v6395
  %v7733 = vunpack.c.h.b16 %v6395
  %v7734 = vunpack.c.l.b16 %v6396
  %v7735 = vunpack.c.h.b16 %v6396
  %v7736 = vunpack.c.l.b16 %v6397
  %v7737 = vunpack.c.h.b16 %v6397
  %v7738 = vunpack.c.l.b16 %v6398
  %v7739 = vunpack.c.h.b16 %v6398
  %v7740 = vunpack.c.l.b16 %v6399
  %v7741 = vunpack.c.h.b16 %v6399
  %v7742 = vunpack.c.l.b16 %v6400
  %v7743 = vunpack.c.h.b16 %v6400
  %v7744 = vunpack.c.l.b16 %v6401
  %v7745 = vunpack.c.h.b16 %v6401
  %v7746 = vunpack.c.l.b16 %v6402
  %v7747 = vunpack.c.h.b16 %v6402
  %v7748 = vunpack.c.l.b16 %v6403
  %v7749 = vunpack.c.h.b16 %v6403
  %v7750 = vunpack.c.l.b16 %v6404
  %v7751 = vunpack.c.h.b16 %v6404
  %v7752 = vunpack.c.l.b16 %v6405
  %v7753 = vunpack.c.h.b16 %v6405
  %v7754 = vunpack.c.l.b16 %v6406
  %v7755 = vunpack.c.h.b16 %v6406
  %v7756 = vunpack.c.l.b16 %v6407
  %v7757 = vunpack.c.h.b16 %v6407
  %v7758 = vunpack.c.l.b16 %v6408
  %v7759 = vunpack.c.h.b16 %v6408
  %v7760 = vunpack.c.l.b16 %v6409
  %v7761 = vunpack.c.h.b16 %v6409
  %v7762 = vunpack.c.l.b16 %v6410
  %v7763 = vunpack.c.h.b16 %v6410
  %v7764 = vunpack.c.l.b16 %v6411
  %v7765 = vunpack.c.h.b16 %v6411
  %v7766 = vunpack.c.l.b16 %v6412
  %v7767 = vunpack.c.h.b16 %v6412
  %v7768 = vunpack.c.l.b16 %v6413
  %v7769 = vunpack.c.h.b16 %v6413
  %v7770 = vunpack.c.l.b16 %v6414
  %v7771 = vunpack.c.h.b16 %v6414
  %v7772 = vunpack.c.l.b16 %v6415
  %v7773 = vunpack.c.h.b16 %v6415
  %v7774 = vunpack.c.l.b16 %v6416
  %v7775 = vunpack.c.h.b16 %v6416
  %v7776 = vunpack.c.l.b16 %v6417
  %v7777 = vunpack.c.h.b16 %v6417
  %v7778 = vunpack.c.l.b16 %v6418
  %v7779 = vunpack.c.h.b16 %v6418
  %v7780 = vunpack.c.l.b16 %v6419
  %v7781 = vunpack.c.h.b16 %v6419
  %v7782 = vunpack.c.l.b16 %v6420
  %v7783 = vunpack.c.h.b16 %v6420
  %v7784 = vunpack.c.l.b16 %v6421
  %v7785 = vunpack.c.h.b16 %v6421
  %v7786 = vunpack.c.l.b16 %v6422
  %v7787 = vunpack.c.h.b16 %v6422
  %v7788 = vunpack.c.l.b16 %v6423
  %v7789 = vunpack.c.h.b16 %v6423
  %v7790 = vunpack.c.l.b16 %v6424
  %v7791 = vunpack.c.h.b16 %v6424
  %v7792 = vunpack.c.l.b16 %v6425
  %v7793 = vunpack.c.h.b16 %v6425
  %v7794 = vunpack.c.l.b16 %v6426
  %v7795 = vunpack.c.h.b16 %v6426
  %v7796 = vunpack.c.l.b16 %v6427
  %v7797 = vunpack.c.h.b16 %v6427
  %v7798 = vunpack.c.l.b16 %v6428
  %v7799 = vunpack.c.h.b16 %v6428
  %v7800 = vunpack.c.l.b16 %v6429
  %v7801 = vunpack.c.h.b16 %v6429
  %v7802 = vunpack.c.l.b16 %v6430
  %v7803 = vunpack.c.h.b16 %v6430
  %v7804 = vunpack.c.l.b16 %v6431
  %v7805 = vunpack.c.h.b16 %v6431
  %v7806 = vunpack.c.l.b16 %v6432
  %v7807 = vunpack.c.h.b16 %v6432
  %v7808 = vunpack.c.l.b16 %v6433
  %v7809 = vunpack.c.h.b16 %v6433
  %v7810 = vunpack.c.l.b16 %v6434
  %v7811 = vunpack.c.h.b16 %v6434
  %v7812 = vunpack.c.l.b16 %v6435
  %v7813 = vunpack.c.h.b16 %v6435
  %v7814 = vunpack.c.l.b16 %v6436
  %v7815 = vunpack.c.h.b16 %v6436
  %v7816 = vunpack.c.l.b16 %v6437
  %v7817 = vunpack.c.h.b16 %v6437
  %v7818 = vunpack.c.l.b16 %v6438
  %v7819 = vunpack.c.h.b16 %v6438
  %v7820 = vunpack.c.l.b16 %v6439
  %v7821 = vunpack.c.h.b16 %v6439
  %v7822 = vunpack.c.l.b16 %v6440
  %v7823 = vunpack.c.h.b16 %v6440
  %v7824 = vunpack.c.l.b16 %v6441
  %v7825 = vunpack.c.h.b16 %v6441
  %v7826 = vunpack.c.l.b16 %v6442
  %v7827 = vunpack.c.h.b16 %v6442
  %v7828 = vunpack.c.l.b16 %v6443
  %v7829 = vunpack.c.h.b16 %v6443
  %v7830 = vunpack.c.l.b16 %v6444
  %v7831 = vunpack.c.h.b16 %v6444
  %v7832 = vunpack.c.l.b16 %v6445
  %v7833 = vunpack.c.h.b16 %v6445
  %v7834 = vunpack.c.l.b16 %v6446
  %v7835 = vunpack.c.h.b16 %v6446
  %v7836 = vunpack.c.l.b16 %v6447
  %v7837 = vunpack.c.h.b16 %v6447
  %v7838 = vunpack.c.l.b16 %v6448
  %v7839 = vunpack.c.h.b16 %v6448
  %v7840 = vunpack.c.l.b16 %v6449
  %v7841 = vunpack.c.h.b16 %v6449
  %v7842 = vunpack.c.l.b16 %v6450
  %v7843 = vunpack.c.h.b16 %v6450
  %v7844 = vunpack.c.l.b16 %v6451
  %v7845 = vunpack.c.h.b16 %v6451
  %v7846 = vunpack.c.l.b16 %v6452
  %v7847 = vunpack.c.h.b16 %v6452
  %v7848 = vunpack.c.l.b16 %v6453
  %v7849 = vunpack.c.h.b16 %v6453
  %v7850 = vunpack.c.l.b16 %v6454
  %v7851 = vunpack.c.h.b16 %v6454
  %v7852 = vunpack.c.l.b16 %v6455
  %v7853 = vunpack.c.h.b16 %v6455
  %v7854 = vunpack.c.l.b16 %v6456
  %v7855 = vunpack.c.h.b16 %v6456
  %v7856 = vunpack.c.l.b16 %v6457
  %v7857 = vunpack.c.h.b16 %v6457
  %v7858 = vunpack.c.l.b16 %v6458
  %v7859 = vunpack.c.h.b16 %v6458
  %v7860 = vunpack.c.l.b16 %v6459
  %v7861 = vunpack.c.h.b16 %v6459
  %v7862 = vunpack.c.l.b16 %v6460
  %v7863 = vunpack.c.h.b16 %v6460
  %v7864 = vunpack.c.l.b16 %v6461
  %v7865 = vunpack.c.h.b16 %v6461
  %v7866 = vunpack.c.l.b16 %v6462
  %v7867 = vunpack.c.h.b16 %v6462
  %v7868 = vunpack.c.l.b16 %v6463
  %v7869 = vunpack.c.h.b16 %v6463
  %v7870 = vunpack.c.l.b16 %v6464
  %v7871 = vunpack.c.h.b16 %v6464
  %v7872 = vunpack.c.l.b16 %v6465
  %v7873 = vunpack.c.h.b16 %v6465
  %v7874 = vunpack.c.l.b16 %v6466
  %v7875 = vunpack.c.h.b16 %v6466
  %v7876 = vunpack.c.l.b16 %v6467
  %v7877 = vunpack.c.h.b16 %v6467
  %v7878 = vunpack.c.l.b16 %v6468
  %v7879 = vunpack.c.h.b16 %v6468
  %v7880 = vunpack.c.l.b16 %v6469
  %v7881 = vunpack.c.h.b16 %v6469
  %v7882 = vunpack.c.l.b16 %v6470
  %v7883 = vunpack.c.h.b16 %v6470
  %v7884 = vunpack.c.l.b16 %v6471
  %v7885 = vunpack.c.h.b16 %v6471
  %v7886 = vunpack.c.l.b16 %v6472
  %v7887 = vunpack.c.h.b16 %v6472
  %v7888 = vunpack.c.l.b16 %v6473
  %v7889 = vunpack.c.h.b16 %v6473
  %v7890 = vunpack.c.l.b16 %v6474
  %v7891 = vunpack.c.h.b16 %v6474
  %v7892 = vunpack.c.l.b16 %v6475
  %v7893 = vunpack.c.h.b16 %v6475
  %v7894 = vunpack.c.l.b16 %v6476
  %v7895 = vunpack.c.h.b16 %v6476
  %v7896 = vunpack.c.l.b16 %v6477
  %v7897 = vunpack.c.h.b16 %v6477
  %v7898 = vunpack.c.l.b16 %v6478
  %v7899 = vunpack.c.h.b16 %v6478
  %v7900 = vunpack.c.l.b16 %v6479
  %v7901 = vunpack.c.h.b16 %v6479
  %v7902 = vunpack.c.l.b16 %v6480
  %v7903 = vunpack.c.h.b16 %v6480
  %v7904 = vunpack.c.l.b16 %v6481
  %v7905 = vunpack.c.h.b16 %v6481
  %v7906 = vunpack.c.l.b16 %v6482
  %v7907 = vunpack.c.h.b16 %v6482
  %v7908 = vunpack.c.l.b16 %v6483
  %v7909 = vunpack.c.h.b16 %v6483
  %v7910 = vunpack.c.l.b16 %v6484
  %v7911 = vunpack.c.h.b16 %v6484
  %v7912 = vunpack.c.l.b16 %v6485
  %v7913 = vunpack.c.h.b16 %v6485
  %v7914 = vunpack.c.l.b16 %v6486
  %v7915 = vunpack.c.h.b16 %v6486
  %v7916 = vunpack.c.l.b16 %v6487
  %v7917 = vunpack.c.h.b16 %v6487
  %v7918 = vunpack.c.l.b16 %v6488
  %v7919 = vunpack.c.h.b16 %v6488
  %v7920 = vunpack.c.l.b16 %v6489
  %v7921 = vunpack.c.h.b16 %v6489
  %v7922 = vunpack.c.l.b16 %v6490
  %v7923 = vunpack.c.h.b16 %v6490
  %v7924 = vunpack.c.l.b16 %v6491
  %v7925 = vunpack.c.h.b16 %v6491
  %v7926 = vunpack.c.l.b16 %v6492
  %v7927 = vunpack.c.h.b16 %v6492
  %v7928 = vunpack.c.l.b16 %v6493
  %v7929 = vunpack.c.h.b16 %v6493
  %v7930 = vunpack.c.l.b16 %v6494
  %v7931 = vunpack.c.h.b16 %v6494
  %v7932 = vunpack.c.l.b16 %v6495
  %v7933 = vunpack.c.h.b16 %v6495
  %v7934 = vunpack.c.l.b16 %v6496
  %v7935 = vunpack.c.h.b16 %v6496
  %v7936 = vunpack.c.l.b16 %v6497
  %v7937 = vunpack.c.h.b16 %v6497
  %v7938 = vunpack.c.l.b16 %v6498
  %v7939 = vunpack.c.h.b16 %v6498
  %v7940 = vunpack.c.l.b16 %v6499
  %v7941 = vunpack.c.h.b16 %v6499
  %v7942 = vunpack.c.l.b16 %v6500
  %v7943 = vunpack.c.h.b16 %v6500
  %v7944 = vunpack.c.l.b16 %v6501
  %v7945 = vunpack.c.h.b16 %v6501
  %v7946 = vunpack.c.l.b16 %v6502
  %v7947 = vunpack.c.h.b16 %v6502
  %v7948 = vunpack.c.l.b16 %v6503
  %v7949 = vunpack.c.h.b16 %v6503
  %v7950 = vunpack.c.l.b16 %v6504
  %v7951 = vunpack.c.h.b16 %v6504
  %v7952 = vunpack.c.l.b16 %v6505
  %v7953 = vunpack.c.h.b16 %v6505
  %v7954 = vunpack.c.l.b16 %v6506
  %v7955 = vunpack.c.h.b16 %v6506
  %v7956 = vunpack.c.l.b16 %v6507
  %v7957 = vunpack.c.h.b16 %v6507
  %v7958 = vunpack.c.l.b16 %v6508
  %v7959 = vunpack.c.h.b16 %v6508
  %v7960 = vunpack.c.l.b16 %v6509
  %v7961 = vunpack.c.h.b16 %v6509
  %v7962 = vunpack.c.l.b16 %v6510
  %v7963 = vunpack.c.h.b16 %v6510
  %v7964 = vunpack.c.l.b16 %v6511
  %v7965 = vunpack.c.h.b16 %v6511
  %v7966 = vunpack.c.l.b16 %v6512
  %v7967 = vunpack.c.h.b16 %v6512
  %v7968 = vunpack.c.l.b16 %v6513
  %v7969 = vunpack.c.h.b16 %v6513
  %v7970 = vunpack.c.l.b16 %v6514
  %v7971 = vunpack.c.h.b16 %v6514
  %v7972 = vunpack.c.l.b16 %v6515
  %v7973 = vunpack.c.h.b16 %v6515
  %v7974 = vunpack.c.l.b16 %v6516
  %v7975 = vunpack.c.h.b16 %v6516
  %v7976 = vunpack.c.l.b16 %v6517
  %v7977 = vunpack.c.h.b16 %v6517
  %v7978 = vpack.c.b16 %v7018, %v7010
  %v7979 = vpack.c.b16 %v7019, %v7011
  %v7980 = vpack.c.b16 %v7020, %v7012
  %v7981 = vpack.c.b16 %v7021, %v7013
  %v7982 = vpack.c.b16 %v7022, %v7014
  %v7983 = vpack.c.b16 %v7023, %v7015
  %v7984 = vpack.c.b16 %v7024, %v7016
  %v7985 = vpack.c.b16 %v7025, %v7017
  %v7986 = vpack.c.b16 %v7034, %v7026
  %v7987 = vpack.c.b16 %v7035, %v7027
  %v7988 = vpack.c.b16 %v7036, %v7028
  %v7989 = vpack.c.b16 %v7037, %v7029
  %v7990 = vpack.c.b16 %v7038, %v7030
  %v7991 = vpack.c.b16 %v7039, %v7031
  %v7992 = vpack.c.b16 %v7040, %v7032
  %v7993 = vpack.c.b16 %v7041, %v7033
  %v7994 = vpack.c.b16 %v7050, %v7042
  %v7995 = vpack.c.b16 %v7051, %v7043
  %v7996 = vpack.c.b16 %v7052, %v7044
  %v7997 = vpack.c.b16 %v7053, %v7045
  %v7998 = vpack.c.b16 %v7054, %v7046
  %v7999 = vpack.c.b16 %v7055, %v7047
  %v8000 = vpack.c.b16 %v7056, %v7048
  %v8001 = vpack.c.b16 %v7057, %v7049
  %v8002 = vpack.c.b16 %v7066, %v7058
  %v8003 = vpack.c.b16 %v7067, %v7059
  %v8004 = vpack.c.b16 %v7068, %v7060
  %v8005 = vpack.c.b16 %v7069, %v7061
  %v8006 = vpack.c.b16 %v7070, %v7062
  %v8007 = vpack.c.b16 %v7071, %v7063
  %v8008 = vpack.c.b16 %v7072, %v7064
  %v8009 = vpack.c.b16 %v7073, %v7065
  %v8010 = vpack.c.b16 %v7082, %v7074
  %v8011 = vpack.c.b16 %v7083, %v7075
  %v8012 = vpack.c.b16 %v7084, %v7076
  %v8013 = vpack.c.b16 %v7085, %v7077
  %v8014 = vpack.c.b16 %v7086, %v7078
  %v8015 = vpack.c.b16 %v7087, %v7079
  %v8016 = vpack.c.b16 %v7088, %v7080
  %v8017 = vpack.c.b16 %v7089, %v7081
  %v8018 = vpack.c.b16 %v7098, %v7090
  %v8019 = vpack.c.b16 %v7099, %v7091
  %v8020 = vpack.c.b16 %v7100, %v7092
  %v8021 = vpack.c.b16 %v7101, %v7093
  %v8022 = vpack.c.b16 %v7102, %v7094
  %v8023 = vpack.c.b16 %v7103, %v7095
  %v8024 = vpack.c.b16 %v7104, %v7096
  %v8025 = vpack.c.b16 %v7105, %v7097
  %v8026 = vpack.c.b16 %v7114, %v7106
  %v8027 = vpack.c.b16 %v7115, %v7107
  %v8028 = vpack.c.b16 %v7116, %v7108
  %v8029 = vpack.c.b16 %v7117, %v7109
  %v8030 = vpack.c.b16 %v7118, %v7110
  %v8031 = vpack.c.b16 %v7119, %v7111
  %v8032 = vpack.c.b16 %v7120, %v7112
  %v8033 = vpack.c.b16 %v7121, %v7113
  %v8034 = vpack.c.b16 %v7130, %v7122
  %v8035 = vpack.c.b16 %v7131, %v7123
  %v8036 = vpack.c.b16 %v7132, %v7124
  %v8037 = vpack.c.b16 %v7133, %v7125
  %v8038 = vpack.c.b16 %v7134, %v7126
  %v8039 = vpack.c.b16 %v7135, %v7127
  %v8040 = vpack.c.b16 %v7136, %v7128
  %v8041 = vpack.c.b16 %v7137, %v7129
  %v8042 = vpack.c.b16 %v7146, %v7138
  %v8043 = vpack.c.b16 %v7147, %v7139
  %v8044 = vpack.c.b16 %v7148, %v7140
  %v8045 = vpack.c.b16 %v7149, %v7141
  %v8046 = vpack.c.b16 %v7150, %v7142
  %v8047 = vpack.c.b16 %v7151, %v7143
  %v8048 = vpack.c.b16 %v7152, %v7144
  %v8049 = vpack.c.b16 %v7153, %v7145
  %v8050 = vpack.c.b16 %v7162, %v7154
  %v8051 = vpack.c.b16 %v7163, %v7155
  %v8052 = vpack.c.b16 %v7164, %v7156
  %v8053 = vpack.c.b16 %v7165, %v7157
  %v8054 = vpack.c.b16 %v7166, %v7158
  %v8055 = vpack.c.b16 %v7167, %v7159
  %v8056 = vpack.c.b16 %v7168, %v7160
  %v8057 = vpack.c.b16 %v7169, %v7161
  %v8058 = vpack.c.b16 %v7178, %v7170
  %v8059 = vpack.c.b16 %v7179, %v7171
  %v8060 = vpack.c.b16 %v7180, %v7172
  %v8061 = vpack.c.b16 %v7181, %v7173
  %v8062 = vpack.c.b16 %v7182, %v7174
  %v8063 = vpack.c.b16 %v7183, %v7175
  %v8064 = vpack.c.b16 %v7184, %v7176
  %v8065 = vpack.c.b16 %v7185, %v7177
  %v8066 = vpack.c.b16 %v7194, %v7186
  %v8067 = vpack.c.b16 %v7195, %v7187
  %v8068 = vpack.c.b16 %v7196, %v7188
  %v8069 = vpack.c.b16 %v7197, %v7189
  %v8070 = vpack.c.b16 %v7198, %v7190
  %v8071 = vpack.c.b16 %v7199, %v7191
  %v8072 = vpack.c.b16 %v7200, %v7192
  %v8073 = vpack.c.b16 %v7201, %v7193
  %v8074 = vpack.c.b16 %v7210, %v7202
  %v8075 = vpack.c.b16 %v7211, %v7203
  %v8076 = vpack.c.b16 %v7212, %v7204
  %v8077 = vpack.c.b16 %v7213, %v7205
  %v8078 = vpack.c.b16 %v7214, %v7206
  %v8079 = vpack.c.b16 %v7215, %v7207
  %v8080 = vpack.c.b16 %v7216, %v7208
  %v8081 = vpack.c.b16 %v7217, %v7209
  %v8082 = vpack.c.b16 %v7226, %v7218
  %v8083 = vpack.c.b16 %v7227, %v7219
  %v8084 = vpack.c.b16 %v7228, %v7220
  %v8085 = vpack.c.b16 %v7229, %v7221
  %v8086 = vpack.c.b16 %v7230, %v7222
  %v8087 = vpack.c.b16 %v7231, %v7223
  %v8088 = vpack.c.b16 %v7232, %v7224
  %v8089 = vpack.c.b16 %v7233, %v7225
  %v8090 = vpack.c.b16 %v7242, %v7234
  %v8091 = vpack.c.b16 %v7243, %v7235
  %v8092 = vpack.c.b16 %v7244, %v7236
  %v8093 = vpack.c.b16 %v7245, %v7237
  %v8094 = vpack.c.b16 %v7246, %v7238
  %v8095 = vpack.c.b16 %v7247, %v7239
  %v8096 = vpack.c.b16 %v7248, %v7240
  %v8097 = vpack.c.b16 %v7249, %v7241
  %v8098 = vpack.c.b16 %v7258, %v7250
  %v8099 = vpack.c.b16 %v7259, %v7251
  %v8100 = vpack.c.b16 %v7260, %v7252
  %v8101 = vpack.c.b16 %v7261, %v7253
  %v8102 = vpack.c.b16 %v7262, %v7254
  %v8103 = vpack.c.b16 %v7263, %v7255
  %v8104 = vpack.c.b16 %v7264, %v7256
  %v8105 = vpack.c.b16 %v7265, %v7257
  %v8106 = vpack.c.b16 %v7274, %v7266
  %v8107 = vpack.c.b16 %v7275, %v7267
  %v8108 = vpack.c.b16 %v7276, %v7268
  %v8109 = vpack.c.b16 %v7277, %v7269
  %v8110 = vpack.c.b16 %v7278, %v7270
  %v8111 = vpack.c.b16 %v7279, %v7271
  %v8112 = vpack.c.b16 %v7280, %v7272
  %v8113 = vpack.c.b16 %v7281, %v7273
  %v8114 = vpack.c.b16 %v7290, %v7282
  %v8115 = vpack.c.b16 %v7291, %v7283
  %v8116 = vpack.c.b16 %v7292, %v7284
  %v8117 = vpack.c.b16 %v7293, %v7285
  %v8118 = vpack.c.b16 %v7294, %v7286
  %v8119 = vpack.c.b16 %v7295, %v7287
  %v8120 = vpack.c.b16 %v7296, %v7288
  %v8121 = vpack.c.b16 %v7297, %v7289
  %v8122 = vpack.c.b16 %v7306, %v7298
  %v8123 = vpack.c.b16 %v7307, %v7299
  %v8124 = vpack.c.b16 %v7308, %v7300
  %v8125 = vpack.c.b16 %v7309, %v7301
  %v8126 = vpack.c.b16 %v7310, %v7302
  %v8127 = vpack.c.b16 %v7311, %v7303
  %v8128 = vpack.c.b16 %v7312, %v7304
  %v8129 = vpack.c.b16 %v7313, %v7305
  %v8130 = vpack.c.b16 %v7322, %v7314
  %v8131 = vpack.c.b16 %v7323, %v7315
  %v8132 = vpack.c.b16 %v7324, %v7316
  %v8133 = vpack.c.b16 %v7325, %v7317
  %v8134 = vpack.c.b16 %v7326, %v7318
  %v8135 = vpack.c.b16 %v7327, %v7319
  %v8136 = vpack.c.b16 %v7328, %v7320
  %v8137 = vpack.c.b16 %v7329, %v7321
  %v8138 = vpack.c.b16 %v7338, %v7330
  %v8139 = vpack.c.b16 %v7339, %v7331
  %v8140 = vpack.c.b16 %v7340, %v7332
  %v8141 = vpack.c.b16 %v7341, %v7333
  %v8142 = vpack.c.b16 %v7342, %v7334
  %v8143 = vpack.c.b16 %v7343, %v7335
  %v8144 = vpack.c.b16 %v7344, %v7336
  %v8145 = vpack.c.b16 %v7345, %v7337
  %v8146 = vpack.c.b16 %v7354, %v7346
  %v8147 = vpack.c.b16 %v7355, %v7347
  %v8148 = vpack.c.b16 %v7356, %v7348
  %v8149 = vpack.c.b16 %v7357, %v7349
  %v8150 = vpack.c.b16 %v7358, %v7350
  %v8151 = vpack.c.b16 %v7359, %v7351
  %v8152 = vpack.c.b16 %v7360, %v7352
  %v8153 = vpack.c.b16 %v7361, %v7353
  %v8154 = vpack.c.b16 %v7370, %v7362
  %v8155 = vpack.c.b16 %v7371, %v7363
  %v8156 = vpack.c.b16 %v7372, %v7364
  %v8157 = vpack.c.b16 %v7373, %v7365
  %v8158 = vpack.c.b16 %v7374, %v7366
  %v8159 = vpack.c.b16 %v7375, %v7367
  %v8160 = vpack.c.b16 %v7376, %v7368
  %v8161 = vpack.c.b16 %v7377, %v7369
  %v8162 = vpack.c.b16 %v7386, %v7378
  %v8163 = vpack.c.b16 %v7387, %v7379
  %v8164 = vpack.c.b16 %v7388, %v7380
  %v8165 = vpack.c.b16 %v7389, %v7381
  %v8166 = vpack.c.b16 %v7390, %v7382
  %v8167 = vpack.c.b16 %v7391, %v7383
  %v8168 = vpack.c.b16 %v7392, %v7384
  %v8169 = vpack.c.b16 %v7393, %v7385
  %v8170 = vpack.c.b16 %v7402, %v7394
  %v8171 = vpack.c.b16 %v7403, %v7395
  %v8172 = vpack.c.b16 %v7404, %v7396
  %v8173 = vpack.c.b16 %v7405, %v7397
  %v8174 = vpack.c.b16 %v7406, %v7398
  %v8175 = vpack.c.b16 %v7407, %v7399
  %v8176 = vpack.c.b16 %v7408, %v7400
  %v8177 = vpack.c.b16 %v7409, %v7401
  %v8178 = vpack.c.b16 %v7418, %v7410
  %v8179 = vpack.c.b16 %v7419, %v7411
  %v8180 = vpack.c.b16 %v7420, %v7412
  %v8181 = vpack.c.b16 %v7421, %v7413
  %v8182 = vpack.c.b16 %v7422, %v7414
  %v8183 = vpack.c.b16 %v7423, %v7415
  %v8184 = vpack.c.b16 %v7424, %v7416
  %v8185 = vpack.c.b16 %v7425, %v7417
  %v8186 = vpack.c.b16 %v7434, %v7426
  %v8187 = vpack.c.b16 %v7435, %v7427
  %v8188 = vpack.c.b16 %v7436, %v7428
  %v8189 = vpack.c.b16 %v7437, %v7429
  %v8190 = vpack.c.b16 %v7438, %v7430
  %v8191 = vpack.c.b16 %v7439, %v7431
  %v8192 = vpack.c.b16 %v7440, %v7432
  %v8193 = vpack.c.b16 %v7441, %v7433
  %v8194 = vpack.c.b16 %v7450, %v7442
  %v8195 = vpack.c.b16 %v7451, %v7443
  %v8196 = vpack.c.b16 %v7452, %v7444
  %v8197 = vpack.c.b16 %v7453, %v7445
  %v8198 = vpack.c.b16 %v7454, %v7446
  %v8199 = vpack.c.b16 %v7455, %v7447
  %v8200 = vpack.c.b16 %v7456, %v7448
  %v8201 = vpack.c.b16 %v7457, %v7449
  %v8202 = vpack.c.b16 %v7466, %v7458
  %v8203 = vpack.c.b16 %v7467, %v7459
  %v8204 = vpack.c.b16 %v7468, %v7460
  %v8205 = vpack.c.b16 %v7469, %v7461
  %v8206 = vpack.c.b16 %v7470, %v7462
  %v8207 = vpack.c.b16 %v7471, %v7463
  %v8208 = vpack.c.b16 %v7472, %v7464
  %v8209 = vpack.c.b16 %v7473, %v7465
  %v8210 = vpack.c.b16 %v7482, %v7474
  %v8211 = vpack.c.b16 %v7483, %v7475
  %v8212 = vpack.c.b16 %v7484, %v7476
  %v8213 = vpack.c.b16 %v7485, %v7477
  %v8214 = vpack.c.b16 %v7486, %v7478
  %v8215 = vpack.c.b16 %v7487, %v7479
  %v8216 = vpack.c.b16 %v7488, %v7480
  %v8217 = vpack.c.b16 %v7489, %v7481
  %v8218 = vpack.c.b16 %v7498, %v7490
  %v8219 = vpack.c.b16 %v7499, %v7491
  %v8220 = vpack.c.b16 %v7500, %v7492
  %v8221 = vpack.c.b16 %v7501, %v7493
  %v8222 = vpack.c.b16 %v7502, %v7494
  %v8223 = vpack.c.b16 %v7503, %v7495
  %v8224 = vpack.c.b16 %v7504, %v7496
  %v8225 = vpack.c.b16 %v7505, %v7497
  %v8226 = vpack.c.b16 %v7514, %v7506
  %v8227 = vpack.c.b16 %v7515, %v7507
  %v8228 = vpack.c.b16 %v7516, %v7508
  %v8229 = vpack.c.b16 %v7517, %v7509
  %v8230 = vpack.c.b16 %v7518, %v7510
  %v8231 = vpack.c.b16 %v7519, %v7511
  %v8232 = vpack.c.b16 %v7520, %v7512
  %v8233 = vpack.c.b16 %v7521, %v7513
  %v8234 = vpack.c.b16 %v7530, %v7522
  %v8235 = vpack.c.b16 %v7531, %v7523
  %v8236 = vpack.c.b16 %v7532, %v7524
  %v8237 = vpack.c.b16 %v7533, %v7525
  %v8238 = vpack.c.b16 %v7534, %v7526
  %v8239 = vpack.c.b16 %v7535, %v7527
  %v8240 = vpack.c.b16 %v7536, %v7528
  %v8241 = vpack.c.b16 %v7537, %v7529
  %v8242 = vpack.c.b16 %v7546, %v7538
  %v8243 = vpack.c.b16 %v7547, %v7539
  %v8244 = vpack.c.b16 %v7548, %v7540
  %v8245 = vpack.c.b16 %v7549, %v7541
  %v8246 = vpack.c.b16 %v7550, %v7542
  %v8247 = vpack.c.b16 %v7551, %v7543
  %v8248 = vpack.c.b16 %v7552, %v7544
  %v8249 = vpack.c.b16 %v7553, %v7545
  %v8250 = vpack.c.b16 %v7562, %v7554
  %v8251 = vpack.c.b16 %v7563, %v7555
  %v8252 = vpack.c.b16 %v7564, %v7556
  %v8253 = vpack.c.b16 %v7565, %v7557
  %v8254 = vpack.c.b16 %v7566, %v7558
  %v8255 = vpack.c.b16 %v7567, %v7559
  %v8256 = vpack.c.b16 %v7568, %v7560
  %v8257 = vpack.c.b16 %v7569, %v7561
  %v8258 = vpack.c.b16 %v7578, %v7570
  %v8259 = vpack.c.b16 %v7579, %v7571
  %v8260 = vpack.c.b16 %v7580, %v7572
  %v8261 = vpack.c.b16 %v7581, %v7573
  %v8262 = vpack.c.b16 %v7582, %v7574
  %v8263 = vpack.c.b16 %v7583, %v7575
  %v8264 = vpack.c.b16 %v7584, %v7576
  %v8265 = vpack.c.b16 %v7585, %v7577
  %v8266 = vpack.c.b16 %v7594, %v7586
  %v8267 = vpack.c.b16 %v7595, %v7587
  %v8268 = vpack.c.b16 %v7596, %v7588
  %v8269 = vpack.c.b16 %v7597, %v7589
  %v8270 = vpack.c.b16 %v7598, %v7590
  %v8271 = vpack.c.b16 %v7599, %v7591
  %v8272 = vpack.c.b16 %v7600, %v7592
  %v8273 = vpack.c.b16 %v7601, %v7593
  %v8274 = vpack.c.b16 %v7610, %v7602
  %v8275 = vpack.c.b16 %v7611, %v7603
  %v8276 = vpack.c.b16 %v7612, %v7604
  %v8277 = vpack.c.b16 %v7613, %v7605
  %v8278 = vpack.c.b16 %v7614, %v7606
  %v8279 = vpack.c.b16 %v7615, %v7607
  %v8280 = vpack.c.b16 %v7616, %v7608
  %v8281 = vpack.c.b16 %v7617, %v7609
  %v8282 = vpack.c.b16 %v7626, %v7618
  %v8283 = vpack.c.b16 %v7627, %v7619
  %v8284 = vpack.c.b16 %v7628, %v7620
  %v8285 = vpack.c.b16 %v7629, %v7621
  %v8286 = vpack.c.b16 %v7630, %v7622
  %v8287 = vpack.c.b16 %v7631, %v7623
  %v8288 = vpack.c.b16 %v7632, %v7624
  %v8289 = vpack.c.b16 %v7633, %v7625
  %v8290 = vpack.c.b16 %v7642, %v7634
  %v8291 = vpack.c.b16 %v7643, %v7635
  %v8292 = vpack.c.b16 %v7644, %v7636
  %v8293 = vpack.c.b16 %v7645, %v7637
  %v8294 = vpack.c.b16 %v7646, %v7638
  %v8295 = vpack.c.b16 %v7647, %v7639
  %v8296 = vpack.c.b16 %v7648, %v7640
  %v8297 = vpack.c.b16 %v7649, %v7641
  %v8298 = vpack.c.b16 %v7658, %v7650
  %v8299 = vpack.c.b16 %v7659, %v7651
  %v8300 = vpack.c.b16 %v7660, %v7652
  %v8301 = vpack.c.b16 %v7661, %v7653
  %v8302 = vpack.c.b16 %v7662, %v7654
  %v8303 = vpack.c.b16 %v7663, %v7655
  %v8304 = vpack.c.b16 %v7664, %v7656
  %v8305 = vpack.c.b16 %v7665, %v7657
  %v8306 = vpack.c.b16 %v7674, %v7666
  %v8307 = vpack.c.b16 %v7675, %v7667
  %v8308 = vpack.c.b16 %v7676, %v7668
  %v8309 = vpack.c.b16 %v7677, %v7669
  %v8310 = vpack.c.b16 %v7678, %v7670
  %v8311 = vpack.c.b16 %v7679, %v7671
  %v8312 = vpack.c.b16 %v7680, %v7672
  %v8313 = vpack.c.b16 %v7681, %v7673
  %v8314 = vpack.c.b16 %v7690, %v7682
  %v8315 = vpack.c.b16 %v7691, %v7683
  %v8316 = vpack.c.b16 %v7692, %v7684
  %v8317 = vpack.c.b16 %v7693, %v7685
  %v8318 = vpack.c.b16 %v7694, %v7686
  %v8319 = vpack.c.b16 %v7695, %v7687
  %v8320 = vpack.c.b16 %v7696, %v7688
  %v8321 = vpack.c.b16 %v7697, %v7689
  %v8322 = vpack.c.b16 %v7706, %v7698
  %v8323 = vpack.c.b16 %v7707, %v7699
  %v8324 = vpack.c.b16 %v7708, %v7700
  %v8325 = vpack.c.b16 %v7709, %v7701
  %v8326 = vpack.c.b16 %v7710, %v7702
  %v8327 = vpack.c.b16 %v7711, %v7703
  %v8328 = vpack.c.b16 %v7712, %v7704
  %v8329 = vpack.c.b16 %v7713, %v7705
  %v8330 = vpack.c.b16 %v7722, %v7714
  %v8331 = vpack.c.b16 %v7723, %v7715
  %v8332 = vpack.c.b16 %v7724, %v7716
  %v8333 = vpack.c.b16 %v7725, %v7717
  %v8334 = vpack.c.b16 %v7726, %v7718
  %v8335 = vpack.c.b16 %v7727, %v7719
  %v8336 = vpack.c.b16 %v7728, %v7720
  %v8337 = vpack.c.b16 %v7729, %v7721
  %v8338 = vpack.c.b16 %v7738, %v7730
  %v8339 = vpack.c.b16 %v7739, %v7731
  %v8340 = vpack.c.b16 %v7740, %v7732
  %v8341 = vpack.c.b16 %v7741, %v7733
  %v8342 = vpack.c.b16 %v7742, %v7734
  %v8343 = vpack.c.b16 %v7743, %v7735
  %v8344 = vpack.c.b16 %v7744, %v7736
  %v8345 = vpack.c.b16 %v7745, %v7737
  %v8346 = vpack.c.b16 %v7754, %v7746
  %v8347 = vpack.c.b16 %v7755, %v7747
  %v8348 = vpack.c.b16 %v7756, %v7748
  %v8349 = vpack.c.b16 %v7757, %v7749
  %v8350 = vpack.c.b16 %v7758, %v7750
  %v8351 = vpack.c.b16 %v7759, %v7751
  %v8352 = vpack.c.b16 %v7760, %v7752
  %v8353 = vpack.c.b16 %v7761, %v7753
  %v8354 = vpack.c.b16 %v7770, %v7762
  %v8355 = vpack.c.b16 %v7771, %v7763
  %v8356 = vpack.c.b16 %v7772, %v7764
  %v8357 = vpack.c.b16 %v7773, %v7765
  %v8358 = vpack.c.b16 %v7774, %v7766
  %v8359 = vpack.c.b16 %v7775, %v7767
  %v8360 = vpack.c.b16 %v7776, %v7768
  %v8361 = vpack.c.b16 %v7777, %v7769
  %v8362 = vpack.c.b16 %v7786, %v7778
  %v8363 = vpack.c.b16 %v7787, %v7779
  %v8364 = vpack.c.b16 %v7788, %v7780
  %v8365 = vpack.c.b16 %v7789, %v7781
  %v8366 = vpack.c.b16 %v7790, %v7782
  %v8367 = vpack.c.b16 %v7791, %v7783
  %v8368 = vpack.c.b16 %v7792, %v7784
  %v8369 = vpack.c.b16 %v7793, %v7785
  %v8370 = vpack.c.b16 %v7802, %v7794
  %v8371 = vpack.c.b16 %v7803, %v7795
  %v8372 = vpack.c.b16 %v7804, %v7796
  %v8373 = vpack.c.b16 %v7805, %v7797
  %v8374 = vpack.c.b16 %v7806, %v7798
  %v8375 = vpack.c.b16 %v7807, %v7799
  %v8376 = vpack.c.b16 %v7808, %v7800
  %v8377 = vpack.c.b16 %v7809, %v7801
  %v8378 = vpack.c.b16 %v7818, %v7810
  %v8379 = vpack.c.b16 %v7819, %v7811
  %v8380 = vpack.c.b16 %v7820, %v7812
  %v8381 = vpack.c.b16 %v7821, %v7813
  %v8382 = vpack.c.b16 %v7822, %v7814
  %v8383 = vpack.c.b16 %v7823, %v7815
  %v8384 = vpack.c.b16 %v7824, %v7816
  %v8385 = vpack.c.b16 %v7825, %v7817
  %v8386 = vpack.c.b16 %v7834, %v7826
  %v8387 = vpack.c.b16 %v7835, %v7827
  %v8388 = vpack.c.b16 %v7836, %v7828
  %v8389 = vpack.c.b16 %v7837, %v7829
  %v8390 = vpack.c.b16 %v7838, %v7830
  %v8391 = vpack.c.b16 %v7839, %v7831
  %v8392 = vpack.c.b16 %v7840, %v7832
  %v8393 = vpack.c.b16 %v7841, %v7833
  %v8394 = vpack.c.b16 %v7850, %v7842
  %v8395 = vpack.c.b16 %v7851, %v7843
  %v8396 = vpack.c.b16 %v7852, %v7844
  %v8397 = vpack.c.b16 %v7853, %v7845
  %v8398 = vpack.c.b16 %v7854, %v7846
  %v8399 = vpack.c.b16 %v7855, %v7847
  %v8400 = vpack.c.b16 %v7856, %v7848
  %v8401 = vpack.c.b16 %v7857, %v7849
  %v8402 = vpack.c.b16 %v7866, %v7858
  %v8403 = vpack.c.b16 %v7867, %v7859
  %v8404 = vpack.c.b16 %v7868, %v7860
  %v8405 = vpack.c.b16 %v7869, %v7861
  %v8406 = vpack.c.b16 %v7870, %v7862
  %v8407 = vpack.c.b16 %v7871, %v7863
  %v8408 = vpack.c.b16 %v7872, %v7864
  %v8409 = vpack.c.b16 %v7873, %v7865
  %v8410 = vpack.c.b16 %v7882, %v7874
  %v8411 = vpack.c.b16 %v7883, %v7875
  %v8412 = vpack.c.b16 %v7884, %v7876
  %v8413 = vpack.c.b16 %v7885, %v7877
  %v8414 = vpack.c.b16 %v7886, %v7878
  %v8415 = vpack.c.b16 %v7887, %v7879
  %v8416 = vpack.c.b16 %v7888, %v7880
  %v8417 = vpack.c.b16 %v7889, %v7881
  %v8418 = vpack.c.b16 %v7898, %v7890
  %v8419 = vpack.c.b16 %v7899, %v7891
  %v8420 = vpack.c.b16 %v7900, %v7892
  %v8421 = vpack.c.b16 %v7901, %v7893
  %v8422 = vpack.c.b16 %v7902, %v7894
  %v8423 = vpack.c.b16 %v7903, %v7895
  %v8424 = vpack.c.b16 %v7904, %v7896
  %v8425 = vpack.c.b16 %v7905, %v7897
  %v8426 = vpack.c.b16 %v7914, %v7906
  %v8427 = vpack.c.b16 %v7915, %v7907
  %v8428 = vpack.c.b16 %v7916, %v7908
  %v8429 = vpack.c.b16 %v7917, %v7909
  %v8430 = vpack.c.b16 %v7918, %v7910
  %v8431 = vpack.c.b16 %v7919, %v7911
  %v8432 = vpack.c.b16 %v7920, %v7912
  %v8433 = vpack.c.b16 %v7921, %v7913
  %v8434 = vpack.c.b16 %v7930, %v7922
  %v8435 = vpack.c.b16 %v7931, %v7923
  %v8436 = vpack.c.b16 %v7932, %v7924
  %v8437 = vpack.c.b16 %v7933, %v7925
  %v8438 = vpack.c.b16 %v7934, %v7926
  %v8439 = vpack.c.b16 %v7935, %v7927
  %v8440 = vpack.c.b16 %v7936, %v7928
  %v8441 = vpack.c.b16 %v7937, %v7929
  %v8442 = vpack.c.b16 %v7946, %v7938
  %v8443 = vpack.c.b16 %v7947, %v7939
  %v8444 = vpack.c.b16 %v7948, %v7940
  %v8445 = vpack.c.b16 %v7949, %v7941
  %v8446 = vpack.c.b16 %v7950, %v7942
  %v8447 = vpack.c.b16 %v7951, %v7943
  %v8448 = vpack.c.b16 %v7952, %v7944
  %v8449 = vpack.c.b16 %v7953, %v7945
  %v8450 = vpack.c.b16 %v7962, %v7954
  %v8451 = vpack.c.b16 %v7963, %v7955
  %v8452 = vpack.c.b16 %v7964, %v7956
  %v8453 = vpack.c.b16 %v7965, %v7957
  %v8454 = vpack.c.b16 %v7966, %v7958
  %v8455 = vpack.c.b16 %v7967, %v7959
  %v8456 = vpack.c.b16 %v7968, %v7960
  %v8457 = vpack.c.b16 %v7969, %v7961
  %v8458 = vpack.c.b16 %v7970, %v7970
  %v8459 = vpack.c.b16 %v7971, %v7971
  %v8460 = vpack.c.b16 %v7972, %v7972
  %v8461 = vpack.c.b16 %v7973, %v7973
  %v8462 = vpack.c.b16 %v7974, %v7974
  %v8463 = vpack.c.b16 %v7975, %v7975
  %v8464 = vpack.c.b16 %v7976, %v7976
  %v8465 = vpack.c.b16 %v7977, %v7977
  %vm8946 = vcmask 588800
  %v8948 = vsel %vm8946, %v6525, 0
  %vm8950 = vcmask 1043456
  %v8952 = vsel %vm8950, %v8458, 0
  %v8955 = vsel %vm8950, %v8459, 0
  %v8958 = vsel %vm8950, %v8460, 0
  %v8961 = vsel %vm8950, %v8461, 0
  %v8964 = vsel %vm8950, %v8462, 0
  %v8967 = vsel %vm8950, %v8463, 0
  %v8970 = vsel %vm8950, %v8464, 0
  %v8973 = vsel %vm8950, %v8465, 0
  %8975 = vmatprep.subr.bf16.mxu0 %v7979
  %8976 = vmatpush1.bf16.msra.mxu0 %v7978
  %8977 = vmatprep.subr.bf16.mxu0 %v7987
  %8978 = vmatpush1.bf16.msra.mxu0 %v7986
  %8979 = vmatprep.subr.bf16.mxu0 %v7995
  %8980 = vmatpush1.bf16.msra.mxu0 %v7994
  %8981 = vmatprep.subr.bf16.mxu0 %v8003
  %8982 = vmatpush1.bf16.msra.mxu0 %v8002
  %8983 = vmatprep.subr.bf16.mxu0 %v8011
  %8984 = vmatpush1.bf16.msra.mxu0 %v8010
  %8985 = vmatprep.subr.bf16.mxu0 %v8019
  %8986 = vmatpush1.bf16.msra.mxu0 %v8018
  %8987 = vmatprep.subr.bf16.mxu0 %v8027
  %8988 = vmatpush1.bf16.msra.mxu0 %v8026
  %8989 = vmatprep.subr.bf16.mxu0 %v8035
  %8990 = vmatpush1.bf16.msra.mxu0 %v8034
  %8991 = vmatprep.subr.bf16.mxu0 %v8043
  %8992 = vmatpush1.bf16.msra.mxu0 %v8042
  %8993 = vmatprep.subr.bf16.mxu0 %v8051
  %8994 = vmatpush1.bf16.msra.mxu0 %v8050
  %8995 = vmatprep.subr.bf16.mxu0 %v8059
  %8996 = vmatpush1.bf16.msra.mxu0 %v8058
  %8997 = vmatprep.subr.bf16.mxu0 %v8067
  %8998 = vmatpush1.bf16.msra.mxu0 %v8066
  %8999 = vmatprep.subr.bf16.mxu0 %v8075
  %9000 = vmatpush1.bf16.msra.mxu0 %v8074
  %9001 = vmatprep.subr.bf16.mxu0 %v8083
  %9002 = vmatpush1.bf16.msra.mxu0 %v8082
  %9003 = vmatprep.subr.bf16.mxu0 %v8091
  %9004 = vmatpush1.bf16.msra.mxu0 %v8090
  %9005 = vmatprep.subr.bf16.mxu0 %v8099
  %9006 = vmatpush1.bf16.msra.mxu0 %v8098
  %9007 = vmatprep.mubr.bf16.mxu0 %v6519
  %9008 = vmatmul.mubr.bf16.gmra.mrb[0].mxu0 %v6518
  %v9009 = vpop.f32.mrb[0].mxu0
  %v9010 = vadd.f32 0.0, %v9009
  %v9011 = vpop.f32.mrb[0].mxu0
  %v9012 = vadd.f32 0.0, %v9011
  %v9013 = vpop.f32.mrb[0].mxu0
  %v9014 = vpop.f32.mrb[0].mxu0
  %9015 = vdwg.mxu0
  %9016 = vmatprep.subr.bf16.mxu0 %v8107
  %9017 = vmatpush1.bf16.msra.mxu0 %v8106
  %9018 = vmatprep.subr.bf16.mxu0 %v8115
  %9019 = vmatpush1.bf16.msra.mxu0 %v8114
  %9020 = vmatprep.subr.bf16.mxu0 %v8123
  %9021 = vmatpush1.bf16.msra.mxu0 %v8122
  %9022 = vmatprep.subr.bf16.mxu0 %v8131
  %9023 = vmatpush1.bf16.msra.mxu0 %v8130
  %9024 = vmatprep.subr.bf16.mxu0 %v8139
  %9025 = vmatpush1.bf16.msra.mxu0 %v8138
  %9026 = vmatprep.subr.bf16.mxu0 %v8147
  %9027 = vmatpush1.bf16.msra.mxu0 %v8146
  %9028 = vmatprep.subr.bf16.mxu0 %v8155
  %9029 = vmatpush1.bf16.msra.mxu0 %v8154
  %9030 = vmatprep.subr.bf16.mxu0 %v8163
  %9031 = vmatpush1.bf16.msra.mxu0 %v8162
  %9032 = vmatprep.subr.bf16.mxu0 %v8171
  %9033 = vmatpush1.bf16.msra.mxu0 %v8170
  %9034 = vmatprep.subr.bf16.mxu0 %v8179
  %9035 = vmatpush1.bf16.msra.mxu0 %v8178
  %9036 = vmatprep.subr.bf16.mxu0 %v8187
  %9037 = vmatpush1.bf16.msra.mxu0 %v8186
  %9038 = vmatprep.subr.bf16.mxu0 %v8195
  %9039 = vmatpush1.bf16.msra.mxu0 %v8194
  %9040 = vmatprep.subr.bf16.mxu0 %v8203
  %9041 = vmatpush1.bf16.msra.mxu0 %v8202
  %9042 = vmatprep.subr.bf16.mxu0 %v8211
  %9043 = vmatpush1.bf16.msra.mxu0 %v8210
  %9044 = vmatprep.subr.bf16.mxu0 %v8219
  %9045 = vmatpush1.bf16.msra.mxu0 %v8218
  %9046 = vmatprep.subr.bf16.mxu0 %v8227
  %9047 = vmatpush1.bf16.msra.mxu0 %v8226
  %9048 = vmatprep.mubr.bf16.mxu0 %v6521
  %9049 = vmatmul.mubr.bf16.gmra.mrb[0].mxu0 %v6520
  %v9050 = vpop.f32.mrb[0].mxu0
  %v9051 = vadd.f32 %v9010, %v9050
  %v9052 = vpop.f32.mrb[0].mxu0
  %v9053 = vadd.f32 %v9012, %v9052
  %v9054 = vpop.f32.mrb[0].mxu0
  %v9055 = vpop.f32.mrb[0].mxu0
  %9056 = vdwg.mxu0
  %9057 = vmatprep.subr.bf16.mxu0 %v8235
  %9058 = vmatpush1.bf16.msra.mxu0 %v8234
  %9059 = vmatprep.subr.bf16.mxu0 %v8243
  %9060 = vmatpush1.bf16.msra.mxu0 %v8242
  %9061 = vmatprep.subr.bf16.mxu0 %v8251
  %9062 = vmatpush1.bf16.msra.mxu0 %v8250
  %9063 = vmatprep.subr.bf16.mxu0 %v8259
  %9064 = vmatpush1.bf16.msra.mxu0 %v8258
  %9065 = vmatprep.subr.bf16.mxu0 %v8267
  %9066 = vmatpush1.bf16.msra.mxu0 %v8266
  %9067 = vmatprep.subr.bf16.mxu0 %v8275
  %9068 = vmatpush1.bf16.msra.mxu0 %v8274
  %9069 = vmatprep.subr.bf16.mxu0 %v8283
  %9070 = vmatpush1.bf16.msra.mxu0 %v8282
  %9071 = vmatprep.subr.bf16.mxu0 %v8291
  %9072 = vmatpush1.bf16.msra.mxu0 %v8290
  %9073 = vmatprep.subr.bf16.mxu0 %v8299
  %9074 = vmatpush1.bf16.msra.mxu0 %v8298
  %9075 = vmatprep.subr.bf16.mxu0 %v8307
  %9076 = vmatpush1.bf16.msra.mxu0 %v8306
  %9077 = vmatprep.subr.bf16.mxu0 %v8315
  %9078 = vmatpush1.bf16.msra.mxu0 %v8314
  %9079 = vmatprep.subr.bf16.mxu0 %v8323
  %9080 = vmatpush1.bf16.msra.mxu0 %v8322
  %9081 = vmatprep.subr.bf16.mxu0 %v8331
  %9082 = vmatpush1.bf16.msra.mxu0 %v8330
  %9083 = vmatprep.subr.bf16.mxu0 %v8339
  %9084 = vmatpush1.bf16.msra.mxu0 %v8338
  %9085 = vmatprep.subr.bf16.mxu0 %v8347
  %9086 = vmatpush1.bf16.msra.mxu0 %v8346
  %9087 = vmatprep.subr.bf16.mxu0 %v8355
  %9088 = vmatpush1.bf16.msra.mxu0 %v8354
  %9089 = vmatprep.mubr.bf16.mxu0 %v6523
  %9090 = vmatmul.mubr.bf16.gmra.mrb[0].mxu0 %v6522
  %v9091 = vpop.f32.mrb[0].mxu0
  %v9092 = vadd.f32 %v9051, %v9091
  %v9093 = vpop.f32.mrb[0].mxu0
  %v9094 = vadd.f32 %v9053, %v9093
  %v9095 = vpop.f32.mrb[0].mxu0
  %v9096 = vpop.f32.mrb[0].mxu0
  %9097 = vdwg.mxu0
  %9098 = vmatprep.subr.bf16.mxu0 %v8363
  %9099 = vmatpush1.bf16.msra.mxu0 %v8362
  %9100 = vmatprep.subr.bf16.mxu0 %v8371
  %9101 = vmatpush1.bf16.msra.mxu0 %v8370
  %9102 = vmatprep.subr.bf16.mxu0 %v8379
  %9103 = vmatpush1.bf16.msra.mxu0 %v8378
  %9104 = vmatprep.subr.bf16.mxu0 %v8387
  %9105 = vmatpush1.bf16.msra.mxu0 %v8386
  %9106 = vmatprep.subr.bf16.mxu0 %v8395
  %9107 = vmatpush1.bf16.msra.mxu0 %v8394
  %9108 = vmatprep.subr.bf16.mxu0 %v8403
  %9109 = vmatpush1.bf16.msra.mxu0 %v8402
  %9110 = vmatprep.subr.bf16.mxu0 %v8411
  %9111 = vmatpush1.bf16.msra.mxu0 %v8410
  %9112 = vmatprep.subr.bf16.mxu0 %v8419
  %9113 = vmatpush1.bf16.msra.mxu0 %v8418
  %9114 = vmatprep.subr.bf16.mxu0 %v8427
  %9115 = vmatpush1.bf16.msra.mxu0 %v8426
  %9116 = vmatprep.subr.bf16.mxu0 %v8435
  %9117 = vmatpush1.bf16.msra.mxu0 %v8434
  %9118 = vmatprep.subr.bf16.mxu0 %v8443
  %9119 = vmatpush1.bf16.msra.mxu0 %v8442
  %9120 = vmatprep.subr.bf16.mxu0 %v8451
  %9121 = vmatpush1.bf16.msra.mxu0 %v8450
  %9122 = vmatprep.subr.bf16.mxu0 %v8955
  %9123 = vmatpush1.bf16.msra.mxu0 %v8952
  %9124 = vmatprep.subr.bf16.mxu0 0
  %9125 = vmatpush1.bf16.msra.mxu0 0
  %9126 = vmatprep.subr.bf16.mxu0 0
  %9127 = vmatpush1.bf16.msra.mxu0 0
  %9128 = vmatprep.subr.bf16.mxu0 0
  %9129 = vmatpush1.bf16.msra.mxu0 0
  %9130 = vmatprep.mubr.bf16.mxu0 %v8948
  %9131 = vmatmul.mubr.bf16.gmra.mrb[0].mxu0 %v6524
  %v9132 = vpop.f32.mrb[0].mxu0
  %v9133 = vadd.f32 %v9092, %v9132
  %v9134 = vpop.f32.mrb[0].mxu0
  %v9135 = vadd.f32 %v9094, %v9134
  %v9136 = vpop.f32.mrb[0].mxu0
  %v9137 = vpop.f32.mrb[0].mxu0
  %9138 = vdwg.mxu0
  %9139 = vmatprep.subr.bf16.mxu0 %v7981
  %9140 = vmatpush1.bf16.msra.mxu0 %v7980
  %9141 = vmatprep.subr.bf16.mxu0 %v7989
  %9142 = vmatpush1.bf16.msra.mxu0 %v7988
  %9143 = vmatprep.subr.bf16.mxu0 %v7997
  %9144 = vmatpush1.bf16.msra.mxu0 %v7996
  %9145 = vmatprep.subr.bf16.mxu0 %v8005
  %9146 = vmatpush1.bf16.msra.mxu0 %v8004
  %9147 = vmatprep.subr.bf16.mxu0 %v8013
  %9148 = vmatpush1.bf16.msra.mxu0 %v8012
  %9149 = vmatprep.subr.bf16.mxu0 %v8021
  %9150 = vmatpush1.bf16.msra.mxu0 %v8020
  %9151 = vmatprep.subr.bf16.mxu0 %v8029
  %9152 = vmatpush1.bf16.msra.mxu0 %v8028
  %9153 = vmatprep.subr.bf16.mxu0 %v8037
  %9154 = vmatpush1.bf16.msra.mxu0 %v8036
  %9155 = vmatprep.subr.bf16.mxu0 %v8045
  %9156 = vmatpush1.bf16.msra.mxu0 %v8044
  %9157 = vmatprep.subr.bf16.mxu0 %v8053
  %9158 = vmatpush1.bf16.msra.mxu0 %v8052
  %9159 = vmatprep.subr.bf16.mxu0 %v8061
  %9160 = vmatpush1.bf16.msra.mxu0 %v8060
  %9161 = vmatprep.subr.bf16.mxu0 %v8069
  %9162 = vmatpush1.bf16.msra.mxu0 %v8068
  %9163 = vmatprep.subr.bf16.mxu0 %v8077
  %9164 = vmatpush1.bf16.msra.mxu0 %v8076
  %9165 = vmatprep.subr.bf16.mxu0 %v8085
  %9166 = vmatpush1.bf16.msra.mxu0 %v8084
  %9167 = vmatprep.subr.bf16.mxu0 %v8093
  %9168 = vmatpush1.bf16.msra.mxu0 %v8092
  %9169 = vmatprep.subr.bf16.mxu0 %v8101
  %9170 = vmatpush1.bf16.msra.mxu0 %v8100
  %9171 = vmatprep.mubr.bf16.mxu0 %v6519
  %9172 = vmatmul.mubr.bf16.gmra.mrb[0].mxu0 %v6518
  %v9173 = vpop.f32.mrb[0].mxu0
  %v9174 = vadd.f32 0.0, %v9173
  %v9175 = vpop.f32.mrb[0].mxu0
  %v9176 = vadd.f32 0.0, %v9175
  %v9177 = vpop.f32.mrb[0].mxu0
  %v9178 = vpop.f32.mrb[0].mxu0
  %9179 = vdwg.mxu0
  %9180 = vmatprep.subr.bf16.mxu0 %v8109
  %9181 = vmatpush1.bf16.msra.mxu0 %v8108
  %9182 = vmatprep.subr.bf16.mxu0 %v8117
  %9183 = vmatpush1.bf16.msra.mxu0 %v8116
  %9184 = vmatprep.subr.bf16.mxu0 %v8125
  %9185 = vmatpush1.bf16.msra.mxu0 %v8124
  %9186 = vmatprep.subr.bf16.mxu0 %v8133
  %9187 = vmatpush1.bf16.msra.mxu0 %v8132
  %9188 = vmatprep.subr.bf16.mxu0 %v8141
  %9189 = vmatpush1.bf16.msra.mxu0 %v8140
  %9190 = vmatprep.subr.bf16.mxu0 %v8149
  %9191 = vmatpush1.bf16.msra.mxu0 %v8148
  %9192 = vmatprep.subr.bf16.mxu0 %v8157
  %9193 = vmatpush1.bf16.msra.mxu0 %v8156
  %9194 = vmatprep.subr.bf16.mxu0 %v8165
  %9195 = vmatpush1.bf16.msra.mxu0 %v8164
  %9196 = vmatprep.subr.bf16.mxu0 %v8173
  %9197 = vmatpush1.bf16.msra.mxu0 %v8172
  %9198 = vmatprep.subr.bf16.mxu0 %v8181
  %9199 = vmatpush1.bf16.msra.mxu0 %v8180
  %9200 = vmatprep.subr.bf16.mxu0 %v8189
  %9201 = vmatpush1.bf16.msra.mxu0 %v8188
  %9202 = vmatprep.subr.bf16.mxu0 %v8197
  %9203 = vmatpush1.bf16.msra.mxu0 %v8196
  %9204 = vmatprep.subr.bf16.mxu0 %v8205
  %9205 = vmatpush1.bf16.msra.mxu0 %v8204
  %9206 = vmatprep.subr.bf16.mxu0 %v8213
  %9207 = vmatpush1.bf16.msra.mxu0 %v8212
  %9208 = vmatprep.subr.bf16.mxu0 %v8221
  %9209 = vmatpush1.bf16.msra.mxu0 %v8220
  %9210 = vmatprep.subr.bf16.mxu0 %v8229
  %9211 = vmatpush1.bf16.msra.mxu0 %v8228
  %9212 = vmatprep.mubr.bf16.mxu0 %v6521
  %9213 = vmatmul.mubr.bf16.gmra.mrb[0].mxu0 %v6520
  %v9214 = vpop.f32.mrb[0].mxu0
  %v9215 = vadd.f32 %v9174, %v9214
  %v9216 = vpop.f32.mrb[0].mxu0
  %v9217 = vadd.f32 %v9176, %v9216
  %v9218 = vpop.f32.mrb[0].mxu0
  %v9219 = vpop.f32.mrb[0].mxu0
  %9220 = vdwg.mxu0
  %9221 = vmatprep.subr.bf16.mxu0 %v8237
  %9222 = vmatpush1.bf16.msra.mxu0 %v8236
  %9223 = vmatprep.subr.bf16.mxu0 %v8245
  %9224 = vmatpush1.bf16.msra.mxu0 %v8244
  %9225 = vmatprep.subr.bf16.mxu0 %v8253
  %9226 = vmatpush1.bf16.msra.mxu0 %v8252
  %9227 = vmatprep.subr.bf16.mxu0 %v8261
  %9228 = vmatpush1.bf16.msra.mxu0 %v8260
  %9229 = vmatprep.subr.bf16.mxu0 %v8269
  %9230 = vmatpush1.bf16.msra.mxu0 %v8268
  %9231 = vmatprep.subr.bf16.mxu0 %v8277
  %9232 = vmatpush1.bf16.msra.mxu0 %v8276
  %9233 = vmatprep.subr.bf16.mxu0 %v8285
  %9234 = vmatpush1.bf16.msra.mxu0 %v8284
  %9235 = vmatprep.subr.bf16.mxu0 %v8293
  %9236 = vmatpush1.bf16.msra.mxu0 %v8292
  %9237 = vmatprep.subr.bf16.mxu0 %v8301
  %9238 = vmatpush1.bf16.msra.mxu0 %v8300
  %9239 = vmatprep.subr.bf16.mxu0 %v8309
  %9240 = vmatpush1.bf16.msra.mxu0 %v8308
  %9241 = vmatprep.subr.bf16.mxu0 %v8317
  %9242 = vmatpush1.bf16.msra.mxu0 %v8316
  %9243 = vmatprep.subr.bf16.mxu0 %v8325
  %9244 = vmatpush1.bf16.msra.mxu0 %v8324
  %9245 = vmatprep.subr.bf16.mxu0 %v8333
  %9246 = vmatpush1.bf16.msra.mxu0 %v8332
  %9247 = vmatprep.subr.bf16.mxu0 %v8341
  %9248 = vmatpush1.bf16.msra.mxu0 %v8340
  %9249 = vmatprep.subr.bf16.mxu0 %v8349
  %9250 = vmatpush1.bf16.msra.mxu0 %v8348
  %9251 = vmatprep.subr.bf16.mxu0 %v8357
  %9252 = vmatpush1.bf16.msra.mxu0 %v8356
  %9253 = vmatprep.mubr.bf16.mxu0 %v6523
  %9254 = vmatmul.mubr.bf16.gmra.mrb[0].mxu0 %v6522
  %v9255 = vpop.f32.mrb[0].mxu0
  %v9256 = vadd.f32 %v9215, %v9255
  %v9257 = vpop.f32.mrb[0].mxu0
  %v9258 = vadd.f32 %v9217, %v9257
  %v9259 = vpop.f32.mrb[0].mxu0
  %v9260 = vpop.f32.mrb[0].mxu0
  %9261 = vdwg.mxu0
  %9262 = vmatprep.subr.bf16.mxu0 %v8365
  %9263 = vmatpush1.bf16.msra.mxu0 %v8364
  %9264 = vmatprep.subr.bf16.mxu0 %v8373
  %9265 = vmatpush1.bf16.msra.mxu0 %v8372
  %9266 = vmatprep.subr.bf16.mxu0 %v8381
  %9267 = vmatpush1.bf16.msra.mxu0 %v8380
  %9268 = vmatprep.subr.bf16.mxu0 %v8389
  %9269 = vmatpush1.bf16.msra.mxu0 %v8388
  %9270 = vmatprep.subr.bf16.mxu0 %v8397
  %9271 = vmatpush1.bf16.msra.mxu0 %v8396
  %9272 = vmatprep.subr.bf16.mxu0 %v8405
  %9273 = vmatpush1.bf16.msra.mxu0 %v8404
  %9274 = vmatprep.subr.bf16.mxu0 %v8413
  %9275 = vmatpush1.bf16.msra.mxu0 %v8412
  %9276 = vmatprep.subr.bf16.mxu0 %v8421
  %9277 = vmatpush1.bf16.msra.mxu0 %v8420
  %9278 = vmatprep.subr.bf16.mxu0 %v8429
  %9279 = vmatpush1.bf16.msra.mxu0 %v8428
  %9280 = vmatprep.subr.bf16.mxu0 %v8437
  %9281 = vmatpush1.bf16.msra.mxu0 %v8436
  %9282 = vmatprep.subr.bf16.mxu0 %v8445
  %9283 = vmatpush1.bf16.msra.mxu0 %v8444
  %9284 = vmatprep.subr.bf16.mxu0 %v8453
  %9285 = vmatpush1.bf16.msra.mxu0 %v8452
  %9286 = vmatprep.subr.bf16.mxu0 %v8961
  %9287 = vmatpush1.bf16.msra.mxu0 %v8958
  %9288 = vmatprep.subr.bf16.mxu0 0
  %9289 = vmatpush1.bf16.msra.mxu0 0
  %9290 = vmatprep.subr.bf16.mxu0 0
  %9291 = vmatpush1.bf16.msra.mxu0 0
  %9292 = vmatprep.subr.bf16.mxu0 0
  %9293 = vmatpush1.bf16.msra.mxu0 0
  %9294 = vmatprep.mubr.bf16.mxu0 %v8948
  %9295 = vmatmul.mubr.bf16.gmra.mrb[0].mxu0 %v6524
  %v9296 = vpop.f32.mrb[0].mxu0
  %v9297 = vadd.f32 %v9256, %v9296
  %v9298 = vpop.f32.mrb[0].mxu0
  %v9299 = vadd.f32 %v9258, %v9298
  %v9300 = vpop.f32.mrb[0].mxu0
  %v9301 = vpop.f32.mrb[0].mxu0
  %9302 = vdwg.mxu0
  %9303 = vmatprep.subr.bf16.mxu0 %v7983
  %9304 = vmatpush1.bf16.msra.mxu0 %v7982
  %9305 = vmatprep.subr.bf16.mxu0 %v7991
  %9306 = vmatpush1.bf16.msra.mxu0 %v7990
  %9307 = vmatprep.subr.bf16.mxu0 %v7999
  %9308 = vmatpush1.bf16.msra.mxu0 %v7998
  %9309 = vmatprep.subr.bf16.mxu0 %v8007
  %9310 = vmatpush1.bf16.msra.mxu0 %v8006
  %9311 = vmatprep.subr.bf16.mxu0 %v8015
  %9312 = vmatpush1.bf16.msra.mxu0 %v8014
  %9313 = vmatprep.subr.bf16.mxu0 %v8023
  %9314 = vmatpush1.bf16.msra.mxu0 %v8022
  %9315 = vmatprep.subr.bf16.mxu0 %v8031
  %9316 = vmatpush1.bf16.msra.mxu0 %v8030
  %9317 = vmatprep.subr.bf16.mxu0 %v8039
  %9318 = vmatpush1.bf16.msra.mxu0 %v8038
  %9319 = vmatprep.subr.bf16.mxu0 %v8047
  %9320 = vmatpush1.bf16.msra.mxu0 %v8046
  %9321 = vmatprep.subr.bf16.mxu0 %v8055
  %9322 = vmatpush1.bf16.msra.mxu0 %v8054
  %9323 = vmatprep.subr.bf16.mxu0 %v8063
  %9324 = vmatpush1.bf16.msra.mxu0 %v8062
  %9325 = vmatprep.subr.bf16.mxu0 %v8071
  %9326 = vmatpush1.bf16.msra.mxu0 %v8070
  %9327 = vmatprep.subr.bf16.mxu0 %v8079
  %9328 = vmatpush1.bf16.msra.mxu0 %v8078
  %9329 = vmatprep.subr.bf16.mxu0 %v8087
  %9330 = vmatpush1.bf16.msra.mxu0 %v8086
  %9331 = vmatprep.subr.bf16.mxu0 %v8095
  %9332 = vmatpush1.bf16.msra.mxu0 %v8094
  %9333 = vmatprep.subr.bf16.mxu0 %v8103
  %9334 = vmatpush1.bf16.msra.mxu0 %v8102
  %9335 = vmatprep.mubr.bf16.mxu0 %v6519
  %9336 = vmatmul.mubr.bf16.gmra.mrb[0].mxu0 %v6518
  %v9337 = vpop.f32.mrb[0].mxu0
  %v9338 = vadd.f32 0.0, %v9337
  %v9339 = vpop.f32.mrb[0].mxu0
  %v9340 = vadd.f32 0.0, %v9339
  %v9341 = vpop.f32.mrb[0].mxu0
  %v9342 = vpop.f32.mrb[0].mxu0
  %9343 = vdwg.mxu0
  %9344 = vmatprep.subr.bf16.mxu0 %v8111
  %9345 = vmatpush1.bf16.msra.mxu0 %v8110
  %9346 = vmatprep.subr.bf16.mxu0 %v8119
  %9347 = vmatpush1.bf16.msra.mxu0 %v8118
  %9348 = vmatprep.subr.bf16.mxu0 %v8127
  %9349 = vmatpush1.bf16.msra.mxu0 %v8126
  %9350 = vmatprep.subr.bf16.mxu0 %v8135
  %9351 = vmatpush1.bf16.msra.mxu0 %v8134
  %9352 = vmatprep.subr.bf16.mxu0 %v8143
  %9353 = vmatpush1.bf16.msra.mxu0 %v8142
  %9354 = vmatprep.subr.bf16.mxu0 %v8151
  %9355 = vmatpush1.bf16.msra.mxu0 %v8150
  %9356 = vmatprep.subr.bf16.mxu0 %v8159
  %9357 = vmatpush1.bf16.msra.mxu0 %v8158
  %9358 = vmatprep.subr.bf16.mxu0 %v8167
  %9359 = vmatpush1.bf16.msra.mxu0 %v8166
  %9360 = vmatprep.subr.bf16.mxu0 %v8175
  %9361 = vmatpush1.bf16.msra.mxu0 %v8174
  %9362 = vmatprep.subr.bf16.mxu0 %v8183
  %9363 = vmatpush1.bf16.msra.mxu0 %v8182
  %9364 = vmatprep.subr.bf16.mxu0 %v8191
  %9365 = vmatpush1.bf16.msra.mxu0 %v8190
  %9366 = vmatprep.subr.bf16.mxu0 %v8199
  %9367 = vmatpush1.bf16.msra.mxu0 %v8198
  %9368 = vmatprep.subr.bf16.mxu0 %v8207
  %9369 = vmatpush1.bf16.msra.mxu0 %v8206
  %9370 = vmatprep.subr.bf16.mxu0 %v8215
  %9371 = vmatpush1.bf16.msra.mxu0 %v8214
  %9372 = vmatprep.subr.bf16.mxu0 %v8223
  %9373 = vmatpush1.bf16.msra.mxu0 %v8222
  %9374 = vmatprep.subr.bf16.mxu0 %v8231
  %9375 = vmatpush1.bf16.msra.mxu0 %v8230
  %9376 = vmatprep.mubr.bf16.mxu0 %v6521
  %9377 = vmatmul.mubr.bf16.gmra.mrb[0].mxu0 %v6520
  %v9378 = vpop.f32.mrb[0].mxu0
  %v9379 = vadd.f32 %v9338, %v9378
  %v9380 = vpop.f32.mrb[0].mxu0
  %v9381 = vadd.f32 %v9340, %v9380
  %v9382 = vpop.f32.mrb[0].mxu0
  %v9383 = vpop.f32.mrb[0].mxu0
  %9384 = vdwg.mxu0
  %9385 = vmatprep.subr.bf16.mxu0 %v8239
  %9386 = vmatpush1.bf16.msra.mxu0 %v8238
  %9387 = vmatprep.subr.bf16.mxu0 %v8247
  %9388 = vmatpush1.bf16.msra.mxu0 %v8246
  %9389 = vmatprep.subr.bf16.mxu0 %v8255
  %9390 = vmatpush1.bf16.msra.mxu0 %v8254
  %9391 = vmatprep.subr.bf16.mxu0 %v8263
  %9392 = vmatpush1.bf16.msra.mxu0 %v8262
  %9393 = vmatprep.subr.bf16.mxu0 %v8271
  %9394 = vmatpush1.bf16.msra.mxu0 %v8270
  %9395 = vmatprep.subr.bf16.mxu0 %v8279
  %9396 = vmatpush1.bf16.msra.mxu0 %v8278
  %9397 = vmatprep.subr.bf16.mxu0 %v8287
  %9398 = vmatpush1.bf16.msra.mxu0 %v8286
  %9399 = vmatprep.subr.bf16.mxu0 %v8295
  %9400 = vmatpush1.bf16.msra.mxu0 %v8294
  %9401 = vmatprep.subr.bf16.mxu0 %v8303
  %9402 = vmatpush1.bf16.msra.mxu0 %v8302
  %9403 = vmatprep.subr.bf16.mxu0 %v8311
  %9404 = vmatpush1.bf16.msra.mxu0 %v8310
  %9405 = vmatprep.subr.bf16.mxu0 %v8319
  %9406 = vmatpush1.bf16.msra.mxu0 %v8318
  %9407 = vmatprep.subr.bf16.mxu0 %v8327
  %9408 = vmatpush1.bf16.msra.mxu0 %v8326
  %9409 = vmatprep.subr.bf16.mxu0 %v8335
  %9410 = vmatpush1.bf16.msra.mxu0 %v8334
  %9411 = vmatprep.subr.bf16.mxu0 %v8343
  %9412 = vmatpush1.bf16.msra.mxu0 %v8342
  %9413 = vmatprep.subr.bf16.mxu0 %v8351
  %9414 = vmatpush1.bf16.msra.mxu0 %v8350
  %9415 = vmatprep.subr.bf16.mxu0 %v8359
  %9416 = vmatpush1.bf16.msra.mxu0 %v8358
  %9417 = vmatprep.mubr.bf16.mxu0 %v6523
  %9418 = vmatmul.mubr.bf16.gmra.mrb[0].mxu0 %v6522
  %v9419 = vpop.f32.mrb[0].mxu0
  %v9420 = vadd.f32 %v9379, %v9419
  %v9421 = vpop.f32.mrb[0].mxu0
  %v9422 = vadd.f32 %v9381, %v9421
  %v9423 = vpop.f32.mrb[0].mxu0
  %v9424 = vpop.f32.mrb[0].mxu0
  %9425 = vdwg.mxu0
  %9426 = vmatprep.subr.bf16.mxu0 %v8367
  %9427 = vmatpush1.bf16.msra.mxu0 %v8366
  %9428 = vmatprep.subr.bf16.mxu0 %v8375
  %9429 = vmatpush1.bf16.msra.mxu0 %v8374
  %9430 = vmatprep.subr.bf16.mxu0 %v8383
  %9431 = vmatpush1.bf16.msra.mxu0 %v8382
  %9432 = vmatprep.subr.bf16.mxu0 %v8391
  %9433 = vmatpush1.bf16.msra.mxu0 %v8390
  %9434 = vmatprep.subr.bf16.mxu0 %v8399
  %9435 = vmatpush1.bf16.msra.mxu0 %v8398
  %9436 = vmatprep.subr.bf16.mxu0 %v8407
  %9437 = vmatpush1.bf16.msra.mxu0 %v8406
  %9438 = vmatprep.subr.bf16.mxu0 %v8415
  %9439 = vmatpush1.bf16.msra.mxu0 %v8414
  %9440 = vmatprep.subr.bf16.mxu0 %v8423
  %9441 = vmatpush1.bf16.msra.mxu0 %v8422
  %9442 = vmatprep.subr.bf16.mxu0 %v8431
  %9443 = vmatpush1.bf16.msra.mxu0 %v8430
  %9444 = vmatprep.subr.bf16.mxu0 %v8439
  %9445 = vmatpush1.bf16.msra.mxu0 %v8438
  %9446 = vmatprep.subr.bf16.mxu0 %v8447
  %9447 = vmatpush1.bf16.msra.mxu0 %v8446
  %9448 = vmatprep.subr.bf16.mxu0 %v8455
  %9449 = vmatpush1.bf16.msra.mxu0 %v8454
  %9450 = vmatprep.subr.bf16.mxu0 %v8967
  %9451 = vmatpush1.bf16.msra.mxu0 %v8964
  %9452 = vmatprep.subr.bf16.mxu0 0
  %9453 = vmatpush1.bf16.msra.mxu0 0
  %9454 = vmatprep.subr.bf16.mxu0 0
  %9455 = vmatpush1.bf16.msra.mxu0 0
  %9456 = vmatprep.subr.bf16.mxu0 0
  %9457 = vmatpush1.bf16.msra.mxu0 0
  %9458 = vmatprep.mubr.bf16.mxu0 %v8948
  %9459 = vmatmul.mubr.bf16.gmra.mrb[0].mxu0 %v6524
  %v9460 = vpop.f32.mrb[0].mxu0
  %v9461 = vadd.f32 %v9420, %v9460
  %v9462 = vpop.f32.mrb[0].mxu0
  %v9463 = vadd.f32 %v9422, %v9462
  %v9464 = vpop.f32.mrb[0].mxu0
  %v9465 = vpop.f32.mrb[0].mxu0
  %9466 = vdwg.mxu0
  %9467 = vmatprep.subr.bf16.mxu0 %v7985
  %9468 = vmatpush1.bf16.msra.mxu0 %v7984
  %9469 = vmatprep.subr.bf16.mxu0 %v7993
  %9470 = vmatpush1.bf16.msra.mxu0 %v7992
  %9471 = vmatprep.subr.bf16.mxu0 %v8001
  %9472 = vmatpush1.bf16.msra.mxu0 %v8000
  %9473 = vmatprep.subr.bf16.mxu0 %v8009
  %9474 = vmatpush1.bf16.msra.mxu0 %v8008
  %9475 = vmatprep.subr.bf16.mxu0 %v8017
  %9476 = vmatpush1.bf16.msra.mxu0 %v8016
  %9477 = vmatprep.subr.bf16.mxu0 %v8025
  %9478 = vmatpush1.bf16.msra.mxu0 %v8024
  %9479 = vmatprep.subr.bf16.mxu0 %v8033
  %9480 = vmatpush1.bf16.msra.mxu0 %v8032
  %9481 = vmatprep.subr.bf16.mxu0 %v8041
  %9482 = vmatpush1.bf16.msra.mxu0 %v8040
  %9483 = vmatprep.subr.bf16.mxu0 %v8049
  %9484 = vmatpush1.bf16.msra.mxu0 %v8048
  %9485 = vmatprep.subr.bf16.mxu0 %v8057
  %9486 = vmatpush1.bf16.msra.mxu0 %v8056
  %9487 = vmatprep.subr.bf16.mxu0 %v8065
  %9488 = vmatpush1.bf16.msra.mxu0 %v8064
  %9489 = vmatprep.subr.bf16.mxu0 %v8073
  %9490 = vmatpush1.bf16.msra.mxu0 %v8072
  %9491 = vmatprep.subr.bf16.mxu0 %v8081
  %9492 = vmatpush1.bf16.msra.mxu0 %v8080
  %9493 = vmatprep.subr.bf16.mxu0 %v8089
  %9494 = vmatpush1.bf16.msra.mxu0 %v8088
  %9495 = vmatprep.subr.bf16.mxu0 %v8097
  %9496 = vmatpush1.bf16.msra.mxu0 %v8096
  %9497 = vmatprep.subr.bf16.mxu0 %v8105
  %9498 = vmatpush1.bf16.msra.mxu0 %v8104
  %9499 = vmatprep.mubr.bf16.mxu0 %v6519
  %9500 = vmatmul.mubr.bf16.gmra.mrb[0].mxu0 %v6518
  %v9501 = vpop.f32.mrb[0].mxu0
  %v9502 = vadd.f32 0.0, %v9501
  %v9503 = vpop.f32.mrb[0].mxu0
  %v9504 = vadd.f32 0.0, %v9503
  %v9505 = vpop.f32.mrb[0].mxu0
  %v9506 = vpop.f32.mrb[0].mxu0
  %9507 = vdwg.mxu0
  %9508 = vmatprep.subr.bf16.mxu0 %v8113
  %9509 = vmatpush1.bf16.msra.mxu0 %v8112
  %9510 = vmatprep.subr.bf16.mxu0 %v8121
  %9511 = vmatpush1.bf16.msra.mxu0 %v8120
  %9512 = vmatprep.subr.bf16.mxu0 %v8129
  %9513 = vmatpush1.bf16.msra.mxu0 %v8128
  %9514 = vmatprep.subr.bf16.mxu0 %v8137
  %9515 = vmatpush1.bf16.msra.mxu0 %v8136
  %9516 = vmatprep.subr.bf16.mxu0 %v8145
  %9517 = vmatpush1.bf16.msra.mxu0 %v8144
  %9518 = vmatprep.subr.bf16.mxu0 %v8153
  %9519 = vmatpush1.bf16.msra.mxu0 %v8152
  %9520 = vmatprep.subr.bf16.mxu0 %v8161
  %9521 = vmatpush1.bf16.msra.mxu0 %v8160
  %9522 = vmatprep.subr.bf16.mxu0 %v8169
  %9523 = vmatpush1.bf16.msra.mxu0 %v8168
  %9524 = vmatprep.subr.bf16.mxu0 %v8177
  %9525 = vmatpush1.bf16.msra.mxu0 %v8176
  %9526 = vmatprep.subr.bf16.mxu0 %v8185
  %9527 = vmatpush1.bf16.msra.mxu0 %v8184
  %9528 = vmatprep.subr.bf16.mxu0 %v8193
  %9529 = vmatpush1.bf16.msra.mxu0 %v8192
  %9530 = vmatprep.subr.bf16.mxu0 %v8201
  %9531 = vmatpush1.bf16.msra.mxu0 %v8200
  %9532 = vmatprep.subr.bf16.mxu0 %v8209
  %9533 = vmatpush1.bf16.msra.mxu0 %v8208
  %9534 = vmatprep.subr.bf16.mxu0 %v8217
  %9535 = vmatpush1.bf16.msra.mxu0 %v8216
  %9536 = vmatprep.subr.bf16.mxu0 %v8225
  %9537 = vmatpush1.bf16.msra.mxu0 %v8224
  %9538 = vmatprep.subr.bf16.mxu0 %v8233
  %9539 = vmatpush1.bf16.msra.mxu0 %v8232
  %9540 = vmatprep.mubr.bf16.mxu0 %v6521
  %9541 = vmatmul.mubr.bf16.gmra.mrb[0].mxu0 %v6520
  %v9542 = vpop.f32.mrb[0].mxu0
  %v9543 = vadd.f32 %v9502, %v9542
  %v9544 = vpop.f32.mrb[0].mxu0
  %v9545 = vadd.f32 %v9504, %v9544
  %v9546 = vpop.f32.mrb[0].mxu0
  %v9547 = vpop.f32.mrb[0].mxu0
  %9548 = vdwg.mxu0
  %9549 = vmatprep.subr.bf16.mxu0 %v8241
  %9550 = vmatpush1.bf16.msra.mxu0 %v8240
  %9551 = vmatprep.subr.bf16.mxu0 %v8249
  %9552 = vmatpush1.bf16.msra.mxu0 %v8248
  %9553 = vmatprep.subr.bf16.mxu0 %v8257
  %9554 = vmatpush1.bf16.msra.mxu0 %v8256
  %9555 = vmatprep.subr.bf16.mxu0 %v8265
  %9556 = vmatpush1.bf16.msra.mxu0 %v8264
  %9557 = vmatprep.subr.bf16.mxu0 %v8273
  %9558 = vmatpush1.bf16.msra.mxu0 %v8272
  %9559 = vmatprep.subr.bf16.mxu0 %v8281
  %9560 = vmatpush1.bf16.msra.mxu0 %v8280
  %9561 = vmatprep.subr.bf16.mxu0 %v8289
  %9562 = vmatpush1.bf16.msra.mxu0 %v8288
  %9563 = vmatprep.subr.bf16.mxu0 %v8297
  %9564 = vmatpush1.bf16.msra.mxu0 %v8296
  %9565 = vmatprep.subr.bf16.mxu0 %v8305
  %9566 = vmatpush1.bf16.msra.mxu0 %v8304
  %9567 = vmatprep.subr.bf16.mxu0 %v8313
  %9568 = vmatpush1.bf16.msra.mxu0 %v8312
  %9569 = vmatprep.subr.bf16.mxu0 %v8321
  %9570 = vmatpush1.bf16.msra.mxu0 %v8320
  %9571 = vmatprep.subr.bf16.mxu0 %v8329
  %9572 = vmatpush1.bf16.msra.mxu0 %v8328
  %9573 = vmatprep.subr.bf16.mxu0 %v8337
  %9574 = vmatpush1.bf16.msra.mxu0 %v8336
  %9575 = vmatprep.subr.bf16.mxu0 %v8345
  %9576 = vmatpush1.bf16.msra.mxu0 %v8344
  %9577 = vmatprep.subr.bf16.mxu0 %v8353
  %9578 = vmatpush1.bf16.msra.mxu0 %v8352
  %9579 = vmatprep.subr.bf16.mxu0 %v8361
  %9580 = vmatpush1.bf16.msra.mxu0 %v8360
  %9581 = vmatprep.mubr.bf16.mxu0 %v6523
  %9582 = vmatmul.mubr.bf16.gmra.mrb[0].mxu0 %v6522
  %v9583 = vpop.f32.mrb[0].mxu0
  %v9584 = vadd.f32 %v9543, %v9583
  %v9585 = vpop.f32.mrb[0].mxu0
  %v9586 = vadd.f32 %v9545, %v9585
  %v9587 = vpop.f32.mrb[0].mxu0
  %v9588 = vpop.f32.mrb[0].mxu0
  %9589 = vdwg.mxu0
  %9590 = vmatprep.subr.bf16.mxu0 %v8369
  %9591 = vmatpush1.bf16.msra.mxu0 %v8368
  %9592 = vmatprep.subr.bf16.mxu0 %v8377
  %9593 = vmatpush1.bf16.msra.mxu0 %v8376
  %9594 = vmatprep.subr.bf16.mxu0 %v8385
  %9595 = vmatpush1.bf16.msra.mxu0 %v8384
  %9596 = vmatprep.subr.bf16.mxu0 %v8393
  %9597 = vmatpush1.bf16.msra.mxu0 %v8392
  %9598 = vmatprep.subr.bf16.mxu0 %v8401
  %9599 = vmatpush1.bf16.msra.mxu0 %v8400
  %9600 = vmatprep.subr.bf16.mxu0 %v8409
  %9601 = vmatpush1.bf16.msra.mxu0 %v8408
  %9602 = vmatprep.subr.bf16.mxu0 %v8417
  %9603 = vmatpush1.bf16.msra.mxu0 %v8416
  %9604 = vmatprep.subr.bf16.mxu0 %v8425
  %9605 = vmatpush1.bf16.msra.mxu0 %v8424
  %9606 = vmatprep.subr.bf16.mxu0 %v8433
  %9607 = vmatpush1.bf16.msra.mxu0 %v8432
  %9608 = vmatprep.subr.bf16.mxu0 %v8441
  %9609 = vmatpush1.bf16.msra.mxu0 %v8440
  %9610 = vmatprep.subr.bf16.mxu0 %v8449
  %9611 = vmatpush1.bf16.msra.mxu0 %v8448
  %9612 = vmatprep.subr.bf16.mxu0 %v8457
  %9613 = vmatpush1.bf16.msra.mxu0 %v8456
  %9614 = vmatprep.subr.bf16.mxu0 %v8973
  %9615 = vmatpush1.bf16.msra.mxu0 %v8970
  %9616 = vmatprep.subr.bf16.mxu0 0
  %9617 = vmatpush1.bf16.msra.mxu0 0
  %9618 = vmatprep.subr.bf16.mxu0 0
  %9619 = vmatpush1.bf16.msra.mxu0 0
  %9620 = vmatprep.subr.bf16.mxu0 0
  %9621 = vmatpush1.bf16.msra.mxu0 0
  %9622 = vmatprep.mubr.bf16.mxu0 %v8948
  %9623 = vmatmul.mubr.bf16.gmra.mrb[0].mxu0 %v6524
  %v9624 = vpop.f32.mrb[0].mxu0
  %v9625 = vadd.f32 %v9584, %v9624
  %v9626 = vpop.f32.mrb[0].mxu0
  %v9627 = vadd.f32 %v9586, %v9626
  %v9628 = vpop.f32.mrb[0].mxu0
  %v9629 = vpop.f32.mrb[0].mxu0
  %9630 = vdwg.mxu0
  %v9631 = vld [vmem:[%s10] ss:$2 sm:$0xff]
  %v9633 = vlaneseq
  %v9634 = vshrl.u32 %v9633, 7
  %v9635 = vsub.s32 0, %v9634
  %v9636 = vrot.slane %v9631, %v9635
  %v9637 = vlaneseq
  %v9638 = vshrl.u32 %v9637, 7
  %v9639 = vsub.s32 1, %v9638
  %v9640 = vrot.slane %v9631, %v9639
  %v9641 = vlaneseq
  %v9642 = vshrl.u32 %v9641, 7
  %v9643 = vsub.s32 2, %v9642
  %v9644 = vrot.slane %v9631, %v9643
  %v9645 = vlaneseq
  %v9646 = vshrl.u32 %v9645, 7
  %v9647 = vsub.s32 3, %v9646
  %v9648 = vrot.slane %v9631, %v9647
  %v9649 = vlaneseq
  %v9650 = vshrl.u32 %v9649, 7
  %v9651 = vsub.s32 4, %v9650
  %v9652 = vrot.slane %v9631, %v9651
  %v9653 = vlaneseq
  %v9654 = vshrl.u32 %v9653, 7
  %v9655 = vsub.s32 5, %v9654
  %v9656 = vrot.slane %v9631, %v9655
  %v9657 = vlaneseq
  %v9658 = vshrl.u32 %v9657, 7
  %v9659 = vsub.s32 6, %v9658
  %v9660 = vrot.slane %v9631, %v9659
  %v9661 = vlaneseq
  %v9662 = vshrl.u32 %v9661, 7
  %v9663 = vsub.s32 7, %v9662
  %v9664 = vrot.slane %v9631, %v9663
  %v9673 = vmul.f32 %v9133, %v9636
  %v9674 = vmul.f32 %v9135, %v9640
  %v9675 = vmul.f32 %v9297, %v9644
  %v9676 = vmul.f32 %v9299, %v9648
  %v9677 = vmul.f32 %v9461, %v9652
  %v9678 = vmul.f32 %v9463, %v9656
  %v9679 = vmul.f32 %v9625, %v9660
  %v9680 = vmul.f32 %v9627, %v9664
  %s9681 = scalar_lea.vmem %s10, 1
  %v9682 = vld [vmem:[%s9681] ss:$2 sm:$0xff]
  %v9684 = vlaneseq
  %v9685 = vshrl.u32 %v9684, 7
  %v9686 = vsub.s32 0, %v9685
  %v9687 = vrot.slane %v9682, %v9686
  %v9688 = vlaneseq
  %v9689 = vshrl.u32 %v9688, 7
  %v9690 = vsub.s32 1, %v9689
  %v9691 = vrot.slane %v9682, %v9690
  %v9692 = vlaneseq
  %v9693 = vshrl.u32 %v9692, 7
  %v9694 = vsub.s32 2, %v9693
  %v9695 = vrot.slane %v9682, %v9694
  %v9696 = vlaneseq
  %v9697 = vshrl.u32 %v9696, 7
  %v9698 = vsub.s32 3, %v9697
  %v9699 = vrot.slane %v9682, %v9698
  %v9700 = vlaneseq
  %v9701 = vshrl.u32 %v9700, 7
  %v9702 = vsub.s32 4, %v9701
  %v9703 = vrot.slane %v9682, %v9702
  %v9704 = vlaneseq
  %v9705 = vshrl.u32 %v9704, 7
  %v9706 = vsub.s32 5, %v9705
  %v9707 = vrot.slane %v9682, %v9706
  %v9708 = vlaneseq
  %v9709 = vshrl.u32 %v9708, 7
  %v9710 = vsub.s32 6, %v9709
  %v9711 = vrot.slane %v9682, %v9710
  %v9712 = vlaneseq
  %v9713 = vshrl.u32 %v9712, 7
  %v9714 = vsub.s32 7, %v9713
  %v9715 = vrot.slane %v9682, %v9714
  %v9724 = vadd.f32 %v9673, %v9687
  %v9725 = vadd.f32 %v9674, %v9691
  %v9726 = vadd.f32 %v9675, %v9695
  %v9727 = vadd.f32 %v9676, %v9699
  %v9728 = vadd.f32 %v9677, %v9703
  %v9729 = vadd.f32 %v9678, %v9707
  %v9730 = vadd.f32 %v9679, %v9711
  %v9731 = vadd.f32 %v9680, %v9715
  %v9732 = vmax.f32 %v9724, 0.0
  %v9733 = vmax.f32 %v9725, 0.0
  %v9734 = vmax.f32 %v9726, 0.0
  %v9735 = vmax.f32 %v9727, 0.0
  %v9736 = vmax.f32 %v9728, 0.0
  %v9737 = vmax.f32 %v9729, 0.0
  %v9738 = vmax.f32 %v9730, 0.0
  %v9739 = vmax.f32 %v9731, 0.0
  %v9740 = vld [vmem:[%s11] sm:$0xff]
  %v9741 = vld [vmem:[%s11 + $0x8] sm:$0x3f]
  %v9742 = vld [vmem:[%s11 + $0xe] sm:$0xff]
  %v9743 = vld [vmem:[%s11 + $0x16] sm:$0x3f]
  %v9744 = vld [vmem:[%s11 + $0x1c] sm:$0xff]
  %v9745 = vld [vmem:[%s11 + $0x24] sm:$0x3f]
  %v9746 = vld [vmem:[%s11 + $0x2a] sm:$0xff]
  %v9747 = vld [vmem:[%s11 + $0x32] sm:$0x3f]
  %v9748 = vld [vmem:[%s11 + $0x38] sm:$0xff]
  %v9749 = vld [vmem:[%s11 + $0x40] sm:$0x3f]
  %v9750 = vld [vmem:[%s11 + $0x46] sm:$0xff]
  %v9751 = vld [vmem:[%s11 + $0x4e] sm:$0x3f]
  %v9752 = vld [vmem:[%s11 + $0x54] sm:$0xff]
  %v9753 = vld [vmem:[%s11 + $0x5c] sm:$0x3f]
  %v9754 = vld [vmem:[%s11 + $0x62] sm:$0xff]
  %v9755 = vld [vmem:[%s11 + $0x6a] sm:$0x3f]
  %v9756 = vld [vmem:[%s11 + $0x70] sm:$0xff]
  %v9757 = vld [vmem:[%s11 + $0x78] sm:$0x3f]
  %v9758 = vld [vmem:[%s11 + $0x7e] sm:$0xff]
  %v9759 = vld [vmem:[%s11 + $0x86] sm:$0x3f]
  %v9760 = vld [vmem:[%s11 + $0x8c] sm:$0xff]
  %v9761 = vld [vmem:[%s11 + $0x94] sm:$0x3f]
  %v9762 = vld [vmem:[%s11 + $0x9a] sm:$0xff]
  %v9763 = vld [vmem:[%s11 + $0xa2] sm:$0x3f]
  %v9764 = vld [vmem:[%s11 + $0xa8] sm:$0xff]
  %v9765 = vld [vmem:[%s11 + $0xb0] sm:$0x3f]
  %v9766 = vld [vmem:[%s11 + $0xb6] sm:$0xff]
  %v9767 = vld [vmem:[%s11 + $0xbe] sm:$0x3f]
  %v9768 = vld [vmem:[%s11 + $0xc4] sm:$0xff]
  %v9769 = vld [vmem:[%s11 + $0xcc] sm:$0x3f]
  %v9770 = vld [vmem:[%s11 + $0xd2] sm:$0xff]
  %v9771 = vld [vmem:[%s11 + $0xda] sm:$0x3f]
  %v9772 = vld [vmem:[%s11 + $0xe0] sm:$0xff]
  %v9773 = vld [vmem:[%s11 + $0xe8] sm:$0x3f]
  %v9774 = vld [vmem:[%s11 + $0xee] sm:$0xff]
  %v9775 = vld [vmem:[%s11 + $0xf6] sm:$0x3f]
  %v9776 = vld [vmem:[%s11 + $0xfc] sm:$0xff]
  %v9777 = vld [vmem:[%s11 + $0x104] sm:$0x3f]
  %v9778 = vld [vmem:[%s11 + $0x10a] sm:$0xff]
  %v9779 = vld [vmem:[%s11 + $0x112] sm:$0x3f]
  %v9780 = vld [vmem:[%s11 + $0x118] sm:$0xff]
  %v9781 = vld [vmem:[%s11 + $0x120] sm:$0x3f]
  %v9782 = vld [vmem:[%s11 + $0x126] sm:$0xff]
  %v9783 = vld [vmem:[%s11 + $0x12e] sm:$0x3f]
  %v9784 = vld [vmem:[%s11 + $0x134] sm:$0xff]
  %v9785 = vld [vmem:[%s11 + $0x13c] sm:$0x3f]
  %v9786 = vld [vmem:[%s11 + $0x142] sm:$0xff]
  %v9787 = vld [vmem:[%s11 + $0x14a] sm:$0x3f]
  %v9788 = vld [vmem:[%s11 + $0x150] sm:$0xff]
  %v9789 = vld [vmem:[%s11 + $0x158] sm:$0x3f]
  %v9790 = vld [vmem:[%s11 + $0x15e] sm:$0xff]
  %v9791 = vld [vmem:[%s11 + $0x166] sm:$0x3f]
  %v9792 = vld [vmem:[%s11 + $0x16c] sm:$0xff]
  %v9793 = vld [vmem:[%s11 + $0x174] sm:$0x3f]
  %v9794 = vld [vmem:[%s11 + $0x17a] sm:$0xff]
  %v9795 = vld [vmem:[%s11 + $0x182] sm:$0x3f]
  %v9796 = vld [vmem:[%s11 + $0x188] sm:$0xff]
  %v9797 = vld [vmem:[%s11 + $0x190] sm:$0x3f]
  %v9798 = vld [vmem:[%s11 + $0x196] sm:$0xff]
  %v9799 = vld [vmem:[%s11 + $0x19e] sm:$0x3f]
  %v9800 = vld [vmem:[%s11 + $0x1a4] sm:$0xff]
  %v9801 = vld [vmem:[%s11 + $0x1ac] sm:$0x3f]
  %v9802 = vld [vmem:[%s11 + $0x1b2] sm:$0xff]
  %v9803 = vld [vmem:[%s11 + $0x1ba] sm:$0x3f]
  %v9804 = vld [vmem:[%s11 + $0x1c0] sm:$0xff]
  %v9805 = vld [vmem:[%s11 + $0x1c8] sm:$0x3f]
  %v9806 = vld [vmem:[%s11 + $0x1ce] sm:$0xff]
  %v9807 = vld [vmem:[%s11 + $0x1d6] sm:$0x3f]
  %v9808 = vld [vmem:[%s11 + $0x1dc] sm:$0xff]
  %v9809 = vld [vmem:[%s11 + $0x1e4] sm:$0x3f]
  %v9810 = vld [vmem:[%s11 + $0x1ea] sm:$0xff]
  %v9811 = vld [vmem:[%s11 + $0x1f2] sm:$0x3f]
  %v9812 = vld [vmem:[%s11 + $0x1f8] sm:$0xff]
  %v9813 = vld [vmem:[%s11 + $0x200] sm:$0x3f]
  %v9814 = vld [vmem:[%s11 + $0x206] sm:$0xff]
  %v9815 = vld [vmem:[%s11 + $0x20e] sm:$0x3f]
  %v9816 = vld [vmem:[%s11 + $0x214] sm:$0xff]
  %v9817 = vld [vmem:[%s11 + $0x21c] sm:$0x3f]
  %v9818 = vld [vmem:[%s11 + $0x222] sm:$0xff]
  %v9819 = vld [vmem:[%s11 + $0x22a] sm:$0x3f]
  %v9820 = vld [vmem:[%s11 + $0x230] sm:$0xff]
  %v9821 = vld [vmem:[%s11 + $0x238] sm:$0x3f]
  %v9822 = vld [vmem:[%s11 + $0x23e] sm:$0xff]
  %v9823 = vld [vmem:[%s11 + $0x246] sm:$0x3f]
  %v9824 = vld [vmem:[%s11 + $0x24c] sm:$0xff]
  %v9825 = vld [vmem:[%s11 + $0x254] sm:$0x3f]
  %v9826 = vld [vmem:[%s11 + $0x25a] sm:$0xff]
  %v9827 = vld [vmem:[%s11 + $0x262] sm:$0x3f]
  %v9828 = vld [vmem:[%s11 + $0x268] sm:$0xff]
  %v9829 = vld [vmem:[%s11 + $0x270] sm:$0x3f]
  %v9830 = vld [vmem:[%s11 + $0x276] sm:$0xff]
  %v9831 = vld [vmem:[%s11 + $0x27e] sm:$0x3f]
  %v9832 = vld [vmem:[%s11 + $0x284] sm:$0xff]
  %v9833 = vld [vmem:[%s11 + $0x28c] sm:$0x3f]
  %v9834 = vld [vmem:[%s11 + $0x292] sm:$0xff]
  %v9835 = vld [vmem:[%s11 + $0x29a] sm:$0x3f]
  %v9836 = vld [vmem:[%s11 + $0x2a0] sm:$0xff]
  %v9837 = vld [vmem:[%s11 + $0x2a8] sm:$0x3f]
  %v9838 = vld [vmem:[%s11 + $0x2ae] sm:$0xff]
  %v9839 = vld [vmem:[%s11 + $0x2b6] sm:$0x3f]
  %v9840 = vld [vmem:[%s11 + $0x2bc] sm:$0xff]
  %v9841 = vld [vmem:[%s11 + $0x2c4] sm:$0x3f]
  %v9842 = vld [vmem:[%s11 + $0x2ca] sm:$0xff]
  %v9843 = vld [vmem:[%s11 + $0x2d2] sm:$0x3f]
  %v9844 = vld [vmem:[%s11 + $0x2d8] sm:$0xff]
  %v9845 = vld [vmem:[%s11 + $0x2e0] sm:$0x3f]
  %v9846 = vld [vmem:[%s11 + $0x2e6] sm:$0xff]
  %v9847 = vld [vmem:[%s11 + $0x2ee] sm:$0x3f]
  %v9848 = vld [vmem:[%s11 + $0x2f4] sm:$0xff]
  %v9849 = vld [vmem:[%s11 + $0x2fc] sm:$0x3f]
  %v9850 = vld [vmem:[%s11 + $0x302] sm:$0xff]
  %v9851 = vld [vmem:[%s11 + $0x30a] sm:$0x3f]
  %v9852 = vld [vmem:[%s11 + $0x310] sm:$0xff]
  %v9853 = vld [vmem:[%s11 + $0x318] sm:$0x3f]
  %v9854 = vld [vmem:[%s11 + $0x31e] sm:$0xff]
  %v9855 = vld [vmem:[%s11 + $0x326] sm:$0x3f]
  %v9856 = vld [vmem:[%s11 + $0x32c] sm:$0xff]
  %v9857 = vld [vmem:[%s11 + $0x334] sm:$0x3f]
  %v9858 = vld [vmem:[%s11 + $0x33a] sm:$0xff]
  %v9859 = vld [vmem:[%s11 + $0x342] sm:$0x3f]
  %v9860 = vld [vmem:[%s11 + $0x348] sm:$0xff]
  %v9861 = vld [vmem:[%s11 + $0x350] sm:$0x3f]
  %v9862 = vld [vmem:[%s11 + $0x356] sm:$0xff]
  %v9863 = vld [vmem:[%s11 + $0x35e] sm:$0x3f]
  %v9864 = vld [vmem:[%s11 + $0x364] sm:$0xff]
  %v9865 = vld [vmem:[%s11 + $0x36c] sm:$0x3f]
  %v9866 = vld [vmem:[%s11 + $0x372] sm:$0xff]
  %v9867 = vld [vmem:[%s11 + $0x37a] sm:$0x3f]
  %v9868 = vld [vmem:[%s11 + $0x380] sm:$0xff]
  %v9869 = vld [vmem:[%s11 + $0x388] sm:$0x3f]
  %v9870 = vld [vmem:[%s11 + $0x38e] sm:$0xff]
  %v9871 = vld [vmem:[%s11 + $0x396] sm:$0x3f]
  %v9872 = vld [vmem:[%s11 + $0x39c] sm:$0xff]
  %v9873 = vld [vmem:[%s11 + $0x3a4] sm:$0x3f]
  %v9874 = vld [vmem:[%s11 + $0x3aa] sm:$0xff]
  %v9875 = vld [vmem:[%s11 + $0x3b2] sm:$0x3f]
  %v9876 = vld [vmem:[%s11 + $0x3b8] sm:$0xff]
  %v9877 = vld [vmem:[%s11 + $0x3c0] sm:$0x3f]
  %v9878 = vld [vmem:[%s11 + $0x3c6] sm:$0xff]
  %v9879 = vld [vmem:[%s11 + $0x3ce] sm:$0x3f]
  %v9880 = vld [vmem:[%s11 + $0x3d4] sm:$0xff]
  %v9881 = vld [vmem:[%s11 + $0x3dc] sm:$0x3f]
  %v9882 = vld [vmem:[%s11 + $0x3e2] sm:$0xff]
  %v9883 = vld [vmem:[%s11 + $0x3ea] sm:$0x3f]
  %v9884 = vld [vmem:[%s11 + $0x3f0] sm:$0xff]
  %v9885 = vld [vmem:[%s11 + $0x3f8] sm:$0x3f]
  %v9886 = vld [vmem:[%s11 + $0x3fe] sm:$0xff]
  %v9887 = vld [vmem:[%s11 + $0x406] sm:$0x3f]
  %v9888 = vld [vmem:[%s11 + $0x40c] sm:$0xff]
  %v9889 = vld [vmem:[%s11 + $0x414] sm:$0x3f]
  %v9890 = vld [vmem:[%s11 + $0x41a] sm:$0xff]
  %v9891 = vld [vmem:[%s11 + $0x422] sm:$0x3f]
  %v9892 = vld [vmem:[%s11 + $0x428] sm:$0xff]
  %v9893 = vld [vmem:[%s11 + $0x430] sm:$0x3f]
  %v9894 = vld [vmem:[%s11 + $0x436] sm:$0xff]
  %v9895 = vld [vmem:[%s11 + $0x43e] sm:$0x3f]
  %v9896 = vld [vmem:[%s11 + $0x444] sm:$0xff]
  %v9897 = vld [vmem:[%s11 + $0x44c] sm:$0x3f]
  %v9898 = vld [vmem:[%s11 + $0x452] sm:$0xff]
  %v9899 = vld [vmem:[%s11 + $0x45a] sm:$0x3f]
  %v9900 = vld [vmem:[%s11 + $0x460] sm:$0xff]
  %v9901 = vld [vmem:[%s11 + $0x468] sm:$0x3f]
  %v9902 = vld [vmem:[%s11 + $0x46e] sm:$0xff]
  %v9903 = vld [vmem:[%s11 + $0x476] sm:$0x3f]
  %v9904 = vld [vmem:[%s11 + $0x47c] sm:$0xff]
  %v9905 = vld [vmem:[%s11 + $0x484] sm:$0x3f]
  %v9906 = vld [vmem:[%s11 + $0x48a] sm:$0xff]
  %v9907 = vld [vmem:[%s11 + $0x492] sm:$0x3f]
  %v9908 = vld [vmem:[%s11 + $0x498] sm:$0xff]
  %v9909 = vld [vmem:[%s11 + $0x4a0] sm:$0x3f]
  %v9910 = vld [vmem:[%s11 + $0x4a6] sm:$0xff]
  %v9911 = vld [vmem:[%s11 + $0x4ae] sm:$0x3f]
  %v9912 = vld [vmem:[%s11 + $0x4b4] sm:$0xff]
  %v9913 = vld [vmem:[%s11 + $0x4bc] sm:$0x3f]
  %v9914 = vld [vmem:[%s11 + $0x4c2] sm:$0xff]
  %v9915 = vld [vmem:[%s11 + $0x4ca] sm:$0x3f]
  %v9916 = vld [vmem:[%s11 + $0x4d0] sm:$0xff]
  %v9917 = vld [vmem:[%s11 + $0x4d8] sm:$0x3f]
  %v9918 = vld [vmem:[%s11 + $0x4de] sm:$0xff]
  %v9919 = vld [vmem:[%s11 + $0x4e6] sm:$0x3f]
  %v9920 = vld [vmem:[%s11 + $0x4ec] sm:$0xff]
  %v9921 = vld [vmem:[%s11 + $0x4f4] sm:$0x3f]
  %v9922 = vld [vmem:[%s11 + $0x4fa] sm:$0xff]
  %v9923 = vld [vmem:[%s11 + $0x502] sm:$0x3f]
  %v9924 = vld [vmem:[%s11 + $0x508] sm:$0xff]
  %v9925 = vld [vmem:[%s11 + $0x510] sm:$0x3f]
  %v9926 = vld [vmem:[%s11 + $0x516] sm:$0xff]
  %v9927 = vld [vmem:[%s11 + $0x51e] sm:$0x3f]
  %v9928 = vld [vmem:[%s11 + $0x524] sm:$0xff]
  %v9929 = vld [vmem:[%s11 + $0x52c] sm:$0x3f]
  %v9930 = vld [vmem:[%s11 + $0x532] sm:$0xff]
  %v9931 = vld [vmem:[%s11 + $0x53a] sm:$0x3f]
  %v9932 = vld [vmem:[%s11 + $0x540] sm:$0xff]
  %v9933 = vld [vmem:[%s11 + $0x548] sm:$0x3f]
  %v9934 = vld [vmem:[%s11 + $0x54e] sm:$0xff]
  %v9935 = vld [vmem:[%s11 + $0x556] sm:$0x3f]
  %v9936 = vld [vmem:[%s11 + $0x55c] sm:$0xff]
  %v9937 = vld [vmem:[%s11 + $0x564] sm:$0x3f]
  %v9938 = vld [vmem:[%s11 + $0x56a] sm:$0xff]
  %v9939 = vld [vmem:[%s11 + $0x572] sm:$0x3f]
  %v9940 = vld [vmem:[%s11 + $0x578] sm:$0xff]
  %v9941 = vld [vmem:[%s11 + $0x580] sm:$0x3f]
  %v9942 = vld [vmem:[%s11 + $0x586] sm:$0xff]
  %v9943 = vld [vmem:[%s11 + $0x58e] sm:$0x3f]
  %v9944 = vld [vmem:[%s11 + $0x594] sm:$0xff]
  %v9945 = vld [vmem:[%s11 + $0x59c] sm:$0x3f]
  %v9946 = vld [vmem:[%s11 + $0x5a2] sm:$0xff]
  %v9947 = vld [vmem:[%s11 + $0x5aa] sm:$0x3f]
  %v9948 = vld [vmem:[%s11 + $0x5b0] sm:$0xff]
  %v9949 = vld [vmem:[%s11 + $0x5b8] sm:$0x3f]
  %v9950 = vld [vmem:[%s11 + $0x5be] sm:$0xff]
  %v9951 = vld [vmem:[%s11 + $0x5c6] sm:$0x3f]
  %v9952 = vld [vmem:[%s11 + $0x5cc] sm:$0xff]
  %v9953 = vld [vmem:[%s11 + $0x5d4] sm:$0x3f]
  %v9954 = vld [vmem:[%s11 + $0x5da] sm:$0xff]
  %v9955 = vld [vmem:[%s11 + $0x5e2] sm:$0x3f]
  %v9956 = vld [vmem:[%s11 + $0x5e8] sm:$0xff]
  %v9957 = vld [vmem:[%s11 + $0x5f0] sm:$0x3f]
  %v9958 = vld [vmem:[%s11 + $0x5f6] sm:$0xff]
  %v9959 = vld [vmem:[%s11 + $0x5fe] sm:$0x3f]
  %v9960 = vld [vmem:[%s11 + $0x604] sm:$0xff]
  %v9961 = vld [vmem:[%s11 + $0x60c] sm:$0x3f]
  %v9962 = vld [vmem:[%s11 + $0x612] sm:$0xff]
  %v9963 = vld [vmem:[%s11 + $0x61a] sm:$0x3f]
  %v9964 = vld [vmem:[%s11 + $0x620] sm:$0xff]
  %v9965 = vld [vmem:[%s11 + $0x628] sm:$0x3f]
  %v9966 = vld [vmem:[%s11 + $0x62e] sm:$0xff]
  %v9967 = vld [vmem:[%s11 + $0x636] sm:$0x3f]
  %v9968 = vld [vmem:[%s11 + $0x63c] sm:$0xff]
  %v9969 = vld [vmem:[%s11 + $0x644] sm:$0x3f]
  %v9970 = vld [vmem:[%s11 + $0x64a] sm:$0xff]
  %v9971 = vld [vmem:[%s11 + $0x652] sm:$0x3f]
  %v9972 = vld [vmem:[%s11 + $0x658] sm:$0xff]
  %v9973 = vld [vmem:[%s11 + $0x660] sm:$0x3f]
  %v9974 = vld [vmem:[%s11 + $0x666] sm:$0xff]
  %v9975 = vld [vmem:[%s11 + $0x66e] sm:$0x3f]
  %v9976 = vld [vmem:[%s11 + $0x674] sm:$0xff]
  %v9977 = vld [vmem:[%s11 + $0x67c] sm:$0x3f]
  %v9978 = vld [vmem:[%s11 + $0x682] sm:$0xff]
  %v9979 = vld [vmem:[%s11 + $0x68a] sm:$0x3f]
  %v9980 = vld [vmem:[%s11 + $0x690] sm:$0xff]
  %v9981 = vld [vmem:[%s11 + $0x698] sm:$0x3f]
  %v9982 = vunpack.c.l.s8.bf16 %v9740
  %v9983 = vunpack.c.h.s8.bf16 %v9740
  %v9984 = vunpack.c.l.s8.bf16 %v9741
  %v9985 = vunpack.c.h.s8.bf16 %v9741
  %v9986 = vunpack.c.l.s8.bf16 %v9742
  %v9987 = vunpack.c.h.s8.bf16 %v9742
  %v9988 = vunpack.c.l.s8.bf16 %v9743
  %v9989 = vunpack.c.h.s8.bf16 %v9743
  %v9990 = vunpack.c.l.s8.bf16 %v9744
  %v9991 = vunpack.c.h.s8.bf16 %v9744
  %v9992 = vunpack.c.l.s8.bf16 %v9745
  %v9993 = vunpack.c.h.s8.bf16 %v9745
  %v9994 = vunpack.c.l.s8.bf16 %v9746
  %v9995 = vunpack.c.h.s8.bf16 %v9746
  %v9996 = vunpack.c.l.s8.bf16 %v9747
  %v9997 = vunpack.c.h.s8.bf16 %v9747
  %v9998 = vunpack.c.l.s8.bf16 %v9748
  %v9999 = vunpack.c.h.s8.bf16 %v9748
  %v10000 = vunpack.c.l.s8.bf16 %v9749
  %v10001 = vunpack.c.h.s8.bf16 %v9749
  %v10002 = vunpack.c.l.s8.bf16 %v9750
  %v10003 = vunpack.c.h.s8.bf16 %v9750
  %v10004 = vunpack.c.l.s8.bf16 %v9751
  %v10005 = vunpack.c.h.s8.bf16 %v9751
  %v10006 = vunpack.c.l.s8.bf16 %v9752
  %v10007 = vunpack.c.h.s8.bf16 %v9752
  %v10008 = vunpack.c.l.s8.bf16 %v9753
  %v10009 = vunpack.c.h.s8.bf16 %v9753
  %v10010 = vunpack.c.l.s8.bf16 %v9754
  %v10011 = vunpack.c.h.s8.bf16 %v9754
  %v10012 = vunpack.c.l.s8.bf16 %v9755
  %v10013 = vunpack.c.h.s8.bf16 %v9755
  %v10014 = vunpack.c.l.s8.bf16 %v9756
  %v10015 = vunpack.c.h.s8.bf16 %v9756
  %v10016 = vunpack.c.l.s8.bf16 %v9757
  %v10017 = vunpack.c.h.s8.bf16 %v9757
  %v10018 = vunpack.c.l.s8.bf16 %v9758
  %v10019 = vunpack.c.h.s8.bf16 %v9758
  %v10020 = vunpack.c.l.s8.bf16 %v9759
  %v10021 = vunpack.c.h.s8.bf16 %v9759
  %v10022 = vunpack.c.l.s8.bf16 %v9760
  %v10023 = vunpack.c.h.s8.bf16 %v9760
  %v10024 = vunpack.c.l.s8.bf16 %v9761
  %v10025 = vunpack.c.h.s8.bf16 %v9761
  %v10026 = vunpack.c.l.s8.bf16 %v9762
  %v10027 = vunpack.c.h.s8.bf16 %v9762
  %v10028 = vunpack.c.l.s8.bf16 %v9763
  %v10029 = vunpack.c.h.s8.bf16 %v9763
  %v10030 = vunpack.c.l.s8.bf16 %v9764
  %v10031 = vunpack.c.h.s8.bf16 %v9764
  %v10032 = vunpack.c.l.s8.bf16 %v9765
  %v10033 = vunpack.c.h.s8.bf16 %v9765
  %v10034 = vunpack.c.l.s8.bf16 %v9766
  %v10035 = vunpack.c.h.s8.bf16 %v9766
  %v10036 = vunpack.c.l.s8.bf16 %v9767
  %v10037 = vunpack.c.h.s8.bf16 %v9767
  %v10038 = vunpack.c.l.s8.bf16 %v9768
  %v10039 = vunpack.c.h.s8.bf16 %v9768
  %v10040 = vunpack.c.l.s8.bf16 %v9769
  %v10041 = vunpack.c.h.s8.bf16 %v9769
  %v10042 = vunpack.c.l.s8.bf16 %v9770
  %v10043 = vunpack.c.h.s8.bf16 %v9770
  %v10044 = vunpack.c.l.s8.bf16 %v9771
  %v10045 = vunpack.c.h.s8.bf16 %v9771
  %v10046 = vunpack.c.l.s8.bf16 %v9772
  %v10047 = vunpack.c.h.s8.bf16 %v9772
  %v10048 = vunpack.c.l.s8.bf16 %v9773
  %v10049 = vunpack.c.h.s8.bf16 %v9773
  %v10050 = vunpack.c.l.s8.bf16 %v9774
  %v10051 = vunpack.c.h.s8.bf16 %v9774
  %v10052 = vunpack.c.l.s8.bf16 %v9775
  %v10053 = vunpack.c.h.s8.bf16 %v9775
  %v10054 = vunpack.c.l.s8.bf16 %v9776
  %v10055 = vunpack.c.h.s8.bf16 %v9776
  %v10056 = vunpack.c.l.s8.bf16 %v9777
  %v10057 = vunpack.c.h.s8.bf16 %v9777
  %v10058 = vunpack.c.l.s8.bf16 %v9778
  %v10059 = vunpack.c.h.s8.bf16 %v9778
  %v10060 = vunpack.c.l.s8.bf16 %v9779
  %v10061 = vunpack.c.h.s8.bf16 %v9779
  %v10062 = vunpack.c.l.s8.bf16 %v9780
  %v10063 = vunpack.c.h.s8.bf16 %v9780
  %v10064 = vunpack.c.l.s8.bf16 %v9781
  %v10065 = vunpack.c.h.s8.bf16 %v9781
  %v10066 = vunpack.c.l.s8.bf16 %v9782
  %v10067 = vunpack.c.h.s8.bf16 %v9782
  %v10068 = vunpack.c.l.s8.bf16 %v9783
  %v10069 = vunpack.c.h.s8.bf16 %v9783
  %v10070 = vunpack.c.l.s8.bf16 %v9784
  %v10071 = vunpack.c.h.s8.bf16 %v9784
  %v10072 = vunpack.c.l.s8.bf16 %v9785
  %v10073 = vunpack.c.h.s8.bf16 %v9785
  %v10074 = vunpack.c.l.s8.bf16 %v9786
  %v10075 = vunpack.c.h.s8.bf16 %v9786
  %v10076 = vunpack.c.l.s8.bf16 %v9787
  %v10077 = vunpack.c.h.s8.bf16 %v9787
  %v10078 = vunpack.c.l.s8.bf16 %v9788
  %v10079 = vunpack.c.h.s8.bf16 %v9788
  %v10080 = vunpack.c.l.s8.bf16 %v9789
  %v10081 = vunpack.c.h.s8.bf16 %v9789
  %v10082 = vunpack.c.l.s8.bf16 %v9790
  %v10083 = vunpack.c.h.s8.bf16 %v9790
  %v10084 = vunpack.c.l.s8.bf16 %v9791
  %v10085 = vunpack.c.h.s8.bf16 %v9791
  %v10086 = vunpack.c.l.s8.bf16 %v9792
  %v10087 = vunpack.c.h.s8.bf16 %v9792
  %v10088 = vunpack.c.l.s8.bf16 %v9793
  %v10089 = vunpack.c.h.s8.bf16 %v9793
  %v10090 = vunpack.c.l.s8.bf16 %v9794
  %v10091 = vunpack.c.h.s8.bf16 %v9794
  %v10092 = vunpack.c.l.s8.bf16 %v9795
  %v10093 = vunpack.c.h.s8.bf16 %v9795
  %v10094 = vunpack.c.l.s8.bf16 %v9796
  %v10095 = vunpack.c.h.s8.bf16 %v9796
  %v10096 = vunpack.c.l.s8.bf16 %v9797
  %v10097 = vunpack.c.h.s8.bf16 %v9797
  %v10098 = vunpack.c.l.s8.bf16 %v9798
  %v10099 = vunpack.c.h.s8.bf16 %v9798
  %v10100 = vunpack.c.l.s8.bf16 %v9799
  %v10101 = vunpack.c.h.s8.bf16 %v9799
  %v10102 = vunpack.c.l.s8.bf16 %v9800
  %v10103 = vunpack.c.h.s8.bf16 %v9800
  %v10104 = vunpack.c.l.s8.bf16 %v9801
  %v10105 = vunpack.c.h.s8.bf16 %v9801
  %v10106 = vunpack.c.l.s8.bf16 %v9802
  %v10107 = vunpack.c.h.s8.bf16 %v9802
  %v10108 = vunpack.c.l.s8.bf16 %v9803
  %v10109 = vunpack.c.h.s8.bf16 %v9803
  %v10110 = vunpack.c.l.s8.bf16 %v9804
  %v10111 = vunpack.c.h.s8.bf16 %v9804
  %v10112 = vunpack.c.l.s8.bf16 %v9805
  %v10113 = vunpack.c.h.s8.bf16 %v9805
  %v10114 = vunpack.c.l.s8.bf16 %v9806
  %v10115 = vunpack.c.h.s8.bf16 %v9806
  %v10116 = vunpack.c.l.s8.bf16 %v9807
  %v10117 = vunpack.c.h.s8.bf16 %v9807
  %v10118 = vunpack.c.l.s8.bf16 %v9808
  %v10119 = vunpack.c.h.s8.bf16 %v9808
  %v10120 = vunpack.c.l.s8.bf16 %v9809
  %v10121 = vunpack.c.h.s8.bf16 %v9809
  %v10122 = vunpack.c.l.s8.bf16 %v9810
  %v10123 = vunpack.c.h.s8.bf16 %v9810
  %v10124 = vunpack.c.l.s8.bf16 %v9811
  %v10125 = vunpack.c.h.s8.bf16 %v9811
  %v10126 = vunpack.c.l.s8.bf16 %v9812
  %v10127 = vunpack.c.h.s8.bf16 %v9812
  %v10128 = vunpack.c.l.s8.bf16 %v9813
  %v10129 = vunpack.c.h.s8.bf16 %v9813
  %v10130 = vunpack.c.l.s8.bf16 %v9814
  %v10131 = vunpack.c.h.s8.bf16 %v9814
  %v10132 = vunpack.c.l.s8.bf16 %v9815
  %v10133 = vunpack.c.h.s8.bf16 %v9815
  %v10134 = vunpack.c.l.s8.bf16 %v9816
  %v10135 = vunpack.c.h.s8.bf16 %v9816
  %v10136 = vunpack.c.l.s8.bf16 %v9817
  %v10137 = vunpack.c.h.s8.bf16 %v9817
  %v10138 = vunpack.c.l.s8.bf16 %v9818
  %v10139 = vunpack.c.h.s8.bf16 %v9818
  %v10140 = vunpack.c.l.s8.bf16 %v9819
  %v10141 = vunpack.c.h.s8.bf16 %v9819
  %v10142 = vunpack.c.l.s8.bf16 %v9820
  %v10143 = vunpack.c.h.s8.bf16 %v9820
  %v10144 = vunpack.c.l.s8.bf16 %v9821
  %v10145 = vunpack.c.h.s8.bf16 %v9821
  %v10146 = vunpack.c.l.s8.bf16 %v9822
  %v10147 = vunpack.c.h.s8.bf16 %v9822
  %v10148 = vunpack.c.l.s8.bf16 %v9823
  %v10149 = vunpack.c.h.s8.bf16 %v9823
  %v10150 = vunpack.c.l.s8.bf16 %v9824
  %v10151 = vunpack.c.h.s8.bf16 %v9824
  %v10152 = vunpack.c.l.s8.bf16 %v9825
  %v10153 = vunpack.c.h.s8.bf16 %v9825
  %v10154 = vunpack.c.l.s8.bf16 %v9826
  %v10155 = vunpack.c.h.s8.bf16 %v9826
  %v10156 = vunpack.c.l.s8.bf16 %v9827
  %v10157 = vunpack.c.h.s8.bf16 %v9827
  %v10158 = vunpack.c.l.s8.bf16 %v9828
  %v10159 = vunpack.c.h.s8.bf16 %v9828
  %v10160 = vunpack.c.l.s8.bf16 %v9829
  %v10161 = vunpack.c.h.s8.bf16 %v9829
  %v10162 = vunpack.c.l.s8.bf16 %v9830
  %v10163 = vunpack.c.h.s8.bf16 %v9830
  %v10164 = vunpack.c.l.s8.bf16 %v9831
  %v10165 = vunpack.c.h.s8.bf16 %v9831
  %v10166 = vunpack.c.l.s8.bf16 %v9832
  %v10167 = vunpack.c.h.s8.bf16 %v9832
  %v10168 = vunpack.c.l.s8.bf16 %v9833
  %v10169 = vunpack.c.h.s8.bf16 %v9833
  %v10170 = vunpack.c.l.s8.bf16 %v9834
  %v10171 = vunpack.c.h.s8.bf16 %v9834
  %v10172 = vunpack.c.l.s8.bf16 %v9835
  %v10173 = vunpack.c.h.s8.bf16 %v9835
  %v10174 = vunpack.c.l.s8.bf16 %v9836
  %v10175 = vunpack.c.h.s8.bf16 %v9836
  %v10176 = vunpack.c.l.s8.bf16 %v9837
  %v10177 = vunpack.c.h.s8.bf16 %v9837
  %v10178 = vunpack.c.l.s8.bf16 %v9838
  %v10179 = vunpack.c.h.s8.bf16 %v9838
  %v10180 = vunpack.c.l.s8.bf16 %v9839
  %v10181 = vunpack.c.h.s8.bf16 %v9839
  %v10182 = vunpack.c.l.s8.bf16 %v9840
  %v10183 = vunpack.c.h.s8.bf16 %v9840
  %v10184 = vunpack.c.l.s8.bf16 %v9841
  %v10185 = vunpack.c.h.s8.bf16 %v9841
  %v10186 = vunpack.c.l.s8.bf16 %v9842
  %v10187 = vunpack.c.h.s8.bf16 %v9842
  %v10188 = vunpack.c.l.s8.bf16 %v9843
  %v10189 = vunpack.c.h.s8.bf16 %v9843
  %v10190 = vunpack.c.l.s8.bf16 %v9844
  %v10191 = vunpack.c.h.s8.bf16 %v9844
  %v10192 = vunpack.c.l.s8.bf16 %v9845
  %v10193 = vunpack.c.h.s8.bf16 %v9845
  %v10194 = vunpack.c.l.s8.bf16 %v9846
  %v10195 = vunpack.c.h.s8.bf16 %v9846
  %v10196 = vunpack.c.l.s8.bf16 %v9847
  %v10197 = vunpack.c.h.s8.bf16 %v9847
  %v10198 = vunpack.c.l.s8.bf16 %v9848
  %v10199 = vunpack.c.h.s8.bf16 %v9848
  %v10200 = vunpack.c.l.s8.bf16 %v9849
  %v10201 = vunpack.c.h.s8.bf16 %v9849
  %v10202 = vunpack.c.l.s8.bf16 %v9850
  %v10203 = vunpack.c.h.s8.bf16 %v9850
  %v10204 = vunpack.c.l.s8.bf16 %v9851
  %v10205 = vunpack.c.h.s8.bf16 %v9851
  %v10206 = vunpack.c.l.s8.bf16 %v9852
  %v10207 = vunpack.c.h.s8.bf16 %v9852
  %v10208 = vunpack.c.l.s8.bf16 %v9853
  %v10209 = vunpack.c.h.s8.bf16 %v9853
  %v10210 = vunpack.c.l.s8.bf16 %v9854
  %v10211 = vunpack.c.h.s8.bf16 %v9854
  %v10212 = vunpack.c.l.s8.bf16 %v9855
  %v10213 = vunpack.c.h.s8.bf16 %v9855
  %v10214 = vunpack.c.l.s8.bf16 %v9856
  %v10215 = vunpack.c.h.s8.bf16 %v9856
  %v10216 = vunpack.c.l.s8.bf16 %v9857
  %v10217 = vunpack.c.h.s8.bf16 %v9857
  %v10218 = vunpack.c.l.s8.bf16 %v9858
  %v10219 = vunpack.c.h.s8.bf16 %v9858
  %v10220 = vunpack.c.l.s8.bf16 %v9859
  %v10221 = vunpack.c.h.s8.bf16 %v9859
  %v10222 = vunpack.c.l.s8.bf16 %v9860
  %v10223 = vunpack.c.h.s8.bf16 %v9860
  %v10224 = vunpack.c.l.s8.bf16 %v9861
  %v10225 = vunpack.c.h.s8.bf16 %v9861
  %v10226 = vunpack.c.l.s8.bf16 %v9862
  %v10227 = vunpack.c.h.s8.bf16 %v9862
  %v10228 = vunpack.c.l.s8.bf16 %v9863
  %v10229 = vunpack.c.h.s8.bf16 %v9863
  %v10230 = vunpack.c.l.s8.bf16 %v9864
  %v10231 = vunpack.c.h.s8.bf16 %v9864
  %v10232 = vunpack.c.l.s8.bf16 %v9865
  %v10233 = vunpack.c.h.s8.bf16 %v9865
  %v10234 = vunpack.c.l.s8.bf16 %v9866
  %v10235 = vunpack.c.h.s8.bf16 %v9866
  %v10236 = vunpack.c.l.s8.bf16 %v9867
  %v10237 = vunpack.c.h.s8.bf16 %v9867
  %v10238 = vunpack.c.l.s8.bf16 %v9868
  %v10239 = vunpack.c.h.s8.bf16 %v9868
  %v10240 = vunpack.c.l.s8.bf16 %v9869
  %v10241 = vunpack.c.h.s8.bf16 %v9869
  %v10242 = vunpack.c.l.s8.bf16 %v9870
  %v10243 = vunpack.c.h.s8.bf16 %v9870
  %v10244 = vunpack.c.l.s8.bf16 %v9871
  %v10245 = vunpack.c.h.s8.bf16 %v9871
  %v10246 = vunpack.c.l.s8.bf16 %v9872
  %v10247 = vunpack.c.h.s8.bf16 %v9872
  %v10248 = vunpack.c.l.s8.bf16 %v9873
  %v10249 = vunpack.c.h.s8.bf16 %v9873
  %v10250 = vunpack.c.l.s8.bf16 %v9874
  %v10251 = vunpack.c.h.s8.bf16 %v9874
  %v10252 = vunpack.c.l.s8.bf16 %v9875
  %v10253 = vunpack.c.h.s8.bf16 %v9875
  %v10254 = vunpack.c.l.s8.bf16 %v9876
  %v10255 = vunpack.c.h.s8.bf16 %v9876
  %v10256 = vunpack.c.l.s8.bf16 %v9877
  %v10257 = vunpack.c.h.s8.bf16 %v9877
  %v10258 = vunpack.c.l.s8.bf16 %v9878
  %v10259 = vunpack.c.h.s8.bf16 %v9878
  %v10260 = vunpack.c.l.s8.bf16 %v9879
  %v10261 = vunpack.c.h.s8.bf16 %v9879
  %v10262 = vunpack.c.l.s8.bf16 %v9880
  %v10263 = vunpack.c.h.s8.bf16 %v9880
  %v10264 = vunpack.c.l.s8.bf16 %v9881
  %v10265 = vunpack.c.h.s8.bf16 %v9881
  %v10266 = vunpack.c.l.s8.bf16 %v9882
  %v10267 = vunpack.c.h.s8.bf16 %v9882
  %v10268 = vunpack.c.l.s8.bf16 %v9883
  %v10269 = vunpack.c.h.s8.bf16 %v9883
  %v10270 = vunpack.c.l.s8.bf16 %v9884
  %v10271 = vunpack.c.h.s8.bf16 %v9884
  %v10272 = vunpack.c.l.s8.bf16 %v9885
  %v10273 = vunpack.c.h.s8.bf16 %v9885
  %v10274 = vunpack.c.l.s8.bf16 %v9886
  %v10275 = vunpack.c.h.s8.bf16 %v9886
  %v10276 = vunpack.c.l.s8.bf16 %v9887
  %v10277 = vunpack.c.h.s8.bf16 %v9887
  %v10278 = vunpack.c.l.s8.bf16 %v9888
  %v10279 = vunpack.c.h.s8.bf16 %v9888
  %v10280 = vunpack.c.l.s8.bf16 %v9889
  %v10281 = vunpack.c.h.s8.bf16 %v9889
  %v10282 = vunpack.c.l.s8.bf16 %v9890
  %v10283 = vunpack.c.h.s8.bf16 %v9890
  %v10284 = vunpack.c.l.s8.bf16 %v9891
  %v10285 = vunpack.c.h.s8.bf16 %v9891
  %v10286 = vunpack.c.l.s8.bf16 %v9892
  %v10287 = vunpack.c.h.s8.bf16 %v9892
  %v10288 = vunpack.c.l.s8.bf16 %v9893
  %v10289 = vunpack.c.h.s8.bf16 %v9893
  %v10290 = vunpack.c.l.s8.bf16 %v9894
  %v10291 = vunpack.c.h.s8.bf16 %v9894
  %v10292 = vunpack.c.l.s8.bf16 %v9895
  %v10293 = vunpack.c.h.s8.bf16 %v9895
  %v10294 = vunpack.c.l.s8.bf16 %v9896
  %v10295 = vunpack.c.h.s8.bf16 %v9896
  %v10296 = vunpack.c.l.s8.bf16 %v9897
  %v10297 = vunpack.c.h.s8.bf16 %v9897
  %v10298 = vunpack.c.l.s8.bf16 %v9898
  %v10299 = vunpack.c.h.s8.bf16 %v9898
  %v10300 = vunpack.c.l.s8.bf16 %v9899
  %v10301 = vunpack.c.h.s8.bf16 %v9899
  %v10302 = vunpack.c.l.s8.bf16 %v9900
  %v10303 = vunpack.c.h.s8.bf16 %v9900
  %v10304 = vunpack.c.l.s8.bf16 %v9901
  %v10305 = vunpack.c.h.s8.bf16 %v9901
  %v10306 = vunpack.c.l.s8.bf16 %v9902
  %v10307 = vunpack.c.h.s8.bf16 %v9902
  %v10308 = vunpack.c.l.s8.bf16 %v9903
  %v10309 = vunpack.c.h.s8.bf16 %v9903
  %v10310 = vunpack.c.l.s8.bf16 %v9904
  %v10311 = vunpack.c.h.s8.bf16 %v9904
  %v10312 = vunpack.c.l.s8.bf16 %v9905
  %v10313 = vunpack.c.h.s8.bf16 %v9905
  %v10314 = vunpack.c.l.s8.bf16 %v9906
  %v10315 = vunpack.c.h.s8.bf16 %v9906
  %v10316 = vunpack.c.l.s8.bf16 %v9907
  %v10317 = vunpack.c.h.s8.bf16 %v9907
  %v10318 = vunpack.c.l.s8.bf16 %v9908
  %v10319 = vunpack.c.h.s8.bf16 %v9908
  %v10320 = vunpack.c.l.s8.bf16 %v9909
  %v10321 = vunpack.c.h.s8.bf16 %v9909
  %v10322 = vunpack.c.l.s8.bf16 %v9910
  %v10323 = vunpack.c.h.s8.bf16 %v9910
  %v10324 = vunpack.c.l.s8.bf16 %v9911
  %v10325 = vunpack.c.h.s8.bf16 %v9911
  %v10326 = vunpack.c.l.s8.bf16 %v9912
  %v10327 = vunpack.c.h.s8.bf16 %v9912
  %v10328 = vunpack.c.l.s8.bf16 %v9913
  %v10329 = vunpack.c.h.s8.bf16 %v9913
  %v10330 = vunpack.c.l.s8.bf16 %v9914
  %v10331 = vunpack.c.h.s8.bf16 %v9914
  %v10332 = vunpack.c.l.s8.bf16 %v9915
  %v10333 = vunpack.c.h.s8.bf16 %v9915
  %v10334 = vunpack.c.l.s8.bf16 %v9916
  %v10335 = vunpack.c.h.s8.bf16 %v9916
  %v10336 = vunpack.c.l.s8.bf16 %v9917
  %v10337 = vunpack.c.h.s8.bf16 %v9917
  %v10338 = vunpack.c.l.s8.bf16 %v9918
  %v10339 = vunpack.c.h.s8.bf16 %v9918
  %v10340 = vunpack.c.l.s8.bf16 %v9919
  %v10341 = vunpack.c.h.s8.bf16 %v9919
  %v10342 = vunpack.c.l.s8.bf16 %v9920
  %v10343 = vunpack.c.h.s8.bf16 %v9920
  %v10344 = vunpack.c.l.s8.bf16 %v9921
  %v10345 = vunpack.c.h.s8.bf16 %v9921
  %v10346 = vunpack.c.l.s8.bf16 %v9922
  %v10347 = vunpack.c.h.s8.bf16 %v9922
  %v10348 = vunpack.c.l.s8.bf16 %v9923
  %v10349 = vunpack.c.h.s8.bf16 %v9923
  %v10350 = vunpack.c.l.s8.bf16 %v9924
  %v10351 = vunpack.c.h.s8.bf16 %v9924
  %v10352 = vunpack.c.l.s8.bf16 %v9925
  %v10353 = vunpack.c.h.s8.bf16 %v9925
  %v10354 = vunpack.c.l.s8.bf16 %v9926
  %v10355 = vunpack.c.h.s8.bf16 %v9926
  %v10356 = vunpack.c.l.s8.bf16 %v9927
  %v10357 = vunpack.c.h.s8.bf16 %v9927
  %v10358 = vunpack.c.l.s8.bf16 %v9928
  %v10359 = vunpack.c.h.s8.bf16 %v9928
  %v10360 = vunpack.c.l.s8.bf16 %v9929
  %v10361 = vunpack.c.h.s8.bf16 %v9929
  %v10362 = vunpack.c.l.s8.bf16 %v9930
  %v10363 = vunpack.c.h.s8.bf16 %v9930
  %v10364 = vunpack.c.l.s8.bf16 %v9931
  %v10365 = vunpack.c.h.s8.bf16 %v9931
  %v10366 = vunpack.c.l.s8.bf16 %v9932
  %v10367 = vunpack.c.h.s8.bf16 %v9932
  %v10368 = vunpack.c.l.s8.bf16 %v9933
  %v10369 = vunpack.c.h.s8.bf16 %v9933
  %v10370 = vunpack.c.l.s8.bf16 %v9934
  %v10371 = vunpack.c.h.s8.bf16 %v9934
  %v10372 = vunpack.c.l.s8.bf16 %v9935
  %v10373 = vunpack.c.h.s8.bf16 %v9935
  %v10374 = vunpack.c.l.s8.bf16 %v9936
  %v10375 = vunpack.c.h.s8.bf16 %v9936
  %v10376 = vunpack.c.l.s8.bf16 %v9937
  %v10377 = vunpack.c.h.s8.bf16 %v9937
  %v10378 = vunpack.c.l.s8.bf16 %v9938
  %v10379 = vunpack.c.h.s8.bf16 %v9938
  %v10380 = vunpack.c.l.s8.bf16 %v9939
  %v10381 = vunpack.c.h.s8.bf16 %v9939
  %v10382 = vunpack.c.l.s8.bf16 %v9940
  %v10383 = vunpack.c.h.s8.bf16 %v9940
  %v10384 = vunpack.c.l.s8.bf16 %v9941
  %v10385 = vunpack.c.h.s8.bf16 %v9941
  %v10386 = vunpack.c.l.s8.bf16 %v9942
  %v10387 = vunpack.c.h.s8.bf16 %v9942
  %v10388 = vunpack.c.l.s8.bf16 %v9943
  %v10389 = vunpack.c.h.s8.bf16 %v9943
  %v10390 = vunpack.c.l.s8.bf16 %v9944
  %v10391 = vunpack.c.h.s8.bf16 %v9944
  %v10392 = vunpack.c.l.s8.bf16 %v9945
  %v10393 = vunpack.c.h.s8.bf16 %v9945
  %v10394 = vunpack.c.l.s8.bf16 %v9946
  %v10395 = vunpack.c.h.s8.bf16 %v9946
  %v10396 = vunpack.c.l.s8.bf16 %v9947
  %v10397 = vunpack.c.h.s8.bf16 %v9947
  %v10398 = vunpack.c.l.s8.bf16 %v9948
  %v10399 = vunpack.c.h.s8.bf16 %v9948
  %v10400 = vunpack.c.l.s8.bf16 %v9949
  %v10401 = vunpack.c.h.s8.bf16 %v9949
  %v10402 = vunpack.c.l.s8.bf16 %v9950
  %v10403 = vunpack.c.h.s8.bf16 %v9950
  %v10404 = vunpack.c.l.s8.bf16 %v9951
  %v10405 = vunpack.c.h.s8.bf16 %v9951
  %v10406 = vunpack.c.l.s8.bf16 %v9952
  %v10407 = vunpack.c.h.s8.bf16 %v9952
  %v10408 = vunpack.c.l.s8.bf16 %v9953
  %v10409 = vunpack.c.h.s8.bf16 %v9953
  %v10410 = vunpack.c.l.s8.bf16 %v9954
  %v10411 = vunpack.c.h.s8.bf16 %v9954
  %v10412 = vunpack.c.l.s8.bf16 %v9955
  %v10413 = vunpack.c.h.s8.bf16 %v9955
  %v10414 = vunpack.c.l.s8.bf16 %v9956
  %v10415 = vunpack.c.h.s8.bf16 %v9956
  %v10416 = vunpack.c.l.s8.bf16 %v9957
  %v10417 = vunpack.c.h.s8.bf16 %v9957
  %v10418 = vunpack.c.l.s8.bf16 %v9958
  %v10419 = vunpack.c.h.s8.bf16 %v9958
  %v10420 = vunpack.c.l.s8.bf16 %v9959
  %v10421 = vunpack.c.h.s8.bf16 %v9959
  %v10422 = vunpack.c.l.s8.bf16 %v9960
  %v10423 = vunpack.c.h.s8.bf16 %v9960
  %v10424 = vunpack.c.l.s8.bf16 %v9961
  %v10425 = vunpack.c.h.s8.bf16 %v9961
  %v10426 = vunpack.c.l.s8.bf16 %v9962
  %v10427 = vunpack.c.h.s8.bf16 %v9962
  %v10428 = vunpack.c.l.s8.bf16 %v9963
  %v10429 = vunpack.c.h.s8.bf16 %v9963
  %v10430 = vunpack.c.l.s8.bf16 %v9964
  %v10431 = vunpack.c.h.s8.bf16 %v9964
  %v10432 = vunpack.c.l.s8.bf16 %v9965
  %v10433 = vunpack.c.h.s8.bf16 %v9965
  %v10434 = vunpack.c.l.s8.bf16 %v9966
  %v10435 = vunpack.c.h.s8.bf16 %v9966
  %v10436 = vunpack.c.l.s8.bf16 %v9967
  %v10437 = vunpack.c.h.s8.bf16 %v9967
  %v10438 = vunpack.c.l.s8.bf16 %v9968
  %v10439 = vunpack.c.h.s8.bf16 %v9968
  %v10440 = vunpack.c.l.s8.bf16 %v9969
  %v10441 = vunpack.c.h.s8.bf16 %v9969
  %v10442 = vunpack.c.l.s8.bf16 %v9970
  %v10443 = vunpack.c.h.s8.bf16 %v9970
  %v10444 = vunpack.c.l.s8.bf16 %v9971
  %v10445 = vunpack.c.h.s8.bf16 %v9971
  %v10446 = vunpack.c.l.s8.bf16 %v9972
  %v10447 = vunpack.c.h.s8.bf16 %v9972
  %v10448 = vunpack.c.l.s8.bf16 %v9973
  %v10449 = vunpack.c.h.s8.bf16 %v9973
  %v10450 = vunpack.c.l.s8.bf16 %v9974
  %v10451 = vunpack.c.h.s8.bf16 %v9974
  %v10452 = vunpack.c.l.s8.bf16 %v9975
  %v10453 = vunpack.c.h.s8.bf16 %v9975
  %v10454 = vunpack.c.l.s8.bf16 %v9976
  %v10455 = vunpack.c.h.s8.bf16 %v9976
  %v10456 = vunpack.c.l.s8.bf16 %v9977
  %v10457 = vunpack.c.h.s8.bf16 %v9977
  %v10458 = vunpack.c.l.s8.bf16 %v9978
  %v10459 = vunpack.c.h.s8.bf16 %v9978
  %v10460 = vunpack.c.l.s8.bf16 %v9979
  %v10461 = vunpack.c.h.s8.bf16 %v9979
  %v10462 = vunpack.c.l.s8.bf16 %v9980
  %v10463 = vunpack.c.h.s8.bf16 %v9980
  %v10464 = vunpack.c.l.s8.bf16 %v9981
  %v10465 = vunpack.c.h.s8.bf16 %v9981
  %v10466 = vpack.c.bf16 %v9732, %v9732
  %v10467 = vpack.c.bf16 %v9733, %v9733
  %v10468 = vpack.c.bf16 %v9734, %v9734
  %v10469 = vpack.c.bf16 %v9735, %v9735
  %v10470 = vpack.c.bf16 %v9736, %v9736
  %v10471 = vpack.c.bf16 %v9737, %v9737
  %v10472 = vpack.c.bf16 %v9738, %v9738
  %v10473 = vpack.c.bf16 %v9739, %v9739
  %v10958 = vunpack.c.l.b16 %v9982
  %v10959 = vunpack.c.h.b16 %v9982
  %v10960 = vunpack.c.l.b16 %v9983
  %v10961 = vunpack.c.h.b16 %v9983
  %v10962 = vunpack.c.l.b16 %v9984
  %v10963 = vunpack.c.h.b16 %v9984
  %v10964 = vunpack.c.l.b16 %v9985
  %v10965 = vunpack.c.l.b16 %v9986
  %v10966 = vunpack.c.h.b16 %v9986
  %v10967 = vunpack.c.l.b16 %v9987
  %v10968 = vunpack.c.h.b16 %v9987
  %v10969 = vunpack.c.l.b16 %v9988
  %v10970 = vunpack.c.h.b16 %v9988
  %v10971 = vunpack.c.l.b16 %v9989
  %v10972 = vunpack.c.l.b16 %v9990
  %v10973 = vunpack.c.h.b16 %v9990
  %v10974 = vunpack.c.l.b16 %v9991
  %v10975 = vunpack.c.h.b16 %v9991
  %v10976 = vunpack.c.l.b16 %v9992
  %v10977 = vunpack.c.h.b16 %v9992
  %v10978 = vunpack.c.l.b16 %v9993
  %v10979 = vunpack.c.l.b16 %v9994
  %v10980 = vunpack.c.h.b16 %v9994
  %v10981 = vunpack.c.l.b16 %v9995
  %v10982 = vunpack.c.h.b16 %v9995
  %v10983 = vunpack.c.l.b16 %v9996
  %v10984 = vunpack.c.h.b16 %v9996
  %v10985 = vunpack.c.l.b16 %v9997
  %v10986 = vunpack.c.l.b16 %v9998
  %v10987 = vunpack.c.h.b16 %v9998
  %v10988 = vunpack.c.l.b16 %v9999
  %v10989 = vunpack.c.h.b16 %v9999
  %v10990 = vunpack.c.l.b16 %v10000
  %v10991 = vunpack.c.h.b16 %v10000
  %v10992 = vunpack.c.l.b16 %v10001
  %v10993 = vunpack.c.l.b16 %v10002
  %v10994 = vunpack.c.h.b16 %v10002
  %v10995 = vunpack.c.l.b16 %v10003
  %v10996 = vunpack.c.h.b16 %v10003
  %v10997 = vunpack.c.l.b16 %v10004
  %v10998 = vunpack.c.h.b16 %v10004
  %v10999 = vunpack.c.l.b16 %v10005
  %v11000 = vunpack.c.l.b16 %v10006
  %v11001 = vunpack.c.h.b16 %v10006
  %v11002 = vunpack.c.l.b16 %v10007
  %v11003 = vunpack.c.h.b16 %v10007
  %v11004 = vunpack.c.l.b16 %v10008
  %v11005 = vunpack.c.h.b16 %v10008
  %v11006 = vunpack.c.l.b16 %v10009
  %v11007 = vunpack.c.l.b16 %v10010
  %v11008 = vunpack.c.h.b16 %v10010
  %v11009 = vunpack.c.l.b16 %v10011
  %v11010 = vunpack.c.h.b16 %v10011
  %v11011 = vunpack.c.l.b16 %v10012
  %v11012 = vunpack.c.h.b16 %v10012
  %v11013 = vunpack.c.l.b16 %v10013
  %v11014 = vunpack.c.l.b16 %v10014
  %v11015 = vunpack.c.h.b16 %v10014
  %v11016 = vunpack.c.l.b16 %v10015
  %v11017 = vunpack.c.h.b16 %v10015
  %v11018 = vunpack.c.l.b16 %v10016
  %v11019 = vunpack.c.h.b16 %v10016
  %v11020 = vunpack.c.l.b16 %v10017
  %v11021 = vunpack.c.l.b16 %v10018
  %v11022 = vunpack.c.h.b16 %v10018
  %v11023 = vunpack.c.l.b16 %v10019
  %v11024 = vunpack.c.h.b16 %v10019
  %v11025 = vunpack.c.l.b16 %v10020
  %v11026 = vunpack.c.h.b16 %v10020
  %v11027 = vunpack.c.l.b16 %v10021
  %v11028 = vunpack.c.l.b16 %v10022
  %v11029 = vunpack.c.h.b16 %v10022
  %v11030 = vunpack.c.l.b16 %v10023
  %v11031 = vunpack.c.h.b16 %v10023
  %v11032 = vunpack.c.l.b16 %v10024
  %v11033 = vunpack.c.h.b16 %v10024
  %v11034 = vunpack.c.l.b16 %v10025
  %v11035 = vunpack.c.l.b16 %v10026
  %v11036 = vunpack.c.h.b16 %v10026
  %v11037 = vunpack.c.l.b16 %v10027
  %v11038 = vunpack.c.h.b16 %v10027
  %v11039 = vunpack.c.l.b16 %v10028
  %v11040 = vunpack.c.h.b16 %v10028
  %v11041 = vunpack.c.l.b16 %v10029
  %v11042 = vunpack.c.l.b16 %v10030
  %v11043 = vunpack.c.h.b16 %v10030
  %v11044 = vunpack.c.l.b16 %v10031
  %v11045 = vunpack.c.h.b16 %v10031
  %v11046 = vunpack.c.l.b16 %v10032
  %v11047 = vunpack.c.h.b16 %v10032
  %v11048 = vunpack.c.l.b16 %v10033
  %v11049 = vunpack.c.l.b16 %v10034
  %v11050 = vunpack.c.h.b16 %v10034
  %v11051 = vunpack.c.l.b16 %v10035
  %v11052 = vunpack.c.h.b16 %v10035
  %v11053 = vunpack.c.l.b16 %v10036
  %v11054 = vunpack.c.h.b16 %v10036
  %v11055 = vunpack.c.l.b16 %v10037
  %v11056 = vunpack.c.l.b16 %v10038
  %v11057 = vunpack.c.h.b16 %v10038
  %v11058 = vunpack.c.l.b16 %v10039
  %v11059 = vunpack.c.h.b16 %v10039
  %v11060 = vunpack.c.l.b16 %v10040
  %v11061 = vunpack.c.h.b16 %v10040
  %v11062 = vunpack.c.l.b16 %v10041
  %v11063 = vunpack.c.l.b16 %v10042
  %v11064 = vunpack.c.h.b16 %v10042
  %v11065 = vunpack.c.l.b16 %v10043
  %v11066 = vunpack.c.h.b16 %v10043
  %v11067 = vunpack.c.l.b16 %v10044
  %v11068 = vunpack.c.h.b16 %v10044
  %v11069 = vunpack.c.l.b16 %v10045
  %v11070 = vunpack.c.l.b16 %v10046
  %v11071 = vunpack.c.h.b16 %v10046
  %v11072 = vunpack.c.l.b16 %v10047
  %v11073 = vunpack.c.h.b16 %v10047
  %v11074 = vunpack.c.l.b16 %v10048
  %v11075 = vunpack.c.h.b16 %v10048
  %v11076 = vunpack.c.l.b16 %v10049
  %v11077 = vunpack.c.l.b16 %v10050
  %v11078 = vunpack.c.h.b16 %v10050
  %v11079 = vunpack.c.l.b16 %v10051
  %v11080 = vunpack.c.h.b16 %v10051
  %v11081 = vunpack.c.l.b16 %v10052
  %v11082 = vunpack.c.h.b16 %v10052
  %v11083 = vunpack.c.l.b16 %v10053
  %v11084 = vunpack.c.l.b16 %v10054
  %v11085 = vunpack.c.h.b16 %v10054
  %v11086 = vunpack.c.l.b16 %v10055
  %v11087 = vunpack.c.h.b16 %v10055
  %v11088 = vunpack.c.l.b16 %v10056
  %v11089 = vunpack.c.h.b16 %v10056
  %v11090 = vunpack.c.l.b16 %v10057
  %v11091 = vunpack.c.l.b16 %v10058
  %v11092 = vunpack.c.h.b16 %v10058
  %v11093 = vunpack.c.l.b16 %v10059
  %v11094 = vunpack.c.h.b16 %v10059
  %v11095 = vunpack.c.l.b16 %v10060
  %v11096 = vunpack.c.h.b16 %v10060
  %v11097 = vunpack.c.l.b16 %v10061
  %v11098 = vunpack.c.l.b16 %v10062
  %v11099 = vunpack.c.h.b16 %v10062
  %v11100 = vunpack.c.l.b16 %v10063
  %v11101 = vunpack.c.h.b16 %v10063
  %v11102 = vunpack.c.l.b16 %v10064
  %v11103 = vunpack.c.h.b16 %v10064
  %v11104 = vunpack.c.l.b16 %v10065
  %v11105 = vunpack.c.l.b16 %v10066
  %v11106 = vunpack.c.h.b16 %v10066
  %v11107 = vunpack.c.l.b16 %v10067
  %v11108 = vunpack.c.h.b16 %v10067
  %v11109 = vunpack.c.l.b16 %v10068
  %v11110 = vunpack.c.h.b16 %v10068
  %v11111 = vunpack.c.l.b16 %v10069
  %v11112 = vunpack.c.l.b16 %v10070
  %v11113 = vunpack.c.h.b16 %v10070
  %v11114 = vunpack.c.l.b16 %v10071
  %v11115 = vunpack.c.h.b16 %v10071
  %v11116 = vunpack.c.l.b16 %v10072
  %v11117 = vunpack.c.h.b16 %v10072
  %v11118 = vunpack.c.l.b16 %v10073
  %v11119 = vunpack.c.l.b16 %v10074
  %v11120 = vunpack.c.h.b16 %v10074
  %v11121 = vunpack.c.l.b16 %v10075
  %v11122 = vunpack.c.h.b16 %v10075
  %v11123 = vunpack.c.l.b16 %v10076
  %v11124 = vunpack.c.h.b16 %v10076
  %v11125 = vunpack.c.l.b16 %v10077
  %v11126 = vunpack.c.l.b16 %v10078
  %v11127 = vunpack.c.h.b16 %v10078
  %v11128 = vunpack.c.l.b16 %v10079
  %v11129 = vunpack.c.h.b16 %v10079
  %v11130 = vunpack.c.l.b16 %v10080
  %v11131 = vunpack.c.h.b16 %v10080
  %v11132 = vunpack.c.l.b16 %v10081
  %v11133 = vunpack.c.l.b16 %v10082
  %v11134 = vunpack.c.h.b16 %v10082
  %v11135 = vunpack.c.l.b16 %v10083
  %v11136 = vunpack.c.h.b16 %v10083
  %v11137 = vunpack.c.l.b16 %v10084
  %v11138 = vunpack.c.h.b16 %v10084
  %v11139 = vunpack.c.l.b16 %v10085
  %v11140 = vunpack.c.l.b16 %v10086
  %v11141 = vunpack.c.h.b16 %v10086
  %v11142 = vunpack.c.l.b16 %v10087
  %v11143 = vunpack.c.h.b16 %v10087
  %v11144 = vunpack.c.l.b16 %v10088
  %v11145 = vunpack.c.h.b16 %v10088
  %v11146 = vunpack.c.l.b16 %v10089
  %v11147 = vunpack.c.l.b16 %v10090
  %v11148 = vunpack.c.h.b16 %v10090
  %v11149 = vunpack.c.l.b16 %v10091
  %v11150 = vunpack.c.h.b16 %v10091
  %v11151 = vunpack.c.l.b16 %v10092
  %v11152 = vunpack.c.h.b16 %v10092
  %v11153 = vunpack.c.l.b16 %v10093
  %v11154 = vunpack.c.l.b16 %v10094
  %v11155 = vunpack.c.h.b16 %v10094
  %v11156 = vunpack.c.l.b16 %v10095
  %v11157 = vunpack.c.h.b16 %v10095
  %v11158 = vunpack.c.l.b16 %v10096
  %v11159 = vunpack.c.h.b16 %v10096
  %v11160 = vunpack.c.l.b16 %v10097
  %v11161 = vunpack.c.l.b16 %v10098
  %v11162 = vunpack.c.h.b16 %v10098
  %v11163 = vunpack.c.l.b16 %v10099
  %v11164 = vunpack.c.h.b16 %v10099
  %v11165 = vunpack.c.l.b16 %v10100
  %v11166 = vunpack.c.h.b16 %v10100
  %v11167 = vunpack.c.l.b16 %v10101
  %v11168 = vunpack.c.l.b16 %v10102
  %v11169 = vunpack.c.h.b16 %v10102
  %v11170 = vunpack.c.l.b16 %v10103
  %v11171 = vunpack.c.h.b16 %v10103
  %v11172 = vunpack.c.l.b16 %v10104
  %v11173 = vunpack.c.h.b16 %v10104
  %v11174 = vunpack.c.l.b16 %v10105
  %v11175 = vunpack.c.l.b16 %v10106
  %v11176 = vunpack.c.h.b16 %v10106
  %v11177 = vunpack.c.l.b16 %v10107
  %v11178 = vunpack.c.h.b16 %v10107
  %v11179 = vunpack.c.l.b16 %v10108
  %v11180 = vunpack.c.h.b16 %v10108
  %v11181 = vunpack.c.l.b16 %v10109
  %v11182 = vunpack.c.l.b16 %v10110
  %v11183 = vunpack.c.h.b16 %v10110
  %v11184 = vunpack.c.l.b16 %v10111
  %v11185 = vunpack.c.h.b16 %v10111
  %v11186 = vunpack.c.l.b16 %v10112
  %v11187 = vunpack.c.h.b16 %v10112
  %v11188 = vunpack.c.l.b16 %v10113
  %v11189 = vunpack.c.l.b16 %v10114
  %v11190 = vunpack.c.h.b16 %v10114
  %v11191 = vunpack.c.l.b16 %v10115
  %v11192 = vunpack.c.h.b16 %v10115
  %v11193 = vunpack.c.l.b16 %v10116
  %v11194 = vunpack.c.h.b16 %v10116
  %v11195 = vunpack.c.l.b16 %v10117
  %v11196 = vunpack.c.l.b16 %v10118
  %v11197 = vunpack.c.h.b16 %v10118
  %v11198 = vunpack.c.l.b16 %v10119
  %v11199 = vunpack.c.h.b16 %v10119
  %v11200 = vunpack.c.l.b16 %v10120
  %v11201 = vunpack.c.h.b16 %v10120
  %v11202 = vunpack.c.l.b16 %v10121
  %v11203 = vunpack.c.l.b16 %v10122
  %v11204 = vunpack.c.h.b16 %v10122
  %v11205 = vunpack.c.l.b16 %v10123
  %v11206 = vunpack.c.h.b16 %v10123
  %v11207 = vunpack.c.l.b16 %v10124
  %v11208 = vunpack.c.h.b16 %v10124
  %v11209 = vunpack.c.l.b16 %v10125
  %v11210 = vunpack.c.l.b16 %v10126
  %v11211 = vunpack.c.h.b16 %v10126
  %v11212 = vunpack.c.l.b16 %v10127
  %v11213 = vunpack.c.h.b16 %v10127
  %v11214 = vunpack.c.l.b16 %v10128
  %v11215 = vunpack.c.h.b16 %v10128
  %v11216 = vunpack.c.l.b16 %v10129
  %v11217 = vunpack.c.l.b16 %v10130
  %v11218 = vunpack.c.h.b16 %v10130
  %v11219 = vunpack.c.l.b16 %v10131
  %v11220 = vunpack.c.h.b16 %v10131
  %v11221 = vunpack.c.l.b16 %v10132
  %v11222 = vunpack.c.h.b16 %v10132
  %v11223 = vunpack.c.l.b16 %v10133
  %v11224 = vunpack.c.l.b16 %v10134
  %v11225 = vunpack.c.h.b16 %v10134
  %v11226 = vunpack.c.l.b16 %v10135
  %v11227 = vunpack.c.h.b16 %v10135
  %v11228 = vunpack.c.l.b16 %v10136
  %v11229 = vunpack.c.h.b16 %v10136
  %v11230 = vunpack.c.l.b16 %v10137
  %v11231 = vunpack.c.l.b16 %v10138
  %v11232 = vunpack.c.h.b16 %v10138
  %v11233 = vunpack.c.l.b16 %v10139
  %v11234 = vunpack.c.h.b16 %v10139
  %v11235 = vunpack.c.l.b16 %v10140
  %v11236 = vunpack.c.h.b16 %v10140
  %v11237 = vunpack.c.l.b16 %v10141
  %v11238 = vunpack.c.l.b16 %v10142
  %v11239 = vunpack.c.h.b16 %v10142
  %v11240 = vunpack.c.l.b16 %v10143
  %v11241 = vunpack.c.h.b16 %v10143
  %v11242 = vunpack.c.l.b16 %v10144
  %v11243 = vunpack.c.h.b16 %v10144
  %v11244 = vunpack.c.l.b16 %v10145
  %v11245 = vunpack.c.l.b16 %v10146
  %v11246 = vunpack.c.h.b16 %v10146
  %v11247 = vunpack.c.l.b16 %v10147
  %v11248 = vunpack.c.h.b16 %v10147
  %v11249 = vunpack.c.l.b16 %v10148
  %v11250 = vunpack.c.h.b16 %v10148
  %v11251 = vunpack.c.l.b16 %v10149
  %v11252 = vunpack.c.l.b16 %v10150
  %v11253 = vunpack.c.h.b16 %v10150
  %v11254 = vunpack.c.l.b16 %v10151
  %v11255 = vunpack.c.h.b16 %v10151
  %v11256 = vunpack.c.l.b16 %v10152
  %v11257 = vunpack.c.h.b16 %v10152
  %v11258 = vunpack.c.l.b16 %v10153
  %v11259 = vunpack.c.l.b16 %v10154
  %v11260 = vunpack.c.h.b16 %v10154
  %v11261 = vunpack.c.l.b16 %v10155
  %v11262 = vunpack.c.h.b16 %v10155
  %v11263 = vunpack.c.l.b16 %v10156
  %v11264 = vunpack.c.h.b16 %v10156
  %v11265 = vunpack.c.l.b16 %v10157
  %v11266 = vunpack.c.l.b16 %v10158
  %v11267 = vunpack.c.h.b16 %v10158
  %v11268 = vunpack.c.l.b16 %v10159
  %v11269 = vunpack.c.h.b16 %v10159
  %v11270 = vunpack.c.l.b16 %v10160
  %v11271 = vunpack.c.h.b16 %v10160
  %v11272 = vunpack.c.l.b16 %v10161
  %v11273 = vunpack.c.l.b16 %v10162
  %v11274 = vunpack.c.h.b16 %v10162
  %v11275 = vunpack.c.l.b16 %v10163
  %v11276 = vunpack.c.h.b16 %v10163
  %v11277 = vunpack.c.l.b16 %v10164
  %v11278 = vunpack.c.h.b16 %v10164
  %v11279 = vunpack.c.l.b16 %v10165
  %v11280 = vunpack.c.l.b16 %v10166
  %v11281 = vunpack.c.h.b16 %v10166
  %v11282 = vunpack.c.l.b16 %v10167
  %v11283 = vunpack.c.h.b16 %v10167
  %v11284 = vunpack.c.l.b16 %v10168
  %v11285 = vunpack.c.h.b16 %v10168
  %v11286 = vunpack.c.l.b16 %v10169
  %v11287 = vunpack.c.l.b16 %v10170
  %v11288 = vunpack.c.h.b16 %v10170
  %v11289 = vunpack.c.l.b16 %v10171
  %v11290 = vunpack.c.h.b16 %v10171
  %v11291 = vunpack.c.l.b16 %v10172
  %v11292 = vunpack.c.h.b16 %v10172
  %v11293 = vunpack.c.l.b16 %v10173
  %v11294 = vunpack.c.l.b16 %v10174
  %v11295 = vunpack.c.h.b16 %v10174
  %v11296 = vunpack.c.l.b16 %v10175
  %v11297 = vunpack.c.h.b16 %v10175
  %v11298 = vunpack.c.l.b16 %v10176
  %v11299 = vunpack.c.h.b16 %v10176
  %v11300 = vunpack.c.l.b16 %v10177
  %v11301 = vunpack.c.l.b16 %v10178
  %v11302 = vunpack.c.h.b16 %v10178
  %v11303 = vunpack.c.l.b16 %v10179
  %v11304 = vunpack.c.h.b16 %v10179
  %v11305 = vunpack.c.l.b16 %v10180
  %v11306 = vunpack.c.h.b16 %v10180
  %v11307 = vunpack.c.l.b16 %v10181
  %v11308 = vunpack.c.l.b16 %v10182
  %v11309 = vunpack.c.h.b16 %v10182
  %v11310 = vunpack.c.l.b16 %v10183
  %v11311 = vunpack.c.h.b16 %v10183
  %v11312 = vunpack.c.l.b16 %v10184
  %v11313 = vunpack.c.h.b16 %v10184
  %v11314 = vunpack.c.l.b16 %v10185
  %v11315 = vunpack.c.l.b16 %v10186
  %v11316 = vunpack.c.h.b16 %v10186
  %v11317 = vunpack.c.l.b16 %v10187
  %v11318 = vunpack.c.h.b16 %v10187
  %v11319 = vunpack.c.l.b16 %v10188
  %v11320 = vunpack.c.h.b16 %v10188
  %v11321 = vunpack.c.l.b16 %v10189
  %v11322 = vunpack.c.l.b16 %v10190
  %v11323 = vunpack.c.h.b16 %v10190
  %v11324 = vunpack.c.l.b16 %v10191
  %v11325 = vunpack.c.h.b16 %v10191
  %v11326 = vunpack.c.l.b16 %v10192
  %v11327 = vunpack.c.h.b16 %v10192
  %v11328 = vunpack.c.l.b16 %v10193
  %v11329 = vunpack.c.l.b16 %v10194
  %v11330 = vunpack.c.h.b16 %v10194
  %v11331 = vunpack.c.l.b16 %v10195
  %v11332 = vunpack.c.h.b16 %v10195
  %v11333 = vunpack.c.l.b16 %v10196
  %v11334 = vunpack.c.h.b16 %v10196
  %v11335 = vunpack.c.l.b16 %v10197
  %v11336 = vunpack.c.l.b16 %v10198
  %v11337 = vunpack.c.h.b16 %v10198
  %v11338 = vunpack.c.l.b16 %v10199
  %v11339 = vunpack.c.h.b16 %v10199
  %v11340 = vunpack.c.l.b16 %v10200
  %v11341 = vunpack.c.h.b16 %v10200
  %v11342 = vunpack.c.l.b16 %v10201
  %v11343 = vunpack.c.l.b16 %v10202
  %v11344 = vunpack.c.h.b16 %v10202
  %v11345 = vunpack.c.l.b16 %v10203
  %v11346 = vunpack.c.h.b16 %v10203
  %v11347 = vunpack.c.l.b16 %v10204
  %v11348 = vunpack.c.h.b16 %v10204
  %v11349 = vunpack.c.l.b16 %v10205
  %v11350 = vunpack.c.l.b16 %v10206
  %v11351 = vunpack.c.h.b16 %v10206
  %v11352 = vunpack.c.l.b16 %v10207
  %v11353 = vunpack.c.h.b16 %v10207
  %v11354 = vunpack.c.l.b16 %v10208
  %v11355 = vunpack.c.h.b16 %v10208
  %v11356 = vunpack.c.l.b16 %v10209
  %v11357 = vunpack.c.l.b16 %v10210
  %v11358 = vunpack.c.h.b16 %v10210
  %v11359 = vunpack.c.l.b16 %v10211
  %v11360 = vunpack.c.h.b16 %v10211
  %v11361 = vunpack.c.l.b16 %v10212
  %v11362 = vunpack.c.h.b16 %v10212
  %v11363 = vunpack.c.l.b16 %v10213
  %v11364 = vunpack.c.l.b16 %v10214
  %v11365 = vunpack.c.h.b16 %v10214
  %v11366 = vunpack.c.l.b16 %v10215
  %v11367 = vunpack.c.h.b16 %v10215
  %v11368 = vunpack.c.l.b16 %v10216
  %v11369 = vunpack.c.h.b16 %v10216
  %v11370 = vunpack.c.l.b16 %v10217
  %v11371 = vunpack.c.l.b16 %v10218
  %v11372 = vunpack.c.h.b16 %v10218
  %v11373 = vunpack.c.l.b16 %v10219
  %v11374 = vunpack.c.h.b16 %v10219
  %v11375 = vunpack.c.l.b16 %v10220
  %v11376 = vunpack.c.h.b16 %v10220
  %v11377 = vunpack.c.l.b16 %v10221
  %v11378 = vunpack.c.l.b16 %v10222
  %v11379 = vunpack.c.h.b16 %v10222
  %v11380 = vunpack.c.l.b16 %v10223
  %v11381 = vunpack.c.h.b16 %v10223
  %v11382 = vunpack.c.l.b16 %v10224
  %v11383 = vunpack.c.h.b16 %v10224
  %v11384 = vunpack.c.l.b16 %v10225
  %v11385 = vunpack.c.l.b16 %v10226
  %v11386 = vunpack.c.h.b16 %v10226
  %v11387 = vunpack.c.l.b16 %v10227
  %v11388 = vunpack.c.h.b16 %v10227
  %v11389 = vunpack.c.l.b16 %v10228
  %v11390 = vunpack.c.h.b16 %v10228
  %v11391 = vunpack.c.l.b16 %v10229
  %v11392 = vunpack.c.l.b16 %v10230
  %v11393 = vunpack.c.h.b16 %v10230
  %v11394 = vunpack.c.l.b16 %v10231
  %v11395 = vunpack.c.h.b16 %v10231
  %v11396 = vunpack.c.l.b16 %v10232
  %v11397 = vunpack.c.h.b16 %v10232
  %v11398 = vunpack.c.l.b16 %v10233
  %v11399 = vunpack.c.l.b16 %v10234
  %v11400 = vunpack.c.h.b16 %v10234
  %v11401 = vunpack.c.l.b16 %v10235
  %v11402 = vunpack.c.h.b16 %v10235
  %v11403 = vunpack.c.l.b16 %v10236
  %v11404 = vunpack.c.h.b16 %v10236
  %v11405 = vunpack.c.l.b16 %v10237
  %v11406 = vunpack.c.l.b16 %v10238
  %v11407 = vunpack.c.h.b16 %v10238
  %v11408 = vunpack.c.l.b16 %v10239
  %v11409 = vunpack.c.h.b16 %v10239
  %v11410 = vunpack.c.l.b16 %v10240
  %v11411 = vunpack.c.h.b16 %v10240
  %v11412 = vunpack.c.l.b16 %v10241
  %v11413 = vunpack.c.l.b16 %v10242
  %v11414 = vunpack.c.h.b16 %v10242
  %v11415 = vunpack.c.l.b16 %v10243
  %v11416 = vunpack.c.h.b16 %v10243
  %v11417 = vunpack.c.l.b16 %v10244
  %v11418 = vunpack.c.h.b16 %v10244
  %v11419 = vunpack.c.l.b16 %v10245
  %v11420 = vunpack.c.l.b16 %v10246
  %v11421 = vunpack.c.h.b16 %v10246
  %v11422 = vunpack.c.l.b16 %v10247
  %v11423 = vunpack.c.h.b16 %v10247
  %v11424 = vunpack.c.l.b16 %v10248
  %v11425 = vunpack.c.h.b16 %v10248
  %v11426 = vunpack.c.l.b16 %v10249
  %v11427 = vunpack.c.l.b16 %v10250
  %v11428 = vunpack.c.h.b16 %v10250
  %v11429 = vunpack.c.l.b16 %v10251
  %v11430 = vunpack.c.h.b16 %v10251
  %v11431 = vunpack.c.l.b16 %v10252
  %v11432 = vunpack.c.h.b16 %v10252
  %v11433 = vunpack.c.l.b16 %v10253
  %v11434 = vunpack.c.l.b16 %v10254
  %v11435 = vunpack.c.h.b16 %v10254
  %v11436 = vunpack.c.l.b16 %v10255
  %v11437 = vunpack.c.h.b16 %v10255
  %v11438 = vunpack.c.l.b16 %v10256
  %v11439 = vunpack.c.h.b16 %v10256
  %v11440 = vunpack.c.l.b16 %v10257
  %v11441 = vunpack.c.l.b16 %v10258
  %v11442 = vunpack.c.h.b16 %v10258
  %v11443 = vunpack.c.l.b16 %v10259
  %v11444 = vunpack.c.h.b16 %v10259
  %v11445 = vunpack.c.l.b16 %v10260
  %v11446 = vunpack.c.h.b16 %v10260
  %v11447 = vunpack.c.l.b16 %v10261
  %v11448 = vunpack.c.l.b16 %v10262
  %v11449 = vunpack.c.h.b16 %v10262
  %v11450 = vunpack.c.l.b16 %v10263
  %v11451 = vunpack.c.h.b16 %v10263
  %v11452 = vunpack.c.l.b16 %v10264
  %v11453 = vunpack.c.h.b16 %v10264
  %v11454 = vunpack.c.l.b16 %v10265
  %v11455 = vunpack.c.l.b16 %v10266
  %v11456 = vunpack.c.h.b16 %v10266
  %v11457 = vunpack.c.l.b16 %v10267
  %v11458 = vunpack.c.h.b16 %v10267
  %v11459 = vunpack.c.l.b16 %v10268
  %v11460 = vunpack.c.h.b16 %v10268
  %v11461 = vunpack.c.l.b16 %v10269
  %v11462 = vunpack.c.l.b16 %v10270
  %v11463 = vunpack.c.h.b16 %v10270
  %v11464 = vunpack.c.l.b16 %v10271
  %v11465 = vunpack.c.h.b16 %v10271
  %v11466 = vunpack.c.l.b16 %v10272
  %v11467 = vunpack.c.h.b16 %v10272
  %v11468 = vunpack.c.l.b16 %v10273
  %v11469 = vunpack.c.l.b16 %v10274
  %v11470 = vunpack.c.h.b16 %v10274
  %v11471 = vunpack.c.l.b16 %v10275
  %v11472 = vunpack.c.h.b16 %v10275
  %v11473 = vunpack.c.l.b16 %v10276
  %v11474 = vunpack.c.h.b16 %v10276
  %v11475 = vunpack.c.l.b16 %v10277
  %v11476 = vunpack.c.l.b16 %v10278
  %v11477 = vunpack.c.h.b16 %v10278
  %v11478 = vunpack.c.l.b16 %v10279
  %v11479 = vunpack.c.h.b16 %v10279
  %v11480 = vunpack.c.l.b16 %v10280
  %v11481 = vunpack.c.h.b16 %v10280
  %v11482 = vunpack.c.l.b16 %v10281
  %v11483 = vunpack.c.l.b16 %v10282
  %v11484 = vunpack.c.h.b16 %v10282
  %v11485 = vunpack.c.l.b16 %v10283
  %v11486 = vunpack.c.h.b16 %v10283
  %v11487 = vunpack.c.l.b16 %v10284
  %v11488 = vunpack.c.h.b16 %v10284
  %v11489 = vunpack.c.l.b16 %v10285
  %v11490 = vunpack.c.l.b16 %v10286
  %v11491 = vunpack.c.h.b16 %v10286
  %v11492 = vunpack.c.l.b16 %v10287
  %v11493 = vunpack.c.h.b16 %v10287
  %v11494 = vunpack.c.l.b16 %v10288
  %v11495 = vunpack.c.h.b16 %v10288
  %v11496 = vunpack.c.l.b16 %v10289
  %v11497 = vunpack.c.l.b16 %v10290
  %v11498 = vunpack.c.h.b16 %v10290
  %v11499 = vunpack.c.l.b16 %v10291
  %v11500 = vunpack.c.h.b16 %v10291
  %v11501 = vunpack.c.l.b16 %v10292
  %v11502 = vunpack.c.h.b16 %v10292
  %v11503 = vunpack.c.l.b16 %v10293
  %v11504 = vunpack.c.l.b16 %v10294
  %v11505 = vunpack.c.h.b16 %v10294
  %v11506 = vunpack.c.l.b16 %v10295
  %v11507 = vunpack.c.h.b16 %v10295
  %v11508 = vunpack.c.l.b16 %v10296
  %v11509 = vunpack.c.h.b16 %v10296
  %v11510 = vunpack.c.l.b16 %v10297
  %v11511 = vunpack.c.l.b16 %v10298
  %v11512 = vunpack.c.h.b16 %v10298
  %v11513 = vunpack.c.l.b16 %v10299
  %v11514 = vunpack.c.h.b16 %v10299
  %v11515 = vunpack.c.l.b16 %v10300
  %v11516 = vunpack.c.h.b16 %v10300
  %v11517 = vunpack.c.l.b16 %v10301
  %v11518 = vunpack.c.l.b16 %v10302
  %v11519 = vunpack.c.h.b16 %v10302
  %v11520 = vunpack.c.l.b16 %v10303
  %v11521 = vunpack.c.h.b16 %v10303
  %v11522 = vunpack.c.l.b16 %v10304
  %v11523 = vunpack.c.h.b16 %v10304
  %v11524 = vunpack.c.l.b16 %v10305
  %v11525 = vunpack.c.l.b16 %v10306
  %v11526 = vunpack.c.h.b16 %v10306
  %v11527 = vunpack.c.l.b16 %v10307
  %v11528 = vunpack.c.h.b16 %v10307
  %v11529 = vunpack.c.l.b16 %v10308
  %v11530 = vunpack.c.h.b16 %v10308
  %v11531 = vunpack.c.l.b16 %v10309
  %v11532 = vunpack.c.l.b16 %v10310
  %v11533 = vunpack.c.h.b16 %v10310
  %v11534 = vunpack.c.l.b16 %v10311
  %v11535 = vunpack.c.h.b16 %v10311
  %v11536 = vunpack.c.l.b16 %v10312
  %v11537 = vunpack.c.h.b16 %v10312
  %v11538 = vunpack.c.l.b16 %v10313
  %v11539 = vunpack.c.l.b16 %v10314
  %v11540 = vunpack.c.h.b16 %v10314
  %v11541 = vunpack.c.l.b16 %v10315
  %v11542 = vunpack.c.h.b16 %v10315
  %v11543 = vunpack.c.l.b16 %v10316
  %v11544 = vunpack.c.h.b16 %v10316
  %v11545 = vunpack.c.l.b16 %v10317
  %v11546 = vunpack.c.l.b16 %v10318
  %v11547 = vunpack.c.h.b16 %v10318
  %v11548 = vunpack.c.l.b16 %v10319
  %v11549 = vunpack.c.h.b16 %v10319
  %v11550 = vunpack.c.l.b16 %v10320
  %v11551 = vunpack.c.h.b16 %v10320
  %v11552 = vunpack.c.l.b16 %v10321
  %v11553 = vunpack.c.l.b16 %v10322
  %v11554 = vunpack.c.h.b16 %v10322
  %v11555 = vunpack.c.l.b16 %v10323
  %v11556 = vunpack.c.h.b16 %v10323
  %v11557 = vunpack.c.l.b16 %v10324
  %v11558 = vunpack.c.h.b16 %v10324
  %v11559 = vunpack.c.l.b16 %v10325
  %v11560 = vunpack.c.l.b16 %v10326
  %v11561 = vunpack.c.h.b16 %v10326
  %v11562 = vunpack.c.l.b16 %v10327
  %v11563 = vunpack.c.h.b16 %v10327
  %v11564 = vunpack.c.l.b16 %v10328
  %v11565 = vunpack.c.h.b16 %v10328
  %v11566 = vunpack.c.l.b16 %v10329
  %v11567 = vunpack.c.l.b16 %v10330
  %v11568 = vunpack.c.h.b16 %v10330
  %v11569 = vunpack.c.l.b16 %v10331
  %v11570 = vunpack.c.h.b16 %v10331
  %v11571 = vunpack.c.l.b16 %v10332
  %v11572 = vunpack.c.h.b16 %v10332
  %v11573 = vunpack.c.l.b16 %v10333
  %v11574 = vunpack.c.l.b16 %v10334
  %v11575 = vunpack.c.h.b16 %v10334
  %v11576 = vunpack.c.l.b16 %v10335
  %v11577 = vunpack.c.h.b16 %v10335
  %v11578 = vunpack.c.l.b16 %v10336
  %v11579 = vunpack.c.h.b16 %v10336
  %v11580 = vunpack.c.l.b16 %v10337
  %v11581 = vunpack.c.l.b16 %v10338
  %v11582 = vunpack.c.h.b16 %v10338
  %v11583 = vunpack.c.l.b16 %v10339
  %v11584 = vunpack.c.h.b16 %v10339
  %v11585 = vunpack.c.l.b16 %v10340
  %v11586 = vunpack.c.h.b16 %v10340
  %v11587 = vunpack.c.l.b16 %v10341
  %v11588 = vunpack.c.l.b16 %v10342
  %v11589 = vunpack.c.h.b16 %v10342
  %v11590 = vunpack.c.l.b16 %v10343
  %v11591 = vunpack.c.h.b16 %v10343
  %v11592 = vunpack.c.l.b16 %v10344
  %v11593 = vunpack.c.h.b16 %v10344
  %v11594 = vunpack.c.l.b16 %v10345
  %v11595 = vunpack.c.l.b16 %v10346
  %v11596 = vunpack.c.h.b16 %v10346
  %v11597 = vunpack.c.l.b16 %v10347
  %v11598 = vunpack.c.h.b16 %v10347
  %v11599 = vunpack.c.l.b16 %v10348
  %v11600 = vunpack.c.h.b16 %v10348
  %v11601 = vunpack.c.l.b16 %v10349
  %v11602 = vunpack.c.l.b16 %v10350
  %v11603 = vunpack.c.h.b16 %v10350
  %v11604 = vunpack.c.l.b16 %v10351
  %v11605 = vunpack.c.h.b16 %v10351
  %v11606 = vunpack.c.l.b16 %v10352
  %v11607 = vunpack.c.h.b16 %v10352
  %v11608 = vunpack.c.l.b16 %v10353
  %v11609 = vunpack.c.l.b16 %v10354
  %v11610 = vunpack.c.h.b16 %v10354
  %v11611 = vunpack.c.l.b16 %v10355
  %v11612 = vunpack.c.h.b16 %v10355
  %v11613 = vunpack.c.l.b16 %v10356
  %v11614 = vunpack.c.h.b16 %v10356
  %v11615 = vunpack.c.l.b16 %v10357
  %v11616 = vunpack.c.l.b16 %v10358
  %v11617 = vunpack.c.h.b16 %v10358
  %v11618 = vunpack.c.l.b16 %v10359
  %v11619 = vunpack.c.h.b16 %v10359
  %v11620 = vunpack.c.l.b16 %v10360
  %v11621 = vunpack.c.h.b16 %v10360
  %v11622 = vunpack.c.l.b16 %v10361
  %v11623 = vunpack.c.l.b16 %v10362
  %v11624 = vunpack.c.h.b16 %v10362
  %v11625 = vunpack.c.l.b16 %v10363
  %v11626 = vunpack.c.h.b16 %v10363
  %v11627 = vunpack.c.l.b16 %v10364
  %v11628 = vunpack.c.h.b16 %v10364
  %v11629 = vunpack.c.l.b16 %v10365
  %v11630 = vunpack.c.l.b16 %v10366
  %v11631 = vunpack.c.h.b16 %v10366
  %v11632 = vunpack.c.l.b16 %v10367
  %v11633 = vunpack.c.h.b16 %v10367
  %v11634 = vunpack.c.l.b16 %v10368
  %v11635 = vunpack.c.h.b16 %v10368
  %v11636 = vunpack.c.l.b16 %v10369
  %v11637 = vunpack.c.l.b16 %v10370
  %v11638 = vunpack.c.h.b16 %v10370
  %v11639 = vunpack.c.l.b16 %v10371
  %v11640 = vunpack.c.h.b16 %v10371
  %v11641 = vunpack.c.l.b16 %v10372
  %v11642 = vunpack.c.h.b16 %v10372
  %v11643 = vunpack.c.l.b16 %v10373
  %v11644 = vunpack.c.l.b16 %v10374
  %v11645 = vunpack.c.h.b16 %v10374
  %v11646 = vunpack.c.l.b16 %v10375
  %v11647 = vunpack.c.h.b16 %v10375
  %v11648 = vunpack.c.l.b16 %v10376
  %v11649 = vunpack.c.h.b16 %v10376
  %v11650 = vunpack.c.l.b16 %v10377
  %v11651 = vunpack.c.l.b16 %v10378
  %v11652 = vunpack.c.h.b16 %v10378
  %v11653 = vunpack.c.l.b16 %v10379
  %v11654 = vunpack.c.h.b16 %v10379
  %v11655 = vunpack.c.l.b16 %v10380
  %v11656 = vunpack.c.h.b16 %v10380
  %v11657 = vunpack.c.l.b16 %v10381
  %v11658 = vunpack.c.l.b16 %v10382
  %v11659 = vunpack.c.h.b16 %v10382
  %v11660 = vunpack.c.l.b16 %v10383
  %v11661 = vunpack.c.h.b16 %v10383
  %v11662 = vunpack.c.l.b16 %v10384
  %v11663 = vunpack.c.h.b16 %v10384
  %v11664 = vunpack.c.l.b16 %v10385
  %v11665 = vunpack.c.l.b16 %v10386
  %v11666 = vunpack.c.h.b16 %v10386
  %v11667 = vunpack.c.l.b16 %v10387
  %v11668 = vunpack.c.h.b16 %v10387
  %v11669 = vunpack.c.l.b16 %v10388
  %v11670 = vunpack.c.h.b16 %v10388
  %v11671 = vunpack.c.l.b16 %v10389
  %v11672 = vunpack.c.l.b16 %v10390
  %v11673 = vunpack.c.h.b16 %v10390
  %v11674 = vunpack.c.l.b16 %v10391
  %v11675 = vunpack.c.h.b16 %v10391
  %v11676 = vunpack.c.l.b16 %v10392
  %v11677 = vunpack.c.h.b16 %v10392
  %v11678 = vunpack.c.l.b16 %v10393
  %v11679 = vunpack.c.l.b16 %v10394
  %v11680 = vunpack.c.h.b16 %v10394
  %v11681 = vunpack.c.l.b16 %v10395
  %v11682 = vunpack.c.h.b16 %v10395
  %v11683 = vunpack.c.l.b16 %v10396
  %v11684 = vunpack.c.h.b16 %v10396
  %v11685 = vunpack.c.l.b16 %v10397
  %v11686 = vunpack.c.l.b16 %v10398
  %v11687 = vunpack.c.h.b16 %v10398
  %v11688 = vunpack.c.l.b16 %v10399
  %v11689 = vunpack.c.h.b16 %v10399
  %v11690 = vunpack.c.l.b16 %v10400
  %v11691 = vunpack.c.h.b16 %v10400
  %v11692 = vunpack.c.l.b16 %v10401
  %v11693 = vunpack.c.l.b16 %v10402
  %v11694 = vunpack.c.h.b16 %v10402
  %v11695 = vunpack.c.l.b16 %v10403
  %v11696 = vunpack.c.h.b16 %v10403
  %v11697 = vunpack.c.l.b16 %v10404
  %v11698 = vunpack.c.h.b16 %v10404
  %v11699 = vunpack.c.l.b16 %v10405
  %v11700 = vunpack.c.l.b16 %v10406
  %v11701 = vunpack.c.h.b16 %v10406
  %v11702 = vunpack.c.l.b16 %v10407
  %v11703 = vunpack.c.h.b16 %v10407
  %v11704 = vunpack.c.l.b16 %v10408
  %v11705 = vunpack.c.h.b16 %v10408
  %v11706 = vunpack.c.l.b16 %v10409
  %v11707 = vunpack.c.l.b16 %v10410
  %v11708 = vunpack.c.h.b16 %v10410
  %v11709 = vunpack.c.l.b16 %v10411
  %v11710 = vunpack.c.h.b16 %v10411
  %v11711 = vunpack.c.l.b16 %v10412
  %v11712 = vunpack.c.h.b16 %v10412
  %v11713 = vunpack.c.l.b16 %v10413
  %v11714 = vunpack.c.l.b16 %v10414
  %v11715 = vunpack.c.h.b16 %v10414
  %v11716 = vunpack.c.l.b16 %v10415
  %v11717 = vunpack.c.h.b16 %v10415
  %v11718 = vunpack.c.l.b16 %v10416
  %v11719 = vunpack.c.h.b16 %v10416
  %v11720 = vunpack.c.l.b16 %v10417
  %v11721 = vunpack.c.l.b16 %v10418
  %v11722 = vunpack.c.h.b16 %v10418
  %v11723 = vunpack.c.l.b16 %v10419
  %v11724 = vunpack.c.h.b16 %v10419
  %v11725 = vunpack.c.l.b16 %v10420
  %v11726 = vunpack.c.h.b16 %v10420
  %v11727 = vunpack.c.l.b16 %v10421
  %v11728 = vunpack.c.l.b16 %v10422
  %v11729 = vunpack.c.h.b16 %v10422
  %v11730 = vunpack.c.l.b16 %v10423
  %v11731 = vunpack.c.h.b16 %v10423
  %v11732 = vunpack.c.l.b16 %v10424
  %v11733 = vunpack.c.h.b16 %v10424
  %v11734 = vunpack.c.l.b16 %v10425
  %v11735 = vunpack.c.l.b16 %v10426
  %v11736 = vunpack.c.h.b16 %v10426
  %v11737 = vunpack.c.l.b16 %v10427
  %v11738 = vunpack.c.h.b16 %v10427
  %v11739 = vunpack.c.l.b16 %v10428
  %v11740 = vunpack.c.h.b16 %v10428
  %v11741 = vunpack.c.l.b16 %v10429
  %v11742 = vunpack.c.l.b16 %v10430
  %v11743 = vunpack.c.h.b16 %v10430
  %v11744 = vunpack.c.l.b16 %v10431
  %v11745 = vunpack.c.h.b16 %v10431
  %v11746 = vunpack.c.l.b16 %v10432
  %v11747 = vunpack.c.h.b16 %v10432
  %v11748 = vunpack.c.l.b16 %v10433
  %v11749 = vunpack.c.l.b16 %v10434
  %v11750 = vunpack.c.h.b16 %v10434
  %v11751 = vunpack.c.l.b16 %v10435
  %v11752 = vunpack.c.h.b16 %v10435
  %v11753 = vunpack.c.l.b16 %v10436
  %v11754 = vunpack.c.h.b16 %v10436
  %v11755 = vunpack.c.l.b16 %v10437
  %v11756 = vunpack.c.l.b16 %v10438
  %v11757 = vunpack.c.h.b16 %v10438
  %v11758 = vunpack.c.l.b16 %v10439
  %v11759 = vunpack.c.h.b16 %v10439
  %v11760 = vunpack.c.l.b16 %v10440
  %v11761 = vunpack.c.h.b16 %v10440
  %v11762 = vunpack.c.l.b16 %v10441
  %v11763 = vunpack.c.l.b16 %v10442
  %v11764 = vunpack.c.h.b16 %v10442
  %v11765 = vunpack.c.l.b16 %v10443
  %v11766 = vunpack.c.h.b16 %v10443
  %v11767 = vunpack.c.l.b16 %v10444
  %v11768 = vunpack.c.h.b16 %v10444
  %v11769 = vunpack.c.l.b16 %v10445
  %v11770 = vunpack.c.l.b16 %v10446
  %v11771 = vunpack.c.h.b16 %v10446
  %v11772 = vunpack.c.l.b16 %v10447
  %v11773 = vunpack.c.h.b16 %v10447
  %v11774 = vunpack.c.l.b16 %v10448
  %v11775 = vunpack.c.h.b16 %v10448
  %v11776 = vunpack.c.l.b16 %v10449
  %v11777 = vunpack.c.l.b16 %v10450
  %v11778 = vunpack.c.h.b16 %v10450
  %v11779 = vunpack.c.l.b16 %v10451
  %v11780 = vunpack.c.h.b16 %v10451
  %v11781 = vunpack.c.l.b16 %v10452
  %v11782 = vunpack.c.h.b16 %v10452
  %v11783 = vunpack.c.l.b16 %v10453
  %v11784 = vunpack.c.l.b16 %v10454
  %v11785 = vunpack.c.h.b16 %v10454
  %v11786 = vunpack.c.l.b16 %v10455
  %v11787 = vunpack.c.h.b16 %v10455
  %v11788 = vunpack.c.l.b16 %v10456
  %v11789 = vunpack.c.h.b16 %v10456
  %v11790 = vunpack.c.l.b16 %v10457
  %v11791 = vunpack.c.l.b16 %v10458
  %v11792 = vunpack.c.h.b16 %v10458
  %v11793 = vunpack.c.l.b16 %v10459
  %v11794 = vunpack.c.h.b16 %v10459
  %v11795 = vunpack.c.l.b16 %v10460
  %v11796 = vunpack.c.h.b16 %v10460
  %v11797 = vunpack.c.l.b16 %v10461
  %v11798 = vunpack.c.l.b16 %v10462
  %v11799 = vunpack.c.h.b16 %v10462
  %v11800 = vunpack.c.l.b16 %v10463
  %v11801 = vunpack.c.h.b16 %v10463
  %v11802 = vunpack.c.l.b16 %v10464
  %v11803 = vunpack.c.h.b16 %v10464
  %v11804 = vunpack.c.l.b16 %v10465
  %v11805 = vpack.c.b16 %v10965, %v10958
  %v11806 = vpack.c.b16 %v10966, %v10959
  %v11807 = vpack.c.b16 %v10967, %v10960
  %v11808 = vpack.c.b16 %v10968, %v10961
  %v11809 = vpack.c.b16 %v10969, %v10962
  %v11810 = vpack.c.b16 %v10970, %v10963
  %v11811 = vpack.c.b16 %v10971, %v10964
  %v11812 = vpack.c.b16 %v10979, %v10972
  %v11813 = vpack.c.b16 %v10980, %v10973
  %v11814 = vpack.c.b16 %v10981, %v10974
  %v11815 = vpack.c.b16 %v10982, %v10975
  %v11816 = vpack.c.b16 %v10983, %v10976
  %v11817 = vpack.c.b16 %v10984, %v10977
  %v11818 = vpack.c.b16 %v10985, %v10978
  %v11819 = vpack.c.b16 %v10993, %v10986
  %v11820 = vpack.c.b16 %v10994, %v10987
  %v11821 = vpack.c.b16 %v10995, %v10988
  %v11822 = vpack.c.b16 %v10996, %v10989
  %v11823 = vpack.c.b16 %v10997, %v10990
  %v11824 = vpack.c.b16 %v10998, %v10991
  %v11825 = vpack.c.b16 %v10999, %v10992
  %v11826 = vpack.c.b16 %v11007, %v11000
  %v11827 = vpack.c.b16 %v11008, %v11001
  %v11828 = vpack.c.b16 %v11009, %v11002
  %v11829 = vpack.c.b16 %v11010, %v11003
  %v11830 = vpack.c.b16 %v11011, %v11004
  %v11831 = vpack.c.b16 %v11012, %v11005
  %v11832 = vpack.c.b16 %v11013, %v11006
  %v11833 = vpack.c.b16 %v11021, %v11014
  %v11834 = vpack.c.b16 %v11022, %v11015
  %v11835 = vpack.c.b16 %v11023, %v11016
  %v11836 = vpack.c.b16 %v11024, %v11017
  %v11837 = vpack.c.b16 %v11025, %v11018
  %v11838 = vpack.c.b16 %v11026, %v11019
  %v11839 = vpack.c.b16 %v11027, %v11020
  %v11840 = vpack.c.b16 %v11035, %v11028
  %v11841 = vpack.c.b16 %v11036, %v11029
  %v11842 = vpack.c.b16 %v11037, %v11030
  %v11843 = vpack.c.b16 %v11038, %v11031
  %v11844 = vpack.c.b16 %v11039, %v11032
  %v11845 = vpack.c.b16 %v11040, %v11033
  %v11846 = vpack.c.b16 %v11041, %v11034
  %v11847 = vpack.c.b16 %v11049, %v11042
  %v11848 = vpack.c.b16 %v11050, %v11043
  %v11849 = vpack.c.b16 %v11051, %v11044
  %v11850 = vpack.c.b16 %v11052, %v11045
  %v11851 = vpack.c.b16 %v11053, %v11046
  %v11852 = vpack.c.b16 %v11054, %v11047
  %v11853 = vpack.c.b16 %v11055, %v11048
  %v11854 = vpack.c.b16 %v11063, %v11056
  %v11855 = vpack.c.b16 %v11064, %v11057
  %v11856 = vpack.c.b16 %v11065, %v11058
  %v11857 = vpack.c.b16 %v11066, %v11059
  %v11858 = vpack.c.b16 %v11067, %v11060
  %v11859 = vpack.c.b16 %v11068, %v11061
  %v11860 = vpack.c.b16 %v11069, %v11062
  %v11861 = vpack.c.b16 %v11077, %v11070
  %v11862 = vpack.c.b16 %v11078, %v11071
  %v11863 = vpack.c.b16 %v11079, %v11072
  %v11864 = vpack.c.b16 %v11080, %v11073
  %v11865 = vpack.c.b16 %v11081, %v11074
  %v11866 = vpack.c.b16 %v11082, %v11075
  %v11867 = vpack.c.b16 %v11083, %v11076
  %v11868 = vpack.c.b16 %v11091, %v11084
  %v11869 = vpack.c.b16 %v11092, %v11085
  %v11870 = vpack.c.b16 %v11093, %v11086
  %v11871 = vpack.c.b16 %v11094, %v11087
  %v11872 = vpack.c.b16 %v11095, %v11088
  %v11873 = vpack.c.b16 %v11096, %v11089
  %v11874 = vpack.c.b16 %v11097, %v11090
  %v11875 = vpack.c.b16 %v11105, %v11098
  %v11876 = vpack.c.b16 %v11106, %v11099
  %v11877 = vpack.c.b16 %v11107, %v11100
  %v11878 = vpack.c.b16 %v11108, %v11101
  %v11879 = vpack.c.b16 %v11109, %v11102
  %v11880 = vpack.c.b16 %v11110, %v11103
  %v11881 = vpack.c.b16 %v11111, %v11104
  %v11882 = vpack.c.b16 %v11119, %v11112
  %v11883 = vpack.c.b16 %v11120, %v11113
  %v11884 = vpack.c.b16 %v11121, %v11114
  %v11885 = vpack.c.b16 %v11122, %v11115
  %v11886 = vpack.c.b16 %v11123, %v11116
  %v11887 = vpack.c.b16 %v11124, %v11117
  %v11888 = vpack.c.b16 %v11125, %v11118
  %v11889 = vpack.c.b16 %v11133, %v11126
  %v11890 = vpack.c.b16 %v11134, %v11127
  %v11891 = vpack.c.b16 %v11135, %v11128
  %v11892 = vpack.c.b16 %v11136, %v11129
  %v11893 = vpack.c.b16 %v11137, %v11130
  %v11894 = vpack.c.b16 %v11138, %v11131
  %v11895 = vpack.c.b16 %v11139, %v11132
  %v11896 = vpack.c.b16 %v11147, %v11140
  %v11897 = vpack.c.b16 %v11148, %v11141
  %v11898 = vpack.c.b16 %v11149, %v11142
  %v11899 = vpack.c.b16 %v11150, %v11143
  %v11900 = vpack.c.b16 %v11151, %v11144
  %v11901 = vpack.c.b16 %v11152, %v11145
  %v11902 = vpack.c.b16 %v11153, %v11146
  %v11903 = vpack.c.b16 %v11161, %v11154
  %v11904 = vpack.c.b16 %v11162, %v11155
  %v11905 = vpack.c.b16 %v11163, %v11156
  %v11906 = vpack.c.b16 %v11164, %v11157
  %v11907 = vpack.c.b16 %v11165, %v11158
  %v11908 = vpack.c.b16 %v11166, %v11159
  %v11909 = vpack.c.b16 %v11167, %v11160
  %v11910 = vpack.c.b16 %v11175, %v11168
  %v11911 = vpack.c.b16 %v11176, %v11169
  %v11912 = vpack.c.b16 %v11177, %v11170
  %v11913 = vpack.c.b16 %v11178, %v11171
  %v11914 = vpack.c.b16 %v11179, %v11172
  %v11915 = vpack.c.b16 %v11180, %v11173
  %v11916 = vpack.c.b16 %v11181, %v11174
  %v11917 = vpack.c.b16 %v11189, %v11182
  %v11918 = vpack.c.b16 %v11190, %v11183
  %v11919 = vpack.c.b16 %v11191, %v11184
  %v11920 = vpack.c.b16 %v11192, %v11185
  %v11921 = vpack.c.b16 %v11193, %v11186
  %v11922 = vpack.c.b16 %v11194, %v11187
  %v11923 = vpack.c.b16 %v11195, %v11188
  %v11924 = vpack.c.b16 %v11203, %v11196
  %v11925 = vpack.c.b16 %v11204, %v11197
  %v11926 = vpack.c.b16 %v11205, %v11198
  %v11927 = vpack.c.b16 %v11206, %v11199
  %v11928 = vpack.c.b16 %v11207, %v11200
  %v11929 = vpack.c.b16 %v11208, %v11201
  %v11930 = vpack.c.b16 %v11209, %v11202
  %v11931 = vpack.c.b16 %v11217, %v11210
  %v11932 = vpack.c.b16 %v11218, %v11211
  %v11933 = vpack.c.b16 %v11219, %v11212
  %v11934 = vpack.c.b16 %v11220, %v11213
  %v11935 = vpack.c.b16 %v11221, %v11214
  %v11936 = vpack.c.b16 %v11222, %v11215
  %v11937 = vpack.c.b16 %v11223, %v11216
  %v11938 = vpack.c.b16 %v11231, %v11224
  %v11939 = vpack.c.b16 %v11232, %v11225
  %v11940 = vpack.c.b16 %v11233, %v11226
  %v11941 = vpack.c.b16 %v11234, %v11227
  %v11942 = vpack.c.b16 %v11235, %v11228
  %v11943 = vpack.c.b16 %v11236, %v11229
  %v11944 = vpack.c.b16 %v11237, %v11230
  %v11945 = vpack.c.b16 %v11245, %v11238
  %v11946 = vpack.c.b16 %v11246, %v11239
  %v11947 = vpack.c.b16 %v11247, %v11240
  %v11948 = vpack.c.b16 %v11248, %v11241
  %v11949 = vpack.c.b16 %v11249, %v11242
  %v11950 = vpack.c.b16 %v11250, %v11243
  %v11951 = vpack.c.b16 %v11251, %v11244
  %v11952 = vpack.c.b16 %v11259, %v11252
  %v11953 = vpack.c.b16 %v11260, %v11253
  %v11954 = vpack.c.b16 %v11261, %v11254
  %v11955 = vpack.c.b16 %v11262, %v11255
  %v11956 = vpack.c.b16 %v11263, %v11256
  %v11957 = vpack.c.b16 %v11264, %v11257
  %v11958 = vpack.c.b16 %v11265, %v11258
  %v11959 = vpack.c.b16 %v11273, %v11266
  %v11960 = vpack.c.b16 %v11274, %v11267
  %v11961 = vpack.c.b16 %v11275, %v11268
  %v11962 = vpack.c.b16 %v11276, %v11269
  %v11963 = vpack.c.b16 %v11277, %v11270
  %v11964 = vpack.c.b16 %v11278, %v11271
  %v11965 = vpack.c.b16 %v11279, %v11272
  %v11966 = vpack.c.b16 %v11287, %v11280
  %v11967 = vpack.c.b16 %v11288, %v11281
  %v11968 = vpack.c.b16 %v11289, %v11282
  %v11969 = vpack.c.b16 %v11290, %v11283
  %v11970 = vpack.c.b16 %v11291, %v11284
  %v11971 = vpack.c.b16 %v11292, %v11285
  %v11972 = vpack.c.b16 %v11293, %v11286
  %v11973 = vpack.c.b16 %v11301, %v11294
  %v11974 = vpack.c.b16 %v11302, %v11295
  %v11975 = vpack.c.b16 %v11303, %v11296
  %v11976 = vpack.c.b16 %v11304, %v11297
  %v11977 = vpack.c.b16 %v11305, %v11298
  %v11978 = vpack.c.b16 %v11306, %v11299
  %v11979 = vpack.c.b16 %v11307, %v11300
  %v11980 = vpack.c.b16 %v11315, %v11308
  %v11981 = vpack.c.b16 %v11316, %v11309
  %v11982 = vpack.c.b16 %v11317, %v11310
  %v11983 = vpack.c.b16 %v11318, %v11311
  %v11984 = vpack.c.b16 %v11319, %v11312
  %v11985 = vpack.c.b16 %v11320, %v11313
  %v11986 = vpack.c.b16 %v11321, %v11314
  %v11987 = vpack.c.b16 %v11329, %v11322
  %v11988 = vpack.c.b16 %v11330, %v11323
  %v11989 = vpack.c.b16 %v11331, %v11324
  %v11990 = vpack.c.b16 %v11332, %v11325
  %v11991 = vpack.c.b16 %v11333, %v11326
  %v11992 = vpack.c.b16 %v11334, %v11327
  %v11993 = vpack.c.b16 %v11335, %v11328
  %v11994 = vpack.c.b16 %v11343, %v11336
  %v11995 = vpack.c.b16 %v11344, %v11337
  %v11996 = vpack.c.b16 %v11345, %v11338
  %v11997 = vpack.c.b16 %v11346, %v11339
  %v11998 = vpack.c.b16 %v11347, %v11340
  %v11999 = vpack.c.b16 %v11348, %v11341
  %v12000 = vpack.c.b16 %v11349, %v11342
  %v12001 = vpack.c.b16 %v11357, %v11350
  %v12002 = vpack.c.b16 %v11358, %v11351
  %v12003 = vpack.c.b16 %v11359, %v11352
  %v12004 = vpack.c.b16 %v11360, %v11353
  %v12005 = vpack.c.b16 %v11361, %v11354
  %v12006 = vpack.c.b16 %v11362, %v11355
  %v12007 = vpack.c.b16 %v11363, %v11356
  %v12008 = vpack.c.b16 %v11371, %v11364
  %v12009 = vpack.c.b16 %v11372, %v11365
  %v12010 = vpack.c.b16 %v11373, %v11366
  %v12011 = vpack.c.b16 %v11374, %v11367
  %v12012 = vpack.c.b16 %v11375, %v11368
  %v12013 = vpack.c.b16 %v11376, %v11369
  %v12014 = vpack.c.b16 %v11377, %v11370
  %v12015 = vpack.c.b16 %v11385, %v11378
  %v12016 = vpack.c.b16 %v11386, %v11379
  %v12017 = vpack.c.b16 %v11387, %v11380
  %v12018 = vpack.c.b16 %v11388, %v11381
  %v12019 = vpack.c.b16 %v11389, %v11382
  %v12020 = vpack.c.b16 %v11390, %v11383
  %v12021 = vpack.c.b16 %v11391, %v11384
  %v12022 = vpack.c.b16 %v11399, %v11392
  %v12023 = vpack.c.b16 %v11400, %v11393
  %v12024 = vpack.c.b16 %v11401, %v11394
  %v12025 = vpack.c.b16 %v11402, %v11395
  %v12026 = vpack.c.b16 %v11403, %v11396
  %v12027 = vpack.c.b16 %v11404, %v11397
  %v12028 = vpack.c.b16 %v11405, %v11398
  %v12029 = vpack.c.b16 %v11413, %v11406
  %v12030 = vpack.c.b16 %v11414, %v11407
  %v12031 = vpack.c.b16 %v11415, %v11408
  %v12032 = vpack.c.b16 %v11416, %v11409
  %v12033 = vpack.c.b16 %v11417, %v11410
  %v12034 = vpack.c.b16 %v11418, %v11411
  %v12035 = vpack.c.b16 %v11419, %v11412
  %v12036 = vpack.c.b16 %v11427, %v11420
  %v12037 = vpack.c.b16 %v11428, %v11421
  %v12038 = vpack.c.b16 %v11429, %v11422
  %v12039 = vpack.c.b16 %v11430, %v11423
  %v12040 = vpack.c.b16 %v11431, %v11424
  %v12041 = vpack.c.b16 %v11432, %v11425
  %v12042 = vpack.c.b16 %v11433, %v11426
  %v12043 = vpack.c.b16 %v11441, %v11434
  %v12044 = vpack.c.b16 %v11442, %v11435
  %v12045 = vpack.c.b16 %v11443, %v11436
  %v12046 = vpack.c.b16 %v11444, %v11437
  %v12047 = vpack.c.b16 %v11445, %v11438
  %v12048 = vpack.c.b16 %v11446, %v11439
  %v12049 = vpack.c.b16 %v11447, %v11440
  %v12050 = vpack.c.b16 %v11455, %v11448
  %v12051 = vpack.c.b16 %v11456, %v11449
  %v12052 = vpack.c.b16 %v11457, %v11450
  %v12053 = vpack.c.b16 %v11458, %v11451
  %v12054 = vpack.c.b16 %v11459, %v11452
  %v12055 = vpack.c.b16 %v11460, %v11453
  %v12056 = vpack.c.b16 %v11461, %v11454
  %v12057 = vpack.c.b16 %v11469, %v11462
  %v12058 = vpack.c.b16 %v11470, %v11463
  %v12059 = vpack.c.b16 %v11471, %v11464
  %v12060 = vpack.c.b16 %v11472, %v11465
  %v12061 = vpack.c.b16 %v11473, %v11466
  %v12062 = vpack.c.b16 %v11474, %v11467
  %v12063 = vpack.c.b16 %v11475, %v11468
  %v12064 = vpack.c.b16 %v11483, %v11476
  %v12065 = vpack.c.b16 %v11484, %v11477
  %v12066 = vpack.c.b16 %v11485, %v11478
  %v12067 = vpack.c.b16 %v11486, %v11479
  %v12068 = vpack.c.b16 %v11487, %v11480
  %v12069 = vpack.c.b16 %v11488, %v11481
  %v12070 = vpack.c.b16 %v11489, %v11482
  %v12071 = vpack.c.b16 %v11497, %v11490
  %v12072 = vpack.c.b16 %v11498, %v11491
  %v12073 = vpack.c.b16 %v11499, %v11492
  %v12074 = vpack.c.b16 %v11500, %v11493
  %v12075 = vpack.c.b16 %v11501, %v11494
  %v12076 = vpack.c.b16 %v11502, %v11495
  %v12077 = vpack.c.b16 %v11503, %v11496
  %v12078 = vpack.c.b16 %v11511, %v11504
  %v12079 = vpack.c.b16 %v11512, %v11505
  %v12080 = vpack.c.b16 %v11513, %v11506
  %v12081 = vpack.c.b16 %v11514, %v11507
  %v12082 = vpack.c.b16 %v11515, %v11508
  %v12083 = vpack.c.b16 %v11516, %v11509
  %v12084 = vpack.c.b16 %v11517, %v11510
  %v12085 = vpack.c.b16 %v11525, %v11518
  %v12086 = vpack.c.b16 %v11526, %v11519
  %v12087 = vpack.c.b16 %v11527, %v11520
  %v12088 = vpack.c.b16 %v11528, %v11521
  %v12089 = vpack.c.b16 %v11529, %v11522
  %v12090 = vpack.c.b16 %v11530, %v11523
  %v12091 = vpack.c.b16 %v11531, %v11524
  %v12092 = vpack.c.b16 %v11539, %v11532
  %v12093 = vpack.c.b16 %v11540, %v11533
  %v12094 = vpack.c.b16 %v11541, %v11534
  %v12095 = vpack.c.b16 %v11542, %v11535
  %v12096 = vpack.c.b16 %v11543, %v11536
  %v12097 = vpack.c.b16 %v11544, %v11537
  %v12098 = vpack.c.b16 %v11545, %v11538
  %v12099 = vpack.c.b16 %v11553, %v11546
  %v12100 = vpack.c.b16 %v11554, %v11547
  %v12101 = vpack.c.b16 %v11555, %v11548
  %v12102 = vpack.c.b16 %v11556, %v11549
  %v12103 = vpack.c.b16 %v11557, %v11550
  %v12104 = vpack.c.b16 %v11558, %v11551
  %v12105 = vpack.c.b16 %v11559, %v11552
  %v12106 = vpack.c.b16 %v11567, %v11560
  %v12107 = vpack.c.b16 %v11568, %v11561
  %v12108 = vpack.c.b16 %v11569, %v11562
  %v12109 = vpack.c.b16 %v11570, %v11563
  %v12110 = vpack.c.b16 %v11571, %v11564
  %v12111 = vpack.c.b16 %v11572, %v11565
  %v12112 = vpack.c.b16 %v11573, %v11566
  %v12113 = vpack.c.b16 %v11581, %v11574
  %v12114 = vpack.c.b16 %v11582, %v11575
  %v12115 = vpack.c.b16 %v11583, %v11576
  %v12116 = vpack.c.b16 %v11584, %v11577
  %v12117 = vpack.c.b16 %v11585, %v11578
  %v12118 = vpack.c.b16 %v11586, %v11579
  %v12119 = vpack.c.b16 %v11587, %v11580
  %v12120 = vpack.c.b16 %v11595, %v11588
  %v12121 = vpack.c.b16 %v11596, %v11589
  %v12122 = vpack.c.b16 %v11597, %v11590
  %v12123 = vpack.c.b16 %v11598, %v11591
  %v12124 = vpack.c.b16 %v11599, %v11592
  %v12125 = vpack.c.b16 %v11600, %v11593
  %v12126 = vpack.c.b16 %v11601, %v11594
  %v12127 = vpack.c.b16 %v11609, %v11602
  %v12128 = vpack.c.b16 %v11610, %v11603
  %v12129 = vpack.c.b16 %v11611, %v11604
  %v12130 = vpack.c.b16 %v11612, %v11605
  %v12131 = vpack.c.b16 %v11613, %v11606
  %v12132 = vpack.c.b16 %v11614, %v11607
  %v12133 = vpack.c.b16 %v11615, %v11608
  %v12134 = vpack.c.b16 %v11623, %v11616
  %v12135 = vpack.c.b16 %v11624, %v11617
  %v12136 = vpack.c.b16 %v11625, %v11618
  %v12137 = vpack.c.b16 %v11626, %v11619
  %v12138 = vpack.c.b16 %v11627, %v11620
  %v12139 = vpack.c.b16 %v11628, %v11621
  %v12140 = vpack.c.b16 %v11629, %v11622
  %v12141 = vpack.c.b16 %v11637, %v11630
  %v12142 = vpack.c.b16 %v11638, %v11631
  %v12143 = vpack.c.b16 %v11639, %v11632
  %v12144 = vpack.c.b16 %v11640, %v11633
  %v12145 = vpack.c.b16 %v11641, %v11634
  %v12146 = vpack.c.b16 %v11642, %v11635
  %v12147 = vpack.c.b16 %v11643, %v11636
  %v12148 = vpack.c.b16 %v11651, %v11644
  %v12149 = vpack.c.b16 %v11652, %v11645
  %v12150 = vpack.c.b16 %v11653, %v11646
  %v12151 = vpack.c.b16 %v11654, %v11647
  %v12152 = vpack.c.b16 %v11655, %v11648
  %v12153 = vpack.c.b16 %v11656, %v11649
  %v12154 = vpack.c.b16 %v11657, %v11650
  %v12155 = vpack.c.b16 %v11665, %v11658
  %v12156 = vpack.c.b16 %v11666, %v11659
  %v12157 = vpack.c.b16 %v11667, %v11660
  %v12158 = vpack.c.b16 %v11668, %v11661
  %v12159 = vpack.c.b16 %v11669, %v11662
  %v12160 = vpack.c.b16 %v11670, %v11663
  %v12161 = vpack.c.b16 %v11671, %v11664
  %v12162 = vpack.c.b16 %v11679, %v11672
  %v12163 = vpack.c.b16 %v11680, %v11673
  %v12164 = vpack.c.b16 %v11681, %v11674
  %v12165 = vpack.c.b16 %v11682, %v11675
  %v12166 = vpack.c.b16 %v11683, %v11676
  %v12167 = vpack.c.b16 %v11684, %v11677
  %v12168 = vpack.c.b16 %v11685, %v11678
  %v12169 = vpack.c.b16 %v11693, %v11686
  %v12170 = vpack.c.b16 %v11694, %v11687
  %v12171 = vpack.c.b16 %v11695, %v11688
  %v12172 = vpack.c.b16 %v11696, %v11689
  %v12173 = vpack.c.b16 %v11697, %v11690
  %v12174 = vpack.c.b16 %v11698, %v11691
  %v12175 = vpack.c.b16 %v11699, %v11692
  %v12176 = vpack.c.b16 %v11707, %v11700
  %v12177 = vpack.c.b16 %v11708, %v11701
  %v12178 = vpack.c.b16 %v11709, %v11702
  %v12179 = vpack.c.b16 %v11710, %v11703
  %v12180 = vpack.c.b16 %v11711, %v11704
  %v12181 = vpack.c.b16 %v11712, %v11705
  %v12182 = vpack.c.b16 %v11713, %v11706
  %v12183 = vpack.c.b16 %v11721, %v11714
  %v12184 = vpack.c.b16 %v11722, %v11715
  %v12185 = vpack.c.b16 %v11723, %v11716
  %v12186 = vpack.c.b16 %v11724, %v11717
  %v12187 = vpack.c.b16 %v11725, %v11718
  %v12188 = vpack.c.b16 %v11726, %v11719
  %v12189 = vpack.c.b16 %v11727, %v11720
  %v12190 = vpack.c.b16 %v11735, %v11728
  %v12191 = vpack.c.b16 %v11736, %v11729
  %v12192 = vpack.c.b16 %v11737, %v11730
  %v12193 = vpack.c.b16 %v11738, %v11731
  %v12194 = vpack.c.b16 %v11739, %v11732
  %v12195 = vpack.c.b16 %v11740, %v11733
  %v12196 = vpack.c.b16 %v11741, %v11734
  %v12197 = vpack.c.b16 %v11749, %v11742
  %v12198 = vpack.c.b16 %v11750, %v11743
  %v12199 = vpack.c.b16 %v11751, %v11744
  %v12200 = vpack.c.b16 %v11752, %v11745
  %v12201 = vpack.c.b16 %v11753, %v11746
  %v12202 = vpack.c.b16 %v11754, %v11747
  %v12203 = vpack.c.b16 %v11755, %v11748
  %v12204 = vpack.c.b16 %v11763, %v11756
  %v12205 = vpack.c.b16 %v11764, %v11757
  %v12206 = vpack.c.b16 %v11765, %v11758
  %v12207 = vpack.c.b16 %v11766, %v11759
  %v12208 = vpack.c.b16 %v11767, %v11760
  %v12209 = vpack.c.b16 %v11768, %v11761
  %v12210 = vpack.c.b16 %v11769, %v11762
  %v12211 = vpack.c.b16 %v11777, %v11770
  %v12212 = vpack.c.b16 %v11778, %v11771
  %v12213 = vpack.c.b16 %v11779, %v11772
  %v12214 = vpack.c.b16 %v11780, %v11773
  %v12215 = vpack.c.b16 %v11781, %v11774
  %v12216 = vpack.c.b16 %v11782, %v11775
  %v12217 = vpack.c.b16 %v11783, %v11776
  %v12218 = vpack.c.b16 %v11791, %v11784
  %v12219 = vpack.c.b16 %v11792, %v11785
  %v12220 = vpack.c.b16 %v11793, %v11786
  %v12221 = vpack.c.b16 %v11794, %v11787
  %v12222 = vpack.c.b16 %v11795, %v11788
  %v12223 = vpack.c.b16 %v11796, %v11789
  %v12224 = vpack.c.b16 %v11797, %v11790
  %v12225 = vpack.c.b16 %v11798, %v11798
  %v12226 = vpack.c.b16 %v11799, %v11799
  %v12227 = vpack.c.b16 %v11800, %v11800
  %v12228 = vpack.c.b16 %v11801, %v11801
  %v12229 = vpack.c.b16 %v11802, %v11802
  %v12230 = vpack.c.b16 %v11803, %v11803
  %v12231 = vpack.c.b16 %v11804, %v11804
  %v12653 = vsel %vm8946, %v10473, 0
  %v12656 = vsel %vm8950, %v12225, 0
  %v12659 = vsel %vm8950, %v12226, 0
  %v12662 = vsel %vm8950, %v12227, 0
  %v12665 = vsel %vm8950, %v12228, 0
  %v12668 = vsel %vm8950, %v12229, 0
  %v12671 = vsel %vm8950, %v12230, 0
  %v12674 = vsel %vm8950, %v12231, 0
  %12676 = vmatprep.subr.bf16.mxu0 %v11806
  %12677 = vmatpush1.bf16.msra.mxu0 %v11805
  %12678 = vmatprep.subr.bf16.mxu0 %v11813
  %12679 = vmatpush1.bf16.msra.mxu0 %v11812
  %12680 = vmatprep.subr.bf16.mxu0 %v11820
  %12681 = vmatpush1.bf16.msra.mxu0 %v11819
  %12682 = vmatprep.subr.bf16.mxu0 %v11827
  %12683 = vmatpush1.bf16.msra.mxu0 %v11826
  %12684 = vmatprep.subr.bf16.mxu0 %v11834
  %12685 = vmatpush1.bf16.msra.mxu0 %v11833
  %12686 = vmatprep.subr.bf16.mxu0 %v11841
  %12687 = vmatpush1.bf16.msra.mxu0 %v11840
  %12688 = vmatprep.subr.bf16.mxu0 %v11848
  %12689 = vmatpush1.bf16.msra.mxu0 %v11847
  %12690 = vmatprep.subr.bf16.mxu0 %v11855
  %12691 = vmatpush1.bf16.msra.mxu0 %v11854
  %12692 = vmatprep.subr.bf16.mxu0 %v11862
  %12693 = vmatpush1.bf16.msra.mxu0 %v11861
  %12694 = vmatprep.subr.bf16.mxu0 %v11869
  %12695 = vmatpush1.bf16.msra.mxu0 %v11868
  %12696 = vmatprep.subr.bf16.mxu0 %v11876
  %12697 = vmatpush1.bf16.msra.mxu0 %v11875
  %12698 = vmatprep.subr.bf16.mxu0 %v11883
  %12699 = vmatpush1.bf16.msra.mxu0 %v11882
  %12700 = vmatprep.subr.bf16.mxu0 %v11890
  %12701 = vmatpush1.bf16.msra.mxu0 %v11889
  %12702 = vmatprep.subr.bf16.mxu0 %v11897
  %12703 = vmatpush1.bf16.msra.mxu0 %v11896
  %12704 = vmatprep.subr.bf16.mxu0 %v11904
  %12705 = vmatpush1.bf16.msra.mxu0 %v11903
  %12706 = vmatprep.subr.bf16.mxu0 %v11911
  %12707 = vmatpush1.bf16.msra.mxu0 %v11910
  %12708 = vmatprep.mubr.bf16.mxu0 %v10467
  %12709 = vmatmul.mubr.bf16.gmra.mrb[0].mxu0 %v10466
  %v12710 = vpop.f32.mrb[0].mxu0
  %v12711 = vadd.f32 0.0, %v12710
  %v12712 = vpop.f32.mrb[0].mxu0
  %v12713 = vadd.f32 0.0, %v12712
  %v12714 = vpop.f32.mrb[0].mxu0
  %v12715 = vpop.f32.mrb[0].mxu0
  %12716 = vdwg.mxu0
  %12717 = vmatprep.subr.bf16.mxu0 %v11918
  %12718 = vmatpush1.bf16.msra.mxu0 %v11917
  %12719 = vmatprep.subr.bf16.mxu0 %v11925
  %12720 = vmatpush1.bf16.msra.mxu0 %v11924
  %12721 = vmatprep.subr.bf16.mxu0 %v11932
  %12722 = vmatpush1.bf16.msra.mxu0 %v11931
  %12723 = vmatprep.subr.bf16.mxu0 %v11939
  %12724 = vmatpush1.bf16.msra.mxu0 %v11938
  %12725 = vmatprep.subr.bf16.mxu0 %v11946
  %12726 = vmatpush1.bf16.msra.mxu0 %v11945
  %12727 = vmatprep.subr.bf16.mxu0 %v11953
  %12728 = vmatpush1.bf16.msra.mxu0 %v11952
  %12729 = vmatprep.subr.bf16.mxu0 %v11960
  %12730 = vmatpush1.bf16.msra.mxu0 %v11959
  %12731 = vmatprep.subr.bf16.mxu0 %v11967
  %12732 = vmatpush1.bf16.msra.mxu0 %v11966
  %12733 = vmatprep.subr.bf16.mxu0 %v11974
  %12734 = vmatpush1.bf16.msra.mxu0 %v11973
  %12735 = vmatprep.subr.bf16.mxu0 %v11981
  %12736 = vmatpush1.bf16.msra.mxu0 %v11980
  %12737 = vmatprep.subr.bf16.mxu0 %v11988
  %12738 = vmatpush1.bf16.msra.mxu0 %v11987
  %12739 = vmatprep.subr.bf16.mxu0 %v11995
  %12740 = vmatpush1.bf16.msra.mxu0 %v11994
  %12741 = vmatprep.subr.bf16.mxu0 %v12002
  %12742 = vmatpush1.bf16.msra.mxu0 %v12001
  %12743 = vmatprep.subr.bf16.mxu0 %v12009
  %12744 = vmatpush1.bf16.msra.mxu0 %v12008
  %12745 = vmatprep.subr.bf16.mxu0 %v12016
  %12746 = vmatpush1.bf16.msra.mxu0 %v12015
  %12747 = vmatprep.subr.bf16.mxu0 %v12023
  %12748 = vmatpush1.bf16.msra.mxu0 %v12022
  %12749 = vmatprep.mubr.bf16.mxu0 %v10469
  %12750 = vmatmul.mubr.bf16.gmra.mrb[0].mxu0 %v10468
  %v12751 = vpop.f32.mrb[0].mxu0
  %v12752 = vadd.f32 %v12711, %v12751
  %v12753 = vpop.f32.mrb[0].mxu0
  %v12754 = vadd.f32 %v12713, %v12753
  %v12755 = vpop.f32.mrb[0].mxu0
  %v12756 = vpop.f32.mrb[0].mxu0
  %12757 = vdwg.mxu0
  %12758 = vmatprep.subr.bf16.mxu0 %v12030
  %12759 = vmatpush1.bf16.msra.mxu0 %v12029
  %12760 = vmatprep.subr.bf16.mxu0 %v12037
  %12761 = vmatpush1.bf16.msra.mxu0 %v12036
  %12762 = vmatprep.subr.bf16.mxu0 %v12044
  %12763 = vmatpush1.bf16.msra.mxu0 %v12043
  %12764 = vmatprep.subr.bf16.mxu0 %v12051
  %12765 = vmatpush1.bf16.msra.mxu0 %v12050
  %12766 = vmatprep.subr.bf16.mxu0 %v12058
  %12767 = vmatpush1.bf16.msra.mxu0 %v12057
  %12768 = vmatprep.subr.bf16.mxu0 %v12065
  %12769 = vmatpush1.bf16.msra.mxu0 %v12064
  %12770 = vmatprep.subr.bf16.mxu0 %v12072
  %12771 = vmatpush1.bf16.msra.mxu0 %v12071
  %12772 = vmatprep.subr.bf16.mxu0 %v12079
  %12773 = vmatpush1.bf16.msra.mxu0 %v12078
  %12774 = vmatprep.subr.bf16.mxu0 %v12086
  %12775 = vmatpush1.bf16.msra.mxu0 %v12085
  %12776 = vmatprep.subr.bf16.mxu0 %v12093
  %12777 = vmatpush1.bf16.msra.mxu0 %v12092
  %12778 = vmatprep.subr.bf16.mxu0 %v12100
  %12779 = vmatpush1.bf16.msra.mxu0 %v12099
  %12780 = vmatprep.subr.bf16.mxu0 %v12107
  %12781 = vmatpush1.bf16.msra.mxu0 %v12106
  %12782 = vmatprep.subr.bf16.mxu0 %v12114
  %12783 = vmatpush1.bf16.msra.mxu0 %v12113
  %12784 = vmatprep.subr.bf16.mxu0 %v12121
  %12785 = vmatpush1.bf16.msra.mxu0 %v12120
  %12786 = vmatprep.subr.bf16.mxu0 %v12128
  %12787 = vmatpush1.bf16.msra.mxu0 %v12127
  %12788 = vmatprep.subr.bf16.mxu0 %v12135
  %12789 = vmatpush1.bf16.msra.mxu0 %v12134
  %12790 = vmatprep.mubr.bf16.mxu0 %v10471
  %12791 = vmatmul.mubr.bf16.gmra.mrb[0].mxu0 %v10470
  %v12792 = vpop.f32.mrb[0].mxu0
  %v12793 = vadd.f32 %v12752, %v12792
  %v12794 = vpop.f32.mrb[0].mxu0
  %v12795 = vadd.f32 %v12754, %v12794
  %v12796 = vpop.f32.mrb[0].mxu0
  %v12797 = vpop.f32.mrb[0].mxu0
  %12798 = vdwg.mxu0
  %12799 = vmatprep.subr.bf16.mxu0 %v12142
  %12800 = vmatpush1.bf16.msra.mxu0 %v12141
  %12801 = vmatprep.subr.bf16.mxu0 %v12149
  %12802 = vmatpush1.bf16.msra.mxu0 %v12148
  %12803 = vmatprep.subr.bf16.mxu0 %v12156
  %12804 = vmatpush1.bf16.msra.mxu0 %v12155
  %12805 = vmatprep.subr.bf16.mxu0 %v12163
  %12806 = vmatpush1.bf16.msra.mxu0 %v12162
  %12807 = vmatprep.subr.bf16.mxu0 %v12170
  %12808 = vmatpush1.bf16.msra.mxu0 %v12169
  %12809 = vmatprep.subr.bf16.mxu0 %v12177
  %12810 = vmatpush1.bf16.msra.mxu0 %v12176
  %12811 = vmatprep.subr.bf16.mxu0 %v12184
  %12812 = vmatpush1.bf16.msra.mxu0 %v12183
  %12813 = vmatprep.subr.bf16.mxu0 %v12191
  %12814 = vmatpush1.bf16.msra.mxu0 %v12190
  %12815 = vmatprep.subr.bf16.mxu0 %v12198
  %12816 = vmatpush1.bf16.msra.mxu0 %v12197
  %12817 = vmatprep.subr.bf16.mxu0 %v12205
  %12818 = vmatpush1.bf16.msra.mxu0 %v12204
  %12819 = vmatprep.subr.bf16.mxu0 %v12212
  %12820 = vmatpush1.bf16.msra.mxu0 %v12211
  %12821 = vmatprep.subr.bf16.mxu0 %v12219
  %12822 = vmatpush1.bf16.msra.mxu0 %v12218
  %12823 = vmatprep.subr.bf16.mxu0 %v12659
  %12824 = vmatpush1.bf16.msra.mxu0 %v12656
  %12825 = vmatprep.subr.bf16.mxu0 0
  %12826 = vmatpush1.bf16.msra.mxu0 0
  %12827 = vmatprep.subr.bf16.mxu0 0
  %12828 = vmatpush1.bf16.msra.mxu0 0
  %12829 = vmatprep.subr.bf16.mxu0 0
  %12830 = vmatpush1.bf16.msra.mxu0 0
  %12831 = vmatprep.mubr.bf16.mxu0 %v12653
  %12832 = vmatmul.mubr.bf16.gmra.mrb[0].mxu0 %v10472
  %v12833 = vpop.f32.mrb[0].mxu0
  %v12834 = vadd.f32 %v12793, %v12833
  %v12835 = vpop.f32.mrb[0].mxu0
  %v12836 = vadd.f32 %v12795, %v12835
  %v12837 = vpop.f32.mrb[0].mxu0
  %v12838 = vpop.f32.mrb[0].mxu0
  %12839 = vdwg.mxu0
  %12840 = vmatprep.subr.bf16.mxu0 %v11808
  %12841 = vmatpush1.bf16.msra.mxu0 %v11807
  %12842 = vmatprep.subr.bf16.mxu0 %v11815
  %12843 = vmatpush1.bf16.msra.mxu0 %v11814
  %12844 = vmatprep.subr.bf16.mxu0 %v11822
  %12845 = vmatpush1.bf16.msra.mxu0 %v11821
  %12846 = vmatprep.subr.bf16.mxu0 %v11829
  %12847 = vmatpush1.bf16.msra.mxu0 %v11828
  %12848 = vmatprep.subr.bf16.mxu0 %v11836
  %12849 = vmatpush1.bf16.msra.mxu0 %v11835
  %12850 = vmatprep.subr.bf16.mxu0 %v11843
  %12851 = vmatpush1.bf16.msra.mxu0 %v11842
  %12852 = vmatprep.subr.bf16.mxu0 %v11850
  %12853 = vmatpush1.bf16.msra.mxu0 %v11849
  %12854 = vmatprep.subr.bf16.mxu0 %v11857
  %12855 = vmatpush1.bf16.msra.mxu0 %v11856
  %12856 = vmatprep.subr.bf16.mxu0 %v11864
  %12857 = vmatpush1.bf16.msra.mxu0 %v11863
  %12858 = vmatprep.subr.bf16.mxu0 %v11871
  %12859 = vmatpush1.bf16.msra.mxu0 %v11870
  %12860 = vmatprep.subr.bf16.mxu0 %v11878
  %12861 = vmatpush1.bf16.msra.mxu0 %v11877
  %12862 = vmatprep.subr.bf16.mxu0 %v11885
  %12863 = vmatpush1.bf16.msra.mxu0 %v11884
  %12864 = vmatprep.subr.bf16.mxu0 %v11892
  %12865 = vmatpush1.bf16.msra.mxu0 %v11891
  %12866 = vmatprep.subr.bf16.mxu0 %v11899
  %12867 = vmatpush1.bf16.msra.mxu0 %v11898
  %12868 = vmatprep.subr.bf16.mxu0 %v11906
  %12869 = vmatpush1.bf16.msra.mxu0 %v11905
  %12870 = vmatprep.subr.bf16.mxu0 %v11913
  %12871 = vmatpush1.bf16.msra.mxu0 %v11912
  %12872 = vmatprep.mubr.bf16.mxu0 %v10467
  %12873 = vmatmul.mubr.bf16.gmra.mrb[0].mxu0 %v10466
  %v12874 = vpop.f32.mrb[0].mxu0
  %v12875 = vadd.f32 0.0, %v12874
  %v12876 = vpop.f32.mrb[0].mxu0
  %v12877 = vadd.f32 0.0, %v12876
  %v12878 = vpop.f32.mrb[0].mxu0
  %v12879 = vpop.f32.mrb[0].mxu0
  %12880 = vdwg.mxu0
  %12881 = vmatprep.subr.bf16.mxu0 %v11920
  %12882 = vmatpush1.bf16.msra.mxu0 %v11919
  %12883 = vmatprep.subr.bf16.mxu0 %v11927
  %12884 = vmatpush1.bf16.msra.mxu0 %v11926
  %12885 = vmatprep.subr.bf16.mxu0 %v11934
  %12886 = vmatpush1.bf16.msra.mxu0 %v11933
  %12887 = vmatprep.subr.bf16.mxu0 %v11941
  %12888 = vmatpush1.bf16.msra.mxu0 %v11940
  %12889 = vmatprep.subr.bf16.mxu0 %v11948
  %12890 = vmatpush1.bf16.msra.mxu0 %v11947
  %12891 = vmatprep.subr.bf16.mxu0 %v11955
  %12892 = vmatpush1.bf16.msra.mxu0 %v11954
  %12893 = vmatprep.subr.bf16.mxu0 %v11962
  %12894 = vmatpush1.bf16.msra.mxu0 %v11961
  %12895 = vmatprep.subr.bf16.mxu0 %v11969
  %12896 = vmatpush1.bf16.msra.mxu0 %v11968
  %12897 = vmatprep.subr.bf16.mxu0 %v11976
  %12898 = vmatpush1.bf16.msra.mxu0 %v11975
  %12899 = vmatprep.subr.bf16.mxu0 %v11983
  %12900 = vmatpush1.bf16.msra.mxu0 %v11982
  %12901 = vmatprep.subr.bf16.mxu0 %v11990
  %12902 = vmatpush1.bf16.msra.mxu0 %v11989
  %12903 = vmatprep.subr.bf16.mxu0 %v11997
  %12904 = vmatpush1.bf16.msra.mxu0 %v11996
  %12905 = vmatprep.subr.bf16.mxu0 %v12004
  %12906 = vmatpush1.bf16.msra.mxu0 %v12003
  %12907 = vmatprep.subr.bf16.mxu0 %v12011
  %12908 = vmatpush1.bf16.msra.mxu0 %v12010
  %12909 = vmatprep.subr.bf16.mxu0 %v12018
  %12910 = vmatpush1.bf16.msra.mxu0 %v12017
  %12911 = vmatprep.subr.bf16.mxu0 %v12025
  %12912 = vmatpush1.bf16.msra.mxu0 %v12024
  %12913 = vmatprep.mubr.bf16.mxu0 %v10469
  %12914 = vmatmul.mubr.bf16.gmra.mrb[0].mxu0 %v10468
  %v12915 = vpop.f32.mrb[0].mxu0
  %v12916 = vadd.f32 %v12875, %v12915
  %v12917 = vpop.f32.mrb[0].mxu0
  %v12918 = vadd.f32 %v12877, %v12917
  %v12919 = vpop.f32.mrb[0].mxu0
  %v12920 = vpop.f32.mrb[0].mxu0
  %12921 = vdwg.mxu0
  %12922 = vmatprep.subr.bf16.mxu0 %v12032
  %12923 = vmatpush1.bf16.msra.mxu0 %v12031
  %12924 = vmatprep.subr.bf16.mxu0 %v12039
  %12925 = vmatpush1.bf16.msra.mxu0 %v12038
  %12926 = vmatprep.subr.bf16.mxu0 %v12046
  %12927 = vmatpush1.bf16.msra.mxu0 %v12045
  %12928 = vmatprep.subr.bf16.mxu0 %v12053
  %12929 = vmatpush1.bf16.msra.mxu0 %v12052
  %12930 = vmatprep.subr.bf16.mxu0 %v12060
  %12931 = vmatpush1.bf16.msra.mxu0 %v12059
  %12932 = vmatprep.subr.bf16.mxu0 %v12067
  %12933 = vmatpush1.bf16.msra.mxu0 %v12066
  %12934 = vmatprep.subr.bf16.mxu0 %v12074
  %12935 = vmatpush1.bf16.msra.mxu0 %v12073
  %12936 = vmatprep.subr.bf16.mxu0 %v12081
  %12937 = vmatpush1.bf16.msra.mxu0 %v12080
  %12938 = vmatprep.subr.bf16.mxu0 %v12088
  %12939 = vmatpush1.bf16.msra.mxu0 %v12087
  %12940 = vmatprep.subr.bf16.mxu0 %v12095
  %12941 = vmatpush1.bf16.msra.mxu0 %v12094
  %12942 = vmatprep.subr.bf16.mxu0 %v12102
  %12943 = vmatpush1.bf16.msra.mxu0 %v12101
  %12944 = vmatprep.subr.bf16.mxu0 %v12109
  %12945 = vmatpush1.bf16.msra.mxu0 %v12108
  %12946 = vmatprep.subr.bf16.mxu0 %v12116
  %12947 = vmatpush1.bf16.msra.mxu0 %v12115
  %12948 = vmatprep.subr.bf16.mxu0 %v12123
  %12949 = vmatpush1.bf16.msra.mxu0 %v12122
  %12950 = vmatprep.subr.bf16.mxu0 %v12130
  %12951 = vmatpush1.bf16.msra.mxu0 %v12129
  %12952 = vmatprep.subr.bf16.mxu0 %v12137
  %12953 = vmatpush1.bf16.msra.mxu0 %v12136
  %12954 = vmatprep.mubr.bf16.mxu0 %v10471
  %12955 = vmatmul.mubr.bf16.gmra.mrb[0].mxu0 %v10470
  %v12956 = vpop.f32.mrb[0].mxu0
  %v12957 = vadd.f32 %v12916, %v12956
  %v12958 = vpop.f32.mrb[0].mxu0
  %v12959 = vadd.f32 %v12918, %v12958
  %v12960 = vpop.f32.mrb[0].mxu0
  %v12961 = vpop.f32.mrb[0].mxu0
  %12962 = vdwg.mxu0
  %12963 = vmatprep.subr.bf16.mxu0 %v12144
  %12964 = vmatpush1.bf16.msra.mxu0 %v12143
  %12965 = vmatprep.subr.bf16.mxu0 %v12151
  %12966 = vmatpush1.bf16.msra.mxu0 %v12150
  %12967 = vmatprep.subr.bf16.mxu0 %v12158
  %12968 = vmatpush1.bf16.msra.mxu0 %v12157
  %12969 = vmatprep.subr.bf16.mxu0 %v12165
  %12970 = vmatpush1.bf16.msra.mxu0 %v12164
  %12971 = vmatprep.subr.bf16.mxu0 %v12172
  %12972 = vmatpush1.bf16.msra.mxu0 %v12171
  %12973 = vmatprep.subr.bf16.mxu0 %v12179
  %12974 = vmatpush1.bf16.msra.mxu0 %v12178
  %12975 = vmatprep.subr.bf16.mxu0 %v12186
  %12976 = vmatpush1.bf16.msra.mxu0 %v12185
  %12977 = vmatprep.subr.bf16.mxu0 %v12193
  %12978 = vmatpush1.bf16.msra.mxu0 %v12192
  %12979 = vmatprep.subr.bf16.mxu0 %v12200
  %12980 = vmatpush1.bf16.msra.mxu0 %v12199
  %12981 = vmatprep.subr.bf16.mxu0 %v12207
  %12982 = vmatpush1.bf16.msra.mxu0 %v12206
  %12983 = vmatprep.subr.bf16.mxu0 %v12214
  %12984 = vmatpush1.bf16.msra.mxu0 %v12213
  %12985 = vmatprep.subr.bf16.mxu0 %v12221
  %12986 = vmatpush1.bf16.msra.mxu0 %v12220
  %12987 = vmatprep.subr.bf16.mxu0 %v12665
  %12988 = vmatpush1.bf16.msra.mxu0 %v12662
  %12989 = vmatprep.subr.bf16.mxu0 0
  %12990 = vmatpush1.bf16.msra.mxu0 0
  %12991 = vmatprep.subr.bf16.mxu0 0
  %12992 = vmatpush1.bf16.msra.mxu0 0
  %12993 = vmatprep.subr.bf16.mxu0 0
  %12994 = vmatpush1.bf16.msra.mxu0 0
  %12995 = vmatprep.mubr.bf16.mxu0 %v12653
  %12996 = vmatmul.mubr.bf16.gmra.mrb[0].mxu0 %v10472
  %v12997 = vpop.f32.mrb[0].mxu0
  %v12998 = vadd.f32 %v12957, %v12997
  %v12999 = vpop.f32.mrb[0].mxu0
  %v13000 = vadd.f32 %v12959, %v12999
  %v13001 = vpop.f32.mrb[0].mxu0
  %v13002 = vpop.f32.mrb[0].mxu0
  %13003 = vdwg.mxu0
  %13004 = vmatprep.subr.bf16.mxu0 %v11810
  %13005 = vmatpush1.bf16.msra.mxu0 %v11809
  %13006 = vmatprep.subr.bf16.mxu0 %v11817
  %13007 = vmatpush1.bf16.msra.mxu0 %v11816
  %13008 = vmatprep.subr.bf16.mxu0 %v11824
  %13009 = vmatpush1.bf16.msra.mxu0 %v11823
  %13010 = vmatprep.subr.bf16.mxu0 %v11831
  %13011 = vmatpush1.bf16.msra.mxu0 %v11830
  %13012 = vmatprep.subr.bf16.mxu0 %v11838
  %13013 = vmatpush1.bf16.msra.mxu0 %v11837
  %13014 = vmatprep.subr.bf16.mxu0 %v11845
  %13015 = vmatpush1.bf16.msra.mxu0 %v11844
  %13016 = vmatprep.subr.bf16.mxu0 %v11852
  %13017 = vmatpush1.bf16.msra.mxu0 %v11851
  %13018 = vmatprep.subr.bf16.mxu0 %v11859
  %13019 = vmatpush1.bf16.msra.mxu0 %v11858
  %13020 = vmatprep.subr.bf16.mxu0 %v11866
  %13021 = vmatpush1.bf16.msra.mxu0 %v11865
  %13022 = vmatprep.subr.bf16.mxu0 %v11873
  %13023 = vmatpush1.bf16.msra.mxu0 %v11872
  %13024 = vmatprep.subr.bf16.mxu0 %v11880
  %13025 = vmatpush1.bf16.msra.mxu0 %v11879
  %13026 = vmatprep.subr.bf16.mxu0 %v11887
  %13027 = vmatpush1.bf16.msra.mxu0 %v11886
  %13028 = vmatprep.subr.bf16.mxu0 %v11894
  %13029 = vmatpush1.bf16.msra.mxu0 %v11893
  %13030 = vmatprep.subr.bf16.mxu0 %v11901
  %13031 = vmatpush1.bf16.msra.mxu0 %v11900
  %13032 = vmatprep.subr.bf16.mxu0 %v11908
  %13033 = vmatpush1.bf16.msra.mxu0 %v11907
  %13034 = vmatprep.subr.bf16.mxu0 %v11915
  %13035 = vmatpush1.bf16.msra.mxu0 %v11914
  %13036 = vmatprep.mubr.bf16.mxu0 %v10467
  %13037 = vmatmul.mubr.bf16.gmra.mrb[0].mxu0 %v10466
  %v13038 = vpop.f32.mrb[0].mxu0
  %v13039 = vadd.f32 0.0, %v13038
  %v13040 = vpop.f32.mrb[0].mxu0
  %v13041 = vadd.f32 0.0, %v13040
  %v13042 = vpop.f32.mrb[0].mxu0
  %v13043 = vpop.f32.mrb[0].mxu0
  %13044 = vdwg.mxu0
  %13045 = vmatprep.subr.bf16.mxu0 %v11922
  %13046 = vmatpush1.bf16.msra.mxu0 %v11921
  %13047 = vmatprep.subr.bf16.mxu0 %v11929
  %13048 = vmatpush1.bf16.msra.mxu0 %v11928
  %13049 = vmatprep.subr.bf16.mxu0 %v11936
  %13050 = vmatpush1.bf16.msra.mxu0 %v11935
  %13051 = vmatprep.subr.bf16.mxu0 %v11943
  %13052 = vmatpush1.bf16.msra.mxu0 %v11942
  %13053 = vmatprep.subr.bf16.mxu0 %v11950
  %13054 = vmatpush1.bf16.msra.mxu0 %v11949
  %13055 = vmatprep.subr.bf16.mxu0 %v11957
  %13056 = vmatpush1.bf16.msra.mxu0 %v11956
  %13057 = vmatprep.subr.bf16.mxu0 %v11964
  %13058 = vmatpush1.bf16.msra.mxu0 %v11963
  %13059 = vmatprep.subr.bf16.mxu0 %v11971
  %13060 = vmatpush1.bf16.msra.mxu0 %v11970
  %13061 = vmatprep.subr.bf16.mxu0 %v11978
  %13062 = vmatpush1.bf16.msra.mxu0 %v11977
  %13063 = vmatprep.subr.bf16.mxu0 %v11985
  %13064 = vmatpush1.bf16.msra.mxu0 %v11984
  %13065 = vmatprep.subr.bf16.mxu0 %v11992
  %13066 = vmatpush1.bf16.msra.mxu0 %v11991
  %13067 = vmatprep.subr.bf16.mxu0 %v11999
  %13068 = vmatpush1.bf16.msra.mxu0 %v11998
  %13069 = vmatprep.subr.bf16.mxu0 %v12006
  %13070 = vmatpush1.bf16.msra.mxu0 %v12005
  %13071 = vmatprep.subr.bf16.mxu0 %v12013
  %13072 = vmatpush1.bf16.msra.mxu0 %v12012
  %13073 = vmatprep.subr.bf16.mxu0 %v12020
  %13074 = vmatpush1.bf16.msra.mxu0 %v12019
  %13075 = vmatprep.subr.bf16.mxu0 %v12027
  %13076 = vmatpush1.bf16.msra.mxu0 %v12026
  %13077 = vmatprep.mubr.bf16.mxu0 %v10469
  %13078 = vmatmul.mubr.bf16.gmra.mrb[0].mxu0 %v10468
  %v13079 = vpop.f32.mrb[0].mxu0
  %v13080 = vadd.f32 %v13039, %v13079
  %v13081 = vpop.f32.mrb[0].mxu0
  %v13082 = vadd.f32 %v13041, %v13081
  %v13083 = vpop.f32.mrb[0].mxu0
  %v13084 = vpop.f32.mrb[0].mxu0
  %13085 = vdwg.mxu0
  %13086 = vmatprep.subr.bf16.mxu0 %v12034
  %13087 = vmatpush1.bf16.msra.mxu0 %v12033
  %13088 = vmatprep.subr.bf16.mxu0 %v12041
  %13089 = vmatpush1.bf16.msra.mxu0 %v12040
  %13090 = vmatprep.subr.bf16.mxu0 %v12048
  %13091 = vmatpush1.bf16.msra.mxu0 %v12047
  %13092 = vmatprep.subr.bf16.mxu0 %v12055
  %13093 = vmatpush1.bf16.msra.mxu0 %v12054
  %13094 = vmatprep.subr.bf16.mxu0 %v12062
  %13095 = vmatpush1.bf16.msra.mxu0 %v12061
  %13096 = vmatprep.subr.bf16.mxu0 %v12069
  %13097 = vmatpush1.bf16.msra.mxu0 %v12068
  %13098 = vmatprep.subr.bf16.mxu0 %v12076
  %13099 = vmatpush1.bf16.msra.mxu0 %v12075
  %13100 = vmatprep.subr.bf16.mxu0 %v12083
  %13101 = vmatpush1.bf16.msra.mxu0 %v12082
  %13102 = vmatprep.subr.bf16.mxu0 %v12090
  %13103 = vmatpush1.bf16.msra.mxu0 %v12089
  %13104 = vmatprep.subr.bf16.mxu0 %v12097
  %13105 = vmatpush1.bf16.msra.mxu0 %v12096
  %13106 = vmatprep.subr.bf16.mxu0 %v12104
  %13107 = vmatpush1.bf16.msra.mxu0 %v12103
  %13108 = vmatprep.subr.bf16.mxu0 %v12111
  %13109 = vmatpush1.bf16.msra.mxu0 %v12110
  %13110 = vmatprep.subr.bf16.mxu0 %v12118
  %13111 = vmatpush1.bf16.msra.mxu0 %v12117
  %13112 = vmatprep.subr.bf16.mxu0 %v12125
  %13113 = vmatpush1.bf16.msra.mxu0 %v12124
  %13114 = vmatprep.subr.bf16.mxu0 %v12132
  %13115 = vmatpush1.bf16.msra.mxu0 %v12131
  %13116 = vmatprep.subr.bf16.mxu0 %v12139
  %13117 = vmatpush1.bf16.msra.mxu0 %v12138
  %13118 = vmatprep.mubr.bf16.mxu0 %v10471
  %13119 = vmatmul.mubr.bf16.gmra.mrb[0].mxu0 %v10470
  %v13120 = vpop.f32.mrb[0].mxu0
  %v13121 = vadd.f32 %v13080, %v13120
  %v13122 = vpop.f32.mrb[0].mxu0
  %v13123 = vadd.f32 %v13082, %v13122
  %v13124 = vpop.f32.mrb[0].mxu0
  %v13125 = vpop.f32.mrb[0].mxu0
  %13126 = vdwg.mxu0
  %13127 = vmatprep.subr.bf16.mxu0 %v12146
  %13128 = vmatpush1.bf16.msra.mxu0 %v12145
  %13129 = vmatprep.subr.bf16.mxu0 %v12153
  %13130 = vmatpush1.bf16.msra.mxu0 %v12152
  %13131 = vmatprep.subr.bf16.mxu0 %v12160
  %13132 = vmatpush1.bf16.msra.mxu0 %v12159
  %13133 = vmatprep.subr.bf16.mxu0 %v12167
  %13134 = vmatpush1.bf16.msra.mxu0 %v12166
  %13135 = vmatprep.subr.bf16.mxu0 %v12174
  %13136 = vmatpush1.bf16.msra.mxu0 %v12173
  %13137 = vmatprep.subr.bf16.mxu0 %v12181
  %13138 = vmatpush1.bf16.msra.mxu0 %v12180
  %13139 = vmatprep.subr.bf16.mxu0 %v12188
  %13140 = vmatpush1.bf16.msra.mxu0 %v12187
  %13141 = vmatprep.subr.bf16.mxu0 %v12195
  %13142 = vmatpush1.bf16.msra.mxu0 %v12194
  %13143 = vmatprep.subr.bf16.mxu0 %v12202
  %13144 = vmatpush1.bf16.msra.mxu0 %v12201
  %13145 = vmatprep.subr.bf16.mxu0 %v12209
  %13146 = vmatpush1.bf16.msra.mxu0 %v12208
  %13147 = vmatprep.subr.bf16.mxu0 %v12216
  %13148 = vmatpush1.bf16.msra.mxu0 %v12215
  %13149 = vmatprep.subr.bf16.mxu0 %v12223
  %13150 = vmatpush1.bf16.msra.mxu0 %v12222
  %13151 = vmatprep.subr.bf16.mxu0 %v12671
  %13152 = vmatpush1.bf16.msra.mxu0 %v12668
  %13153 = vmatprep.subr.bf16.mxu0 0
  %13154 = vmatpush1.bf16.msra.mxu0 0
  %13155 = vmatprep.subr.bf16.mxu0 0
  %13156 = vmatpush1.bf16.msra.mxu0 0
  %13157 = vmatprep.subr.bf16.mxu0 0
  %13158 = vmatpush1.bf16.msra.mxu0 0
  %13159 = vmatprep.mubr.bf16.mxu0 %v12653
  %13160 = vmatmul.mubr.bf16.gmra.mrb[0].mxu0 %v10472
  %v13161 = vpop.f32.mrb[0].mxu0
  %v13162 = vadd.f32 %v13121, %v13161
  %v13163 = vpop.f32.mrb[0].mxu0
  %v13164 = vadd.f32 %v13123, %v13163
  %v13165 = vpop.f32.mrb[0].mxu0
  %v13166 = vpop.f32.mrb[0].mxu0
  %13167 = vdwg.mxu0
  %13168 = vmatprep.subr.bf16.mxu0 0
  %13169 = vmatpush1.bf16.msra.mxu0 %v11811
  %13170 = vmatprep.subr.bf16.mxu0 0
  %13171 = vmatpush1.bf16.msra.mxu0 %v11818
  %13172 = vmatprep.subr.bf16.mxu0 0
  %13173 = vmatpush1.bf16.msra.mxu0 %v11825
  %13174 = vmatprep.subr.bf16.mxu0 0
  %13175 = vmatpush1.bf16.msra.mxu0 %v11832
  %13176 = vmatprep.subr.bf16.mxu0 0
  %13177 = vmatpush1.bf16.msra.mxu0 %v11839
  %13178 = vmatprep.subr.bf16.mxu0 0
  %13179 = vmatpush1.bf16.msra.mxu0 %v11846
  %13180 = vmatprep.subr.bf16.mxu0 0
  %13181 = vmatpush1.bf16.msra.mxu0 %v11853
  %13182 = vmatprep.subr.bf16.mxu0 0
  %13183 = vmatpush1.bf16.msra.mxu0 %v11860
  %13184 = vmatprep.subr.bf16.mxu0 0
  %13185 = vmatpush1.bf16.msra.mxu0 %v11867
  %13186 = vmatprep.subr.bf16.mxu0 0
  %13187 = vmatpush1.bf16.msra.mxu0 %v11874
  %13188 = vmatprep.subr.bf16.mxu0 0
  %13189 = vmatpush1.bf16.msra.mxu0 %v11881
  %13190 = vmatprep.subr.bf16.mxu0 0
  %13191 = vmatpush1.bf16.msra.mxu0 %v11888
  %13192 = vmatprep.subr.bf16.mxu0 0
  %13193 = vmatpush1.bf16.msra.mxu0 %v11895
  %13194 = vmatprep.subr.bf16.mxu0 0
  %13195 = vmatpush1.bf16.msra.mxu0 %v11902
  %13196 = vmatprep.subr.bf16.mxu0 0
  %13197 = vmatpush1.bf16.msra.mxu0 %v11909
  %13198 = vmatprep.subr.bf16.mxu0 0
  %13199 = vmatpush1.bf16.msra.mxu0 %v11916
  %13200 = vmatprep.mubr.bf16.mxu0 %v10467
  %13201 = vmatmul.mubr.bf16.gmra.mrb[0].mxu0 %v10466
  %v13202 = vpop.f32.mrb[0].mxu0
  %v13203 = vadd.f32 0.0, %v13202
  %v13204 = vpop.f32.mrb[0].mxu0
  %v13205 = vpop.f32.mrb[0].mxu0
  %v13206 = vpop.f32.mrb[0].mxu0
  %13207 = vdwg.mxu0
  %13208 = vmatprep.subr.bf16.mxu0 0
  %13209 = vmatpush1.bf16.msra.mxu0 %v11923
  %13210 = vmatprep.subr.bf16.mxu0 0
  %13211 = vmatpush1.bf16.msra.mxu0 %v11930
  %13212 = vmatprep.subr.bf16.mxu0 0
  %13213 = vmatpush1.bf16.msra.mxu0 %v11937
  %13214 = vmatprep.subr.bf16.mxu0 0
  %13215 = vmatpush1.bf16.msra.mxu0 %v11944
  %13216 = vmatprep.subr.bf16.mxu0 0
  %13217 = vmatpush1.bf16.msra.mxu0 %v11951
  %13218 = vmatprep.subr.bf16.mxu0 0
  %13219 = vmatpush1.bf16.msra.mxu0 %v11958
  %13220 = vmatprep.subr.bf16.mxu0 0
  %13221 = vmatpush1.bf16.msra.mxu0 %v11965
  %13222 = vmatprep.subr.bf16.mxu0 0
  %13223 = vmatpush1.bf16.msra.mxu0 %v11972
  %13224 = vmatprep.subr.bf16.mxu0 0
  %13225 = vmatpush1.bf16.msra.mxu0 %v11979
  %13226 = vmatprep.subr.bf16.mxu0 0
  %13227 = vmatpush1.bf16.msra.mxu0 %v11986
  %13228 = vmatprep.subr.bf16.mxu0 0
  %13229 = vmatpush1.bf16.msra.mxu0 %v11993
  %13230 = vmatprep.subr.bf16.mxu0 0
  %13231 = vmatpush1.bf16.msra.mxu0 %v12000
  %13232 = vmatprep.subr.bf16.mxu0 0
  %13233 = vmatpush1.bf16.msra.mxu0 %v12007
  %13234 = vmatprep.subr.bf16.mxu0 0
  %13235 = vmatpush1.bf16.msra.mxu0 %v12014
  %13236 = vmatprep.subr.bf16.mxu0 0
  %13237 = vmatpush1.bf16.msra.mxu0 %v12021
  %13238 = vmatprep.subr.bf16.mxu0 0
  %13239 = vmatpush1.bf16.msra.mxu0 %v12028
  %13240 = vmatprep.mubr.bf16.mxu0 %v10469
  %13241 = vmatmul.mubr.bf16.gmra.mrb[0].mxu0 %v10468
  %v13242 = vpop.f32.mrb[0].mxu0
  %v13243 = vadd.f32 %v13203, %v13242
  %v13244 = vpop.f32.mrb[0].mxu0
  %v13245 = vpop.f32.mrb[0].mxu0
  %v13246 = vpop.f32.mrb[0].mxu0
  %13247 = vdwg.mxu0
  %13248 = vmatprep.subr.bf16.mxu0 0
  %13249 = vmatpush1.bf16.msra.mxu0 %v12035
  %13250 = vmatprep.subr.bf16.mxu0 0
  %13251 = vmatpush1.bf16.msra.mxu0 %v12042
  %13252 = vmatprep.subr.bf16.mxu0 0
  %13253 = vmatpush1.bf16.msra.mxu0 %v12049
  %13254 = vmatprep.subr.bf16.mxu0 0
  %13255 = vmatpush1.bf16.msra.mxu0 %v12056
  %13256 = vmatprep.subr.bf16.mxu0 0
  %13257 = vmatpush1.bf16.msra.mxu0 %v12063
  %13258 = vmatprep.subr.bf16.mxu0 0
  %13259 = vmatpush1.bf16.msra.mxu0 %v12070
  %13260 = vmatprep.subr.bf16.mxu0 0
  %13261 = vmatpush1.bf16.msra.mxu0 %v12077
  %13262 = vmatprep.subr.bf16.mxu0 0
  %13263 = vmatpush1.bf16.msra.mxu0 %v12084
  %13264 = vmatprep.subr.bf16.mxu0 0
  %13265 = vmatpush1.bf16.msra.mxu0 %v12091
  %13266 = vmatprep.subr.bf16.mxu0 0
  %13267 = vmatpush1.bf16.msra.mxu0 %v12098
  %13268 = vmatprep.subr.bf16.mxu0 0
  %13269 = vmatpush1.bf16.msra.mxu0 %v12105
  %13270 = vmatprep.subr.bf16.mxu0 0
  %13271 = vmatpush1.bf16.msra.mxu0 %v12112
  %13272 = vmatprep.subr.bf16.mxu0 0
  %13273 = vmatpush1.bf16.msra.mxu0 %v12119
  %13274 = vmatprep.subr.bf16.mxu0 0
  %13275 = vmatpush1.bf16.msra.mxu0 %v12126
  %13276 = vmatprep.subr.bf16.mxu0 0
  %13277 = vmatpush1.bf16.msra.mxu0 %v12133
  %13278 = vmatprep.subr.bf16.mxu0 0
  %13279 = vmatpush1.bf16.msra.mxu0 %v12140
  %13280 = vmatprep.mubr.bf16.mxu0 %v10471
  %13281 = vmatmul.mubr.bf16.gmra.mrb[0].mxu0 %v10470
  %v13282 = vpop.f32.mrb[0].mxu0
  %v13283 = vadd.f32 %v13243, %v13282
  %v13284 = vpop.f32.mrb[0].mxu0
  %v13285 = vpop.f32.mrb[0].mxu0
  %v13286 = vpop.f32.mrb[0].mxu0
  %13287 = vdwg.mxu0
  %13288 = vmatprep.subr.bf16.mxu0 0
  %13289 = vmatpush1.bf16.msra.mxu0 %v12147
  %13290 = vmatprep.subr.bf16.mxu0 0
  %13291 = vmatpush1.bf16.msra.mxu0 %v12154
  %13292 = vmatprep.subr.bf16.mxu0 0
  %13293 = vmatpush1.bf16.msra.mxu0 %v12161
  %13294 = vmatprep.subr.bf16.mxu0 0
  %13295 = vmatpush1.bf16.msra.mxu0 %v12168
  %13296 = vmatprep.subr.bf16.mxu0 0
  %13297 = vmatpush1.bf16.msra.mxu0 %v12175
  %13298 = vmatprep.subr.bf16.mxu0 0
  %13299 = vmatpush1.bf16.msra.mxu0 %v12182
  %13300 = vmatprep.subr.bf16.mxu0 0
  %13301 = vmatpush1.bf16.msra.mxu0 %v12189
  %13302 = vmatprep.subr.bf16.mxu0 0
  %13303 = vmatpush1.bf16.msra.mxu0 %v12196
  %13304 = vmatprep.subr.bf16.mxu0 0
  %13305 = vmatpush1.bf16.msra.mxu0 %v12203
  %13306 = vmatprep.subr.bf16.mxu0 0
  %13307 = vmatpush1.bf16.msra.mxu0 %v12210
  %13308 = vmatprep.subr.bf16.mxu0 0
  %13309 = vmatpush1.bf16.msra.mxu0 %v12217
  %13310 = vmatprep.subr.bf16.mxu0 0
  %13311 = vmatpush1.bf16.msra.mxu0 %v12224
  %13312 = vmatprep.subr.bf16.mxu0 0
  %13313 = vmatpush1.bf16.msra.mxu0 %v12674
  %13314 = vmatprep.subr.bf16.mxu0 0
  %13315 = vmatpush1.bf16.msra.mxu0 0
  %13316 = vmatprep.subr.bf16.mxu0 0
  %13317 = vmatpush1.bf16.msra.mxu0 0
  %13318 = vmatprep.subr.bf16.mxu0 0
  %13319 = vmatpush1.bf16.msra.mxu0 0
  %13320 = vmatprep.mubr.bf16.mxu0 %v12653
  %13321 = vmatmul.mubr.bf16.gmra.mrb[0].mxu0 %v10472
  %v13322 = vpop.f32.mrb[0].mxu0
  %v13323 = vadd.f32 %v13283, %v13322
  %v13324 = vpop.f32.mrb[0].mxu0
  %v13325 = vpop.f32.mrb[0].mxu0
  %v13326 = vpop.f32.mrb[0].mxu0
  %13327 = vdwg.mxu0
  %v13328 = vld [vmem:[%s12] ss:$2 sm:$0x7f]
  %v13330 = vlaneseq
  %v13331 = vshrl.u32 %v13330, 7
  %v13332 = vsub.s32 0, %v13331
  %v13333 = vrot.slane %v13328, %v13332
  %v13334 = vlaneseq
  %v13335 = vshrl.u32 %v13334, 7
  %v13336 = vsub.s32 1, %v13335
  %v13337 = vrot.slane %v13328, %v13336
  %v13338 = vlaneseq
  %v13339 = vshrl.u32 %v13338, 7
  %v13340 = vsub.s32 2, %v13339
  %v13341 = vrot.slane %v13328, %v13340
  %v13342 = vlaneseq
  %v13343 = vshrl.u32 %v13342, 7
  %v13344 = vsub.s32 3, %v13343
  %v13345 = vrot.slane %v13328, %v13344
  %v13346 = vlaneseq
  %v13347 = vshrl.u32 %v13346, 7
  %v13348 = vsub.s32 4, %v13347
  %v13349 = vrot.slane %v13328, %v13348
  %v13350 = vlaneseq
  %v13351 = vshrl.u32 %v13350, 7
  %v13352 = vsub.s32 5, %v13351
  %v13353 = vrot.slane %v13328, %v13352
  %v13354 = vlaneseq
  %v13355 = vshrl.u32 %v13354, 7
  %v13356 = vsub.s32 6, %v13355
  %v13357 = vrot.slane %v13328, %v13356
  %v13365 = vmul.f32 %v12834, %v13333
  %v13366 = vmul.f32 %v12836, %v13337
  %v13367 = vmul.f32 %v12998, %v13341
  %v13368 = vmul.f32 %v13000, %v13345
  %v13369 = vmul.f32 %v13162, %v13349
  %v13370 = vmul.f32 %v13164, %v13353
  %v13371 = vmul.f32 %v13323, %v13357
  %s13372 = scalar_lea.vmem %s12, 1
  %v13373 = vld [vmem:[%s13372] ss:$2 sm:$0x7f]
  %v13375 = vlaneseq
  %v13376 = vshrl.u32 %v13375, 7
  %v13377 = vsub.s32 0, %v13376
  %v13378 = vrot.slane %v13373, %v13377
  %v13379 = vlaneseq
  %v13380 = vshrl.u32 %v13379, 7
  %v13381 = vsub.s32 1, %v13380
  %v13382 = vrot.slane %v13373, %v13381
  %v13383 = vlaneseq
  %v13384 = vshrl.u32 %v13383, 7
  %v13385 = vsub.s32 2, %v13384
  %v13386 = vrot.slane %v13373, %v13385
  %v13387 = vlaneseq
  %v13388 = vshrl.u32 %v13387, 7
  %v13389 = vsub.s32 3, %v13388
  %v13390 = vrot.slane %v13373, %v13389
  %v13391 = vlaneseq
  %v13392 = vshrl.u32 %v13391, 7
  %v13393 = vsub.s32 4, %v13392
  %v13394 = vrot.slane %v13373, %v13393
  %v13395 = vlaneseq
  %v13396 = vshrl.u32 %v13395, 7
  %v13397 = vsub.s32 5, %v13396
  %v13398 = vrot.slane %v13373, %v13397
  %v13399 = vlaneseq
  %v13400 = vshrl.u32 %v13399, 7
  %v13401 = vsub.s32 6, %v13400
  %v13402 = vrot.slane %v13373, %v13401
  %v13410 = vadd.f32 %v13365, %v13378
  %v13411 = vadd.f32 %v13366, %v13382
  %v13412 = vadd.f32 %v13367, %v13386
  %v13413 = vadd.f32 %v13368, %v13390
  %v13414 = vadd.f32 %v13369, %v13394
  %v13415 = vadd.f32 %v13370, %v13398
  %v13416 = vadd.f32 %v13371, %v13402
  %v13417 = vxor.u32 %v13410, 2147483648
  %v13418 = vxor.u32 %v13411, 2147483648
  %v13419 = vxor.u32 %v13412, 2147483648
  %v13420 = vxor.u32 %v13413, 2147483648
  %v13421 = vxor.u32 %v13414, 2147483648
  %v13422 = vxor.u32 %v13415, 2147483648
  %v13423 = vxor.u32 %v13416, 2147483648
  %v13424 = vmul.f32 %v13417, 1.442695
  %v13425 = vpow.pop %v13424
  %v13426 = vmul.f32 %v13418, 1.442695
  %v13427 = vpow.pop %v13426
  %v13428 = vmul.f32 %v13419, 1.442695
  %v13429 = vpow.pop %v13428
  %v13430 = vmul.f32 %v13420, 1.442695
  %v13431 = vpow.pop %v13430
  %v13432 = vmul.f32 %v13421, 1.442695
  %v13433 = vpow.pop %v13432
  %v13434 = vmul.f32 %v13422, 1.442695
  %v13435 = vpow.pop %v13434
  %v13436 = vmul.f32 %v13423, 1.442695
  %v13437 = vpow.pop %v13436
  %v13438 = vadd.f32 %v13425, 1.0
  %v13439 = vadd.f32 %v13427, 1.0
  %v13440 = vadd.f32 %v13429, 1.0
  %v13441 = vadd.f32 %v13431, 1.0
  %v13442 = vadd.f32 %v13433, 1.0
  %v13443 = vadd.f32 %v13435, 1.0
  %v13444 = vadd.f32 %v13437, 1.0
  %v13445 = vrcp.pop %v13438
  %v13446 = vmul.f32 1.0, %v13445
  %v13447 = vrcp.pop %v13439
  %v13448 = vmul.f32 1.0, %v13447
  %v13449 = vrcp.pop %v13440
  %v13450 = vmul.f32 1.0, %v13449
  %v13451 = vrcp.pop %v13441
  %v13452 = vmul.f32 1.0, %v13451
  %v13453 = vrcp.pop %v13442
  %v13454 = vmul.f32 1.0, %v13453
  %v13455 = vrcp.pop %v13443
  %v13456 = vmul.f32 1.0, %v13455
  %v13457 = vrcp.pop %v13444
  %v13458 = vmul.f32 1.0, %v13457
  %v13466 = vcombine.low %v13446, %v13448
  %v13467 = vcombine.low %v13450, %v13452
  %v13469 = vunpack.c.l.s4 1983009808
  %v13470 = vunpack.c.0.s8 %v13469
  %v13471 = vlaneseq
  %v13472 = vshrl.u32 %v13471, 7
  %v13473 = vsub.s32 %v13470, %v13472
  %v13474 = vrot.slane %v13466, %v13473
  %v13476 = vunpack.c.l.s4 1983009808
  %v13477 = vunpack.c.0.s8 %v13476
  %v13478 = vlaneseq
  %v13479 = vshrl.u32 %v13478, 7
  %v13480 = vsub.s32 %v13477, %v13479
  %v13481 = vrot.slane %v13467, %v13480
  %v13482 = vcombine.low %v13474, %v13481
  %v13483 = vcombine.low %v13454, %v13456
  %v13485 = vunpack.c.l.s4 1983009808
  %v13486 = vunpack.c.0.s8 %v13485
  %v13487 = vlaneseq
  %v13488 = vshrl.u32 %v13487, 7
  %v13489 = vsub.s32 %v13486, %v13488
  %v13490 = vrot.slane %v13483, %v13489
  %v13492 = vunpack.c.l.s4 1983009808
  %v13493 = vunpack.c.0.s8 %v13492
  %v13494 = vlaneseq
  %v13495 = vshrl.u32 %v13494, 7
  %v13496 = vsub.s32 %v13493, %v13495
  %v13497 = vrot.slane %v13458, %v13496
  %v13498 = vcombine.low %v13490, %v13497
  %13501 = vst [vmem:[%s13] sm:$0xff] %v13482
  %vm13502 = vcmask 1041408
  %vm13503 = vcmask 1043458
  %vm13504 = vmor %vm13503, %vm13502
  %vm13505 = vcmask 128004
  %vm13506 = vmor %vm13505, %vm13504
  %13507 = vst.msk [vmem:[%s13 + $0x8] sm:$0x3f] %vm13506, %v13498
  // Predicated region
  $region54: #{generator_forward.1} parent=0 // pred_check
    _
  $region55: #{generator_forward.1} parent=0 // pred_check_branch
    %13509 = sbr.rel (0) target = $region57
  $region56: #{generator_forward.1} parent=0 // pred_region
    _
  $region57: #{generator_forward.1} parent=0 // pred_fallthru
    _
  // Predicated region
  $region58: #{generator_forward.1} parent=0 // pred_check
    _
  $region59: #{generator_forward.1} parent=0 // pred_check_branch
    %13511 = sbr.rel (0) target = $region61
  $region60: #{generator_forward.1} parent=0 // pred_region
    _
  $region61: #{generator_forward.1} parent=0 // pred_fallthru
    _

</llo_original>
